<compile_context>
chip_gen: v7x
topology: tpu7x:2x2x1
jax: 0.10.0
libtpu: 0.0.40
codegen_flags: <defaults>
</compile_context>

<pallas_src>
import functools

import jax
import jax.numpy as jnp
from jax.experimental import pallas as pl
from jax.experimental.pallas import tpu as pltpu


# ----------------------------- Pallas kernels ------------------------------ #

def _conv_stage_kernel(s_ref, w1_ref, b1_ref, w2_ref, b2_ref, feat_ref,
                       pad1_ref, c2_ref, c2v_ref):
    # s_ref:  (1, 1024, 32)  conv1 patch strip for this image, rows ordered
    #                        (yi, xi, yo, xo) (pool-window parity outermost),
    #                        K = 27 real taps (dy,dx,cin) + 5 zero pad.
    # w1_ref: (32, 32)       conv1 weight  [k, cout]
    # w2_ref: (9, 32, 64)    conv2 weight  [tap, cin, cout]
    # feat_ref: (1, 64, 64)  pooled conv2 features [yo2*8+xo2, cout]
    # scratch: pad1_ref (328, 32), c2_ref (288, 64), c2v_ref (128, 64)

    # ---- conv1: one dense K=32 MXU dot; pool1 = max over the 4 parities ----
    x2d = s_ref[0]                                                 # (1024, 32)
    c1 = jnp.dot(x2d, w1_ref[...], preferred_element_type=jnp.float32)
    c1 = c1.reshape(4, 256, 32)          # leading-dim split: (parity, yo*16+xo, c)
    p1 = jnp.maximum(jnp.max(c1, axis=0) + b1_ref[...], 0.0)      # (256, 32)
    # (relu(max(pre)+b) == maxpool(relu(pre+b)) since bias is shared & relu monotone)

    # ---- scatter pool1 into a zero-padded 18x18 (pitch 18) VMEM buffer ----
    pad1_ref[...] = jnp.zeros_like(pad1_ref)
    for yy in range(16):
        pad1_ref[pl.ds((yy + 1) * 18 + 1, 16), :] = p1[yy * 16:(yy + 1) * 16, :]

    # ---- conv2: 9 shifted-window K=32 dots, accumulated in values (no VMEM RMW) ----
    def tap(k):
        dy, dx = divmod(k, 3)
        lhs = pad1_ref[pl.ds(dy * 18 + dx, 288), :]                # (288, 32)
        return jnp.dot(lhs, w2_ref[k], preferred_element_type=jnp.float32)

    acc = tap(0)
    for k in range(1, 9):
        acc = acc + tap(k)                                         # (288, 64)
    c2_ref[...] = acc        # rows = y2*18 + x2 (x2 in [0,18); cols 16,17 garbage)

    # ---- pool2: vertical pairs (contiguous slices), then horizontal pairs
    #      via stride-2 sublane reads; bias + relu fused after the max ----
    for yo in range(8):
        c2v_ref[pl.ds(16 * yo, 16), :] = jnp.maximum(
            c2_ref[pl.ds(36 * yo, 16), :],        # y2 = 2*yo,   x2 in [0,16)
            c2_ref[pl.ds(36 * yo + 18, 16), :])   # y2 = 2*yo+1, x2 in [0,16)
    even = c2v_ref[pl.ds(0, 64, stride=2), :]                      # (64, 64) x2 even
    odd = c2v_ref[pl.ds(1, 64, stride=2), :]                       # (64, 64) x2 odd
    feat_ref[0] = jnp.maximum(jnp.maximum(even, odd) + b2_ref[...], 0.0)


def _fc_kernel(x_ref, w1_ref, b1_ref, w2_ref, b2_ref, o_ref):
    # fc1 + relu + fc2 fused; single grid step, whole batch at once.
    h = jnp.maximum(
        jnp.dot(x_ref[...], w1_ref[...], preferred_element_type=jnp.float32)
        + b1_ref[...], 0.0)                                        # (N, 128)
    o_ref[...] = (jnp.dot(h, w2_ref[...], preferred_element_type=jnp.float32)
                  + b2_ref[...])                                   # (N, 128)


# ------------------------------ call wrappers ------------------------------ #

def conv_stage_pallas(s, w1, b1, w2, b2):
    """Fused conv1+relu+pool1+conv2+relu+pool2.  s: (N, 1024, 32) patch strip."""
    N = s.shape[0]
    return pl.pallas_call(
        _conv_stage_kernel,
        out_shape=jax.ShapeDtypeStruct((N, 64, 64), jnp.float32),
        grid=(N,),
        in_specs=[
            pl.BlockSpec((1, 1024, 32), lambda n: (n, 0, 0)),
            pl.BlockSpec((32, 32), lambda n: (0, 0)),
            pl.BlockSpec((1, 32), lambda n: (0, 0)),
            pl.BlockSpec((9, 32, 64), lambda n: (0, 0, 0)),
            pl.BlockSpec((1, 64), lambda n: (0, 0)),
        ],
        out_specs=pl.BlockSpec((1, 64, 64), lambda n: (n, 0, 0)),
        scratch_shapes=[
            pltpu.VMEM((328, 32), jnp.float32),   # zero-padded pool1 (pitch 18)
            pltpu.VMEM((288, 64), jnp.float32),   # conv2 pre-pool
            pltpu.VMEM((128, 64), jnp.float32),   # conv2 vertically pooled
        ],
        compiler_params=pltpu.CompilerParams(
            dimension_semantics=("parallel",)),
    )(s, w1, b1, w2, b2)


def fc_pallas(feat, w1, b1, w2, b2):
    """Fused fc1 + relu + fc2.  feat: (N, 4096); w1: (4096, 128) densified."""
    N = feat.shape[0]
    return pl.pallas_call(
        _fc_kernel,
        out_shape=jax.ShapeDtypeStruct((N, 128), jnp.float32),
        grid=(1,),
        in_specs=[
            pl.BlockSpec((N, 4096), lambda i: (0, 0)),
            pl.BlockSpec((4096, 128), lambda i: (0, 0)),
            pl.BlockSpec((1, 128), lambda i: (0, 0)),
            pl.BlockSpec((128, 128), lambda i: (0, 0)),
            pl.BlockSpec((1, 128), lambda i: (0, 0)),
        ],
        out_specs=pl.BlockSpec((N, 128), lambda i: (0, 0)),
        compiler_params=pltpu.CompilerParams(
            dimension_semantics=("arbitrary",)),
    )(feat, w1, b1, w2, b2)


# --------------------------- parameter re-layout --------------------------- #

def prepare_params(p):
    """One-time re-layout of PyTorch-style parameters for the kernels."""
    # conv1: (32, 3, 3, 3) -> (27, 32) rows k = (dy*3+dx)*3 + cin, padded to 32.
    w1 = jnp.transpose(jnp.asarray(p["conv1_w"], jnp.float32), (2, 3, 1, 0))
    w1 = jnp.pad(w1.reshape(27, 32), ((0, 5), (0, 0)))
    b1 = jnp.asarray(p["conv1_b"], jnp.float32).reshape(1, 32)
    # conv2: (64, 32, 3, 3) -> (9, 32, 64) per tap.
    w2 = jnp.transpose(jnp.asarray(p["conv2_w"], jnp.float32), (2, 3, 1, 0))
    w2 = w2.reshape(9, 32, 64)
    b2 = jnp.asarray(p["conv2_b"], jnp.float32).reshape(1, 64)
    # fc1: fold torch's NCHW flatten into a DENSIFIED (4096, 128) weight whose row
    # order matches the kernel feature layout idx = (h*8 + w)*64 + c.
    w_t = jnp.asarray(p["fc1_w"], jnp.float32).T                   # (4096, 128)
    cc, hh, ww = jnp.meshgrid(jnp.arange(64), jnp.arange(8), jnp.arange(8),
                              indexing="ij")
    torch_idx = (cc * 64 + hh * 8 + ww).reshape(-1)
    mine_idx = ((hh * 8 + ww) * 64 + cc).reshape(-1)
    fc1_w = jnp.zeros((4096, 128), jnp.float32).at[mine_idx].set(w_t[torch_idx])
    fc1_b = jnp.asarray(p["fc1_b"], jnp.float32).reshape(1, 128)
    # fc2: (out, 128) -> (128, 128) with output lanes zero-padded (lane-dense store).
    out_dim = p["fc2_w"].shape[0]
    fc2_w = jnp.zeros((128, 128), jnp.float32).at[:, :out_dim].set(
        jnp.asarray(p["fc2_w"], jnp.float32).T)
    fc2_b = jnp.zeros((1, 128), jnp.float32).at[0, :out_dim].set(
        jnp.asarray(p["fc2_b"], jnp.float32))
    return {"w1": w1, "b1": b1, "w2": w2, "b2": b2,
            "fc1_w": fc1_w, "fc1_b": fc1_b, "fc2_w": fc2_w, "fc2_b": fc2_b}


# ------------------------------ forward pass ------------------------------- #

def cnn_forward(x_nchw, ep, *, out_dim):
    N = x_nchw.shape[0]
    x = jnp.transpose(x_nchw, (0, 2, 3, 1))                        # NCHW -> NHWC
    xp = jnp.pad(x, ((0, 0), (1, 1), (1, 1), (0, 0)))              # (N, 34, 34, 3)

    # conv1 patch strip: K = 27 (dy,dx,cin) lane-packed -> pad 32; the 2x2-pool
    # parity (yi, xi) is made the outermost row order so pool1 is free in-kernel.
    taps = [xp[:, dy:dy + 32, dx:dx + 32, :]
            for dy in range(3) for dx in range(3)]
    s = jnp.concatenate(taps, axis=-1)                             # (N, 32, 32, 27)
    s = jnp.pad(s, ((0, 0), (0, 0), (0, 0), (0, 5)))               # (N, 32, 32, 32)
    s = s.reshape(N, 16, 2, 16, 2, 32).transpose(0, 2, 4, 1, 3, 5)
    s = s.reshape(N, 1024, 32)                                     # rows (yi,xi,yo,xo)

    feat = conv_stage_pallas(s, ep["w1"], ep["b1"], ep["w2"], ep["b2"])  # (N,64,64)
    feat = feat.reshape(N, 64 * 64)                                # free reshape

    out = fc_pallas(feat, ep["fc1_w"], ep["fc1_b"], ep["fc2_w"], ep["fc2_b"])
    return out[:, :out_dim]


# --------------------------- pure-JAX reference ----------------------------- #

def ref_forward(x_nchw, p):
    dn = ("NCHW", "OIHW", "NCHW")
    x = jax.lax.conv_general_dilated(x_nchw, p["conv1_w"], (1, 1), "SAME",
                                     dimension_numbers=dn)
    x = jax.nn.relu(x + p["conv1_b"][None, :, None, None])
    x = jax.lax.reduce_window(x, -jnp.inf, jax.lax.max,
                              (1, 1, 2, 2), (1, 1, 2, 2), "VALID")
    x = jax.lax.conv_general_dilated(x, p["conv2_w"], (1, 1), "SAME",
                                     dimension_numbers=dn)
    x = jax.nn.relu(x + p["conv2_b"][None, :, None, None])
    x = jax.lax.reduce_window(x, -jnp.inf, jax.lax.max,
                              (1, 1, 2, 2), (1, 1, 2, 2), "VALID")
    x = x.reshape(x.shape[0], -1)
    x = jax.nn.relu(x @ p["fc1_w"].T + p["fc1_b"])
    return x @ p["fc2_w"].T + p["fc2_b"]


def init_params(key, output_size=10):
    ks = jax.random.split(key, 8)
    n = lambda k, s, sc: (sc * jax.random.normal(k, s)).astype(jnp.float32)
    return {
        "conv1_w": n(ks[0], (32, 3, 3, 3), 0.10),
        "conv1_b": n(ks[1], (32,), 0.10),
        "conv2_w": n(ks[2], (64, 32, 3, 3), 0.05),
        "conv2_b": n(ks[3], (64,), 0.10),
        "fc1_w":   n(ks[4], (128, 64 * 8 * 8), 0.02),
        "fc1_b":   n(ks[5], (128,), 0.10),
        "fc2_w":   n(ks[6], (output_size, 128), 0.05),
        "fc2_b":   n(ks[7], (output_size,), 0.10),
    }


if __name__ == "__main__":
    key = jax.random.PRNGKey(0)
    pkey, xkey = jax.random.split(key)
    params = init_params(pkey, output_size=10)
    eparams = prepare_params(params)     # one-time weight re-layout (not per call)

    # fc1 expects 64*8*8 features => spatial must be 32x32 (CIFAR-10); batch = 2.
    x = jax.random.normal(xkey, (2, 3, 32, 32), dtype=jnp.float32)

    fwd = jax.jit(functools.partial(cnn_forward, out_dim=10))
    out = jax.block_until_ready(fwd(x, eparams))
    ref = jax.block_until_ready(ref_forward(x, params))

    assert out.shape == (2, 10), out.shape
    assert jnp.allclose(out, ref, atol=1e-3, rtol=1e-3), float(
        jnp.max(jnp.abs(out - ref)))
    print("KERNEL_OK")
</pallas_src>

<mosaic_0001>
module attributes {stable_mosaic.version = 11 : i64} {
  func.func @_conv_stage_kernel(%arg0: i32, %arg1: memref<1x1024x32xf32, #tpu.memory_space<vmem>>, %arg2: memref<32x32xf32, #tpu.memory_space<vmem>>, %arg3: memref<1x32xf32, #tpu.memory_space<vmem>>, %arg4: memref<9x32x64xf32, #tpu.memory_space<vmem>>, %arg5: memref<1x64xf32, #tpu.memory_space<vmem>>, %arg6: memref<1x64x64xf32, #tpu.memory_space<vmem>>, %arg7: memref<328x32xf32, #tpu.memory_space<vmem>>, %arg8: memref<288x64xf32, #tpu.memory_space<vmem>>, %arg9: memref<128x64xf32, #tpu.memory_space<vmem>>) attributes {dimension_semantics = [#tpu.dimension_semantics<parallel>], iteration_bounds = array<i64: 2>, scalar_prefetch = 0 : i64, scratch_operands = 3 : i64, tpu.core_type = #tpu.core_type<tc>, window_params = [{transform_indices = @transform_0, window_bounds = array<i64: 1, 1024, 32>}, {pipeline_mode = #tpu.pipeline_mode<synchronous>, transform_indices = @transform_1, window_bounds = array<i64: 32, 32>}, {pipeline_mode = #tpu.pipeline_mode<synchronous>, transform_indices = @transform_2, window_bounds = array<i64: 1, 32>}, {pipeline_mode = #tpu.pipeline_mode<synchronous>, transform_indices = @transform_3, window_bounds = array<i64: 9, 32, 64>}, {pipeline_mode = #tpu.pipeline_mode<synchronous>, transform_indices = @transform_4, window_bounds = array<i64: 1, 64>}, {transform_indices = @transform_5, window_bounds = array<i64: 1, 64, 64>}]} {
    %c0 = arith.constant 0 : index
    %c0_0 = arith.constant 0 : index
    %c0_1 = arith.constant 0 : index
    %0 = vector.load %arg1[%c0, %c0_0, %c0_1] : memref<1x1024x32xf32, #tpu.memory_space<vmem>>, vector<1x1024x32xf32>
    %1 = vector.shape_cast %0 : vector<1x1024x32xf32> to vector<1024x32xf32>
    %c0_2 = arith.constant 0 : index
    %c0_3 = arith.constant 0 : index
    %2 = vector.load %arg2[%c0_2, %c0_3] : memref<32x32xf32, #tpu.memory_space<vmem>>, vector<32x32xf32>
    %cst = arith.constant dense<0.000000e+00> : vector<1024x32xf32>
    %3 = tpu.matmul %1, %2, %cst {dimension_numbers = #tpu.dot_dimension_numbers<[1], [0], [0], [1], [0, 0, 1, 1], [], []>} : vector<1024x32xf32>, vector<32x32xf32>, vector<1024x32xf32> -> vector<1024x32xf32>
    %4 = vector.shape_cast %3 : vector<1024x32xf32> to vector<4x256x32xf32>
    %cst_4 = arith.constant dense<0xFF800000> : vector<256x32xf32>
    %5 = vector.multi_reduction <maximumf>, %4, %cst_4 [0] : vector<4x256x32xf32> to vector<256x32xf32>
    %c0_5 = arith.constant 0 : index
    %c0_6 = arith.constant 0 : index
    %6 = vector.load %arg3[%c0_5, %c0_6] : memref<1x32xf32, #tpu.memory_space<vmem>>, vector<1x32xf32>
    %7 = vector.broadcast %6 : vector<1x32xf32> to vector<256x32xf32>
    %8 = arith.addf %5, %7 : vector<256x32xf32>
    %cst_7 = arith.constant 0.000000e+00 : f32
    %9 = vector.broadcast %cst_7 : f32 to vector<256x32xf32>
    %10 = arith.maximumf %8, %9 : vector<256x32xf32>
    %cst_8 = arith.constant 0.000000e+00 : f32
    %11 = vector.broadcast %cst_8 : f32 to vector<328x32xf32>
    %c0_9 = arith.constant 0 : index
    %c0_10 = arith.constant 0 : index
    %12 = vector.load %arg7[%c0_9, %c0_10] : memref<328x32xf32, #tpu.memory_space<vmem>>, vector<328x32xf32>
    tpu.vector_store %arg7[%c0_9, %c0_10], %11 {strides = array<i32>} : memref<328x32xf32, #tpu.memory_space<vmem>>, vector<328x32xf32>,
    %13 = vector.extract_strided_slice %10 {offsets = [0, 0], sizes = [16, 32], strides = [1, 1]} : vector<256x32xf32> to vector<16x32xf32>
    %c19 = arith.constant 19 : index
    %c0_11 = arith.constant 0 : index
    %14 = vector.load %arg7[%c19, %c0_11] : memref<328x32xf32, #tpu.memory_space<vmem>>, vector<16x32xf32>
    tpu.vector_store %arg7[%c19, %c0_11], %13 {strides = array<i32>} : memref<328x32xf32, #tpu.memory_space<vmem>>, vector<16x32xf32>,
    %15 = vector.extract_strided_slice %10 {offsets = [16, 0], sizes = [16, 32], strides = [1, 1]} : vector<256x32xf32> to vector<16x32xf32>
    %c37 = arith.constant 37 : index
    %c0_12 = arith.constant 0 : index
    %16 = vector.load %arg7[%c37, %c0_12] : memref<328x32xf32, #tpu.memory_space<vmem>>, vector<16x32xf32>
    tpu.vector_store %arg7[%c37, %c0_12], %15 {strides = array<i32>} : memref<328x32xf32, #tpu.memory_space<vmem>>, vector<16x32xf32>,
    %17 = vector.extract_strided_slice %10 {offsets = [32, 0], sizes = [16, 32], strides = [1, 1]} : vector<256x32xf32> to vector<16x32xf32>
    %c55 = arith.constant 55 : index
    %c0_13 = arith.constant 0 : index
    %18 = vector.load %arg7[%c55, %c0_13] : memref<328x32xf32, #tpu.memory_space<vmem>>, vector<16x32xf32>
    tpu.vector_store %arg7[%c55, %c0_13], %17 {strides = array<i32>} : memref<328x32xf32, #tpu.memory_space<vmem>>, vector<16x32xf32>,
    %19 = vector.extract_strided_slice %10 {offsets = [48, 0], sizes = [16, 32], strides = [1, 1]} : vector<256x32xf32> to vector<16x32xf32>
    %c73 = arith.constant 73 : index
    %c0_14 = arith.constant 0 : index
    %20 = vector.load %arg7[%c73, %c0_14] : memref<328x32xf32, #tpu.memory_space<vmem>>, vector<16x32xf32>
    tpu.vector_store %arg7[%c73, %c0_14], %19 {strides = array<i32>} : memref<328x32xf32, #tpu.memory_space<vmem>>, vector<16x32xf32>,
    %21 = vector.extract_strided_slice %10 {offsets = [64, 0], sizes = [16, 32], strides = [1, 1]} : vector<256x32xf32> to vector<16x32xf32>
    %c91 = arith.constant 91 : index
    %c0_15 = arith.constant 0 : index
    %22 = vector.load %arg7[%c91, %c0_15] : memref<328x32xf32, #tpu.memory_space<vmem>>, vector<16x32xf32>
    tpu.vector_store %arg7[%c91, %c0_15], %21 {strides = array<i32>} : memref<328x32xf32, #tpu.memory_space<vmem>>, vector<16x32xf32>,
    %23 = vector.extract_strided_slice %10 {offsets = [80, 0], sizes = [16, 32], strides = [1, 1]} : vector<256x32xf32> to vector<16x32xf32>
    %c109 = arith.constant 109 : index
    %c0_16 = arith.constant 0 : index
    %24 = vector.load %arg7[%c109, %c0_16] : memref<328x32xf32, #tpu.memory_space<vmem>>, vector<16x32xf32>
    tpu.vector_store %arg7[%c109, %c0_16], %23 {strides = array<i32>} : memref<328x32xf32, #tpu.memory_space<vmem>>, vector<16x32xf32>,
    %25 = vector.extract_strided_slice %10 {offsets = [96, 0], sizes = [16, 32], strides = [1, 1]} : vector<256x32xf32> to vector<16x32xf32>
    %c127 = arith.constant 127 : index
    %c0_17 = arith.constant 0 : index
    %26 = vector.load %arg7[%c127, %c0_17] : memref<328x32xf32, #tpu.memory_space<vmem>>, vector<16x32xf32>
    tpu.vector_store %arg7[%c127, %c0_17], %25 {strides = array<i32>} : memref<328x32xf32, #tpu.memory_space<vmem>>, vector<16x32xf32>,
    %27 = vector.extract_strided_slice %10 {offsets = [112, 0], sizes = [16, 32], strides = [1, 1]} : vector<256x32xf32> to vector<16x32xf32>
    %c145 = arith.constant 145 : index
    %c0_18 = arith.constant 0 : index
    %28 = vector.load %arg7[%c145, %c0_18] : memref<328x32xf32, #tpu.memory_space<vmem>>, vector<16x32xf32>
    tpu.vector_store %arg7[%c145, %c0_18], %27 {strides = array<i32>} : memref<328x32xf32, #tpu.memory_space<vmem>>, vector<16x32xf32>,
    %29 = vector.extract_strided_slice %10 {offsets = [128, 0], sizes = [16, 32], strides = [1, 1]} : vector<256x32xf32> to vector<16x32xf32>
    %c163 = arith.constant 163 : index
    %c0_19 = arith.constant 0 : index
    %30 = vector.load %arg7[%c163, %c0_19] : memref<328x32xf32, #tpu.memory_space<vmem>>, vector<16x32xf32>
    tpu.vector_store %arg7[%c163, %c0_19], %29 {strides = array<i32>} : memref<328x32xf32, #tpu.memory_space<vmem>>, vector<16x32xf32>,
    %31 = vector.extract_strided_slice %10 {offsets = [144, 0], sizes = [16, 32], strides = [1, 1]} : vector<256x32xf32> to vector<16x32xf32>
    %c181 = arith.constant 181 : index
    %c0_20 = arith.constant 0 : index
    %32 = vector.load %arg7[%c181, %c0_20] : memref<328x32xf32, #tpu.memory_space<vmem>>, vector<16x32xf32>
    tpu.vector_store %arg7[%c181, %c0_20], %31 {strides = array<i32>} : memref<328x32xf32, #tpu.memory_space<vmem>>, vector<16x32xf32>,
    %33 = vector.extract_strided_slice %10 {offsets = [160, 0], sizes = [16, 32], strides = [1, 1]} : vector<256x32xf32> to vector<16x32xf32>
    %c199 = arith.constant 199 : index
    %c0_21 = arith.constant 0 : index
    %34 = vector.load %arg7[%c199, %c0_21] : memref<328x32xf32, #tpu.memory_space<vmem>>, vector<16x32xf32>
    tpu.vector_store %arg7[%c199, %c0_21], %33 {strides = array<i32>} : memref<328x32xf32, #tpu.memory_space<vmem>>, vector<16x32xf32>,
    %35 = vector.extract_strided_slice %10 {offsets = [176, 0], sizes = [16, 32], strides = [1, 1]} : vector<256x32xf32> to vector<16x32xf32>
    %c217 = arith.constant 217 : index
    %c0_22 = arith.constant 0 : index
    %36 = vector.load %arg7[%c217, %c0_22] : memref<328x32xf32, #tpu.memory_space<vmem>>, vector<16x32xf32>
    tpu.vector_store %arg7[%c217, %c0_22], %35 {strides = array<i32>} : memref<328x32xf32, #tpu.memory_space<vmem>>, vector<16x32xf32>,
    %37 = vector.extract_strided_slice %10 {offsets = [192, 0], sizes = [16, 32], strides = [1, 1]} : vector<256x32xf32> to vector<16x32xf32>
    %c235 = arith.constant 235 : index
    %c0_23 = arith.constant 0 : index
    %38 = vector.load %arg7[%c235, %c0_23] : memref<328x32xf32, #tpu.memory_space<vmem>>, vector<16x32xf32>
    tpu.vector_store %arg7[%c235, %c0_23], %37 {strides = array<i32>} : memref<328x32xf32, #tpu.memory_space<vmem>>, vector<16x32xf32>,
    %39 = vector.extract_strided_slice %10 {offsets = [208, 0], sizes = [16, 32], strides = [1, 1]} : vector<256x32xf32> to vector<16x32xf32>
    %c253 = arith.constant 253 : index
    %c0_24 = arith.constant 0 : index
    %40 = vector.load %arg7[%c253, %c0_24] : memref<328x32xf32, #tpu.memory_space<vmem>>, vector<16x32xf32>
    tpu.vector_store %arg7[%c253, %c0_24], %39 {strides = array<i32>} : memref<328x32xf32, #tpu.memory_space<vmem>>, vector<16x32xf32>,
    %41 = vector.extract_strided_slice %10 {offsets = [224, 0], sizes = [16, 32], strides = [1, 1]} : vector<256x32xf32> to vector<16x32xf32>
    %c271 = arith.constant 271 : index
    %c0_25 = arith.constant 0 : index
    %42 = vector.load %arg7[%c271, %c0_25] : memref<328x32xf32, #tpu.memory_space<vmem>>, vector<16x32xf32>
    tpu.vector_store %arg7[%c271, %c0_25], %41 {strides = array<i32>} : memref<328x32xf32, #tpu.memory_space<vmem>>, vector<16x32xf32>,
    %43 = vector.extract_strided_slice %10 {offsets = [240, 0], sizes = [16, 32], strides = [1, 1]} : vector<256x32xf32> to vector<16x32xf32>
    %c289 = arith.constant 289 : index
    %c0_26 = arith.constant 0 : index
    %44 = vector.load %arg7[%c289, %c0_26] : memref<328x32xf32, #tpu.memory_space<vmem>>, vector<16x32xf32>
    tpu.vector_store %arg7[%c289, %c0_26], %43 {strides = array<i32>} : memref<328x32xf32, #tpu.memory_space<vmem>>, vector<16x32xf32>,
    %c0_27 = arith.constant 0 : index
    %c0_28 = arith.constant 0 : index
    %45 = vector.load %arg7[%c0_27, %c0_28] : memref<328x32xf32, #tpu.memory_space<vmem>>, vector<288x32xf32>
    %c0_29 = arith.constant 0 : index
    %c0_30 = arith.constant 0 : index
    %c0_31 = arith.constant 0 : index
    %46 = vector.load %arg4[%c0_29, %c0_30, %c0_31] : memref<9x32x64xf32, #tpu.memory_space<vmem>>, vector<1x32x64xf32>
    %47 = vector.shape_cast %46 : vector<1x32x64xf32> to vector<32x64xf32>
    %cst_32 = arith.constant dense<0.000000e+00> : vector<288x64xf32>
    %48 = tpu.matmul %45, %47, %cst_32 {dimension_numbers = #tpu.dot_dimension_numbers<[1], [0], [0], [1], [0, 0, 1, 1], [], []>} : vector<288x32xf32>, vector<32x64xf32>, vector<288x64xf32> -> vector<288x64xf32>
    %c1 = arith.constant 1 : index
    %c0_33 = arith.constant 0 : index
    %49 = vector.load %arg7[%c1, %c0_33] : memref<328x32xf32, #tpu.memory_space<vmem>>, vector<288x32xf32>
    %c1_34 = arith.constant 1 : index
    %c0_35 = arith.constant 0 : index
    %c0_36 = arith.constant 0 : index
    %50 = vector.load %arg4[%c1_34, %c0_35, %c0_36] : memref<9x32x64xf32, #tpu.memory_space<vmem>>, vector<1x32x64xf32>
    %51 = vector.shape_cast %50 : vector<1x32x64xf32> to vector<32x64xf32>
    %cst_37 = arith.constant dense<0.000000e+00> : vector<288x64xf32>
    %52 = tpu.matmul %49, %51, %cst_37 {dimension_numbers = #tpu.dot_dimension_numbers<[1], [0], [0], [1], [0, 0, 1, 1], [], []>} : vector<288x32xf32>, vector<32x64xf32>, vector<288x64xf32> -> vector<288x64xf32>
    %53 = arith.addf %48, %52 : vector<288x64xf32>
    %c2 = arith.constant 2 : index
    %c0_38 = arith.constant 0 : index
    %54 = vector.load %arg7[%c2, %c0_38] : memref<328x32xf32, #tpu.memory_space<vmem>>, vector<288x32xf32>
    %c2_39 = arith.constant 2 : index
    %c0_40 = arith.constant 0 : index
    %c0_41 = arith.constant 0 : index
    %55 = vector.load %arg4[%c2_39, %c0_40, %c0_41] : memref<9x32x64xf32, #tpu.memory_space<vmem>>, vector<1x32x64xf32>
    %56 = vector.shape_cast %55 : vector<1x32x64xf32> to vector<32x64xf32>
    %cst_42 = arith.constant dense<0.000000e+00> : vector<288x64xf32>
    %57 = tpu.matmul %54, %56, %cst_42 {dimension_numbers = #tpu.dot_dimension_numbers<[1], [0], [0], [1], [0, 0, 1, 1], [], []>} : vector<288x32xf32>, vector<32x64xf32>, vector<288x64xf32> -> vector<288x64xf32>
    %58 = arith.addf %53, %57 : vector<288x64xf32>
    %c18 = arith.constant 18 : index
    %c0_43 = arith.constant 0 : index
    %59 = vector.load %arg7[%c18, %c0_43] : memref<328x32xf32, #tpu.memory_space<vmem>>, vector<288x32xf32>
    %c3 = arith.constant 3 : index
    %c0_44 = arith.constant 0 : index
    %c0_45 = arith.constant 0 : index
    %60 = vector.load %arg4[%c3, %c0_44, %c0_45] : memref<9x32x64xf32, #tpu.memory_space<vmem>>, vector<1x32x64xf32>
    %61 = vector.shape_cast %60 : vector<1x32x64xf32> to vector<32x64xf32>
    %cst_46 = arith.constant dense<0.000000e+00> : vector<288x64xf32>
    %62 = tpu.matmul %59, %61, %cst_46 {dimension_numbers = #tpu.dot_dimension_numbers<[1], [0], [0], [1], [0, 0, 1, 1], [], []>} : vector<288x32xf32>, vector<32x64xf32>, vector<288x64xf32> -> vector<288x64xf32>
    %63 = arith.addf %58, %62 : vector<288x64xf32>
    %c19_47 = arith.constant 19 : index
    %c0_48 = arith.constant 0 : index
    %64 = vector.load %arg7[%c19_47, %c0_48] : memref<328x32xf32, #tpu.memory_space<vmem>>, vector<288x32xf32>
    %c4 = arith.constant 4 : index
    %c0_49 = arith.constant 0 : index
    %c0_50 = arith.constant 0 : index
    %65 = vector.load %arg4[%c4, %c0_49, %c0_50] : memref<9x32x64xf32, #tpu.memory_space<vmem>>, vector<1x32x64xf32>
    %66 = vector.shape_cast %65 : vector<1x32x64xf32> to vector<32x64xf32>
    %cst_51 = arith.constant dense<0.000000e+00> : vector<288x64xf32>
    %67 = tpu.matmul %64, %66, %cst_51 {dimension_numbers = #tpu.dot_dimension_numbers<[1], [0], [0], [1], [0, 0, 1, 1], [], []>} : vector<288x32xf32>, vector<32x64xf32>, vector<288x64xf32> -> vector<288x64xf32>
    %68 = arith.addf %63, %67 : vector<288x64xf32>
    %c20 = arith.constant 20 : index
    %c0_52 = arith.constant 0 : index
    %69 = vector.load %arg7[%c20, %c0_52] : memref<328x32xf32, #tpu.memory_space<vmem>>, vector<288x32xf32>
    %c5 = arith.constant 5 : index
    %c0_53 = arith.constant 0 : index
    %c0_54 = arith.constant 0 : index
    %70 = vector.load %arg4[%c5, %c0_53, %c0_54] : memref<9x32x64xf32, #tpu.memory_space<vmem>>, vector<1x32x64xf32>
    %71 = vector.shape_cast %70 : vector<1x32x64xf32> to vector<32x64xf32>
    %cst_55 = arith.constant dense<0.000000e+00> : vector<288x64xf32>
    %72 = tpu.matmul %69, %71, %cst_55 {dimension_numbers = #tpu.dot_dimension_numbers<[1], [0], [0], [1], [0, 0, 1, 1], [], []>} : vector<288x32xf32>, vector<32x64xf32>, vector<288x64xf32> -> vector<288x64xf32>
    %73 = arith.addf %68, %72 : vector<288x64xf32>
    %c36 = arith.constant 36 : index
    %c0_56 = arith.constant 0 : index
    %74 = vector.load %arg7[%c36, %c0_56] : memref<328x32xf32, #tpu.memory_space<vmem>>, vector<288x32xf32>
    %c6 = arith.constant 6 : index
    %c0_57 = arith.constant 0 : index
    %c0_58 = arith.constant 0 : index
    %75 = vector.load %arg4[%c6, %c0_57, %c0_58] : memref<9x32x64xf32, #tpu.memory_space<vmem>>, vector<1x32x64xf32>
    %76 = vector.shape_cast %75 : vector<1x32x64xf32> to vector<32x64xf32>
    %cst_59 = arith.constant dense<0.000000e+00> : vector<288x64xf32>
    %77 = tpu.matmul %74, %76, %cst_59 {dimension_numbers = #tpu.dot_dimension_numbers<[1], [0], [0], [1], [0, 0, 1, 1], [], []>} : vector<288x32xf32>, vector<32x64xf32>, vector<288x64xf32> -> vector<288x64xf32>
    %78 = arith.addf %73, %77 : vector<288x64xf32>
    %c37_60 = arith.constant 37 : index
    %c0_61 = arith.constant 0 : index
    %79 = vector.load %arg7[%c37_60, %c0_61] : memref<328x32xf32, #tpu.memory_space<vmem>>, vector<288x32xf32>
    %c7 = arith.constant 7 : index
    %c0_62 = arith.constant 0 : index
    %c0_63 = arith.constant 0 : index
    %80 = vector.load %arg4[%c7, %c0_62, %c0_63] : memref<9x32x64xf32, #tpu.memory_space<vmem>>, vector<1x32x64xf32>
    %81 = vector.shape_cast %80 : vector<1x32x64xf32> to vector<32x64xf32>
    %cst_64 = arith.constant dense<0.000000e+00> : vector<288x64xf32>
    %82 = tpu.matmul %79, %81, %cst_64 {dimension_numbers = #tpu.dot_dimension_numbers<[1], [0], [0], [1], [0, 0, 1, 1], [], []>} : vector<288x32xf32>, vector<32x64xf32>, vector<288x64xf32> -> vector<288x64xf32>
    %83 = arith.addf %78, %82 : vector<288x64xf32>
    %c38 = arith.constant 38 : index
    %c0_65 = arith.constant 0 : index
    %84 = vector.load %arg7[%c38, %c0_65] : memref<328x32xf32, #tpu.memory_space<vmem>>, vector<288x32xf32>
    %c8 = arith.constant 8 : index
    %c0_66 = arith.constant 0 : index
    %c0_67 = arith.constant 0 : index
    %85 = vector.load %arg4[%c8, %c0_66, %c0_67] : memref<9x32x64xf32, #tpu.memory_space<vmem>>, vector<1x32x64xf32>
    %86 = vector.shape_cast %85 : vector<1x32x64xf32> to vector<32x64xf32>
    %cst_68 = arith.constant dense<0.000000e+00> : vector<288x64xf32>
    %87 = tpu.matmul %84, %86, %cst_68 {dimension_numbers = #tpu.dot_dimension_numbers<[1], [0], [0], [1], [0, 0, 1, 1], [], []>} : vector<288x32xf32>, vector<32x64xf32>, vector<288x64xf32> -> vector<288x64xf32>
    %88 = arith.addf %83, %87 : vector<288x64xf32>
    %c0_69 = arith.constant 0 : index
    %c0_70 = arith.constant 0 : index
    %89 = vector.load %arg8[%c0_69, %c0_70] : memref<288x64xf32, #tpu.memory_space<vmem>>, vector<288x64xf32>
    tpu.vector_store %arg8[%c0_69, %c0_70], %88 {strides = array<i32>} : memref<288x64xf32, #tpu.memory_space<vmem>>, vector<288x64xf32>,
    %c0_71 = arith.constant 0 : index
    %c0_72 = arith.constant 0 : index
    %90 = vector.load %arg8[%c0_71, %c0_72] : memref<288x64xf32, #tpu.memory_space<vmem>>, vector<16x64xf32>
    %c18_73 = arith.constant 18 : index
    %c0_74 = arith.constant 0 : index
    %91 = vector.load %arg8[%c18_73, %c0_74] : memref<288x64xf32, #tpu.memory_space<vmem>>, vector<16x64xf32>
    %92 = arith.maximumf %90, %91 : vector<16x64xf32>
    %c0_75 = arith.constant 0 : index
    %c0_76 = arith.constant 0 : index
    %93 = vector.load %arg9[%c0_75, %c0_76] : memref<128x64xf32, #tpu.memory_space<vmem>>, vector<16x64xf32>
    tpu.vector_store %arg9[%c0_75, %c0_76], %92 {strides = array<i32>} : memref<128x64xf32, #tpu.memory_space<vmem>>, vector<16x64xf32>,
    %c36_77 = arith.constant 36 : index
    %c0_78 = arith.constant 0 : index
    %94 = vector.load %arg8[%c36_77, %c0_78] : memref<288x64xf32, #tpu.memory_space<vmem>>, vector<16x64xf32>
    %c54 = arith.constant 54 : index
    %c0_79 = arith.constant 0 : index
    %95 = vector.load %arg8[%c54, %c0_79] : memref<288x64xf32, #tpu.memory_space<vmem>>, vector<16x64xf32>
    %96 = arith.maximumf %94, %95 : vector<16x64xf32>
    %c16 = arith.constant 16 : index
    %c0_80 = arith.constant 0 : index
    %97 = vector.load %arg9[%c16, %c0_80] : memref<128x64xf32, #tpu.memory_space<vmem>>, vector<16x64xf32>
    tpu.vector_store %arg9[%c16, %c0_80], %96 {strides = array<i32>} : memref<128x64xf32, #tpu.memory_space<vmem>>, vector<16x64xf32>,
    %c72 = arith.constant 72 : index
    %c0_81 = arith.constant 0 : index
    %98 = vector.load %arg8[%c72, %c0_81] : memref<288x64xf32, #tpu.memory_space<vmem>>, vector<16x64xf32>
    %c90 = arith.constant 90 : index
    %c0_82 = arith.constant 0 : index
    %99 = vector.load %arg8[%c90, %c0_82] : memref<288x64xf32, #tpu.memory_space<vmem>>, vector<16x64xf32>
    %100 = arith.maximumf %98, %99 : vector<16x64xf32>
    %c32 = arith.constant 32 : index
    %c0_83 = arith.constant 0 : index
    %101 = vector.load %arg9[%c32, %c0_83] : memref<128x64xf32, #tpu.memory_space<vmem>>, vector<16x64xf32>
    tpu.vector_store %arg9[%c32, %c0_83], %100 {strides = array<i32>} : memref<128x64xf32, #tpu.memory_space<vmem>>, vector<16x64xf32>,
    %c108 = arith.constant 108 : index
    %c0_84 = arith.constant 0 : index
    %102 = vector.load %arg8[%c108, %c0_84] : memref<288x64xf32, #tpu.memory_space<vmem>>, vector<16x64xf32>
    %c126 = arith.constant 126 : index
    %c0_85 = arith.constant 0 : index
    %103 = vector.load %arg8[%c126, %c0_85] : memref<288x64xf32, #tpu.memory_space<vmem>>, vector<16x64xf32>
    %104 = arith.maximumf %102, %103 : vector<16x64xf32>
    %c48 = arith.constant 48 : index
    %c0_86 = arith.constant 0 : index
    %105 = vector.load %arg9[%c48, %c0_86] : memref<128x64xf32, #tpu.memory_space<vmem>>, vector<16x64xf32>
    tpu.vector_store %arg9[%c48, %c0_86], %104 {strides = array<i32>} : memref<128x64xf32, #tpu.memory_space<vmem>>, vector<16x64xf32>,
    %c144 = arith.constant 144 : index
    %c0_87 = arith.constant 0 : index
    %106 = vector.load %arg8[%c144, %c0_87] : memref<288x64xf32, #tpu.memory_space<vmem>>, vector<16x64xf32>
    %c162 = arith.constant 162 : index
    %c0_88 = arith.constant 0 : index
    %107 = vector.load %arg8[%c162, %c0_88] : memref<288x64xf32, #tpu.memory_space<vmem>>, vector<16x64xf32>
    %108 = arith.maximumf %106, %107 : vector<16x64xf32>
    %c64 = arith.constant 64 : index
    %c0_89 = arith.constant 0 : index
    %109 = vector.load %arg9[%c64, %c0_89] : memref<128x64xf32, #tpu.memory_space<vmem>>, vector<16x64xf32>
    tpu.vector_store %arg9[%c64, %c0_89], %108 {strides = array<i32>} : memref<128x64xf32, #tpu.memory_space<vmem>>, vector<16x64xf32>,
    %c180 = arith.constant 180 : index
    %c0_90 = arith.constant 0 : index
    %110 = vector.load %arg8[%c180, %c0_90] : memref<288x64xf32, #tpu.memory_space<vmem>>, vector<16x64xf32>
    %c198 = arith.constant 198 : index
    %c0_91 = arith.constant 0 : index
    %111 = vector.load %arg8[%c198, %c0_91] : memref<288x64xf32, #tpu.memory_space<vmem>>, vector<16x64xf32>
    %112 = arith.maximumf %110, %111 : vector<16x64xf32>
    %c80 = arith.constant 80 : index
    %c0_92 = arith.constant 0 : index
    %113 = vector.load %arg9[%c80, %c0_92] : memref<128x64xf32, #tpu.memory_space<vmem>>, vector<16x64xf32>
    tpu.vector_store %arg9[%c80, %c0_92], %112 {strides = array<i32>} : memref<128x64xf32, #tpu.memory_space<vmem>>, vector<16x64xf32>,
    %c216 = arith.constant 216 : index
    %c0_93 = arith.constant 0 : index
    %114 = vector.load %arg8[%c216, %c0_93] : memref<288x64xf32, #tpu.memory_space<vmem>>, vector<16x64xf32>
    %c234 = arith.constant 234 : index
    %c0_94 = arith.constant 0 : index
    %115 = vector.load %arg8[%c234, %c0_94] : memref<288x64xf32, #tpu.memory_space<vmem>>, vector<16x64xf32>
    %116 = arith.maximumf %114, %115 : vector<16x64xf32>
    %c96 = arith.constant 96 : index
    %c0_95 = arith.constant 0 : index
    %117 = vector.load %arg9[%c96, %c0_95] : memref<128x64xf32, #tpu.memory_space<vmem>>, vector<16x64xf32>
    tpu.vector_store %arg9[%c96, %c0_95], %116 {strides = array<i32>} : memref<128x64xf32, #tpu.memory_space<vmem>>, vector<16x64xf32>,
    %c252 = arith.constant 252 : index
    %c0_96 = arith.constant 0 : index
    %118 = vector.load %arg8[%c252, %c0_96] : memref<288x64xf32, #tpu.memory_space<vmem>>, vector<16x64xf32>
    %c270 = arith.constant 270 : index
    %c0_97 = arith.constant 0 : index
    %119 = vector.load %arg8[%c270, %c0_97] : memref<288x64xf32, #tpu.memory_space<vmem>>, vector<16x64xf32>
    %120 = arith.maximumf %118, %119 : vector<16x64xf32>
    %c112 = arith.constant 112 : index
    %c0_98 = arith.constant 0 : index
    %121 = vector.load %arg9[%c112, %c0_98] : memref<128x64xf32, #tpu.memory_space<vmem>>, vector<16x64xf32>
    tpu.vector_store %arg9[%c112, %c0_98], %120 {strides = array<i32>} : memref<128x64xf32, #tpu.memory_space<vmem>>, vector<16x64xf32>,
    %c0_99 = arith.constant 0 : index
    %c0_100 = arith.constant 0 : index
    %122 = tpu.strided_load %arg9[%c0_99, %c0_100] {strides = array<i32: 2, 1>} : memref<128x64xf32, #tpu.memory_space<vmem>>, vector<64x64xf32>
    %c1_101 = arith.constant 1 : index
    %c0_102 = arith.constant 0 : index
    %123 = tpu.strided_load %arg9[%c1_101, %c0_102] {strides = array<i32: 2, 1>} : memref<128x64xf32, #tpu.memory_space<vmem>>, vector<64x64xf32>
    %124 = arith.maximumf %122, %123 : vector<64x64xf32>
    %c0_103 = arith.constant 0 : index
    %c0_104 = arith.constant 0 : index
    %125 = vector.load %arg5[%c0_103, %c0_104] : memref<1x64xf32, #tpu.memory_space<vmem>>, vector<1x64xf32>
    %126 = vector.broadcast %125 : vector<1x64xf32> to vector<64x64xf32>
    %127 = arith.addf %124, %126 : vector<64x64xf32>
    %cst_105 = arith.constant 0.000000e+00 : f32
    %128 = vector.broadcast %cst_105 : f32 to vector<64x64xf32>
    %129 = arith.maximumf %127, %128 : vector<64x64xf32>
    %c0_106 = arith.constant 0 : index
    %c0_107 = arith.constant 0 : index
    %c0_108 = arith.constant 0 : index
    %130 = vector.load %arg6[%c0_106, %c0_107, %c0_108] : memref<1x64x64xf32, #tpu.memory_space<vmem>>, vector<1x64x64xf32>
    %131 = vector.shape_cast %130 : vector<1x64x64xf32> to vector<64x64xf32>
    %132 = vector.shape_cast %129 : vector<64x64xf32> to vector<1x64x64xf32>
    tpu.vector_store %arg6[%c0_106, %c0_107, %c0_108], %132 {strides = array<i32>} : memref<1x64x64xf32, #tpu.memory_space<vmem>>, vector<1x64x64xf32>,
    return
  }
  func.func @transform_0(%arg0: i32) -> (i32, i32, i32) {
    %c0_i32 = arith.constant 0 : i32
    %c0_i32_0 = arith.constant 0 : i32
    %c0_i32_1 = arith.constant 0 : i32
    return %arg0, %c0_i32, %c0_i32_0 : i32, i32, i32
  }
  func.func @transform_1(%arg0: i32) -> (i32, i32) {
    %c0_i32 = arith.constant 0 : i32
    %c0_i32_0 = arith.constant 0 : i32
    %c0_i32_1 = arith.constant 0 : i32
    return %c0_i32, %c0_i32_0 : i32, i32
  }
  func.func @transform_2(%arg0: i32) -> (i32, i32) {
    %c0_i32 = arith.constant 0 : i32
    %c0_i32_0 = arith.constant 0 : i32
    %c0_i32_1 = arith.constant 0 : i32
    return %c0_i32, %c0_i32_0 : i32, i32
  }
  func.func @transform_3(%arg0: i32) -> (i32, i32, i32) {
    %c0_i32 = arith.constant 0 : i32
    %c0_i32_0 = arith.constant 0 : i32
    %c0_i32_1 = arith.constant 0 : i32
    %c0_i32_2 = arith.constant 0 : i32
    return %c0_i32, %c0_i32_0, %c0_i32_1 : i32, i32, i32
  }
  func.func @transform_4(%arg0: i32) -> (i32, i32) {
    %c0_i32 = arith.constant 0 : i32
    %c0_i32_0 = arith.constant 0 : i32
    %c0_i32_1 = arith.constant 0 : i32
    return %c0_i32, %c0_i32_0 : i32, i32
  }
  func.func @transform_5(%arg0: i32) -> (i32, i32, i32) {
    %c0_i32 = arith.constant 0 : i32
    %c0_i32_0 = arith.constant 0 : i32
    %c0_i32_1 = arith.constant 0 : i32
    return %arg0, %c0_i32, %c0_i32_0 : i32, i32, i32
  }
}

module attributes {stable_mosaic.version = 11 : i64} {
  func.func @_fc_kernel(%arg0: i32, %arg1: memref<2x4096xf32, #tpu.memory_space<vmem>>, %arg2: memref<4096x128xf32, #tpu.memory_space<vmem>>, %arg3: memref<1x128xf32, #tpu.memory_space<vmem>>, %arg4: memref<128x128xf32, #tpu.memory_space<vmem>>, %arg5: memref<1x128xf32, #tpu.memory_space<vmem>>, %arg6: memref<2x128xf32, #tpu.memory_space<vmem>>) attributes {dimension_semantics = [#tpu.dimension_semantics<arbitrary>], iteration_bounds = array<i64: 1>, scalar_prefetch = 0 : i64, scratch_operands = 0 : i64, tpu.core_type = #tpu.core_type<tc>, window_params = [{pipeline_mode = #tpu.pipeline_mode<synchronous>, transform_indices = @transform_0, window_bounds = array<i64: 2, 4096>}, {pipeline_mode = #tpu.pipeline_mode<synchronous>, transform_indices = @transform_1, window_bounds = array<i64: 4096, 128>}, {pipeline_mode = #tpu.pipeline_mode<synchronous>, transform_indices = @transform_2, window_bounds = array<i64: 1, 128>}, {pipeline_mode = #tpu.pipeline_mode<synchronous>, transform_indices = @transform_3, window_bounds = array<i64: 128, 128>}, {pipeline_mode = #tpu.pipeline_mode<synchronous>, transform_indices = @transform_4, window_bounds = array<i64: 1, 128>}, {pipeline_mode = #tpu.pipeline_mode<synchronous>, transform_indices = @transform_5, window_bounds = array<i64: 2, 128>}]} {
    %c0 = arith.constant 0 : index
    %c0_0 = arith.constant 0 : index
    %0 = vector.load %arg1[%c0, %c0_0] : memref<2x4096xf32, #tpu.memory_space<vmem>>, vector<2x4096xf32>
    %c0_1 = arith.constant 0 : index
    %c0_2 = arith.constant 0 : index
    %1 = vector.load %arg2[%c0_1, %c0_2] : memref<4096x128xf32, #tpu.memory_space<vmem>>, vector<4096x128xf32>
    %cst = arith.constant dense<0.000000e+00> : vector<2x128xf32>
    %2 = tpu.matmul %0, %1, %cst {dimension_numbers = #tpu.dot_dimension_numbers<[1], [0], [0], [1], [0, 0, 1, 1], [], []>} : vector<2x4096xf32>, vector<4096x128xf32>, vector<2x128xf32> -> vector<2x128xf32>
    %c0_3 = arith.constant 0 : index
    %c0_4 = arith.constant 0 : index
    %3 = vector.load %arg3[%c0_3, %c0_4] : memref<1x128xf32, #tpu.memory_space<vmem>>, vector<1x128xf32>
    %4 = vector.broadcast %3 : vector<1x128xf32> to vector<2x128xf32>
    %5 = arith.addf %2, %4 : vector<2x128xf32>
    %cst_5 = arith.constant 0.000000e+00 : f32
    %6 = vector.broadcast %cst_5 : f32 to vector<2x128xf32>
    %7 = arith.maximumf %5, %6 : vector<2x128xf32>
    %c0_6 = arith.constant 0 : index
    %c0_7 = arith.constant 0 : index
    %8 = vector.load %arg4[%c0_6, %c0_7] : memref<128x128xf32, #tpu.memory_space<vmem>>, vector<128x128xf32>
    %cst_8 = arith.constant dense<0.000000e+00> : vector<2x128xf32>
    %9 = tpu.matmul %7, %8, %cst_8 {dimension_numbers = #tpu.dot_dimension_numbers<[1], [0], [0], [1], [0, 0, 1, 1], [], []>} : vector<2x128xf32>, vector<128x128xf32>, vector<2x128xf32> -> vector<2x128xf32>
    %c0_9 = arith.constant 0 : index
    %c0_10 = arith.constant 0 : index
    %10 = vector.load %arg5[%c0_9, %c0_10] : memref<1x128xf32, #tpu.memory_space<vmem>>, vector<1x128xf32>
    %11 = vector.broadcast %10 : vector<1x128xf32> to vector<2x128xf32>
    %12 = arith.addf %9, %11 : vector<2x128xf32>
    %c0_11 = arith.constant 0 : index
    %c0_12 = arith.constant 0 : index
    %13 = vector.load %arg6[%c0_11, %c0_12] : memref<2x128xf32, #tpu.memory_space<vmem>>, vector<2x128xf32>
    tpu.vector_store %arg6[%c0_11, %c0_12], %12 {strides = array<i32>} : memref<2x128xf32, #tpu.memory_space<vmem>>, vector<2x128xf32>,
    return
  }
  func.func @transform_0(%arg0: i32) -> (i32, i32) {
    %c0_i32 = arith.constant 0 : i32
    %c0_i32_0 = arith.constant 0 : i32
    %c0_i32_1 = arith.constant 0 : i32
    return %c0_i32, %c0_i32_0 : i32, i32
  }
  func.func @transform_1(%arg0: i32) -> (i32, i32) {
    %c0_i32 = arith.constant 0 : i32
    %c0_i32_0 = arith.constant 0 : i32
    %c0_i32_1 = arith.constant 0 : i32
    return %c0_i32, %c0_i32_0 : i32, i32
  }
  func.func @transform_2(%arg0: i32) -> (i32, i32) {
    %c0_i32 = arith.constant 0 : i32
    %c0_i32_0 = arith.constant 0 : i32
    %c0_i32_1 = arith.constant 0 : i32
    return %c0_i32, %c0_i32_0 : i32, i32
  }
  func.func @transform_3(%arg0: i32) -> (i32, i32) {
    %c0_i32 = arith.constant 0 : i32
    %c0_i32_0 = arith.constant 0 : i32
    %c0_i32_1 = arith.constant 0 : i32
    return %c0_i32, %c0_i32_0 : i32, i32
  }
  func.func @transform_4(%arg0: i32) -> (i32, i32) {
    %c0_i32 = arith.constant 0 : i32
    %c0_i32_0 = arith.constant 0 : i32
    %c0_i32_1 = arith.constant 0 : i32
    return %c0_i32, %c0_i32_0 : i32, i32
  }
  func.func @transform_5(%arg0: i32) -> (i32, i32) {
    %c0_i32 = arith.constant 0 : i32
    %c0_i32_0 = arith.constant 0 : i32
    %c0_i32_1 = arith.constant 0 : i32
    return %c0_i32, %c0_i32_0 : i32, i32
  }
}

</mosaic_0001>

<llo_original>
// kernel: cnn_forward.3
$region0: #{cnn_forward.3}
  #allocation0 [shape = 'u32[]', space=smem, size = 0x4, offset = 0x4, fixed_abs, tag = 'smem constant byte address 0x4 - core index']
  #allocation1 [shape = 'u32[144,128]{1,0:T(1,128)}', space=vmem, size = 0x12000, scoped, tag = 'internal scratch']
  %s0 = inlined_call_operand.vmem [shape: f32[2,4096], index: 0, kind: input, shape index: {}]
  %s1 = inlined_call_operand.vmem [shape: f32[4096,128], index: 1, kind: input, shape index: {}]
  %s2 = inlined_call_operand.vmem [shape: f32[1,128], index: 2, kind: input, shape index: {}]
  %s3 = inlined_call_operand.vmem [shape: f32[128,128], index: 3, kind: input, shape index: {}]
  %s4 = inlined_call_operand.vmem [shape: f32[1,128], index: 4, kind: input, shape index: {}]
  %s5 = inlined_call_operand.hbm [shape: f32[2,128], index: 5, kind: output, shape index: {}]
  %s6 = sld [smem:[#allocation0]]
  $region30: #{cnn_forward.3} parent=0
    _
  %s8 = ssub.s32 1, %s6
  %s9 = scalar_select 0, %s8, %s6
  $region1: #{cnn_forward.3} parent=0
    #allocation2 [shape = 'u8[1024]{0}', space=vmem, size = 0x400, scoped, tag = 'output window, operand 0, single buffered']
    #allocation3 [shape = 's32[1]{0}', space=sflag, size = 0x4, scoped, tag = 'scoped memory for cnn_forward.3']
    %10 = vsyncpa [#allocation3], 0
    // Predicated region
    $region2: #{cnn_forward.3} parent=1 // pred_check
      _
    $region3: #{cnn_forward.3} parent=1 // pred_check_branch
      %12 = sbr.rel (0) target = $region5
    $region4: #{cnn_forward.3} parent=1 // pred_region
      _
    $region5: #{cnn_forward.3} parent=1 // pred_fallthru
      _
    // Predicated region
    $region6: #{cnn_forward.3} parent=1 // pred_check
      _
    $region7: #{cnn_forward.3} parent=1 // pred_check_branch
      %14 = sbr.rel (0) target = $region9
    $region8: #{cnn_forward.3} parent=1 // pred_region
      _
    $region9: #{cnn_forward.3} parent=1 // pred_fallthru
      _
    // Predicated region
    $region10: #{cnn_forward.3} parent=1 // pred_check
      _
    $region11: #{cnn_forward.3} parent=1 // pred_check_branch
      %16 = sbr.rel (0) target = $region13
    $region12: #{cnn_forward.3} parent=1 // pred_region
      _
    $region13: #{cnn_forward.3} parent=1 // pred_fallthru
      _
    // Predicated region
    $region14: #{cnn_forward.3} parent=1 // pred_check
      _
    $region15: #{cnn_forward.3} parent=1 // pred_check_branch
      %18 = sbr.rel (0) target = $region17
    $region16: #{cnn_forward.3} parent=1 // pred_region
      _
    $region17: #{cnn_forward.3} parent=1 // pred_fallthru
      _
    // Predicated region
    $region18: #{cnn_forward.3} parent=1 // pred_check
      _
    $region19: #{cnn_forward.3} parent=1 // pred_check_branch
      %20 = sbr.rel (0) target = $region21
    $region20: #{cnn_forward.3} parent=1 // pred_region
      _
    $region21: #{cnn_forward.3} parent=1 // pred_fallthru
      _
    %v21 = vld [vmem:[%s0] sm:$0xff]
    %v22 = vld [vmem:[%s0 + $0x8] sm:$0xff]
    %v23 = vld [vmem:[%s0 + $0x10] sm:$0xff]
    %v24 = vld [vmem:[%s0 + $0x18] sm:$0xff]
    %v25 = vld [vmem:[%s0 + $0x20] sm:$0xff]
    %v26 = vld [vmem:[%s0 + $0x28] sm:$0xff]
    %v27 = vld [vmem:[%s0 + $0x30] sm:$0xff]
    %v28 = vld [vmem:[%s0 + $0x38] sm:$0xff]
    %v29 = vld [vmem:[%s1] sm:$0xff]
    %v30 = vld [vmem:[%s1 + $0x8] sm:$0xff]
    %v31 = vld [vmem:[%s1 + $0x10] sm:$0xff]
    %v32 = vld [vmem:[%s1 + $0x18] sm:$0xff]
    %v33 = vld [vmem:[%s1 + $0x20] sm:$0xff]
    %v34 = vld [vmem:[%s1 + $0x28] sm:$0xff]
    %v35 = vld [vmem:[%s1 + $0x30] sm:$0xff]
    %v36 = vld [vmem:[%s1 + $0x38] sm:$0xff]
    %v37 = vld [vmem:[%s1 + $0x40] sm:$0xff]
    %v38 = vld [vmem:[%s1 + $0x48] sm:$0xff]
    %v39 = vld [vmem:[%s1 + $0x50] sm:$0xff]
    %v40 = vld [vmem:[%s1 + $0x58] sm:$0xff]
    %v41 = vld [vmem:[%s1 + $0x60] sm:$0xff]
    %v42 = vld [vmem:[%s1 + $0x68] sm:$0xff]
    %v43 = vld [vmem:[%s1 + $0x70] sm:$0xff]
    %v44 = vld [vmem:[%s1 + $0x78] sm:$0xff]
    %v45 = vld [vmem:[%s1 + $0x80] sm:$0xff]
    %v46 = vld [vmem:[%s1 + $0x88] sm:$0xff]
    %v47 = vld [vmem:[%s1 + $0x90] sm:$0xff]
    %v48 = vld [vmem:[%s1 + $0x98] sm:$0xff]
    %v49 = vld [vmem:[%s1 + $0xa0] sm:$0xff]
    %v50 = vld [vmem:[%s1 + $0xa8] sm:$0xff]
    %v51 = vld [vmem:[%s1 + $0xb0] sm:$0xff]
    %v52 = vld [vmem:[%s1 + $0xb8] sm:$0xff]
    %v53 = vld [vmem:[%s1 + $0xc0] sm:$0xff]
    %v54 = vld [vmem:[%s1 + $0xc8] sm:$0xff]
    %v55 = vld [vmem:[%s1 + $0xd0] sm:$0xff]
    %v56 = vld [vmem:[%s1 + $0xd8] sm:$0xff]
    %v57 = vld [vmem:[%s1 + $0xe0] sm:$0xff]
    %v58 = vld [vmem:[%s1 + $0xe8] sm:$0xff]
    %v59 = vld [vmem:[%s1 + $0xf0] sm:$0xff]
    %v60 = vld [vmem:[%s1 + $0xf8] sm:$0xff]
    %v61 = vld [vmem:[%s1 + $0x100] sm:$0xff]
    %v62 = vld [vmem:[%s1 + $0x108] sm:$0xff]
    %v63 = vld [vmem:[%s1 + $0x110] sm:$0xff]
    %v64 = vld [vmem:[%s1 + $0x118] sm:$0xff]
    %v65 = vld [vmem:[%s1 + $0x120] sm:$0xff]
    %v66 = vld [vmem:[%s1 + $0x128] sm:$0xff]
    %v67 = vld [vmem:[%s1 + $0x130] sm:$0xff]
    %v68 = vld [vmem:[%s1 + $0x138] sm:$0xff]
    %v69 = vld [vmem:[%s1 + $0x140] sm:$0xff]
    %v70 = vld [vmem:[%s1 + $0x148] sm:$0xff]
    %v71 = vld [vmem:[%s1 + $0x150] sm:$0xff]
    %v72 = vld [vmem:[%s1 + $0x158] sm:$0xff]
    %v73 = vld [vmem:[%s1 + $0x160] sm:$0xff]
    %v74 = vld [vmem:[%s1 + $0x168] sm:$0xff]
    %v75 = vld [vmem:[%s1 + $0x170] sm:$0xff]
    %v76 = vld [vmem:[%s1 + $0x178] sm:$0xff]
    %v77 = vld [vmem:[%s1 + $0x180] sm:$0xff]
    %v78 = vld [vmem:[%s1 + $0x188] sm:$0xff]
    %v79 = vld [vmem:[%s1 + $0x190] sm:$0xff]
    %v80 = vld [vmem:[%s1 + $0x198] sm:$0xff]
    %v81 = vld [vmem:[%s1 + $0x1a0] sm:$0xff]
    %v82 = vld [vmem:[%s1 + $0x1a8] sm:$0xff]
    %v83 = vld [vmem:[%s1 + $0x1b0] sm:$0xff]
    %v84 = vld [vmem:[%s1 + $0x1b8] sm:$0xff]
    %v85 = vld [vmem:[%s1 + $0x1c0] sm:$0xff]
    %v86 = vld [vmem:[%s1 + $0x1c8] sm:$0xff]
    %v87 = vld [vmem:[%s1 + $0x1d0] sm:$0xff]
    %v88 = vld [vmem:[%s1 + $0x1d8] sm:$0xff]
    %v89 = vld [vmem:[%s1 + $0x1e0] sm:$0xff]
    %v90 = vld [vmem:[%s1 + $0x1e8] sm:$0xff]
    %v91 = vld [vmem:[%s1 + $0x1f0] sm:$0xff]
    %v92 = vld [vmem:[%s1 + $0x1f8] sm:$0xff]
    %v93 = vld [vmem:[%s1 + $0x200] sm:$0xff]
    %v94 = vld [vmem:[%s1 + $0x208] sm:$0xff]
    %v95 = vld [vmem:[%s1 + $0x210] sm:$0xff]
    %v96 = vld [vmem:[%s1 + $0x218] sm:$0xff]
    %v97 = vld [vmem:[%s1 + $0x220] sm:$0xff]
    %v98 = vld [vmem:[%s1 + $0x228] sm:$0xff]
    %v99 = vld [vmem:[%s1 + $0x230] sm:$0xff]
    %v100 = vld [vmem:[%s1 + $0x238] sm:$0xff]
    %v101 = vld [vmem:[%s1 + $0x240] sm:$0xff]
    %v102 = vld [vmem:[%s1 + $0x248] sm:$0xff]
    %v103 = vld [vmem:[%s1 + $0x250] sm:$0xff]
    %v104 = vld [vmem:[%s1 + $0x258] sm:$0xff]
    %v105 = vld [vmem:[%s1 + $0x260] sm:$0xff]
    %v106 = vld [vmem:[%s1 + $0x268] sm:$0xff]
    %v107 = vld [vmem:[%s1 + $0x270] sm:$0xff]
    %v108 = vld [vmem:[%s1 + $0x278] sm:$0xff]
    %v109 = vld [vmem:[%s1 + $0x280] sm:$0xff]
    %v110 = vld [vmem:[%s1 + $0x288] sm:$0xff]
    %v111 = vld [vmem:[%s1 + $0x290] sm:$0xff]
    %v112 = vld [vmem:[%s1 + $0x298] sm:$0xff]
    %v113 = vld [vmem:[%s1 + $0x2a0] sm:$0xff]
    %v114 = vld [vmem:[%s1 + $0x2a8] sm:$0xff]
    %v115 = vld [vmem:[%s1 + $0x2b0] sm:$0xff]
    %v116 = vld [vmem:[%s1 + $0x2b8] sm:$0xff]
    %v117 = vld [vmem:[%s1 + $0x2c0] sm:$0xff]
    %v118 = vld [vmem:[%s1 + $0x2c8] sm:$0xff]
    %v119 = vld [vmem:[%s1 + $0x2d0] sm:$0xff]
    %v120 = vld [vmem:[%s1 + $0x2d8] sm:$0xff]
    %v121 = vld [vmem:[%s1 + $0x2e0] sm:$0xff]
    %v122 = vld [vmem:[%s1 + $0x2e8] sm:$0xff]
    %v123 = vld [vmem:[%s1 + $0x2f0] sm:$0xff]
    %v124 = vld [vmem:[%s1 + $0x2f8] sm:$0xff]
    %v125 = vld [vmem:[%s1 + $0x300] sm:$0xff]
    %v126 = vld [vmem:[%s1 + $0x308] sm:$0xff]
    %v127 = vld [vmem:[%s1 + $0x310] sm:$0xff]
    %v128 = vld [vmem:[%s1 + $0x318] sm:$0xff]
    %v129 = vld [vmem:[%s1 + $0x320] sm:$0xff]
    %v130 = vld [vmem:[%s1 + $0x328] sm:$0xff]
    %v131 = vld [vmem:[%s1 + $0x330] sm:$0xff]
    %v132 = vld [vmem:[%s1 + $0x338] sm:$0xff]
    %v133 = vld [vmem:[%s1 + $0x340] sm:$0xff]
    %v134 = vld [vmem:[%s1 + $0x348] sm:$0xff]
    %v135 = vld [vmem:[%s1 + $0x350] sm:$0xff]
    %v136 = vld [vmem:[%s1 + $0x358] sm:$0xff]
    %v137 = vld [vmem:[%s1 + $0x360] sm:$0xff]
    %v138 = vld [vmem:[%s1 + $0x368] sm:$0xff]
    %v139 = vld [vmem:[%s1 + $0x370] sm:$0xff]
    %v140 = vld [vmem:[%s1 + $0x378] sm:$0xff]
    %v141 = vld [vmem:[%s1 + $0x380] sm:$0xff]
    %v142 = vld [vmem:[%s1 + $0x388] sm:$0xff]
    %v143 = vld [vmem:[%s1 + $0x390] sm:$0xff]
    %v144 = vld [vmem:[%s1 + $0x398] sm:$0xff]
    %v145 = vld [vmem:[%s1 + $0x3a0] sm:$0xff]
    %v146 = vld [vmem:[%s1 + $0x3a8] sm:$0xff]
    %v147 = vld [vmem:[%s1 + $0x3b0] sm:$0xff]
    %v148 = vld [vmem:[%s1 + $0x3b8] sm:$0xff]
    %v149 = vld [vmem:[%s1 + $0x3c0] sm:$0xff]
    %v150 = vld [vmem:[%s1 + $0x3c8] sm:$0xff]
    %v151 = vld [vmem:[%s1 + $0x3d0] sm:$0xff]
    %v152 = vld [vmem:[%s1 + $0x3d8] sm:$0xff]
    %v153 = vld [vmem:[%s1 + $0x3e0] sm:$0xff]
    %v154 = vld [vmem:[%s1 + $0x3e8] sm:$0xff]
    %v155 = vld [vmem:[%s1 + $0x3f0] sm:$0xff]
    %v156 = vld [vmem:[%s1 + $0x3f8] sm:$0xff]
    %v157 = vld [vmem:[%s1 + $0x400] sm:$0xff]
    %v158 = vld [vmem:[%s1 + $0x408] sm:$0xff]
    %v159 = vld [vmem:[%s1 + $0x410] sm:$0xff]
    %v160 = vld [vmem:[%s1 + $0x418] sm:$0xff]
    %v161 = vld [vmem:[%s1 + $0x420] sm:$0xff]
    %v162 = vld [vmem:[%s1 + $0x428] sm:$0xff]
    %v163 = vld [vmem:[%s1 + $0x430] sm:$0xff]
    %v164 = vld [vmem:[%s1 + $0x438] sm:$0xff]
    %v165 = vld [vmem:[%s1 + $0x440] sm:$0xff]
    %v166 = vld [vmem:[%s1 + $0x448] sm:$0xff]
    %v167 = vld [vmem:[%s1 + $0x450] sm:$0xff]
    %v168 = vld [vmem:[%s1 + $0x458] sm:$0xff]
    %v169 = vld [vmem:[%s1 + $0x460] sm:$0xff]
    %v170 = vld [vmem:[%s1 + $0x468] sm:$0xff]
    %v171 = vld [vmem:[%s1 + $0x470] sm:$0xff]
    %v172 = vld [vmem:[%s1 + $0x478] sm:$0xff]
    %v173 = vld [vmem:[%s1 + $0x480] sm:$0xff]
    %v174 = vld [vmem:[%s1 + $0x488] sm:$0xff]
    %v175 = vld [vmem:[%s1 + $0x490] sm:$0xff]
    %v176 = vld [vmem:[%s1 + $0x498] sm:$0xff]
    %v177 = vld [vmem:[%s1 + $0x4a0] sm:$0xff]
    %v178 = vld [vmem:[%s1 + $0x4a8] sm:$0xff]
    %v179 = vld [vmem:[%s1 + $0x4b0] sm:$0xff]
    %v180 = vld [vmem:[%s1 + $0x4b8] sm:$0xff]
    %v181 = vld [vmem:[%s1 + $0x4c0] sm:$0xff]
    %v182 = vld [vmem:[%s1 + $0x4c8] sm:$0xff]
    %v183 = vld [vmem:[%s1 + $0x4d0] sm:$0xff]
    %v184 = vld [vmem:[%s1 + $0x4d8] sm:$0xff]
    %v185 = vld [vmem:[%s1 + $0x4e0] sm:$0xff]
    %v186 = vld [vmem:[%s1 + $0x4e8] sm:$0xff]
    %v187 = vld [vmem:[%s1 + $0x4f0] sm:$0xff]
    %v188 = vld [vmem:[%s1 + $0x4f8] sm:$0xff]
    %v189 = vld [vmem:[%s1 + $0x500] sm:$0xff]
    %v190 = vld [vmem:[%s1 + $0x508] sm:$0xff]
    %v191 = vld [vmem:[%s1 + $0x510] sm:$0xff]
    %v192 = vld [vmem:[%s1 + $0x518] sm:$0xff]
    %v193 = vld [vmem:[%s1 + $0x520] sm:$0xff]
    %v194 = vld [vmem:[%s1 + $0x528] sm:$0xff]
    %v195 = vld [vmem:[%s1 + $0x530] sm:$0xff]
    %v196 = vld [vmem:[%s1 + $0x538] sm:$0xff]
    %v197 = vld [vmem:[%s1 + $0x540] sm:$0xff]
    %v198 = vld [vmem:[%s1 + $0x548] sm:$0xff]
    %v199 = vld [vmem:[%s1 + $0x550] sm:$0xff]
    %v200 = vld [vmem:[%s1 + $0x558] sm:$0xff]
    %v201 = vld [vmem:[%s1 + $0x560] sm:$0xff]
    %v202 = vld [vmem:[%s1 + $0x568] sm:$0xff]
    %v203 = vld [vmem:[%s1 + $0x570] sm:$0xff]
    %v204 = vld [vmem:[%s1 + $0x578] sm:$0xff]
    %v205 = vld [vmem:[%s1 + $0x580] sm:$0xff]
    %v206 = vld [vmem:[%s1 + $0x588] sm:$0xff]
    %v207 = vld [vmem:[%s1 + $0x590] sm:$0xff]
    %v208 = vld [vmem:[%s1 + $0x598] sm:$0xff]
    %v209 = vld [vmem:[%s1 + $0x5a0] sm:$0xff]
    %v210 = vld [vmem:[%s1 + $0x5a8] sm:$0xff]
    %v211 = vld [vmem:[%s1 + $0x5b0] sm:$0xff]
    %v212 = vld [vmem:[%s1 + $0x5b8] sm:$0xff]
    %v213 = vld [vmem:[%s1 + $0x5c0] sm:$0xff]
    %v214 = vld [vmem:[%s1 + $0x5c8] sm:$0xff]
    %v215 = vld [vmem:[%s1 + $0x5d0] sm:$0xff]
    %v216 = vld [vmem:[%s1 + $0x5d8] sm:$0xff]
    %v217 = vld [vmem:[%s1 + $0x5e0] sm:$0xff]
    %v218 = vld [vmem:[%s1 + $0x5e8] sm:$0xff]
    %v219 = vld [vmem:[%s1 + $0x5f0] sm:$0xff]
    %v220 = vld [vmem:[%s1 + $0x5f8] sm:$0xff]
    %v221 = vld [vmem:[%s1 + $0x600] sm:$0xff]
    %v222 = vld [vmem:[%s1 + $0x608] sm:$0xff]
    %v223 = vld [vmem:[%s1 + $0x610] sm:$0xff]
    %v224 = vld [vmem:[%s1 + $0x618] sm:$0xff]
    %v225 = vld [vmem:[%s1 + $0x620] sm:$0xff]
    %v226 = vld [vmem:[%s1 + $0x628] sm:$0xff]
    %v227 = vld [vmem:[%s1 + $0x630] sm:$0xff]
    %v228 = vld [vmem:[%s1 + $0x638] sm:$0xff]
    %v229 = vld [vmem:[%s1 + $0x640] sm:$0xff]
    %v230 = vld [vmem:[%s1 + $0x648] sm:$0xff]
    %v231 = vld [vmem:[%s1 + $0x650] sm:$0xff]
    %v232 = vld [vmem:[%s1 + $0x658] sm:$0xff]
    %v233 = vld [vmem:[%s1 + $0x660] sm:$0xff]
    %v234 = vld [vmem:[%s1 + $0x668] sm:$0xff]
    %v235 = vld [vmem:[%s1 + $0x670] sm:$0xff]
    %v236 = vld [vmem:[%s1 + $0x678] sm:$0xff]
    %v237 = vld [vmem:[%s1 + $0x680] sm:$0xff]
    %v238 = vld [vmem:[%s1 + $0x688] sm:$0xff]
    %v239 = vld [vmem:[%s1 + $0x690] sm:$0xff]
    %v240 = vld [vmem:[%s1 + $0x698] sm:$0xff]
    %v241 = vld [vmem:[%s1 + $0x6a0] sm:$0xff]
    %v242 = vld [vmem:[%s1 + $0x6a8] sm:$0xff]
    %v243 = vld [vmem:[%s1 + $0x6b0] sm:$0xff]
    %v244 = vld [vmem:[%s1 + $0x6b8] sm:$0xff]
    %v245 = vld [vmem:[%s1 + $0x6c0] sm:$0xff]
    %v246 = vld [vmem:[%s1 + $0x6c8] sm:$0xff]
    %v247 = vld [vmem:[%s1 + $0x6d0] sm:$0xff]
    %v248 = vld [vmem:[%s1 + $0x6d8] sm:$0xff]
    %v249 = vld [vmem:[%s1 + $0x6e0] sm:$0xff]
    %v250 = vld [vmem:[%s1 + $0x6e8] sm:$0xff]
    %v251 = vld [vmem:[%s1 + $0x6f0] sm:$0xff]
    %v252 = vld [vmem:[%s1 + $0x6f8] sm:$0xff]
    %v253 = vld [vmem:[%s1 + $0x700] sm:$0xff]
    %v254 = vld [vmem:[%s1 + $0x708] sm:$0xff]
    %v255 = vld [vmem:[%s1 + $0x710] sm:$0xff]
    %v256 = vld [vmem:[%s1 + $0x718] sm:$0xff]
    %v257 = vld [vmem:[%s1 + $0x720] sm:$0xff]
    %v258 = vld [vmem:[%s1 + $0x728] sm:$0xff]
    %v259 = vld [vmem:[%s1 + $0x730] sm:$0xff]
    %v260 = vld [vmem:[%s1 + $0x738] sm:$0xff]
    %v261 = vld [vmem:[%s1 + $0x740] sm:$0xff]
    %v262 = vld [vmem:[%s1 + $0x748] sm:$0xff]
    %v263 = vld [vmem:[%s1 + $0x750] sm:$0xff]
    %v264 = vld [vmem:[%s1 + $0x758] sm:$0xff]
    %v265 = vld [vmem:[%s1 + $0x760] sm:$0xff]
    %v266 = vld [vmem:[%s1 + $0x768] sm:$0xff]
    %v267 = vld [vmem:[%s1 + $0x770] sm:$0xff]
    %v268 = vld [vmem:[%s1 + $0x778] sm:$0xff]
    %v269 = vld [vmem:[%s1 + $0x780] sm:$0xff]
    %v270 = vld [vmem:[%s1 + $0x788] sm:$0xff]
    %v271 = vld [vmem:[%s1 + $0x790] sm:$0xff]
    %v272 = vld [vmem:[%s1 + $0x798] sm:$0xff]
    %v273 = vld [vmem:[%s1 + $0x7a0] sm:$0xff]
    %v274 = vld [vmem:[%s1 + $0x7a8] sm:$0xff]
    %v275 = vld [vmem:[%s1 + $0x7b0] sm:$0xff]
    %v276 = vld [vmem:[%s1 + $0x7b8] sm:$0xff]
    %v277 = vld [vmem:[%s1 + $0x7c0] sm:$0xff]
    %v278 = vld [vmem:[%s1 + $0x7c8] sm:$0xff]
    %v279 = vld [vmem:[%s1 + $0x7d0] sm:$0xff]
    %v280 = vld [vmem:[%s1 + $0x7d8] sm:$0xff]
    %v281 = vld [vmem:[%s1 + $0x7e0] sm:$0xff]
    %v282 = vld [vmem:[%s1 + $0x7e8] sm:$0xff]
    %v283 = vld [vmem:[%s1 + $0x7f0] sm:$0xff]
    %v284 = vld [vmem:[%s1 + $0x7f8] sm:$0xff]
    %v285 = vld [vmem:[%s1 + $0x800] sm:$0xff]
    %v286 = vld [vmem:[%s1 + $0x808] sm:$0xff]
    %v287 = vld [vmem:[%s1 + $0x810] sm:$0xff]
    %v288 = vld [vmem:[%s1 + $0x818] sm:$0xff]
    %v289 = vld [vmem:[%s1 + $0x820] sm:$0xff]
    %v290 = vld [vmem:[%s1 + $0x828] sm:$0xff]
    %v291 = vld [vmem:[%s1 + $0x830] sm:$0xff]
    %v292 = vld [vmem:[%s1 + $0x838] sm:$0xff]
    %v293 = vld [vmem:[%s1 + $0x840] sm:$0xff]
    %v294 = vld [vmem:[%s1 + $0x848] sm:$0xff]
    %v295 = vld [vmem:[%s1 + $0x850] sm:$0xff]
    %v296 = vld [vmem:[%s1 + $0x858] sm:$0xff]
    %v297 = vld [vmem:[%s1 + $0x860] sm:$0xff]
    %v298 = vld [vmem:[%s1 + $0x868] sm:$0xff]
    %v299 = vld [vmem:[%s1 + $0x870] sm:$0xff]
    %v300 = vld [vmem:[%s1 + $0x878] sm:$0xff]
    %v301 = vld [vmem:[%s1 + $0x880] sm:$0xff]
    %v302 = vld [vmem:[%s1 + $0x888] sm:$0xff]
    %v303 = vld [vmem:[%s1 + $0x890] sm:$0xff]
    %v304 = vld [vmem:[%s1 + $0x898] sm:$0xff]
    %v305 = vld [vmem:[%s1 + $0x8a0] sm:$0xff]
    %v306 = vld [vmem:[%s1 + $0x8a8] sm:$0xff]
    %v307 = vld [vmem:[%s1 + $0x8b0] sm:$0xff]
    %v308 = vld [vmem:[%s1 + $0x8b8] sm:$0xff]
    %v309 = vld [vmem:[%s1 + $0x8c0] sm:$0xff]
    %v310 = vld [vmem:[%s1 + $0x8c8] sm:$0xff]
    %v311 = vld [vmem:[%s1 + $0x8d0] sm:$0xff]
    %v312 = vld [vmem:[%s1 + $0x8d8] sm:$0xff]
    %v313 = vld [vmem:[%s1 + $0x8e0] sm:$0xff]
    %v314 = vld [vmem:[%s1 + $0x8e8] sm:$0xff]
    %v315 = vld [vmem:[%s1 + $0x8f0] sm:$0xff]
    %v316 = vld [vmem:[%s1 + $0x8f8] sm:$0xff]
    %v317 = vld [vmem:[%s1 + $0x900] sm:$0xff]
    %v318 = vld [vmem:[%s1 + $0x908] sm:$0xff]
    %v319 = vld [vmem:[%s1 + $0x910] sm:$0xff]
    %v320 = vld [vmem:[%s1 + $0x918] sm:$0xff]
    %v321 = vld [vmem:[%s1 + $0x920] sm:$0xff]
    %v322 = vld [vmem:[%s1 + $0x928] sm:$0xff]
    %v323 = vld [vmem:[%s1 + $0x930] sm:$0xff]
    %v324 = vld [vmem:[%s1 + $0x938] sm:$0xff]
    %v325 = vld [vmem:[%s1 + $0x940] sm:$0xff]
    %v326 = vld [vmem:[%s1 + $0x948] sm:$0xff]
    %v327 = vld [vmem:[%s1 + $0x950] sm:$0xff]
    %v328 = vld [vmem:[%s1 + $0x958] sm:$0xff]
    %v329 = vld [vmem:[%s1 + $0x960] sm:$0xff]
    %v330 = vld [vmem:[%s1 + $0x968] sm:$0xff]
    %v331 = vld [vmem:[%s1 + $0x970] sm:$0xff]
    %v332 = vld [vmem:[%s1 + $0x978] sm:$0xff]
    %v333 = vld [vmem:[%s1 + $0x980] sm:$0xff]
    %v334 = vld [vmem:[%s1 + $0x988] sm:$0xff]
    %v335 = vld [vmem:[%s1 + $0x990] sm:$0xff]
    %v336 = vld [vmem:[%s1 + $0x998] sm:$0xff]
    %v337 = vld [vmem:[%s1 + $0x9a0] sm:$0xff]
    %v338 = vld [vmem:[%s1 + $0x9a8] sm:$0xff]
    %v339 = vld [vmem:[%s1 + $0x9b0] sm:$0xff]
    %v340 = vld [vmem:[%s1 + $0x9b8] sm:$0xff]
    %v341 = vld [vmem:[%s1 + $0x9c0] sm:$0xff]
    %v342 = vld [vmem:[%s1 + $0x9c8] sm:$0xff]
    %v343 = vld [vmem:[%s1 + $0x9d0] sm:$0xff]
    %v344 = vld [vmem:[%s1 + $0x9d8] sm:$0xff]
    %v345 = vld [vmem:[%s1 + $0x9e0] sm:$0xff]
    %v346 = vld [vmem:[%s1 + $0x9e8] sm:$0xff]
    %v347 = vld [vmem:[%s1 + $0x9f0] sm:$0xff]
    %v348 = vld [vmem:[%s1 + $0x9f8] sm:$0xff]
    %v349 = vld [vmem:[%s1 + $0xa00] sm:$0xff]
    %v350 = vld [vmem:[%s1 + $0xa08] sm:$0xff]
    %v351 = vld [vmem:[%s1 + $0xa10] sm:$0xff]
    %v352 = vld [vmem:[%s1 + $0xa18] sm:$0xff]
    %v353 = vld [vmem:[%s1 + $0xa20] sm:$0xff]
    %v354 = vld [vmem:[%s1 + $0xa28] sm:$0xff]
    %v355 = vld [vmem:[%s1 + $0xa30] sm:$0xff]
    %v356 = vld [vmem:[%s1 + $0xa38] sm:$0xff]
    %v357 = vld [vmem:[%s1 + $0xa40] sm:$0xff]
    %v358 = vld [vmem:[%s1 + $0xa48] sm:$0xff]
    %v359 = vld [vmem:[%s1 + $0xa50] sm:$0xff]
    %v360 = vld [vmem:[%s1 + $0xa58] sm:$0xff]
    %v361 = vld [vmem:[%s1 + $0xa60] sm:$0xff]
    %v362 = vld [vmem:[%s1 + $0xa68] sm:$0xff]
    %v363 = vld [vmem:[%s1 + $0xa70] sm:$0xff]
    %v364 = vld [vmem:[%s1 + $0xa78] sm:$0xff]
    %v365 = vld [vmem:[%s1 + $0xa80] sm:$0xff]
    %v366 = vld [vmem:[%s1 + $0xa88] sm:$0xff]
    %v367 = vld [vmem:[%s1 + $0xa90] sm:$0xff]
    %v368 = vld [vmem:[%s1 + $0xa98] sm:$0xff]
    %v369 = vld [vmem:[%s1 + $0xaa0] sm:$0xff]
    %v370 = vld [vmem:[%s1 + $0xaa8] sm:$0xff]
    %v371 = vld [vmem:[%s1 + $0xab0] sm:$0xff]
    %v372 = vld [vmem:[%s1 + $0xab8] sm:$0xff]
    %v373 = vld [vmem:[%s1 + $0xac0] sm:$0xff]
    %v374 = vld [vmem:[%s1 + $0xac8] sm:$0xff]
    %v375 = vld [vmem:[%s1 + $0xad0] sm:$0xff]
    %v376 = vld [vmem:[%s1 + $0xad8] sm:$0xff]
    %v377 = vld [vmem:[%s1 + $0xae0] sm:$0xff]
    %v378 = vld [vmem:[%s1 + $0xae8] sm:$0xff]
    %v379 = vld [vmem:[%s1 + $0xaf0] sm:$0xff]
    %v380 = vld [vmem:[%s1 + $0xaf8] sm:$0xff]
    %v381 = vld [vmem:[%s1 + $0xb00] sm:$0xff]
    %v382 = vld [vmem:[%s1 + $0xb08] sm:$0xff]
    %v383 = vld [vmem:[%s1 + $0xb10] sm:$0xff]
    %v384 = vld [vmem:[%s1 + $0xb18] sm:$0xff]
    %v385 = vld [vmem:[%s1 + $0xb20] sm:$0xff]
    %v386 = vld [vmem:[%s1 + $0xb28] sm:$0xff]
    %v387 = vld [vmem:[%s1 + $0xb30] sm:$0xff]
    %v388 = vld [vmem:[%s1 + $0xb38] sm:$0xff]
    %v389 = vld [vmem:[%s1 + $0xb40] sm:$0xff]
    %v390 = vld [vmem:[%s1 + $0xb48] sm:$0xff]
    %v391 = vld [vmem:[%s1 + $0xb50] sm:$0xff]
    %v392 = vld [vmem:[%s1 + $0xb58] sm:$0xff]
    %v393 = vld [vmem:[%s1 + $0xb60] sm:$0xff]
    %v394 = vld [vmem:[%s1 + $0xb68] sm:$0xff]
    %v395 = vld [vmem:[%s1 + $0xb70] sm:$0xff]
    %v396 = vld [vmem:[%s1 + $0xb78] sm:$0xff]
    %v397 = vld [vmem:[%s1 + $0xb80] sm:$0xff]
    %v398 = vld [vmem:[%s1 + $0xb88] sm:$0xff]
    %v399 = vld [vmem:[%s1 + $0xb90] sm:$0xff]
    %v400 = vld [vmem:[%s1 + $0xb98] sm:$0xff]
    %v401 = vld [vmem:[%s1 + $0xba0] sm:$0xff]
    %v402 = vld [vmem:[%s1 + $0xba8] sm:$0xff]
    %v403 = vld [vmem:[%s1 + $0xbb0] sm:$0xff]
    %v404 = vld [vmem:[%s1 + $0xbb8] sm:$0xff]
    %v405 = vld [vmem:[%s1 + $0xbc0] sm:$0xff]
    %v406 = vld [vmem:[%s1 + $0xbc8] sm:$0xff]
    %v407 = vld [vmem:[%s1 + $0xbd0] sm:$0xff]
    %v408 = vld [vmem:[%s1 + $0xbd8] sm:$0xff]
    %v409 = vld [vmem:[%s1 + $0xbe0] sm:$0xff]
    %v410 = vld [vmem:[%s1 + $0xbe8] sm:$0xff]
    %v411 = vld [vmem:[%s1 + $0xbf0] sm:$0xff]
    %v412 = vld [vmem:[%s1 + $0xbf8] sm:$0xff]
    %v413 = vld [vmem:[%s1 + $0xc00] sm:$0xff]
    %v414 = vld [vmem:[%s1 + $0xc08] sm:$0xff]
    %v415 = vld [vmem:[%s1 + $0xc10] sm:$0xff]
    %v416 = vld [vmem:[%s1 + $0xc18] sm:$0xff]
    %v417 = vld [vmem:[%s1 + $0xc20] sm:$0xff]
    %v418 = vld [vmem:[%s1 + $0xc28] sm:$0xff]
    %v419 = vld [vmem:[%s1 + $0xc30] sm:$0xff]
    %v420 = vld [vmem:[%s1 + $0xc38] sm:$0xff]
    %v421 = vld [vmem:[%s1 + $0xc40] sm:$0xff]
    %v422 = vld [vmem:[%s1 + $0xc48] sm:$0xff]
    %v423 = vld [vmem:[%s1 + $0xc50] sm:$0xff]
    %v424 = vld [vmem:[%s1 + $0xc58] sm:$0xff]
    %v425 = vld [vmem:[%s1 + $0xc60] sm:$0xff]
    %v426 = vld [vmem:[%s1 + $0xc68] sm:$0xff]
    %v427 = vld [vmem:[%s1 + $0xc70] sm:$0xff]
    %v428 = vld [vmem:[%s1 + $0xc78] sm:$0xff]
    %v429 = vld [vmem:[%s1 + $0xc80] sm:$0xff]
    %v430 = vld [vmem:[%s1 + $0xc88] sm:$0xff]
    %v431 = vld [vmem:[%s1 + $0xc90] sm:$0xff]
    %v432 = vld [vmem:[%s1 + $0xc98] sm:$0xff]
    %v433 = vld [vmem:[%s1 + $0xca0] sm:$0xff]
    %v434 = vld [vmem:[%s1 + $0xca8] sm:$0xff]
    %v435 = vld [vmem:[%s1 + $0xcb0] sm:$0xff]
    %v436 = vld [vmem:[%s1 + $0xcb8] sm:$0xff]
    %v437 = vld [vmem:[%s1 + $0xcc0] sm:$0xff]
    %v438 = vld [vmem:[%s1 + $0xcc8] sm:$0xff]
    %v439 = vld [vmem:[%s1 + $0xcd0] sm:$0xff]
    %v440 = vld [vmem:[%s1 + $0xcd8] sm:$0xff]
    %v441 = vld [vmem:[%s1 + $0xce0] sm:$0xff]
    %v442 = vld [vmem:[%s1 + $0xce8] sm:$0xff]
    %v443 = vld [vmem:[%s1 + $0xcf0] sm:$0xff]
    %v444 = vld [vmem:[%s1 + $0xcf8] sm:$0xff]
    %v445 = vld [vmem:[%s1 + $0xd00] sm:$0xff]
    %v446 = vld [vmem:[%s1 + $0xd08] sm:$0xff]
    %v447 = vld [vmem:[%s1 + $0xd10] sm:$0xff]
    %v448 = vld [vmem:[%s1 + $0xd18] sm:$0xff]
    %v449 = vld [vmem:[%s1 + $0xd20] sm:$0xff]
    %v450 = vld [vmem:[%s1 + $0xd28] sm:$0xff]
    %v451 = vld [vmem:[%s1 + $0xd30] sm:$0xff]
    %v452 = vld [vmem:[%s1 + $0xd38] sm:$0xff]
    %v453 = vld [vmem:[%s1 + $0xd40] sm:$0xff]
    %v454 = vld [vmem:[%s1 + $0xd48] sm:$0xff]
    %v455 = vld [vmem:[%s1 + $0xd50] sm:$0xff]
    %v456 = vld [vmem:[%s1 + $0xd58] sm:$0xff]
    %v457 = vld [vmem:[%s1 + $0xd60] sm:$0xff]
    %v458 = vld [vmem:[%s1 + $0xd68] sm:$0xff]
    %v459 = vld [vmem:[%s1 + $0xd70] sm:$0xff]
    %v460 = vld [vmem:[%s1 + $0xd78] sm:$0xff]
    %v461 = vld [vmem:[%s1 + $0xd80] sm:$0xff]
    %v462 = vld [vmem:[%s1 + $0xd88] sm:$0xff]
    %v463 = vld [vmem:[%s1 + $0xd90] sm:$0xff]
    %v464 = vld [vmem:[%s1 + $0xd98] sm:$0xff]
    %v465 = vld [vmem:[%s1 + $0xda0] sm:$0xff]
    %v466 = vld [vmem:[%s1 + $0xda8] sm:$0xff]
    %v467 = vld [vmem:[%s1 + $0xdb0] sm:$0xff]
    %v468 = vld [vmem:[%s1 + $0xdb8] sm:$0xff]
    %v469 = vld [vmem:[%s1 + $0xdc0] sm:$0xff]
    %v470 = vld [vmem:[%s1 + $0xdc8] sm:$0xff]
    %v471 = vld [vmem:[%s1 + $0xdd0] sm:$0xff]
    %v472 = vld [vmem:[%s1 + $0xdd8] sm:$0xff]
    %v473 = vld [vmem:[%s1 + $0xde0] sm:$0xff]
    %v474 = vld [vmem:[%s1 + $0xde8] sm:$0xff]
    %v475 = vld [vmem:[%s1 + $0xdf0] sm:$0xff]
    %v476 = vld [vmem:[%s1 + $0xdf8] sm:$0xff]
    %v477 = vld [vmem:[%s1 + $0xe00] sm:$0xff]
    %v478 = vld [vmem:[%s1 + $0xe08] sm:$0xff]
    %v479 = vld [vmem:[%s1 + $0xe10] sm:$0xff]
    %v480 = vld [vmem:[%s1 + $0xe18] sm:$0xff]
    %v481 = vld [vmem:[%s1 + $0xe20] sm:$0xff]
    %v482 = vld [vmem:[%s1 + $0xe28] sm:$0xff]
    %v483 = vld [vmem:[%s1 + $0xe30] sm:$0xff]
    %v484 = vld [vmem:[%s1 + $0xe38] sm:$0xff]
    %v485 = vld [vmem:[%s1 + $0xe40] sm:$0xff]
    %v486 = vld [vmem:[%s1 + $0xe48] sm:$0xff]
    %v487 = vld [vmem:[%s1 + $0xe50] sm:$0xff]
    %v488 = vld [vmem:[%s1 + $0xe58] sm:$0xff]
    %v489 = vld [vmem:[%s1 + $0xe60] sm:$0xff]
    %v490 = vld [vmem:[%s1 + $0xe68] sm:$0xff]
    %v491 = vld [vmem:[%s1 + $0xe70] sm:$0xff]
    %v492 = vld [vmem:[%s1 + $0xe78] sm:$0xff]
    %v493 = vld [vmem:[%s1 + $0xe80] sm:$0xff]
    %v494 = vld [vmem:[%s1 + $0xe88] sm:$0xff]
    %v495 = vld [vmem:[%s1 + $0xe90] sm:$0xff]
    %v496 = vld [vmem:[%s1 + $0xe98] sm:$0xff]
    %v497 = vld [vmem:[%s1 + $0xea0] sm:$0xff]
    %v498 = vld [vmem:[%s1 + $0xea8] sm:$0xff]
    %v499 = vld [vmem:[%s1 + $0xeb0] sm:$0xff]
    %v500 = vld [vmem:[%s1 + $0xeb8] sm:$0xff]
    %v501 = vld [vmem:[%s1 + $0xec0] sm:$0xff]
    %v502 = vld [vmem:[%s1 + $0xec8] sm:$0xff]
    %v503 = vld [vmem:[%s1 + $0xed0] sm:$0xff]
    %v504 = vld [vmem:[%s1 + $0xed8] sm:$0xff]
    %v505 = vld [vmem:[%s1 + $0xee0] sm:$0xff]
    %v506 = vld [vmem:[%s1 + $0xee8] sm:$0xff]
    %v507 = vld [vmem:[%s1 + $0xef0] sm:$0xff]
    %v508 = vld [vmem:[%s1 + $0xef8] sm:$0xff]
    %v509 = vld [vmem:[%s1 + $0xf00] sm:$0xff]
    %v510 = vld [vmem:[%s1 + $0xf08] sm:$0xff]
    %v511 = vld [vmem:[%s1 + $0xf10] sm:$0xff]
    %v512 = vld [vmem:[%s1 + $0xf18] sm:$0xff]
    %v513 = vld [vmem:[%s1 + $0xf20] sm:$0xff]
    %v514 = vld [vmem:[%s1 + $0xf28] sm:$0xff]
    %v515 = vld [vmem:[%s1 + $0xf30] sm:$0xff]
    %v516 = vld [vmem:[%s1 + $0xf38] sm:$0xff]
    %v517 = vld [vmem:[%s1 + $0xf40] sm:$0xff]
    %v518 = vld [vmem:[%s1 + $0xf48] sm:$0xff]
    %v519 = vld [vmem:[%s1 + $0xf50] sm:$0xff]
    %v520 = vld [vmem:[%s1 + $0xf58] sm:$0xff]
    %v521 = vld [vmem:[%s1 + $0xf60] sm:$0xff]
    %v522 = vld [vmem:[%s1 + $0xf68] sm:$0xff]
    %v523 = vld [vmem:[%s1 + $0xf70] sm:$0xff]
    %v524 = vld [vmem:[%s1 + $0xf78] sm:$0xff]
    %v525 = vld [vmem:[%s1 + $0xf80] sm:$0xff]
    %v526 = vld [vmem:[%s1 + $0xf88] sm:$0xff]
    %v527 = vld [vmem:[%s1 + $0xf90] sm:$0xff]
    %v528 = vld [vmem:[%s1 + $0xf98] sm:$0xff]
    %v529 = vld [vmem:[%s1 + $0xfa0] sm:$0xff]
    %v530 = vld [vmem:[%s1 + $0xfa8] sm:$0xff]
    %v531 = vld [vmem:[%s1 + $0xfb0] sm:$0xff]
    %v532 = vld [vmem:[%s1 + $0xfb8] sm:$0xff]
    %v533 = vld [vmem:[%s1 + $0xfc0] sm:$0xff]
    %v534 = vld [vmem:[%s1 + $0xfc8] sm:$0xff]
    %v535 = vld [vmem:[%s1 + $0xfd0] sm:$0xff]
    %v536 = vld [vmem:[%s1 + $0xfd8] sm:$0xff]
    %v537 = vld [vmem:[%s1 + $0xfe0] sm:$0xff]
    %v538 = vld [vmem:[%s1 + $0xfe8] sm:$0xff]
    %v539 = vld [vmem:[%s1 + $0xff0] sm:$0xff]
    %v540 = vld [vmem:[%s1 + $0xff8] sm:$0xff]
    %v541 = vld [vmem:[%s2] sm:$0x1]
    %v543 = vlaneseq
    %v544 = vshrl.u32 %v543, 7
    %v545 = vsub.s32 0, %v544
    %v546 = vrot.slane %v541, %v545
    %v556 = vcombine.high %v21, %v21
    %v558 = vunpack.c.l.s4 1983009808
    %v559 = vunpack.c.0.s8 %v558
    %v560 = vlaneseq
    %v561 = vshrl.u32 %v560, 7
    %v562 = vsub.s32 %v559, %v561
    %v563 = vrot.slane %v21, %v562
    %v565 = vunpack.c.l.s4 1983009808
    %v566 = vunpack.c.0.s8 %v565
    %v567 = vlaneseq
    %v568 = vshrl.u32 %v567, 7
    %v569 = vsub.s32 %v566, %v568
    %v570 = vrot.slane %v556, %v569
    %v571 = vcombine.high %v563, %v563
    %v572 = vcombine.high %v570, %v570
    %v573 = vcombine.high %v22, %v22
    %v575 = vunpack.c.l.s4 1983009808
    %v576 = vunpack.c.0.s8 %v575
    %v577 = vlaneseq
    %v578 = vshrl.u32 %v577, 7
    %v579 = vsub.s32 %v576, %v578
    %v580 = vrot.slane %v22, %v579
    %v582 = vunpack.c.l.s4 1983009808
    %v583 = vunpack.c.0.s8 %v582
    %v584 = vlaneseq
    %v585 = vshrl.u32 %v584, 7
    %v586 = vsub.s32 %v583, %v585
    %v587 = vrot.slane %v573, %v586
    %v588 = vcombine.high %v580, %v580
    %v589 = vcombine.high %v587, %v587
    %v590 = vcombine.high %v23, %v23
    %v592 = vunpack.c.l.s4 1983009808
    %v593 = vunpack.c.0.s8 %v592
    %v594 = vlaneseq
    %v595 = vshrl.u32 %v594, 7
    %v596 = vsub.s32 %v593, %v595
    %v597 = vrot.slane %v23, %v596
    %v599 = vunpack.c.l.s4 1983009808
    %v600 = vunpack.c.0.s8 %v599
    %v601 = vlaneseq
    %v602 = vshrl.u32 %v601, 7
    %v603 = vsub.s32 %v600, %v602
    %v604 = vrot.slane %v590, %v603
    %v605 = vcombine.high %v597, %v597
    %v606 = vcombine.high %v604, %v604
    %v607 = vcombine.high %v24, %v24
    %v609 = vunpack.c.l.s4 1983009808
    %v610 = vunpack.c.0.s8 %v609
    %v611 = vlaneseq
    %v612 = vshrl.u32 %v611, 7
    %v613 = vsub.s32 %v610, %v612
    %v614 = vrot.slane %v24, %v613
    %v616 = vunpack.c.l.s4 1983009808
    %v617 = vunpack.c.0.s8 %v616
    %v618 = vlaneseq
    %v619 = vshrl.u32 %v618, 7
    %v620 = vsub.s32 %v617, %v619
    %v621 = vrot.slane %v607, %v620
    %v622 = vcombine.high %v614, %v614
    %v623 = vcombine.high %v621, %v621
    %v624 = vcombine.high %v25, %v25
    %v626 = vunpack.c.l.s4 1983009808
    %v627 = vunpack.c.0.s8 %v626
    %v628 = vlaneseq
    %v629 = vshrl.u32 %v628, 7
    %v630 = vsub.s32 %v627, %v629
    %v631 = vrot.slane %v25, %v630
    %v633 = vunpack.c.l.s4 1983009808
    %v634 = vunpack.c.0.s8 %v633
    %v635 = vlaneseq
    %v636 = vshrl.u32 %v635, 7
    %v637 = vsub.s32 %v634, %v636
    %v638 = vrot.slane %v624, %v637
    %v639 = vcombine.high %v631, %v631
    %v640 = vcombine.high %v638, %v638
    %v641 = vcombine.high %v26, %v26
    %v643 = vunpack.c.l.s4 1983009808
    %v644 = vunpack.c.0.s8 %v643
    %v645 = vlaneseq
    %v646 = vshrl.u32 %v645, 7
    %v647 = vsub.s32 %v644, %v646
    %v648 = vrot.slane %v26, %v647
    %v650 = vunpack.c.l.s4 1983009808
    %v651 = vunpack.c.0.s8 %v650
    %v652 = vlaneseq
    %v653 = vshrl.u32 %v652, 7
    %v654 = vsub.s32 %v651, %v653
    %v655 = vrot.slane %v641, %v654
    %v656 = vcombine.high %v648, %v648
    %v657 = vcombine.high %v655, %v655
    %v658 = vcombine.high %v27, %v27
    %v660 = vunpack.c.l.s4 1983009808
    %v661 = vunpack.c.0.s8 %v660
    %v662 = vlaneseq
    %v663 = vshrl.u32 %v662, 7
    %v664 = vsub.s32 %v661, %v663
    %v665 = vrot.slane %v27, %v664
    %v667 = vunpack.c.l.s4 1983009808
    %v668 = vunpack.c.0.s8 %v667
    %v669 = vlaneseq
    %v670 = vshrl.u32 %v669, 7
    %v671 = vsub.s32 %v668, %v670
    %v672 = vrot.slane %v658, %v671
    %v673 = vcombine.high %v665, %v665
    %v674 = vcombine.high %v672, %v672
    %v675 = vcombine.high %v28, %v28
    %v677 = vunpack.c.l.s4 1983009808
    %v678 = vunpack.c.0.s8 %v677
    %v679 = vlaneseq
    %v680 = vshrl.u32 %v679, 7
    %v681 = vsub.s32 %v678, %v680
    %v682 = vrot.slane %v28, %v681
    %v684 = vunpack.c.l.s4 1983009808
    %v685 = vunpack.c.0.s8 %v684
    %v686 = vlaneseq
    %v687 = vshrl.u32 %v686, 7
    %v688 = vsub.s32 %v685, %v687
    %v689 = vrot.slane %v675, %v688
    %v690 = vcombine.high %v682, %v682
    %v691 = vcombine.high %v689, %v689
    %724 = vmatprep.subr.mxu0 0.0
    %725 = vmatpush1.msra.mxu0 %v29
    %726 = vmatprep.subr.mxu0 0.0
    %727 = vmatpush1.msra.mxu0 %v30
    %728 = vmatprep.subr.mxu0 0.0
    %729 = vmatpush1.msra.mxu0 %v31
    %730 = vmatprep.subr.mxu0 0.0
    %731 = vmatpush1.msra.mxu0 %v32
    %732 = vmatprep.subr.mxu0 0.0
    %733 = vmatpush1.msra.mxu0 %v33
    %734 = vmatprep.subr.mxu0 0.0
    %735 = vmatpush1.msra.mxu0 %v34
    %736 = vmatprep.subr.mxu0 0.0
    %737 = vmatpush1.msra.mxu0 %v35
    %738 = vmatprep.subr.mxu0 0.0
    %739 = vmatpush1.msra.mxu0 %v36
    %740 = vmatprep.subr.mxu0 0.0
    %741 = vmatpush1.msra.mxu0 %v37
    %742 = vmatprep.subr.mxu0 0.0
    %743 = vmatpush1.msra.mxu0 %v38
    %744 = vmatprep.subr.mxu0 0.0
    %745 = vmatpush1.msra.mxu0 %v39
    %746 = vmatprep.subr.mxu0 0.0
    %747 = vmatpush1.msra.mxu0 %v40
    %748 = vmatprep.subr.mxu0 0.0
    %749 = vmatpush1.msra.mxu0 %v41
    %750 = vmatprep.subr.mxu0 0.0
    %751 = vmatpush1.msra.mxu0 %v42
    %752 = vmatprep.subr.mxu0 0.0
    %753 = vmatpush1.msra.mxu0 %v43
    %754 = vmatprep.subr.mxu0 0.0
    %755 = vmatpush1.msra.mxu0 %v44
    %756 = vmatprep.subr.mxu0 0.0
    %757 = vmatpush1.msra.mxu0 %v45
    %758 = vmatprep.subr.mxu0 0.0
    %759 = vmatpush1.msra.mxu0 %v46
    %760 = vmatprep.subr.mxu0 0.0
    %761 = vmatpush1.msra.mxu0 %v47
    %762 = vmatprep.subr.mxu0 0.0
    %763 = vmatpush1.msra.mxu0 %v48
    %764 = vmatprep.subr.mxu0 0.0
    %765 = vmatpush1.msra.mxu0 %v49
    %766 = vmatprep.subr.mxu0 0.0
    %767 = vmatpush1.msra.mxu0 %v50
    %768 = vmatprep.subr.mxu0 0.0
    %769 = vmatpush1.msra.mxu0 %v51
    %770 = vmatprep.subr.mxu0 0.0
    %771 = vmatpush1.msra.mxu0 %v52
    %772 = vmatprep.subr.mxu0 0.0
    %773 = vmatpush1.msra.mxu0 %v53
    %774 = vmatprep.subr.mxu0 0.0
    %775 = vmatpush1.msra.mxu0 %v54
    %776 = vmatprep.subr.mxu0 0.0
    %777 = vmatpush1.msra.mxu0 %v55
    %778 = vmatprep.subr.mxu0 0.0
    %779 = vmatpush1.msra.mxu0 %v56
    %780 = vmatprep.subr.mxu0 0.0
    %781 = vmatpush1.msra.mxu0 %v57
    %782 = vmatprep.subr.mxu0 0.0
    %783 = vmatpush1.msra.mxu0 %v58
    %784 = vmatprep.subr.mxu0 0.0
    %785 = vmatpush1.msra.mxu0 %v59
    %786 = vmatprep.subr.mxu0 0.0
    %787 = vmatpush1.msra.mxu0 %v60
    %788 = vmatprep.mubr.f32.mxu0 %v571
    %789 = vmatmul.mubr.f32.gmra.mrb[0].mxu0 %v563
    %v790 = vpop.f32.mrb[0].mxu0
    %v791 = vadd.f32 %v546, %v790
    %v792 = vpop.f32.mrb[0].mxu0
    %793 = vdwg.mxu0
    %794 = vmatprep.subr.mxu0 0.0
    %795 = vmatpush1.msra.mxu0 %v61
    %796 = vmatprep.subr.mxu0 0.0
    %797 = vmatpush1.msra.mxu0 %v62
    %798 = vmatprep.subr.mxu0 0.0
    %799 = vmatpush1.msra.mxu0 %v63
    %800 = vmatprep.subr.mxu0 0.0
    %801 = vmatpush1.msra.mxu0 %v64
    %802 = vmatprep.subr.mxu0 0.0
    %803 = vmatpush1.msra.mxu0 %v65
    %804 = vmatprep.subr.mxu0 0.0
    %805 = vmatpush1.msra.mxu0 %v66
    %806 = vmatprep.subr.mxu0 0.0
    %807 = vmatpush1.msra.mxu0 %v67
    %808 = vmatprep.subr.mxu0 0.0
    %809 = vmatpush1.msra.mxu0 %v68
    %810 = vmatprep.subr.mxu0 0.0
    %811 = vmatpush1.msra.mxu0 %v69
    %812 = vmatprep.subr.mxu0 0.0
    %813 = vmatpush1.msra.mxu0 %v70
    %814 = vmatprep.subr.mxu0 0.0
    %815 = vmatpush1.msra.mxu0 %v71
    %816 = vmatprep.subr.mxu0 0.0
    %817 = vmatpush1.msra.mxu0 %v72
    %818 = vmatprep.subr.mxu0 0.0
    %819 = vmatpush1.msra.mxu0 %v73
    %820 = vmatprep.subr.mxu0 0.0
    %821 = vmatpush1.msra.mxu0 %v74
    %822 = vmatprep.subr.mxu0 0.0
    %823 = vmatpush1.msra.mxu0 %v75
    %824 = vmatprep.subr.mxu0 0.0
    %825 = vmatpush1.msra.mxu0 %v76
    %826 = vmatprep.subr.mxu0 0.0
    %827 = vmatpush1.msra.mxu0 %v77
    %828 = vmatprep.subr.mxu0 0.0
    %829 = vmatpush1.msra.mxu0 %v78
    %830 = vmatprep.subr.mxu0 0.0
    %831 = vmatpush1.msra.mxu0 %v79
    %832 = vmatprep.subr.mxu0 0.0
    %833 = vmatpush1.msra.mxu0 %v80
    %834 = vmatprep.subr.mxu0 0.0
    %835 = vmatpush1.msra.mxu0 %v81
    %836 = vmatprep.subr.mxu0 0.0
    %837 = vmatpush1.msra.mxu0 %v82
    %838 = vmatprep.subr.mxu0 0.0
    %839 = vmatpush1.msra.mxu0 %v83
    %840 = vmatprep.subr.mxu0 0.0
    %841 = vmatpush1.msra.mxu0 %v84
    %842 = vmatprep.subr.mxu0 0.0
    %843 = vmatpush1.msra.mxu0 %v85
    %844 = vmatprep.subr.mxu0 0.0
    %845 = vmatpush1.msra.mxu0 %v86
    %846 = vmatprep.subr.mxu0 0.0
    %847 = vmatpush1.msra.mxu0 %v87
    %848 = vmatprep.subr.mxu0 0.0
    %849 = vmatpush1.msra.mxu0 %v88
    %850 = vmatprep.subr.mxu0 0.0
    %851 = vmatpush1.msra.mxu0 %v89
    %852 = vmatprep.subr.mxu0 0.0
    %853 = vmatpush1.msra.mxu0 %v90
    %854 = vmatprep.subr.mxu0 0.0
    %855 = vmatpush1.msra.mxu0 %v91
    %856 = vmatprep.subr.mxu0 0.0
    %857 = vmatpush1.msra.mxu0 %v92
    %858 = vmatprep.mubr.f32.mxu0 %v572
    %859 = vmatmul.mubr.f32.gmra.mrb[0].mxu0 %v570
    %v860 = vpop.f32.mrb[0].mxu0
    %v861 = vadd.f32 %v791, %v860
    %v862 = vpop.f32.mrb[0].mxu0
    %863 = vdwg.mxu0
    %864 = vmatprep.subr.mxu0 0.0
    %865 = vmatpush1.msra.mxu0 %v93
    %866 = vmatprep.subr.mxu0 0.0
    %867 = vmatpush1.msra.mxu0 %v94
    %868 = vmatprep.subr.mxu0 0.0
    %869 = vmatpush1.msra.mxu0 %v95
    %870 = vmatprep.subr.mxu0 0.0
    %871 = vmatpush1.msra.mxu0 %v96
    %872 = vmatprep.subr.mxu0 0.0
    %873 = vmatpush1.msra.mxu0 %v97
    %874 = vmatprep.subr.mxu0 0.0
    %875 = vmatpush1.msra.mxu0 %v98
    %876 = vmatprep.subr.mxu0 0.0
    %877 = vmatpush1.msra.mxu0 %v99
    %878 = vmatprep.subr.mxu0 0.0
    %879 = vmatpush1.msra.mxu0 %v100
    %880 = vmatprep.subr.mxu0 0.0
    %881 = vmatpush1.msra.mxu0 %v101
    %882 = vmatprep.subr.mxu0 0.0
    %883 = vmatpush1.msra.mxu0 %v102
    %884 = vmatprep.subr.mxu0 0.0
    %885 = vmatpush1.msra.mxu0 %v103
    %886 = vmatprep.subr.mxu0 0.0
    %887 = vmatpush1.msra.mxu0 %v104
    %888 = vmatprep.subr.mxu0 0.0
    %889 = vmatpush1.msra.mxu0 %v105
    %890 = vmatprep.subr.mxu0 0.0
    %891 = vmatpush1.msra.mxu0 %v106
    %892 = vmatprep.subr.mxu0 0.0
    %893 = vmatpush1.msra.mxu0 %v107
    %894 = vmatprep.subr.mxu0 0.0
    %895 = vmatpush1.msra.mxu0 %v108
    %896 = vmatprep.subr.mxu0 0.0
    %897 = vmatpush1.msra.mxu0 %v109
    %898 = vmatprep.subr.mxu0 0.0
    %899 = vmatpush1.msra.mxu0 %v110
    %900 = vmatprep.subr.mxu0 0.0
    %901 = vmatpush1.msra.mxu0 %v111
    %902 = vmatprep.subr.mxu0 0.0
    %903 = vmatpush1.msra.mxu0 %v112
    %904 = vmatprep.subr.mxu0 0.0
    %905 = vmatpush1.msra.mxu0 %v113
    %906 = vmatprep.subr.mxu0 0.0
    %907 = vmatpush1.msra.mxu0 %v114
    %908 = vmatprep.subr.mxu0 0.0
    %909 = vmatpush1.msra.mxu0 %v115
    %910 = vmatprep.subr.mxu0 0.0
    %911 = vmatpush1.msra.mxu0 %v116
    %912 = vmatprep.subr.mxu0 0.0
    %913 = vmatpush1.msra.mxu0 %v117
    %914 = vmatprep.subr.mxu0 0.0
    %915 = vmatpush1.msra.mxu0 %v118
    %916 = vmatprep.subr.mxu0 0.0
    %917 = vmatpush1.msra.mxu0 %v119
    %918 = vmatprep.subr.mxu0 0.0
    %919 = vmatpush1.msra.mxu0 %v120
    %920 = vmatprep.subr.mxu0 0.0
    %921 = vmatpush1.msra.mxu0 %v121
    %922 = vmatprep.subr.mxu0 0.0
    %923 = vmatpush1.msra.mxu0 %v122
    %924 = vmatprep.subr.mxu0 0.0
    %925 = vmatpush1.msra.mxu0 %v123
    %926 = vmatprep.subr.mxu0 0.0
    %927 = vmatpush1.msra.mxu0 %v124
    %928 = vmatprep.mubr.f32.mxu0 %v588
    %929 = vmatmul.mubr.f32.gmra.mrb[0].mxu0 %v580
    %v930 = vpop.f32.mrb[0].mxu0
    %v931 = vadd.f32 %v861, %v930
    %v932 = vpop.f32.mrb[0].mxu0
    %933 = vdwg.mxu0
    %934 = vmatprep.subr.mxu0 0.0
    %935 = vmatpush1.msra.mxu0 %v125
    %936 = vmatprep.subr.mxu0 0.0
    %937 = vmatpush1.msra.mxu0 %v126
    %938 = vmatprep.subr.mxu0 0.0
    %939 = vmatpush1.msra.mxu0 %v127
    %940 = vmatprep.subr.mxu0 0.0
    %941 = vmatpush1.msra.mxu0 %v128
    %942 = vmatprep.subr.mxu0 0.0
    %943 = vmatpush1.msra.mxu0 %v129
    %944 = vmatprep.subr.mxu0 0.0
    %945 = vmatpush1.msra.mxu0 %v130
    %946 = vmatprep.subr.mxu0 0.0
    %947 = vmatpush1.msra.mxu0 %v131
    %948 = vmatprep.subr.mxu0 0.0
    %949 = vmatpush1.msra.mxu0 %v132
    %950 = vmatprep.subr.mxu0 0.0
    %951 = vmatpush1.msra.mxu0 %v133
    %952 = vmatprep.subr.mxu0 0.0
    %953 = vmatpush1.msra.mxu0 %v134
    %954 = vmatprep.subr.mxu0 0.0
    %955 = vmatpush1.msra.mxu0 %v135
    %956 = vmatprep.subr.mxu0 0.0
    %957 = vmatpush1.msra.mxu0 %v136
    %958 = vmatprep.subr.mxu0 0.0
    %959 = vmatpush1.msra.mxu0 %v137
    %960 = vmatprep.subr.mxu0 0.0
    %961 = vmatpush1.msra.mxu0 %v138
    %962 = vmatprep.subr.mxu0 0.0
    %963 = vmatpush1.msra.mxu0 %v139
    %964 = vmatprep.subr.mxu0 0.0
    %965 = vmatpush1.msra.mxu0 %v140
    %966 = vmatprep.subr.mxu0 0.0
    %967 = vmatpush1.msra.mxu0 %v141
    %968 = vmatprep.subr.mxu0 0.0
    %969 = vmatpush1.msra.mxu0 %v142
    %970 = vmatprep.subr.mxu0 0.0
    %971 = vmatpush1.msra.mxu0 %v143
    %972 = vmatprep.subr.mxu0 0.0
    %973 = vmatpush1.msra.mxu0 %v144
    %974 = vmatprep.subr.mxu0 0.0
    %975 = vmatpush1.msra.mxu0 %v145
    %976 = vmatprep.subr.mxu0 0.0
    %977 = vmatpush1.msra.mxu0 %v146
    %978 = vmatprep.subr.mxu0 0.0
    %979 = vmatpush1.msra.mxu0 %v147
    %980 = vmatprep.subr.mxu0 0.0
    %981 = vmatpush1.msra.mxu0 %v148
    %982 = vmatprep.subr.mxu0 0.0
    %983 = vmatpush1.msra.mxu0 %v149
    %984 = vmatprep.subr.mxu0 0.0
    %985 = vmatpush1.msra.mxu0 %v150
    %986 = vmatprep.subr.mxu0 0.0
    %987 = vmatpush1.msra.mxu0 %v151
    %988 = vmatprep.subr.mxu0 0.0
    %989 = vmatpush1.msra.mxu0 %v152
    %990 = vmatprep.subr.mxu0 0.0
    %991 = vmatpush1.msra.mxu0 %v153
    %992 = vmatprep.subr.mxu0 0.0
    %993 = vmatpush1.msra.mxu0 %v154
    %994 = vmatprep.subr.mxu0 0.0
    %995 = vmatpush1.msra.mxu0 %v155
    %996 = vmatprep.subr.mxu0 0.0
    %997 = vmatpush1.msra.mxu0 %v156
    %998 = vmatprep.mubr.f32.mxu0 %v589
    %999 = vmatmul.mubr.f32.gmra.mrb[0].mxu0 %v587
    %v1000 = vpop.f32.mrb[0].mxu0
    %v1001 = vadd.f32 %v931, %v1000
    %v1002 = vpop.f32.mrb[0].mxu0
    %1003 = vdwg.mxu0
    %1004 = vmatprep.subr.mxu0 0.0
    %1005 = vmatpush1.msra.mxu0 %v157
    %1006 = vmatprep.subr.mxu0 0.0
    %1007 = vmatpush1.msra.mxu0 %v158
    %1008 = vmatprep.subr.mxu0 0.0
    %1009 = vmatpush1.msra.mxu0 %v159
    %1010 = vmatprep.subr.mxu0 0.0
    %1011 = vmatpush1.msra.mxu0 %v160
    %1012 = vmatprep.subr.mxu0 0.0
    %1013 = vmatpush1.msra.mxu0 %v161
    %1014 = vmatprep.subr.mxu0 0.0
    %1015 = vmatpush1.msra.mxu0 %v162
    %1016 = vmatprep.subr.mxu0 0.0
    %1017 = vmatpush1.msra.mxu0 %v163
    %1018 = vmatprep.subr.mxu0 0.0
    %1019 = vmatpush1.msra.mxu0 %v164
    %1020 = vmatprep.subr.mxu0 0.0
    %1021 = vmatpush1.msra.mxu0 %v165
    %1022 = vmatprep.subr.mxu0 0.0
    %1023 = vmatpush1.msra.mxu0 %v166
    %1024 = vmatprep.subr.mxu0 0.0
    %1025 = vmatpush1.msra.mxu0 %v167
    %1026 = vmatprep.subr.mxu0 0.0
    %1027 = vmatpush1.msra.mxu0 %v168
    %1028 = vmatprep.subr.mxu0 0.0
    %1029 = vmatpush1.msra.mxu0 %v169
    %1030 = vmatprep.subr.mxu0 0.0
    %1031 = vmatpush1.msra.mxu0 %v170
    %1032 = vmatprep.subr.mxu0 0.0
    %1033 = vmatpush1.msra.mxu0 %v171
    %1034 = vmatprep.subr.mxu0 0.0
    %1035 = vmatpush1.msra.mxu0 %v172
    %1036 = vmatprep.subr.mxu0 0.0
    %1037 = vmatpush1.msra.mxu0 %v173
    %1038 = vmatprep.subr.mxu0 0.0
    %1039 = vmatpush1.msra.mxu0 %v174
    %1040 = vmatprep.subr.mxu0 0.0
    %1041 = vmatpush1.msra.mxu0 %v175
    %1042 = vmatprep.subr.mxu0 0.0
    %1043 = vmatpush1.msra.mxu0 %v176
    %1044 = vmatprep.subr.mxu0 0.0
    %1045 = vmatpush1.msra.mxu0 %v177
    %1046 = vmatprep.subr.mxu0 0.0
    %1047 = vmatpush1.msra.mxu0 %v178
    %1048 = vmatprep.subr.mxu0 0.0
    %1049 = vmatpush1.msra.mxu0 %v179
    %1050 = vmatprep.subr.mxu0 0.0
    %1051 = vmatpush1.msra.mxu0 %v180
    %1052 = vmatprep.subr.mxu0 0.0
    %1053 = vmatpush1.msra.mxu0 %v181
    %1054 = vmatprep.subr.mxu0 0.0
    %1055 = vmatpush1.msra.mxu0 %v182
    %1056 = vmatprep.subr.mxu0 0.0
    %1057 = vmatpush1.msra.mxu0 %v183
    %1058 = vmatprep.subr.mxu0 0.0
    %1059 = vmatpush1.msra.mxu0 %v184
    %1060 = vmatprep.subr.mxu0 0.0
    %1061 = vmatpush1.msra.mxu0 %v185
    %1062 = vmatprep.subr.mxu0 0.0
    %1063 = vmatpush1.msra.mxu0 %v186
    %1064 = vmatprep.subr.mxu0 0.0
    %1065 = vmatpush1.msra.mxu0 %v187
    %1066 = vmatprep.subr.mxu0 0.0
    %1067 = vmatpush1.msra.mxu0 %v188
    %1068 = vmatprep.mubr.f32.mxu0 %v605
    %1069 = vmatmul.mubr.f32.gmra.mrb[0].mxu0 %v597
    %v1070 = vpop.f32.mrb[0].mxu0
    %v1071 = vadd.f32 %v1001, %v1070
    %v1072 = vpop.f32.mrb[0].mxu0
    %1073 = vdwg.mxu0
    %1074 = vmatprep.subr.mxu0 0.0
    %1075 = vmatpush1.msra.mxu0 %v189
    %1076 = vmatprep.subr.mxu0 0.0
    %1077 = vmatpush1.msra.mxu0 %v190
    %1078 = vmatprep.subr.mxu0 0.0
    %1079 = vmatpush1.msra.mxu0 %v191
    %1080 = vmatprep.subr.mxu0 0.0
    %1081 = vmatpush1.msra.mxu0 %v192
    %1082 = vmatprep.subr.mxu0 0.0
    %1083 = vmatpush1.msra.mxu0 %v193
    %1084 = vmatprep.subr.mxu0 0.0
    %1085 = vmatpush1.msra.mxu0 %v194
    %1086 = vmatprep.subr.mxu0 0.0
    %1087 = vmatpush1.msra.mxu0 %v195
    %1088 = vmatprep.subr.mxu0 0.0
    %1089 = vmatpush1.msra.mxu0 %v196
    %1090 = vmatprep.subr.mxu0 0.0
    %1091 = vmatpush1.msra.mxu0 %v197
    %1092 = vmatprep.subr.mxu0 0.0
    %1093 = vmatpush1.msra.mxu0 %v198
    %1094 = vmatprep.subr.mxu0 0.0
    %1095 = vmatpush1.msra.mxu0 %v199
    %1096 = vmatprep.subr.mxu0 0.0
    %1097 = vmatpush1.msra.mxu0 %v200
    %1098 = vmatprep.subr.mxu0 0.0
    %1099 = vmatpush1.msra.mxu0 %v201
    %1100 = vmatprep.subr.mxu0 0.0
    %1101 = vmatpush1.msra.mxu0 %v202
    %1102 = vmatprep.subr.mxu0 0.0
    %1103 = vmatpush1.msra.mxu0 %v203
    %1104 = vmatprep.subr.mxu0 0.0
    %1105 = vmatpush1.msra.mxu0 %v204
    %1106 = vmatprep.subr.mxu0 0.0
    %1107 = vmatpush1.msra.mxu0 %v205
    %1108 = vmatprep.subr.mxu0 0.0
    %1109 = vmatpush1.msra.mxu0 %v206
    %1110 = vmatprep.subr.mxu0 0.0
    %1111 = vmatpush1.msra.mxu0 %v207
    %1112 = vmatprep.subr.mxu0 0.0
    %1113 = vmatpush1.msra.mxu0 %v208
    %1114 = vmatprep.subr.mxu0 0.0
    %1115 = vmatpush1.msra.mxu0 %v209
    %1116 = vmatprep.subr.mxu0 0.0
    %1117 = vmatpush1.msra.mxu0 %v210
    %1118 = vmatprep.subr.mxu0 0.0
    %1119 = vmatpush1.msra.mxu0 %v211
    %1120 = vmatprep.subr.mxu0 0.0
    %1121 = vmatpush1.msra.mxu0 %v212
    %1122 = vmatprep.subr.mxu0 0.0
    %1123 = vmatpush1.msra.mxu0 %v213
    %1124 = vmatprep.subr.mxu0 0.0
    %1125 = vmatpush1.msra.mxu0 %v214
    %1126 = vmatprep.subr.mxu0 0.0
    %1127 = vmatpush1.msra.mxu0 %v215
    %1128 = vmatprep.subr.mxu0 0.0
    %1129 = vmatpush1.msra.mxu0 %v216
    %1130 = vmatprep.subr.mxu0 0.0
    %1131 = vmatpush1.msra.mxu0 %v217
    %1132 = vmatprep.subr.mxu0 0.0
    %1133 = vmatpush1.msra.mxu0 %v218
    %1134 = vmatprep.subr.mxu0 0.0
    %1135 = vmatpush1.msra.mxu0 %v219
    %1136 = vmatprep.subr.mxu0 0.0
    %1137 = vmatpush1.msra.mxu0 %v220
    %1138 = vmatprep.mubr.f32.mxu0 %v606
    %1139 = vmatmul.mubr.f32.gmra.mrb[0].mxu0 %v604
    %v1140 = vpop.f32.mrb[0].mxu0
    %v1141 = vadd.f32 %v1071, %v1140
    %v1142 = vpop.f32.mrb[0].mxu0
    %1143 = vdwg.mxu0
    %1144 = vmatprep.subr.mxu0 0.0
    %1145 = vmatpush1.msra.mxu0 %v221
    %1146 = vmatprep.subr.mxu0 0.0
    %1147 = vmatpush1.msra.mxu0 %v222
    %1148 = vmatprep.subr.mxu0 0.0
    %1149 = vmatpush1.msra.mxu0 %v223
    %1150 = vmatprep.subr.mxu0 0.0
    %1151 = vmatpush1.msra.mxu0 %v224
    %1152 = vmatprep.subr.mxu0 0.0
    %1153 = vmatpush1.msra.mxu0 %v225
    %1154 = vmatprep.subr.mxu0 0.0
    %1155 = vmatpush1.msra.mxu0 %v226
    %1156 = vmatprep.subr.mxu0 0.0
    %1157 = vmatpush1.msra.mxu0 %v227
    %1158 = vmatprep.subr.mxu0 0.0
    %1159 = vmatpush1.msra.mxu0 %v228
    %1160 = vmatprep.subr.mxu0 0.0
    %1161 = vmatpush1.msra.mxu0 %v229
    %1162 = vmatprep.subr.mxu0 0.0
    %1163 = vmatpush1.msra.mxu0 %v230
    %1164 = vmatprep.subr.mxu0 0.0
    %1165 = vmatpush1.msra.mxu0 %v231
    %1166 = vmatprep.subr.mxu0 0.0
    %1167 = vmatpush1.msra.mxu0 %v232
    %1168 = vmatprep.subr.mxu0 0.0
    %1169 = vmatpush1.msra.mxu0 %v233
    %1170 = vmatprep.subr.mxu0 0.0
    %1171 = vmatpush1.msra.mxu0 %v234
    %1172 = vmatprep.subr.mxu0 0.0
    %1173 = vmatpush1.msra.mxu0 %v235
    %1174 = vmatprep.subr.mxu0 0.0
    %1175 = vmatpush1.msra.mxu0 %v236
    %1176 = vmatprep.subr.mxu0 0.0
    %1177 = vmatpush1.msra.mxu0 %v237
    %1178 = vmatprep.subr.mxu0 0.0
    %1179 = vmatpush1.msra.mxu0 %v238
    %1180 = vmatprep.subr.mxu0 0.0
    %1181 = vmatpush1.msra.mxu0 %v239
    %1182 = vmatprep.subr.mxu0 0.0
    %1183 = vmatpush1.msra.mxu0 %v240
    %1184 = vmatprep.subr.mxu0 0.0
    %1185 = vmatpush1.msra.mxu0 %v241
    %1186 = vmatprep.subr.mxu0 0.0
    %1187 = vmatpush1.msra.mxu0 %v242
    %1188 = vmatprep.subr.mxu0 0.0
    %1189 = vmatpush1.msra.mxu0 %v243
    %1190 = vmatprep.subr.mxu0 0.0
    %1191 = vmatpush1.msra.mxu0 %v244
    %1192 = vmatprep.subr.mxu0 0.0
    %1193 = vmatpush1.msra.mxu0 %v245
    %1194 = vmatprep.subr.mxu0 0.0
    %1195 = vmatpush1.msra.mxu0 %v246
    %1196 = vmatprep.subr.mxu0 0.0
    %1197 = vmatpush1.msra.mxu0 %v247
    %1198 = vmatprep.subr.mxu0 0.0
    %1199 = vmatpush1.msra.mxu0 %v248
    %1200 = vmatprep.subr.mxu0 0.0
    %1201 = vmatpush1.msra.mxu0 %v249
    %1202 = vmatprep.subr.mxu0 0.0
    %1203 = vmatpush1.msra.mxu0 %v250
    %1204 = vmatprep.subr.mxu0 0.0
    %1205 = vmatpush1.msra.mxu0 %v251
    %1206 = vmatprep.subr.mxu0 0.0
    %1207 = vmatpush1.msra.mxu0 %v252
    %1208 = vmatprep.mubr.f32.mxu0 %v622
    %1209 = vmatmul.mubr.f32.gmra.mrb[0].mxu0 %v614
    %v1210 = vpop.f32.mrb[0].mxu0
    %v1211 = vadd.f32 %v1141, %v1210
    %v1212 = vpop.f32.mrb[0].mxu0
    %1213 = vdwg.mxu0
    %1214 = vmatprep.subr.mxu0 0.0
    %1215 = vmatpush1.msra.mxu0 %v253
    %1216 = vmatprep.subr.mxu0 0.0
    %1217 = vmatpush1.msra.mxu0 %v254
    %1218 = vmatprep.subr.mxu0 0.0
    %1219 = vmatpush1.msra.mxu0 %v255
    %1220 = vmatprep.subr.mxu0 0.0
    %1221 = vmatpush1.msra.mxu0 %v256
    %1222 = vmatprep.subr.mxu0 0.0
    %1223 = vmatpush1.msra.mxu0 %v257
    %1224 = vmatprep.subr.mxu0 0.0
    %1225 = vmatpush1.msra.mxu0 %v258
    %1226 = vmatprep.subr.mxu0 0.0
    %1227 = vmatpush1.msra.mxu0 %v259
    %1228 = vmatprep.subr.mxu0 0.0
    %1229 = vmatpush1.msra.mxu0 %v260
    %1230 = vmatprep.subr.mxu0 0.0
    %1231 = vmatpush1.msra.mxu0 %v261
    %1232 = vmatprep.subr.mxu0 0.0
    %1233 = vmatpush1.msra.mxu0 %v262
    %1234 = vmatprep.subr.mxu0 0.0
    %1235 = vmatpush1.msra.mxu0 %v263
    %1236 = vmatprep.subr.mxu0 0.0
    %1237 = vmatpush1.msra.mxu0 %v264
    %1238 = vmatprep.subr.mxu0 0.0
    %1239 = vmatpush1.msra.mxu0 %v265
    %1240 = vmatprep.subr.mxu0 0.0
    %1241 = vmatpush1.msra.mxu0 %v266
    %1242 = vmatprep.subr.mxu0 0.0
    %1243 = vmatpush1.msra.mxu0 %v267
    %1244 = vmatprep.subr.mxu0 0.0
    %1245 = vmatpush1.msra.mxu0 %v268
    %1246 = vmatprep.subr.mxu0 0.0
    %1247 = vmatpush1.msra.mxu0 %v269
    %1248 = vmatprep.subr.mxu0 0.0
    %1249 = vmatpush1.msra.mxu0 %v270
    %1250 = vmatprep.subr.mxu0 0.0
    %1251 = vmatpush1.msra.mxu0 %v271
    %1252 = vmatprep.subr.mxu0 0.0
    %1253 = vmatpush1.msra.mxu0 %v272
    %1254 = vmatprep.subr.mxu0 0.0
    %1255 = vmatpush1.msra.mxu0 %v273
    %1256 = vmatprep.subr.mxu0 0.0
    %1257 = vmatpush1.msra.mxu0 %v274
    %1258 = vmatprep.subr.mxu0 0.0
    %1259 = vmatpush1.msra.mxu0 %v275
    %1260 = vmatprep.subr.mxu0 0.0
    %1261 = vmatpush1.msra.mxu0 %v276
    %1262 = vmatprep.subr.mxu0 0.0
    %1263 = vmatpush1.msra.mxu0 %v277
    %1264 = vmatprep.subr.mxu0 0.0
    %1265 = vmatpush1.msra.mxu0 %v278
    %1266 = vmatprep.subr.mxu0 0.0
    %1267 = vmatpush1.msra.mxu0 %v279
    %1268 = vmatprep.subr.mxu0 0.0
    %1269 = vmatpush1.msra.mxu0 %v280
    %1270 = vmatprep.subr.mxu0 0.0
    %1271 = vmatpush1.msra.mxu0 %v281
    %1272 = vmatprep.subr.mxu0 0.0
    %1273 = vmatpush1.msra.mxu0 %v282
    %1274 = vmatprep.subr.mxu0 0.0
    %1275 = vmatpush1.msra.mxu0 %v283
    %1276 = vmatprep.subr.mxu0 0.0
    %1277 = vmatpush1.msra.mxu0 %v284
    %1278 = vmatprep.mubr.f32.mxu0 %v623
    %1279 = vmatmul.mubr.f32.gmra.mrb[0].mxu0 %v621
    %v1280 = vpop.f32.mrb[0].mxu0
    %v1281 = vadd.f32 %v1211, %v1280
    %v1282 = vpop.f32.mrb[0].mxu0
    %1283 = vdwg.mxu0
    %1284 = vmatprep.subr.mxu0 0.0
    %1285 = vmatpush1.msra.mxu0 %v285
    %1286 = vmatprep.subr.mxu0 0.0
    %1287 = vmatpush1.msra.mxu0 %v286
    %1288 = vmatprep.subr.mxu0 0.0
    %1289 = vmatpush1.msra.mxu0 %v287
    %1290 = vmatprep.subr.mxu0 0.0
    %1291 = vmatpush1.msra.mxu0 %v288
    %1292 = vmatprep.subr.mxu0 0.0
    %1293 = vmatpush1.msra.mxu0 %v289
    %1294 = vmatprep.subr.mxu0 0.0
    %1295 = vmatpush1.msra.mxu0 %v290
    %1296 = vmatprep.subr.mxu0 0.0
    %1297 = vmatpush1.msra.mxu0 %v291
    %1298 = vmatprep.subr.mxu0 0.0
    %1299 = vmatpush1.msra.mxu0 %v292
    %1300 = vmatprep.subr.mxu0 0.0
    %1301 = vmatpush1.msra.mxu0 %v293
    %1302 = vmatprep.subr.mxu0 0.0
    %1303 = vmatpush1.msra.mxu0 %v294
    %1304 = vmatprep.subr.mxu0 0.0
    %1305 = vmatpush1.msra.mxu0 %v295
    %1306 = vmatprep.subr.mxu0 0.0
    %1307 = vmatpush1.msra.mxu0 %v296
    %1308 = vmatprep.subr.mxu0 0.0
    %1309 = vmatpush1.msra.mxu0 %v297
    %1310 = vmatprep.subr.mxu0 0.0
    %1311 = vmatpush1.msra.mxu0 %v298
    %1312 = vmatprep.subr.mxu0 0.0
    %1313 = vmatpush1.msra.mxu0 %v299
    %1314 = vmatprep.subr.mxu0 0.0
    %1315 = vmatpush1.msra.mxu0 %v300
    %1316 = vmatprep.subr.mxu0 0.0
    %1317 = vmatpush1.msra.mxu0 %v301
    %1318 = vmatprep.subr.mxu0 0.0
    %1319 = vmatpush1.msra.mxu0 %v302
    %1320 = vmatprep.subr.mxu0 0.0
    %1321 = vmatpush1.msra.mxu0 %v303
    %1322 = vmatprep.subr.mxu0 0.0
    %1323 = vmatpush1.msra.mxu0 %v304
    %1324 = vmatprep.subr.mxu0 0.0
    %1325 = vmatpush1.msra.mxu0 %v305
    %1326 = vmatprep.subr.mxu0 0.0
    %1327 = vmatpush1.msra.mxu0 %v306
    %1328 = vmatprep.subr.mxu0 0.0
    %1329 = vmatpush1.msra.mxu0 %v307
    %1330 = vmatprep.subr.mxu0 0.0
    %1331 = vmatpush1.msra.mxu0 %v308
    %1332 = vmatprep.subr.mxu0 0.0
    %1333 = vmatpush1.msra.mxu0 %v309
    %1334 = vmatprep.subr.mxu0 0.0
    %1335 = vmatpush1.msra.mxu0 %v310
    %1336 = vmatprep.subr.mxu0 0.0
    %1337 = vmatpush1.msra.mxu0 %v311
    %1338 = vmatprep.subr.mxu0 0.0
    %1339 = vmatpush1.msra.mxu0 %v312
    %1340 = vmatprep.subr.mxu0 0.0
    %1341 = vmatpush1.msra.mxu0 %v313
    %1342 = vmatprep.subr.mxu0 0.0
    %1343 = vmatpush1.msra.mxu0 %v314
    %1344 = vmatprep.subr.mxu0 0.0
    %1345 = vmatpush1.msra.mxu0 %v315
    %1346 = vmatprep.subr.mxu0 0.0
    %1347 = vmatpush1.msra.mxu0 %v316
    %1348 = vmatprep.mubr.f32.mxu0 %v639
    %1349 = vmatmul.mubr.f32.gmra.mrb[0].mxu0 %v631
    %v1350 = vpop.f32.mrb[0].mxu0
    %v1351 = vadd.f32 %v1281, %v1350
    %v1352 = vpop.f32.mrb[0].mxu0
    %1353 = vdwg.mxu0
    %1354 = vmatprep.subr.mxu0 0.0
    %1355 = vmatpush1.msra.mxu0 %v317
    %1356 = vmatprep.subr.mxu0 0.0
    %1357 = vmatpush1.msra.mxu0 %v318
    %1358 = vmatprep.subr.mxu0 0.0
    %1359 = vmatpush1.msra.mxu0 %v319
    %1360 = vmatprep.subr.mxu0 0.0
    %1361 = vmatpush1.msra.mxu0 %v320
    %1362 = vmatprep.subr.mxu0 0.0
    %1363 = vmatpush1.msra.mxu0 %v321
    %1364 = vmatprep.subr.mxu0 0.0
    %1365 = vmatpush1.msra.mxu0 %v322
    %1366 = vmatprep.subr.mxu0 0.0
    %1367 = vmatpush1.msra.mxu0 %v323
    %1368 = vmatprep.subr.mxu0 0.0
    %1369 = vmatpush1.msra.mxu0 %v324
    %1370 = vmatprep.subr.mxu0 0.0
    %1371 = vmatpush1.msra.mxu0 %v325
    %1372 = vmatprep.subr.mxu0 0.0
    %1373 = vmatpush1.msra.mxu0 %v326
    %1374 = vmatprep.subr.mxu0 0.0
    %1375 = vmatpush1.msra.mxu0 %v327
    %1376 = vmatprep.subr.mxu0 0.0
    %1377 = vmatpush1.msra.mxu0 %v328
    %1378 = vmatprep.subr.mxu0 0.0
    %1379 = vmatpush1.msra.mxu0 %v329
    %1380 = vmatprep.subr.mxu0 0.0
    %1381 = vmatpush1.msra.mxu0 %v330
    %1382 = vmatprep.subr.mxu0 0.0
    %1383 = vmatpush1.msra.mxu0 %v331
    %1384 = vmatprep.subr.mxu0 0.0
    %1385 = vmatpush1.msra.mxu0 %v332
    %1386 = vmatprep.subr.mxu0 0.0
    %1387 = vmatpush1.msra.mxu0 %v333
    %1388 = vmatprep.subr.mxu0 0.0
    %1389 = vmatpush1.msra.mxu0 %v334
    %1390 = vmatprep.subr.mxu0 0.0
    %1391 = vmatpush1.msra.mxu0 %v335
    %1392 = vmatprep.subr.mxu0 0.0
    %1393 = vmatpush1.msra.mxu0 %v336
    %1394 = vmatprep.subr.mxu0 0.0
    %1395 = vmatpush1.msra.mxu0 %v337
    %1396 = vmatprep.subr.mxu0 0.0
    %1397 = vmatpush1.msra.mxu0 %v338
    %1398 = vmatprep.subr.mxu0 0.0
    %1399 = vmatpush1.msra.mxu0 %v339
    %1400 = vmatprep.subr.mxu0 0.0
    %1401 = vmatpush1.msra.mxu0 %v340
    %1402 = vmatprep.subr.mxu0 0.0
    %1403 = vmatpush1.msra.mxu0 %v341
    %1404 = vmatprep.subr.mxu0 0.0
    %1405 = vmatpush1.msra.mxu0 %v342
    %1406 = vmatprep.subr.mxu0 0.0
    %1407 = vmatpush1.msra.mxu0 %v343
    %1408 = vmatprep.subr.mxu0 0.0
    %1409 = vmatpush1.msra.mxu0 %v344
    %1410 = vmatprep.subr.mxu0 0.0
    %1411 = vmatpush1.msra.mxu0 %v345
    %1412 = vmatprep.subr.mxu0 0.0
    %1413 = vmatpush1.msra.mxu0 %v346
    %1414 = vmatprep.subr.mxu0 0.0
    %1415 = vmatpush1.msra.mxu0 %v347
    %1416 = vmatprep.subr.mxu0 0.0
    %1417 = vmatpush1.msra.mxu0 %v348
    %1418 = vmatprep.mubr.f32.mxu0 %v640
    %1419 = vmatmul.mubr.f32.gmra.mrb[0].mxu0 %v638
    %v1420 = vpop.f32.mrb[0].mxu0
    %v1421 = vadd.f32 %v1351, %v1420
    %v1422 = vpop.f32.mrb[0].mxu0
    %1423 = vdwg.mxu0
    %1424 = vmatprep.subr.mxu0 0.0
    %1425 = vmatpush1.msra.mxu0 %v349
    %1426 = vmatprep.subr.mxu0 0.0
    %1427 = vmatpush1.msra.mxu0 %v350
    %1428 = vmatprep.subr.mxu0 0.0
    %1429 = vmatpush1.msra.mxu0 %v351
    %1430 = vmatprep.subr.mxu0 0.0
    %1431 = vmatpush1.msra.mxu0 %v352
    %1432 = vmatprep.subr.mxu0 0.0
    %1433 = vmatpush1.msra.mxu0 %v353
    %1434 = vmatprep.subr.mxu0 0.0
    %1435 = vmatpush1.msra.mxu0 %v354
    %1436 = vmatprep.subr.mxu0 0.0
    %1437 = vmatpush1.msra.mxu0 %v355
    %1438 = vmatprep.subr.mxu0 0.0
    %1439 = vmatpush1.msra.mxu0 %v356
    %1440 = vmatprep.subr.mxu0 0.0
    %1441 = vmatpush1.msra.mxu0 %v357
    %1442 = vmatprep.subr.mxu0 0.0
    %1443 = vmatpush1.msra.mxu0 %v358
    %1444 = vmatprep.subr.mxu0 0.0
    %1445 = vmatpush1.msra.mxu0 %v359
    %1446 = vmatprep.subr.mxu0 0.0
    %1447 = vmatpush1.msra.mxu0 %v360
    %1448 = vmatprep.subr.mxu0 0.0
    %1449 = vmatpush1.msra.mxu0 %v361
    %1450 = vmatprep.subr.mxu0 0.0
    %1451 = vmatpush1.msra.mxu0 %v362
    %1452 = vmatprep.subr.mxu0 0.0
    %1453 = vmatpush1.msra.mxu0 %v363
    %1454 = vmatprep.subr.mxu0 0.0
    %1455 = vmatpush1.msra.mxu0 %v364
    %1456 = vmatprep.subr.mxu0 0.0
    %1457 = vmatpush1.msra.mxu0 %v365
    %1458 = vmatprep.subr.mxu0 0.0
    %1459 = vmatpush1.msra.mxu0 %v366
    %1460 = vmatprep.subr.mxu0 0.0
    %1461 = vmatpush1.msra.mxu0 %v367
    %1462 = vmatprep.subr.mxu0 0.0
    %1463 = vmatpush1.msra.mxu0 %v368
    %1464 = vmatprep.subr.mxu0 0.0
    %1465 = vmatpush1.msra.mxu0 %v369
    %1466 = vmatprep.subr.mxu0 0.0
    %1467 = vmatpush1.msra.mxu0 %v370
    %1468 = vmatprep.subr.mxu0 0.0
    %1469 = vmatpush1.msra.mxu0 %v371
    %1470 = vmatprep.subr.mxu0 0.0
    %1471 = vmatpush1.msra.mxu0 %v372
    %1472 = vmatprep.subr.mxu0 0.0
    %1473 = vmatpush1.msra.mxu0 %v373
    %1474 = vmatprep.subr.mxu0 0.0
    %1475 = vmatpush1.msra.mxu0 %v374
    %1476 = vmatprep.subr.mxu0 0.0
    %1477 = vmatpush1.msra.mxu0 %v375
    %1478 = vmatprep.subr.mxu0 0.0
    %1479 = vmatpush1.msra.mxu0 %v376
    %1480 = vmatprep.subr.mxu0 0.0
    %1481 = vmatpush1.msra.mxu0 %v377
    %1482 = vmatprep.subr.mxu0 0.0
    %1483 = vmatpush1.msra.mxu0 %v378
    %1484 = vmatprep.subr.mxu0 0.0
    %1485 = vmatpush1.msra.mxu0 %v379
    %1486 = vmatprep.subr.mxu0 0.0
    %1487 = vmatpush1.msra.mxu0 %v380
    %1488 = vmatprep.mubr.f32.mxu0 %v656
    %1489 = vmatmul.mubr.f32.gmra.mrb[0].mxu0 %v648
    %v1490 = vpop.f32.mrb[0].mxu0
    %v1491 = vadd.f32 %v1421, %v1490
    %v1492 = vpop.f32.mrb[0].mxu0
    %1493 = vdwg.mxu0
    %1494 = vmatprep.subr.mxu0 0.0
    %1495 = vmatpush1.msra.mxu0 %v381
    %1496 = vmatprep.subr.mxu0 0.0
    %1497 = vmatpush1.msra.mxu0 %v382
    %1498 = vmatprep.subr.mxu0 0.0
    %1499 = vmatpush1.msra.mxu0 %v383
    %1500 = vmatprep.subr.mxu0 0.0
    %1501 = vmatpush1.msra.mxu0 %v384
    %1502 = vmatprep.subr.mxu0 0.0
    %1503 = vmatpush1.msra.mxu0 %v385
    %1504 = vmatprep.subr.mxu0 0.0
    %1505 = vmatpush1.msra.mxu0 %v386
    %1506 = vmatprep.subr.mxu0 0.0
    %1507 = vmatpush1.msra.mxu0 %v387
    %1508 = vmatprep.subr.mxu0 0.0
    %1509 = vmatpush1.msra.mxu0 %v388
    %1510 = vmatprep.subr.mxu0 0.0
    %1511 = vmatpush1.msra.mxu0 %v389
    %1512 = vmatprep.subr.mxu0 0.0
    %1513 = vmatpush1.msra.mxu0 %v390
    %1514 = vmatprep.subr.mxu0 0.0
    %1515 = vmatpush1.msra.mxu0 %v391
    %1516 = vmatprep.subr.mxu0 0.0
    %1517 = vmatpush1.msra.mxu0 %v392
    %1518 = vmatprep.subr.mxu0 0.0
    %1519 = vmatpush1.msra.mxu0 %v393
    %1520 = vmatprep.subr.mxu0 0.0
    %1521 = vmatpush1.msra.mxu0 %v394
    %1522 = vmatprep.subr.mxu0 0.0
    %1523 = vmatpush1.msra.mxu0 %v395
    %1524 = vmatprep.subr.mxu0 0.0
    %1525 = vmatpush1.msra.mxu0 %v396
    %1526 = vmatprep.subr.mxu0 0.0
    %1527 = vmatpush1.msra.mxu0 %v397
    %1528 = vmatprep.subr.mxu0 0.0
    %1529 = vmatpush1.msra.mxu0 %v398
    %1530 = vmatprep.subr.mxu0 0.0
    %1531 = vmatpush1.msra.mxu0 %v399
    %1532 = vmatprep.subr.mxu0 0.0
    %1533 = vmatpush1.msra.mxu0 %v400
    %1534 = vmatprep.subr.mxu0 0.0
    %1535 = vmatpush1.msra.mxu0 %v401
    %1536 = vmatprep.subr.mxu0 0.0
    %1537 = vmatpush1.msra.mxu0 %v402
    %1538 = vmatprep.subr.mxu0 0.0
    %1539 = vmatpush1.msra.mxu0 %v403
    %1540 = vmatprep.subr.mxu0 0.0
    %1541 = vmatpush1.msra.mxu0 %v404
    %1542 = vmatprep.subr.mxu0 0.0
    %1543 = vmatpush1.msra.mxu0 %v405
    %1544 = vmatprep.subr.mxu0 0.0
    %1545 = vmatpush1.msra.mxu0 %v406
    %1546 = vmatprep.subr.mxu0 0.0
    %1547 = vmatpush1.msra.mxu0 %v407
    %1548 = vmatprep.subr.mxu0 0.0
    %1549 = vmatpush1.msra.mxu0 %v408
    %1550 = vmatprep.subr.mxu0 0.0
    %1551 = vmatpush1.msra.mxu0 %v409
    %1552 = vmatprep.subr.mxu0 0.0
    %1553 = vmatpush1.msra.mxu0 %v410
    %1554 = vmatprep.subr.mxu0 0.0
    %1555 = vmatpush1.msra.mxu0 %v411
    %1556 = vmatprep.subr.mxu0 0.0
    %1557 = vmatpush1.msra.mxu0 %v412
    %1558 = vmatprep.mubr.f32.mxu0 %v657
    %1559 = vmatmul.mubr.f32.gmra.mrb[0].mxu0 %v655
    %v1560 = vpop.f32.mrb[0].mxu0
    %v1561 = vadd.f32 %v1491, %v1560
    %v1562 = vpop.f32.mrb[0].mxu0
    %1563 = vdwg.mxu0
    %1564 = vmatprep.subr.mxu0 0.0
    %1565 = vmatpush1.msra.mxu0 %v413
    %1566 = vmatprep.subr.mxu0 0.0
    %1567 = vmatpush1.msra.mxu0 %v414
    %1568 = vmatprep.subr.mxu0 0.0
    %1569 = vmatpush1.msra.mxu0 %v415
    %1570 = vmatprep.subr.mxu0 0.0
    %1571 = vmatpush1.msra.mxu0 %v416
    %1572 = vmatprep.subr.mxu0 0.0
    %1573 = vmatpush1.msra.mxu0 %v417
    %1574 = vmatprep.subr.mxu0 0.0
    %1575 = vmatpush1.msra.mxu0 %v418
    %1576 = vmatprep.subr.mxu0 0.0
    %1577 = vmatpush1.msra.mxu0 %v419
    %1578 = vmatprep.subr.mxu0 0.0
    %1579 = vmatpush1.msra.mxu0 %v420
    %1580 = vmatprep.subr.mxu0 0.0
    %1581 = vmatpush1.msra.mxu0 %v421
    %1582 = vmatprep.subr.mxu0 0.0
    %1583 = vmatpush1.msra.mxu0 %v422
    %1584 = vmatprep.subr.mxu0 0.0
    %1585 = vmatpush1.msra.mxu0 %v423
    %1586 = vmatprep.subr.mxu0 0.0
    %1587 = vmatpush1.msra.mxu0 %v424
    %1588 = vmatprep.subr.mxu0 0.0
    %1589 = vmatpush1.msra.mxu0 %v425
    %1590 = vmatprep.subr.mxu0 0.0
    %1591 = vmatpush1.msra.mxu0 %v426
    %1592 = vmatprep.subr.mxu0 0.0
    %1593 = vmatpush1.msra.mxu0 %v427
    %1594 = vmatprep.subr.mxu0 0.0
    %1595 = vmatpush1.msra.mxu0 %v428
    %1596 = vmatprep.subr.mxu0 0.0
    %1597 = vmatpush1.msra.mxu0 %v429
    %1598 = vmatprep.subr.mxu0 0.0
    %1599 = vmatpush1.msra.mxu0 %v430
    %1600 = vmatprep.subr.mxu0 0.0
    %1601 = vmatpush1.msra.mxu0 %v431
    %1602 = vmatprep.subr.mxu0 0.0
    %1603 = vmatpush1.msra.mxu0 %v432
    %1604 = vmatprep.subr.mxu0 0.0
    %1605 = vmatpush1.msra.mxu0 %v433
    %1606 = vmatprep.subr.mxu0 0.0
    %1607 = vmatpush1.msra.mxu0 %v434
    %1608 = vmatprep.subr.mxu0 0.0
    %1609 = vmatpush1.msra.mxu0 %v435
    %1610 = vmatprep.subr.mxu0 0.0
    %1611 = vmatpush1.msra.mxu0 %v436
    %1612 = vmatprep.subr.mxu0 0.0
    %1613 = vmatpush1.msra.mxu0 %v437
    %1614 = vmatprep.subr.mxu0 0.0
    %1615 = vmatpush1.msra.mxu0 %v438
    %1616 = vmatprep.subr.mxu0 0.0
    %1617 = vmatpush1.msra.mxu0 %v439
    %1618 = vmatprep.subr.mxu0 0.0
    %1619 = vmatpush1.msra.mxu0 %v440
    %1620 = vmatprep.subr.mxu0 0.0
    %1621 = vmatpush1.msra.mxu0 %v441
    %1622 = vmatprep.subr.mxu0 0.0
    %1623 = vmatpush1.msra.mxu0 %v442
    %1624 = vmatprep.subr.mxu0 0.0
    %1625 = vmatpush1.msra.mxu0 %v443
    %1626 = vmatprep.subr.mxu0 0.0
    %1627 = vmatpush1.msra.mxu0 %v444
    %1628 = vmatprep.mubr.f32.mxu0 %v673
    %1629 = vmatmul.mubr.f32.gmra.mrb[0].mxu0 %v665
    %v1630 = vpop.f32.mrb[0].mxu0
    %v1631 = vadd.f32 %v1561, %v1630
    %v1632 = vpop.f32.mrb[0].mxu0
    %1633 = vdwg.mxu0
    %1634 = vmatprep.subr.mxu0 0.0
    %1635 = vmatpush1.msra.mxu0 %v445
    %1636 = vmatprep.subr.mxu0 0.0
    %1637 = vmatpush1.msra.mxu0 %v446
    %1638 = vmatprep.subr.mxu0 0.0
    %1639 = vmatpush1.msra.mxu0 %v447
    %1640 = vmatprep.subr.mxu0 0.0
    %1641 = vmatpush1.msra.mxu0 %v448
    %1642 = vmatprep.subr.mxu0 0.0
    %1643 = vmatpush1.msra.mxu0 %v449
    %1644 = vmatprep.subr.mxu0 0.0
    %1645 = vmatpush1.msra.mxu0 %v450
    %1646 = vmatprep.subr.mxu0 0.0
    %1647 = vmatpush1.msra.mxu0 %v451
    %1648 = vmatprep.subr.mxu0 0.0
    %1649 = vmatpush1.msra.mxu0 %v452
    %1650 = vmatprep.subr.mxu0 0.0
    %1651 = vmatpush1.msra.mxu0 %v453
    %1652 = vmatprep.subr.mxu0 0.0
    %1653 = vmatpush1.msra.mxu0 %v454
    %1654 = vmatprep.subr.mxu0 0.0
    %1655 = vmatpush1.msra.mxu0 %v455
    %1656 = vmatprep.subr.mxu0 0.0
    %1657 = vmatpush1.msra.mxu0 %v456
    %1658 = vmatprep.subr.mxu0 0.0
    %1659 = vmatpush1.msra.mxu0 %v457
    %1660 = vmatprep.subr.mxu0 0.0
    %1661 = vmatpush1.msra.mxu0 %v458
    %1662 = vmatprep.subr.mxu0 0.0
    %1663 = vmatpush1.msra.mxu0 %v459
    %1664 = vmatprep.subr.mxu0 0.0
    %1665 = vmatpush1.msra.mxu0 %v460
    %1666 = vmatprep.subr.mxu0 0.0
    %1667 = vmatpush1.msra.mxu0 %v461
    %1668 = vmatprep.subr.mxu0 0.0
    %1669 = vmatpush1.msra.mxu0 %v462
    %1670 = vmatprep.subr.mxu0 0.0
    %1671 = vmatpush1.msra.mxu0 %v463
    %1672 = vmatprep.subr.mxu0 0.0
    %1673 = vmatpush1.msra.mxu0 %v464
    %1674 = vmatprep.subr.mxu0 0.0
    %1675 = vmatpush1.msra.mxu0 %v465
    %1676 = vmatprep.subr.mxu0 0.0
    %1677 = vmatpush1.msra.mxu0 %v466
    %1678 = vmatprep.subr.mxu0 0.0
    %1679 = vmatpush1.msra.mxu0 %v467
    %1680 = vmatprep.subr.mxu0 0.0
    %1681 = vmatpush1.msra.mxu0 %v468
    %1682 = vmatprep.subr.mxu0 0.0
    %1683 = vmatpush1.msra.mxu0 %v469
    %1684 = vmatprep.subr.mxu0 0.0
    %1685 = vmatpush1.msra.mxu0 %v470
    %1686 = vmatprep.subr.mxu0 0.0
    %1687 = vmatpush1.msra.mxu0 %v471
    %1688 = vmatprep.subr.mxu0 0.0
    %1689 = vmatpush1.msra.mxu0 %v472
    %1690 = vmatprep.subr.mxu0 0.0
    %1691 = vmatpush1.msra.mxu0 %v473
    %1692 = vmatprep.subr.mxu0 0.0
    %1693 = vmatpush1.msra.mxu0 %v474
    %1694 = vmatprep.subr.mxu0 0.0
    %1695 = vmatpush1.msra.mxu0 %v475
    %1696 = vmatprep.subr.mxu0 0.0
    %1697 = vmatpush1.msra.mxu0 %v476
    %1698 = vmatprep.mubr.f32.mxu0 %v674
    %1699 = vmatmul.mubr.f32.gmra.mrb[0].mxu0 %v672
    %v1700 = vpop.f32.mrb[0].mxu0
    %v1701 = vadd.f32 %v1631, %v1700
    %v1702 = vpop.f32.mrb[0].mxu0
    %1703 = vdwg.mxu0
    %1704 = vmatprep.subr.mxu0 0.0
    %1705 = vmatpush1.msra.mxu0 %v477
    %1706 = vmatprep.subr.mxu0 0.0
    %1707 = vmatpush1.msra.mxu0 %v478
    %1708 = vmatprep.subr.mxu0 0.0
    %1709 = vmatpush1.msra.mxu0 %v479
    %1710 = vmatprep.subr.mxu0 0.0
    %1711 = vmatpush1.msra.mxu0 %v480
    %1712 = vmatprep.subr.mxu0 0.0
    %1713 = vmatpush1.msra.mxu0 %v481
    %1714 = vmatprep.subr.mxu0 0.0
    %1715 = vmatpush1.msra.mxu0 %v482
    %1716 = vmatprep.subr.mxu0 0.0
    %1717 = vmatpush1.msra.mxu0 %v483
    %1718 = vmatprep.subr.mxu0 0.0
    %1719 = vmatpush1.msra.mxu0 %v484
    %1720 = vmatprep.subr.mxu0 0.0
    %1721 = vmatpush1.msra.mxu0 %v485
    %1722 = vmatprep.subr.mxu0 0.0
    %1723 = vmatpush1.msra.mxu0 %v486
    %1724 = vmatprep.subr.mxu0 0.0
    %1725 = vmatpush1.msra.mxu0 %v487
    %1726 = vmatprep.subr.mxu0 0.0
    %1727 = vmatpush1.msra.mxu0 %v488
    %1728 = vmatprep.subr.mxu0 0.0
    %1729 = vmatpush1.msra.mxu0 %v489
    %1730 = vmatprep.subr.mxu0 0.0
    %1731 = vmatpush1.msra.mxu0 %v490
    %1732 = vmatprep.subr.mxu0 0.0
    %1733 = vmatpush1.msra.mxu0 %v491
    %1734 = vmatprep.subr.mxu0 0.0
    %1735 = vmatpush1.msra.mxu0 %v492
    %1736 = vmatprep.subr.mxu0 0.0
    %1737 = vmatpush1.msra.mxu0 %v493
    %1738 = vmatprep.subr.mxu0 0.0
    %1739 = vmatpush1.msra.mxu0 %v494
    %1740 = vmatprep.subr.mxu0 0.0
    %1741 = vmatpush1.msra.mxu0 %v495
    %1742 = vmatprep.subr.mxu0 0.0
    %1743 = vmatpush1.msra.mxu0 %v496
    %1744 = vmatprep.subr.mxu0 0.0
    %1745 = vmatpush1.msra.mxu0 %v497
    %1746 = vmatprep.subr.mxu0 0.0
    %1747 = vmatpush1.msra.mxu0 %v498
    %1748 = vmatprep.subr.mxu0 0.0
    %1749 = vmatpush1.msra.mxu0 %v499
    %1750 = vmatprep.subr.mxu0 0.0
    %1751 = vmatpush1.msra.mxu0 %v500
    %1752 = vmatprep.subr.mxu0 0.0
    %1753 = vmatpush1.msra.mxu0 %v501
    %1754 = vmatprep.subr.mxu0 0.0
    %1755 = vmatpush1.msra.mxu0 %v502
    %1756 = vmatprep.subr.mxu0 0.0
    %1757 = vmatpush1.msra.mxu0 %v503
    %1758 = vmatprep.subr.mxu0 0.0
    %1759 = vmatpush1.msra.mxu0 %v504
    %1760 = vmatprep.subr.mxu0 0.0
    %1761 = vmatpush1.msra.mxu0 %v505
    %1762 = vmatprep.subr.mxu0 0.0
    %1763 = vmatpush1.msra.mxu0 %v506
    %1764 = vmatprep.subr.mxu0 0.0
    %1765 = vmatpush1.msra.mxu0 %v507
    %1766 = vmatprep.subr.mxu0 0.0
    %1767 = vmatpush1.msra.mxu0 %v508
    %1768 = vmatprep.mubr.f32.mxu0 %v690
    %1769 = vmatmul.mubr.f32.gmra.mrb[0].mxu0 %v682
    %v1770 = vpop.f32.mrb[0].mxu0
    %v1771 = vadd.f32 %v1701, %v1770
    %v1772 = vpop.f32.mrb[0].mxu0
    %1773 = vdwg.mxu0
    %1774 = vmatprep.subr.mxu0 0.0
    %1775 = vmatpush1.msra.mxu0 %v509
    %1776 = vmatprep.subr.mxu0 0.0
    %1777 = vmatpush1.msra.mxu0 %v510
    %1778 = vmatprep.subr.mxu0 0.0
    %1779 = vmatpush1.msra.mxu0 %v511
    %1780 = vmatprep.subr.mxu0 0.0
    %1781 = vmatpush1.msra.mxu0 %v512
    %1782 = vmatprep.subr.mxu0 0.0
    %1783 = vmatpush1.msra.mxu0 %v513
    %1784 = vmatprep.subr.mxu0 0.0
    %1785 = vmatpush1.msra.mxu0 %v514
    %1786 = vmatprep.subr.mxu0 0.0
    %1787 = vmatpush1.msra.mxu0 %v515
    %1788 = vmatprep.subr.mxu0 0.0
    %1789 = vmatpush1.msra.mxu0 %v516
    %1790 = vmatprep.subr.mxu0 0.0
    %1791 = vmatpush1.msra.mxu0 %v517
    %1792 = vmatprep.subr.mxu0 0.0
    %1793 = vmatpush1.msra.mxu0 %v518
    %1794 = vmatprep.subr.mxu0 0.0
    %1795 = vmatpush1.msra.mxu0 %v519
    %1796 = vmatprep.subr.mxu0 0.0
    %1797 = vmatpush1.msra.mxu0 %v520
    %1798 = vmatprep.subr.mxu0 0.0
    %1799 = vmatpush1.msra.mxu0 %v521
    %1800 = vmatprep.subr.mxu0 0.0
    %1801 = vmatpush1.msra.mxu0 %v522
    %1802 = vmatprep.subr.mxu0 0.0
    %1803 = vmatpush1.msra.mxu0 %v523
    %1804 = vmatprep.subr.mxu0 0.0
    %1805 = vmatpush1.msra.mxu0 %v524
    %1806 = vmatprep.subr.mxu0 0.0
    %1807 = vmatpush1.msra.mxu0 %v525
    %1808 = vmatprep.subr.mxu0 0.0
    %1809 = vmatpush1.msra.mxu0 %v526
    %1810 = vmatprep.subr.mxu0 0.0
    %1811 = vmatpush1.msra.mxu0 %v527
    %1812 = vmatprep.subr.mxu0 0.0
    %1813 = vmatpush1.msra.mxu0 %v528
    %1814 = vmatprep.subr.mxu0 0.0
    %1815 = vmatpush1.msra.mxu0 %v529
    %1816 = vmatprep.subr.mxu0 0.0
    %1817 = vmatpush1.msra.mxu0 %v530
    %1818 = vmatprep.subr.mxu0 0.0
    %1819 = vmatpush1.msra.mxu0 %v531
    %1820 = vmatprep.subr.mxu0 0.0
    %1821 = vmatpush1.msra.mxu0 %v532
    %1822 = vmatprep.subr.mxu0 0.0
    %1823 = vmatpush1.msra.mxu0 %v533
    %1824 = vmatprep.subr.mxu0 0.0
    %1825 = vmatpush1.msra.mxu0 %v534
    %1826 = vmatprep.subr.mxu0 0.0
    %1827 = vmatpush1.msra.mxu0 %v535
    %1828 = vmatprep.subr.mxu0 0.0
    %1829 = vmatpush1.msra.mxu0 %v536
    %1830 = vmatprep.subr.mxu0 0.0
    %1831 = vmatpush1.msra.mxu0 %v537
    %1832 = vmatprep.subr.mxu0 0.0
    %1833 = vmatpush1.msra.mxu0 %v538
    %1834 = vmatprep.subr.mxu0 0.0
    %1835 = vmatpush1.msra.mxu0 %v539
    %1836 = vmatprep.subr.mxu0 0.0
    %1837 = vmatpush1.msra.mxu0 %v540
    %1838 = vmatprep.mubr.f32.mxu0 %v691
    %1839 = vmatmul.mubr.f32.gmra.mrb[0].mxu0 %v689
    %v1840 = vpop.f32.mrb[0].mxu0
    %v1841 = vadd.f32 %v1771, %v1840
    %v1842 = vpop.f32.mrb[0].mxu0
    %1843 = vdwg.mxu0
    %v1844 = vmax.f32 %v1841, 0.0
    %v1845 = vld [vmem:[%s3] sm:$0xff]
    %v1846 = vld [vmem:[%s3 + $0x8] sm:$0xff]
    %v1847 = vld [vmem:[%s3 + $0x10] sm:$0xff]
    %v1848 = vld [vmem:[%s3 + $0x18] sm:$0xff]
    %v1849 = vld [vmem:[%s3 + $0x20] sm:$0xff]
    %v1850 = vld [vmem:[%s3 + $0x28] sm:$0xff]
    %v1851 = vld [vmem:[%s3 + $0x30] sm:$0xff]
    %v1852 = vld [vmem:[%s3 + $0x38] sm:$0xff]
    %v1853 = vld [vmem:[%s3 + $0x40] sm:$0xff]
    %v1854 = vld [vmem:[%s3 + $0x48] sm:$0xff]
    %v1855 = vld [vmem:[%s3 + $0x50] sm:$0xff]
    %v1856 = vld [vmem:[%s3 + $0x58] sm:$0xff]
    %v1857 = vld [vmem:[%s3 + $0x60] sm:$0xff]
    %v1858 = vld [vmem:[%s3 + $0x68] sm:$0xff]
    %v1859 = vld [vmem:[%s3 + $0x70] sm:$0xff]
    %v1860 = vld [vmem:[%s3 + $0x78] sm:$0xff]
    %v1861 = vld [vmem:[%s4] sm:$0x1]
    %v1863 = vlaneseq
    %v1864 = vshrl.u32 %v1863, 7
    %v1865 = vsub.s32 0, %v1864
    %v1866 = vrot.slane %v1861, %v1865
    %1868 = vmatprep.subr.mxu0 0.0
    %1869 = vmatpush1.msra.mxu0 %v1845
    %1870 = vmatprep.subr.mxu0 0.0
    %1871 = vmatpush1.msra.mxu0 %v1846
    %1872 = vmatprep.subr.mxu0 0.0
    %1873 = vmatpush1.msra.mxu0 %v1847
    %1874 = vmatprep.subr.mxu0 0.0
    %1875 = vmatpush1.msra.mxu0 %v1848
    %1876 = vmatprep.subr.mxu0 0.0
    %1877 = vmatpush1.msra.mxu0 %v1849
    %1878 = vmatprep.subr.mxu0 0.0
    %1879 = vmatpush1.msra.mxu0 %v1850
    %1880 = vmatprep.subr.mxu0 0.0
    %1881 = vmatpush1.msra.mxu0 %v1851
    %1882 = vmatprep.subr.mxu0 0.0
    %1883 = vmatpush1.msra.mxu0 %v1852
    %1884 = vmatprep.subr.mxu0 0.0
    %1885 = vmatpush1.msra.mxu0 %v1853
    %1886 = vmatprep.subr.mxu0 0.0
    %1887 = vmatpush1.msra.mxu0 %v1854
    %1888 = vmatprep.subr.mxu0 0.0
    %1889 = vmatpush1.msra.mxu0 %v1855
    %1890 = vmatprep.subr.mxu0 0.0
    %1891 = vmatpush1.msra.mxu0 %v1856
    %1892 = vmatprep.subr.mxu0 0.0
    %1893 = vmatpush1.msra.mxu0 %v1857
    %1894 = vmatprep.subr.mxu0 0.0
    %1895 = vmatpush1.msra.mxu0 %v1858
    %1896 = vmatprep.subr.mxu0 0.0
    %1897 = vmatpush1.msra.mxu0 %v1859
    %1898 = vmatprep.subr.mxu0 0.0
    %1899 = vmatpush1.msra.mxu0 %v1860
    %1900 = vmatprep.subr.mxu0 0.0
    %1901 = vmatpush1.msra.mxu0 0.0
    %1902 = vmatprep.subr.mxu0 0.0
    %1903 = vmatpush1.msra.mxu0 0.0
    %1904 = vmatprep.subr.mxu0 0.0
    %1905 = vmatpush1.msra.mxu0 0.0
    %1906 = vmatprep.subr.mxu0 0.0
    %1907 = vmatpush1.msra.mxu0 0.0
    %1908 = vmatprep.subr.mxu0 0.0
    %1909 = vmatpush1.msra.mxu0 0.0
    %1910 = vmatprep.subr.mxu0 0.0
    %1911 = vmatpush1.msra.mxu0 0.0
    %1912 = vmatprep.subr.mxu0 0.0
    %1913 = vmatpush1.msra.mxu0 0.0
    %1914 = vmatprep.subr.mxu0 0.0
    %1915 = vmatpush1.msra.mxu0 0.0
    %1916 = vmatprep.subr.mxu0 0.0
    %1917 = vmatpush1.msra.mxu0 0.0
    %1918 = vmatprep.subr.mxu0 0.0
    %1919 = vmatpush1.msra.mxu0 0.0
    %1920 = vmatprep.subr.mxu0 0.0
    %1921 = vmatpush1.msra.mxu0 0.0
    %1922 = vmatprep.subr.mxu0 0.0
    %1923 = vmatpush1.msra.mxu0 0.0
    %1924 = vmatprep.subr.mxu0 0.0
    %1925 = vmatpush1.msra.mxu0 0.0
    %1926 = vmatprep.subr.mxu0 0.0
    %1927 = vmatpush1.msra.mxu0 0.0
    %1928 = vmatprep.subr.mxu0 0.0
    %1929 = vmatpush1.msra.mxu0 0.0
    %1930 = vmatprep.subr.mxu0 0.0
    %1931 = vmatpush1.msra.mxu0 0.0
    %1932 = vmatprep.mubr.f32.mxu0 0.0
    %1933 = vmatmul.mubr.f32.gmra.mrb[0].mxu0 %v1844
    %v1934 = vpop.f32.mrb[0].mxu0
    %v1935 = vadd.f32 %v1866, %v1934
    %v1936 = vpop.f32.mrb[0].mxu0
    %1937 = vdwg.mxu0
    %1938 = vst [vmem:[#allocation2] sm:$0x3] %v1935
    // Predicated region
    $region22: #{cnn_forward.3} parent=1 // pred_check
      _
    $region23: #{cnn_forward.3} parent=1 // pred_check_branch
      %1940 = sbr.rel (0) target = $region25
    $region24: #{cnn_forward.3} parent=1 // pred_region
      %s1942 = ssub.s32 32, 32
      %1943 = vsyncadd [#allocation3], %s1942
      %s1945 = sshll.u32 [#allocation2], 4
      %s1946 = int_to_ptr.vmem [resolvable:$true] %s1945
      %1948 = dma.vmem_to_hbm [thread:$0]  %s1946, 32, %s5, [#allocation3]
    $region25: #{cnn_forward.3} parent=1 // pred_fallthru
      _
    // Predicated region
    $region26: #{cnn_forward.3} parent=1 // pred_check
      _
    $region27: #{cnn_forward.3} parent=1 // pred_check_branch
      %1950 = sbr.rel (0) target = $region29
    $region28: #{cnn_forward.3} parent=1 // pred_region
      %1951 = dma.done [#allocation3], 32
    $region29: #{cnn_forward.3} parent=1 // pred_fallthru
      _
    %1952 = vsyncpa [#allocation3], 1

// kernel: cnn_forward.2
$region0: #{cnn_forward.2}
  #allocation0 [shape = 'u32[]', space=smem, size = 0x4, offset = 0x4, fixed_abs, tag = 'smem constant byte address 0x4 - core index']
  #allocation1 [shape = 'u32[144,128]{1,0:T(1,128)}', space=vmem, size = 0x12000, scoped, tag = 'internal scratch']
  #allocation2 [shape = 'f32[328,32]{1,0:T(8,128)}', space=vmem, size = 0x29000, scoped, tag = 'scratch operand']
  #allocation3 [shape = 'f32[288,64]{1,0:T(8,128)}', space=vmem, size = 0x24000, scoped, tag = 'scratch operand']
  #allocation4 [shape = 'f32[128,64]{1,0:T(8,128)}', space=vmem, size = 0x10000, scoped, tag = 'scratch operand']
  %s0 = inlined_call_operand.vmem [shape: f32[2,1024,32], index: 0, kind: input, shape index: {}]
  %s1 = inlined_call_operand.vmem [shape: f32[32,32], index: 1, kind: input, shape index: {}]
  %s2 = inlined_call_operand.vmem [shape: f32[1,32], index: 2, kind: input, shape index: {}]
  %s3 = inlined_call_operand.vmem [shape: f32[9,32,64], index: 3, kind: input, shape index: {}]
  %s4 = inlined_call_operand.vmem [shape: f32[1,64], index: 4, kind: input, shape index: {}]
  %s5 = inlined_call_operand.vmem [shape: f32[2,64,64], index: 5, kind: output, shape index: {}]
  %s6 = sld [smem:[#allocation0]]
  $region53: #{cnn_forward.2} parent=0
    _
  %s8 = ssub.s32 1, %s6
  %s9 = scalar_select 0, %s8, %s6
  loop: start=0, step=1, limit=4
  $region2: #{cnn_forward.2} parent=0 // loop_pre_header
    _
  $region3: #{cnn_forward.2} parent=0 // loop_header
    %s11 = sphi 0, %s15
    %p12 = scmp.ge.s32.totalorder %s11, 4
    %s21 = sphi 0, %s23
    %s24 = sphi 0, %s21
    %s25 = sphi 0, %s24
    %s41 = sphi 0, %s25
    %s45 = sphi 0, %s45
    %s47 = sphi 0, %s45
    %s48 = sphi 0, %s47
    %s62 = sphi 0, %s48
    %s66 = sphi 0, %s66
    %s68 = sphi 0, %s66
    %s69 = sphi 0, %s68
    %s83 = sphi 0, %s69
    %s87 = sphi 0, %s87
    %s89 = sphi 0, %s87
    %s90 = sphi 0, %s89
    %s104 = sphi 0, %s90
    %s108 = sphi 0, %s108
    %s110 = sphi 0, %s108
    %s111 = sphi 0, %s110
    %s125 = sphi 0, %s111
    %s131 = sphi 0, %s133
    %s134 = sphi 0, %s131
    %s135 = sphi 0, %s134
    %s151 = sphi 0, %s135
  $region4: #{cnn_forward.2} parent=0 // loop_header_branch
    %14 = sbr.rel (%p12) target = $region8
  $region5: #{cnn_forward.2} parent=0 // loop_body
    %s16 = ssub.s32 %s11, 1
    %s17 = ssub.s32 %s11, 2
    %s18 = sadd.s32 %s11, 1
    %s19 = ssub.s32 %s11, %s18
    %p20 = scmp.eq.s32.totalorder %s19, 0
    %s22 = sadd.s32 %s21, 1
    %s23 = scalar_select %p20, %s21, %s22
    %p26 = pneg %p20
    %p27 = scmp.eq.s32.totalorder %s11, 1
    %p28 = por %p26, %p27
    %p29 = scmp.ne.s32.totalorder %s21, %s24
    %p30 = scmp.eq.s32.totalorder %s11, 0
    %p31 = por %p29, %p30
    %p32 = scmp.ne.s32.totalorder %s21, %s24
    %p33 = scmp.eq.s32.totalorder %s16, 1
    %p34 = por %p32, %p33
    %p35 = scmp.ne.s32.totalorder %s24, %s25
    %p36 = scmp.eq.s32.totalorder %s16, 0
    %p37 = por %p35, %p36
    %p38 = scmp.ne.s32.totalorder %s24, %s25
    %p39 = scmp.eq.s32.totalorder %s17, 1
    %p40 = por %p38, %p39
    %p42 = scmp.ne.s32.totalorder %s25, %s41
    %p43 = scmp.eq.s32.totalorder %s17, 0
    %p44 = por %p42, %p43
    %s46 = sadd.s32 %s45, 1
    %p49 = scmp.eq.s32.totalorder %s11, 1
    %p50 = scmp.ne.s32.totalorder %s45, %s47
    %p51 = scmp.eq.s32.totalorder %s11, 0
    %p52 = por %p50, %p51
    %p53 = scmp.ne.s32.totalorder %s45, %s47
    %p54 = scmp.eq.s32.totalorder %s16, 1
    %p55 = por %p53, %p54
    %p56 = scmp.ne.s32.totalorder %s47, %s48
    %p57 = scmp.eq.s32.totalorder %s16, 0
    %p58 = por %p56, %p57
    %p59 = scmp.ne.s32.totalorder %s47, %s48
    %p60 = scmp.eq.s32.totalorder %s17, 1
    %p61 = por %p59, %p60
    %p63 = scmp.ne.s32.totalorder %s48, %s62
    %p64 = scmp.eq.s32.totalorder %s17, 0
    %p65 = por %p63, %p64
    %s67 = sadd.s32 %s66, 1
    %p70 = scmp.eq.s32.totalorder %s11, 1
    %p71 = scmp.ne.s32.totalorder %s66, %s68
    %p72 = scmp.eq.s32.totalorder %s11, 0
    %p73 = por %p71, %p72
    %p74 = scmp.ne.s32.totalorder %s66, %s68
    %p75 = scmp.eq.s32.totalorder %s16, 1
    %p76 = por %p74, %p75
    %p77 = scmp.ne.s32.totalorder %s68, %s69
    %p78 = scmp.eq.s32.totalorder %s16, 0
    %p79 = por %p77, %p78
    %p80 = scmp.ne.s32.totalorder %s68, %s69
    %p81 = scmp.eq.s32.totalorder %s17, 1
    %p82 = por %p80, %p81
    %p84 = scmp.ne.s32.totalorder %s69, %s83
    %p85 = scmp.eq.s32.totalorder %s17, 0
    %p86 = por %p84, %p85
    %s88 = sadd.s32 %s87, 1
    %p91 = scmp.eq.s32.totalorder %s11, 1
    %p92 = scmp.ne.s32.totalorder %s87, %s89
    %p93 = scmp.eq.s32.totalorder %s11, 0
    %p94 = por %p92, %p93
    %p95 = scmp.ne.s32.totalorder %s87, %s89
    %p96 = scmp.eq.s32.totalorder %s16, 1
    %p97 = por %p95, %p96
    %p98 = scmp.ne.s32.totalorder %s89, %s90
    %p99 = scmp.eq.s32.totalorder %s16, 0
    %p100 = por %p98, %p99
    %p101 = scmp.ne.s32.totalorder %s89, %s90
    %p102 = scmp.eq.s32.totalorder %s17, 1
    %p103 = por %p101, %p102
    %p105 = scmp.ne.s32.totalorder %s90, %s104
    %p106 = scmp.eq.s32.totalorder %s17, 0
    %p107 = por %p105, %p106
    %s109 = sadd.s32 %s108, 1
    %p112 = scmp.eq.s32.totalorder %s11, 1
    %p113 = scmp.ne.s32.totalorder %s108, %s110
    %p114 = scmp.eq.s32.totalorder %s11, 0
    %p115 = por %p113, %p114
    %p116 = scmp.ne.s32.totalorder %s108, %s110
    %p117 = scmp.eq.s32.totalorder %s16, 1
    %p118 = por %p116, %p117
    %p119 = scmp.ne.s32.totalorder %s110, %s111
    %p120 = scmp.eq.s32.totalorder %s16, 0
    %p121 = por %p119, %p120
    %p122 = scmp.ne.s32.totalorder %s110, %s111
    %p123 = scmp.eq.s32.totalorder %s17, 1
    %p124 = por %p122, %p123
    %p126 = scmp.ne.s32.totalorder %s111, %s125
    %p127 = scmp.eq.s32.totalorder %s17, 0
    %p128 = por %p126, %p127
    %s129 = ssub.s32 %s11, %s18
    %p130 = scmp.eq.s32.totalorder %s129, 0
    %s132 = sadd.s32 %s131, 1
    %s133 = scalar_select %p130, %s131, %s132
    %p136 = pneg %p130
    %p137 = scmp.eq.s32.totalorder %s11, 1
    %p138 = por %p136, %p137
    %p139 = scmp.ne.s32.totalorder %s131, %s134
    %p140 = scmp.eq.s32.totalorder %s11, 0
    %p141 = por %p139, %p140
    %p142 = scmp.ne.s32.totalorder %s131, %s134
    %p143 = scmp.eq.s32.totalorder %s16, 1
    %p144 = por %p142, %p143
    %p145 = scmp.ne.s32.totalorder %s134, %s135
    %p146 = scmp.eq.s32.totalorder %s16, 0
    %p147 = por %p145, %p146
    %p148 = scmp.ne.s32.totalorder %s134, %s135
    %p149 = scmp.eq.s32.totalorder %s17, 1
    %p150 = por %p148, %p149
    %p152 = scmp.ne.s32.totalorder %s135, %s151
    %p153 = scmp.eq.s32.totalorder %s17, 0
    %p154 = por %p152, %p153
    %p155 = scmp.le.s32.totalorder 1, %s11
    %p156 = scmp.lt.s32.totalorder %s11, 3
    %p157 = pnand %p155, %p156
    %p158 = pneg %p157
    // Predicated region
    $region9: #{cnn_forward.2} parent=5 // pred_check
      _
    $region10: #{cnn_forward.2} parent=5 // pred_check_branch
      %160 = sbr.rel (%p157) target = $region12
    $region11: #{cnn_forward.2} parent=5 // pred_region
      %s161 = ssub.s32 %s11, 1
      // Predicated region
      $region13: #{cnn_forward.2} parent=11 // pred_check
        %p162 = pneg %p58
      $region14: #{cnn_forward.2} parent=11 // pred_check_branch
        %164 = sbr.rel (%p162) target = $region16
      $region15: #{cnn_forward.2} parent=11 // pred_region
        _
      $region16: #{cnn_forward.2} parent=11 // pred_fallthru
        _
      // Predicated region
      $region17: #{cnn_forward.2} parent=11 // pred_check
        %p165 = pneg %p79
      $region18: #{cnn_forward.2} parent=11 // pred_check_branch
        %167 = sbr.rel (%p165) target = $region20
      $region19: #{cnn_forward.2} parent=11 // pred_region
        _
      $region20: #{cnn_forward.2} parent=11 // pred_fallthru
        _
      // Predicated region
      $region21: #{cnn_forward.2} parent=11 // pred_check
        %p168 = pneg %p100
      $region22: #{cnn_forward.2} parent=11 // pred_check_branch
        %170 = sbr.rel (%p168) target = $region24
      $region23: #{cnn_forward.2} parent=11 // pred_region
        _
      $region24: #{cnn_forward.2} parent=11 // pred_fallthru
        _
      // Predicated region
      $region25: #{cnn_forward.2} parent=11 // pred_check
        %p171 = pneg %p121
      $region26: #{cnn_forward.2} parent=11 // pred_check_branch
        %173 = sbr.rel (%p171) target = $region28
      $region27: #{cnn_forward.2} parent=11 // pred_region
        _
      $region28: #{cnn_forward.2} parent=11 // pred_fallthru
        _
    $region12: #{cnn_forward.2} parent=5 // pred_fallthru
      _
    %p174 = scmp.lt.s32.totalorder %s11, 2
    // Predicated region
    $region29: #{cnn_forward.2} parent=5 // pred_check
      %p175 = pneg %p174
    $region30: #{cnn_forward.2} parent=5 // pred_check_branch
      %177 = sbr.rel (%p175) target = $region32
    $region31: #{cnn_forward.2} parent=5 // pred_region
      // Predicated region
      $region33: #{cnn_forward.2} parent=31 // pred_check
        %p178 = pneg %p31
      $region34: #{cnn_forward.2} parent=31 // pred_check_branch
        %180 = sbr.rel (%p178) target = $region36
      $region35: #{cnn_forward.2} parent=31 // pred_region
        %p181 = scmp.lt.s32.totalorder %s11, 1
        %s182 = scalar_select %p181, %s11, 1
        %s183 = smul.addr %s182, 128
        %s184 = smul.addr %s183, 8
        %s185 = scalar_lea.vmem %s0, %s184
      $region36: #{cnn_forward.2} parent=31 // pred_fallthru
        _
    $region32: #{cnn_forward.2} parent=5 // pred_fallthru
      _
    %p186 = scmp.le.s32.totalorder 1, %s11
    %p187 = scmp.lt.s32.totalorder %s11, 3
    %p188 = pnand %p186, %p187
    %p189 = pneg %p188
    // Predicated region
    $region37: #{cnn_forward.2} parent=5 // pred_check
      _
    $region38: #{cnn_forward.2} parent=5 // pred_check_branch
      %191 = sbr.rel (%p188) target = $region40
    $region39: #{cnn_forward.2} parent=5 // pred_region
      %s192 = ssub.s32 %s11, 1
      %p193 = scmp.lt.s32.totalorder %s16, 1
      %s194 = scalar_select %p193, %s16, 1
      %s195 = smul.addr %s194, 128
      %s196 = smul.addr %s195, 8
      %s197 = scalar_lea.vmem %s0, %s196
      %p198 = pneg %p37
      %p199 = pneg %p34
      %p200 = pneg %p58
      %p201 = pneg %p55
      %p202 = pneg %p79
      %p203 = pneg %p76
      %p204 = pneg %p100
      %p205 = pneg %p97
      %p206 = pneg %p121
      %p207 = pneg %p118
      %p208 = pneg %p147
      %p209 = pneg %p144
      %p210 = scmp.lt.s32.totalorder %s16, 1
      %s211 = scalar_select %p210, %s16, 1
      %s212 = smul.addr %s211, 8
      %s213 = smul.addr %s212, 8
      %s214 = scalar_lea.vmem %s5, %s213
      %p215 = scmp.lt.s32.totalorder %s16, 1
      %s216 = scalar_select %p215, %s16, 1
      %s217 = smul.addr %s216, 128
      %s218 = smul.addr %s217, 8
      %s219 = scalar_lea.vmem %s0, %s218
      %p220 = scmp.lt.s32.totalorder %s16, 1
      %s221 = scalar_select %p220, %s16, 1
      %s222 = smul.addr %s221, 8
      %s223 = smul.addr %s222, 8
      %s224 = scalar_lea.vmem %s5, %s223
      %v225 = vld [vmem:[%s219] sm:$0xff]
      %v226 = vld [vmem:[%s219 + $0x8] sm:$0xff]
      %v227 = vld [vmem:[%s219 + $0x10] sm:$0xff]
      %v228 = vld [vmem:[%s219 + $0x18] sm:$0xff]
      %v229 = vld [vmem:[%s219 + $0x20] sm:$0xff]
      %v230 = vld [vmem:[%s219 + $0x28] sm:$0xff]
      %v231 = vld [vmem:[%s219 + $0x30] sm:$0xff]
      %v232 = vld [vmem:[%s219 + $0x38] sm:$0xff]
      %v233 = vld [vmem:[%s219 + $0x40] sm:$0xff]
      %v234 = vld [vmem:[%s219 + $0x48] sm:$0xff]
      %v235 = vld [vmem:[%s219 + $0x50] sm:$0xff]
      %v236 = vld [vmem:[%s219 + $0x58] sm:$0xff]
      %v237 = vld [vmem:[%s219 + $0x60] sm:$0xff]
      %v238 = vld [vmem:[%s219 + $0x68] sm:$0xff]
      %v239 = vld [vmem:[%s219 + $0x70] sm:$0xff]
      %v240 = vld [vmem:[%s219 + $0x78] sm:$0xff]
      %v241 = vld [vmem:[%s219 + $0x80] sm:$0xff]
      %v242 = vld [vmem:[%s219 + $0x88] sm:$0xff]
      %v243 = vld [vmem:[%s219 + $0x90] sm:$0xff]
      %v244 = vld [vmem:[%s219 + $0x98] sm:$0xff]
      %v245 = vld [vmem:[%s219 + $0xa0] sm:$0xff]
      %v246 = vld [vmem:[%s219 + $0xa8] sm:$0xff]
      %v247 = vld [vmem:[%s219 + $0xb0] sm:$0xff]
      %v248 = vld [vmem:[%s219 + $0xb8] sm:$0xff]
      %v249 = vld [vmem:[%s219 + $0xc0] sm:$0xff]
      %v250 = vld [vmem:[%s219 + $0xc8] sm:$0xff]
      %v251 = vld [vmem:[%s219 + $0xd0] sm:$0xff]
      %v252 = vld [vmem:[%s219 + $0xd8] sm:$0xff]
      %v253 = vld [vmem:[%s219 + $0xe0] sm:$0xff]
      %v254 = vld [vmem:[%s219 + $0xe8] sm:$0xff]
      %v255 = vld [vmem:[%s219 + $0xf0] sm:$0xff]
      %v256 = vld [vmem:[%s219 + $0xf8] sm:$0xff]
      %v257 = vld [vmem:[%s219 + $0x100] sm:$0xff]
      %v258 = vld [vmem:[%s219 + $0x108] sm:$0xff]
      %v259 = vld [vmem:[%s219 + $0x110] sm:$0xff]
      %v260 = vld [vmem:[%s219 + $0x118] sm:$0xff]
      %v261 = vld [vmem:[%s219 + $0x120] sm:$0xff]
      %v262 = vld [vmem:[%s219 + $0x128] sm:$0xff]
      %v263 = vld [vmem:[%s219 + $0x130] sm:$0xff]
      %v264 = vld [vmem:[%s219 + $0x138] sm:$0xff]
      %v265 = vld [vmem:[%s219 + $0x140] sm:$0xff]
      %v266 = vld [vmem:[%s219 + $0x148] sm:$0xff]
      %v267 = vld [vmem:[%s219 + $0x150] sm:$0xff]
      %v268 = vld [vmem:[%s219 + $0x158] sm:$0xff]
      %v269 = vld [vmem:[%s219 + $0x160] sm:$0xff]
      %v270 = vld [vmem:[%s219 + $0x168] sm:$0xff]
      %v271 = vld [vmem:[%s219 + $0x170] sm:$0xff]
      %v272 = vld [vmem:[%s219 + $0x178] sm:$0xff]
      %v273 = vld [vmem:[%s219 + $0x180] sm:$0xff]
      %v274 = vld [vmem:[%s219 + $0x188] sm:$0xff]
      %v275 = vld [vmem:[%s219 + $0x190] sm:$0xff]
      %v276 = vld [vmem:[%s219 + $0x198] sm:$0xff]
      %v277 = vld [vmem:[%s219 + $0x1a0] sm:$0xff]
      %v278 = vld [vmem:[%s219 + $0x1a8] sm:$0xff]
      %v279 = vld [vmem:[%s219 + $0x1b0] sm:$0xff]
      %v280 = vld [vmem:[%s219 + $0x1b8] sm:$0xff]
      %v281 = vld [vmem:[%s219 + $0x1c0] sm:$0xff]
      %v282 = vld [vmem:[%s219 + $0x1c8] sm:$0xff]
      %v283 = vld [vmem:[%s219 + $0x1d0] sm:$0xff]
      %v284 = vld [vmem:[%s219 + $0x1d8] sm:$0xff]
      %v285 = vld [vmem:[%s219 + $0x1e0] sm:$0xff]
      %v286 = vld [vmem:[%s219 + $0x1e8] sm:$0xff]
      %v287 = vld [vmem:[%s219 + $0x1f0] sm:$0xff]
      %v288 = vld [vmem:[%s219 + $0x1f8] sm:$0xff]
      %v289 = vld [vmem:[%s219 + $0x200] sm:$0xff]
      %v290 = vld [vmem:[%s219 + $0x208] sm:$0xff]
      %v291 = vld [vmem:[%s219 + $0x210] sm:$0xff]
      %v292 = vld [vmem:[%s219 + $0x218] sm:$0xff]
      %v293 = vld [vmem:[%s219 + $0x220] sm:$0xff]
      %v294 = vld [vmem:[%s219 + $0x228] sm:$0xff]
      %v295 = vld [vmem:[%s219 + $0x230] sm:$0xff]
      %v296 = vld [vmem:[%s219 + $0x238] sm:$0xff]
      %v297 = vld [vmem:[%s219 + $0x240] sm:$0xff]
      %v298 = vld [vmem:[%s219 + $0x248] sm:$0xff]
      %v299 = vld [vmem:[%s219 + $0x250] sm:$0xff]
      %v300 = vld [vmem:[%s219 + $0x258] sm:$0xff]
      %v301 = vld [vmem:[%s219 + $0x260] sm:$0xff]
      %v302 = vld [vmem:[%s219 + $0x268] sm:$0xff]
      %v303 = vld [vmem:[%s219 + $0x270] sm:$0xff]
      %v304 = vld [vmem:[%s219 + $0x278] sm:$0xff]
      %v305 = vld [vmem:[%s219 + $0x280] sm:$0xff]
      %v306 = vld [vmem:[%s219 + $0x288] sm:$0xff]
      %v307 = vld [vmem:[%s219 + $0x290] sm:$0xff]
      %v308 = vld [vmem:[%s219 + $0x298] sm:$0xff]
      %v309 = vld [vmem:[%s219 + $0x2a0] sm:$0xff]
      %v310 = vld [vmem:[%s219 + $0x2a8] sm:$0xff]
      %v311 = vld [vmem:[%s219 + $0x2b0] sm:$0xff]
      %v312 = vld [vmem:[%s219 + $0x2b8] sm:$0xff]
      %v313 = vld [vmem:[%s219 + $0x2c0] sm:$0xff]
      %v314 = vld [vmem:[%s219 + $0x2c8] sm:$0xff]
      %v315 = vld [vmem:[%s219 + $0x2d0] sm:$0xff]
      %v316 = vld [vmem:[%s219 + $0x2d8] sm:$0xff]
      %v317 = vld [vmem:[%s219 + $0x2e0] sm:$0xff]
      %v318 = vld [vmem:[%s219 + $0x2e8] sm:$0xff]
      %v319 = vld [vmem:[%s219 + $0x2f0] sm:$0xff]
      %v320 = vld [vmem:[%s219 + $0x2f8] sm:$0xff]
      %v321 = vld [vmem:[%s219 + $0x300] sm:$0xff]
      %v322 = vld [vmem:[%s219 + $0x308] sm:$0xff]
      %v323 = vld [vmem:[%s219 + $0x310] sm:$0xff]
      %v324 = vld [vmem:[%s219 + $0x318] sm:$0xff]
      %v325 = vld [vmem:[%s219 + $0x320] sm:$0xff]
      %v326 = vld [vmem:[%s219 + $0x328] sm:$0xff]
      %v327 = vld [vmem:[%s219 + $0x330] sm:$0xff]
      %v328 = vld [vmem:[%s219 + $0x338] sm:$0xff]
      %v329 = vld [vmem:[%s219 + $0x340] sm:$0xff]
      %v330 = vld [vmem:[%s219 + $0x348] sm:$0xff]
      %v331 = vld [vmem:[%s219 + $0x350] sm:$0xff]
      %v332 = vld [vmem:[%s219 + $0x358] sm:$0xff]
      %v333 = vld [vmem:[%s219 + $0x360] sm:$0xff]
      %v334 = vld [vmem:[%s219 + $0x368] sm:$0xff]
      %v335 = vld [vmem:[%s219 + $0x370] sm:$0xff]
      %v336 = vld [vmem:[%s219 + $0x378] sm:$0xff]
      %v337 = vld [vmem:[%s219 + $0x380] sm:$0xff]
      %v338 = vld [vmem:[%s219 + $0x388] sm:$0xff]
      %v339 = vld [vmem:[%s219 + $0x390] sm:$0xff]
      %v340 = vld [vmem:[%s219 + $0x398] sm:$0xff]
      %v341 = vld [vmem:[%s219 + $0x3a0] sm:$0xff]
      %v342 = vld [vmem:[%s219 + $0x3a8] sm:$0xff]
      %v343 = vld [vmem:[%s219 + $0x3b0] sm:$0xff]
      %v344 = vld [vmem:[%s219 + $0x3b8] sm:$0xff]
      %v345 = vld [vmem:[%s219 + $0x3c0] sm:$0xff]
      %v346 = vld [vmem:[%s219 + $0x3c8] sm:$0xff]
      %v347 = vld [vmem:[%s219 + $0x3d0] sm:$0xff]
      %v348 = vld [vmem:[%s219 + $0x3d8] sm:$0xff]
      %v349 = vld [vmem:[%s219 + $0x3e0] sm:$0xff]
      %v350 = vld [vmem:[%s219 + $0x3e8] sm:$0xff]
      %v351 = vld [vmem:[%s219 + $0x3f0] sm:$0xff]
      %v352 = vld [vmem:[%s219 + $0x3f8] sm:$0xff]
      %v353 = vld [vmem:[%s1] sm:$0xff]
      %v354 = vld [vmem:[%s1 + $0x8] sm:$0xff]
      %v355 = vld [vmem:[%s1 + $0x10] sm:$0xff]
      %v356 = vld [vmem:[%s1 + $0x18] sm:$0xff]
      %vm357 = vcmask 261120
      %v359 = vsel %vm357, %v225, 0
      %v362 = vsel %vm357, %v226, 0
      %v365 = vsel %vm357, %v227, 0
      %v368 = vsel %vm357, %v228, 0
      %v371 = vsel %vm357, %v229, 0
      %v374 = vsel %vm357, %v230, 0
      %v377 = vsel %vm357, %v231, 0
      %v380 = vsel %vm357, %v232, 0
      %v383 = vsel %vm357, %v233, 0
      %v386 = vsel %vm357, %v234, 0
      %v389 = vsel %vm357, %v235, 0
      %v392 = vsel %vm357, %v236, 0
      %v395 = vsel %vm357, %v237, 0
      %v398 = vsel %vm357, %v238, 0
      %v401 = vsel %vm357, %v239, 0
      %v404 = vsel %vm357, %v240, 0
      %v407 = vsel %vm357, %v241, 0
      %v410 = vsel %vm357, %v242, 0
      %v413 = vsel %vm357, %v243, 0
      %v416 = vsel %vm357, %v244, 0
      %v419 = vsel %vm357, %v245, 0
      %v422 = vsel %vm357, %v246, 0
      %v425 = vsel %vm357, %v247, 0
      %v428 = vsel %vm357, %v248, 0
      %v431 = vsel %vm357, %v249, 0
      %v434 = vsel %vm357, %v250, 0
      %v437 = vsel %vm357, %v251, 0
      %v440 = vsel %vm357, %v252, 0
      %v443 = vsel %vm357, %v253, 0
      %v446 = vsel %vm357, %v254, 0
      %v449 = vsel %vm357, %v255, 0
      %v452 = vsel %vm357, %v256, 0
      %v455 = vsel %vm357, %v257, 0
      %v458 = vsel %vm357, %v258, 0
      %v461 = vsel %vm357, %v259, 0
      %v464 = vsel %vm357, %v260, 0
      %v467 = vsel %vm357, %v261, 0
      %v470 = vsel %vm357, %v262, 0
      %v473 = vsel %vm357, %v263, 0
      %v476 = vsel %vm357, %v264, 0
      %v479 = vsel %vm357, %v265, 0
      %v482 = vsel %vm357, %v266, 0
      %v485 = vsel %vm357, %v267, 0
      %v488 = vsel %vm357, %v268, 0
      %v491 = vsel %vm357, %v269, 0
      %v494 = vsel %vm357, %v270, 0
      %v497 = vsel %vm357, %v271, 0
      %v500 = vsel %vm357, %v272, 0
      %v503 = vsel %vm357, %v273, 0
      %v506 = vsel %vm357, %v274, 0
      %v509 = vsel %vm357, %v275, 0
      %v512 = vsel %vm357, %v276, 0
      %v515 = vsel %vm357, %v277, 0
      %v518 = vsel %vm357, %v278, 0
      %v521 = vsel %vm357, %v279, 0
      %v524 = vsel %vm357, %v280, 0
      %v527 = vsel %vm357, %v281, 0
      %v530 = vsel %vm357, %v282, 0
      %v533 = vsel %vm357, %v283, 0
      %v536 = vsel %vm357, %v284, 0
      %v539 = vsel %vm357, %v285, 0
      %v542 = vsel %vm357, %v286, 0
      %v545 = vsel %vm357, %v287, 0
      %v548 = vsel %vm357, %v288, 0
      %v551 = vsel %vm357, %v289, 0
      %v554 = vsel %vm357, %v290, 0
      %v557 = vsel %vm357, %v291, 0
      %v560 = vsel %vm357, %v292, 0
      %v563 = vsel %vm357, %v293, 0
      %v566 = vsel %vm357, %v294, 0
      %v569 = vsel %vm357, %v295, 0
      %v572 = vsel %vm357, %v296, 0
      %v575 = vsel %vm357, %v297, 0
      %v578 = vsel %vm357, %v298, 0
      %v581 = vsel %vm357, %v299, 0
      %v584 = vsel %vm357, %v300, 0
      %v587 = vsel %vm357, %v301, 0
      %v590 = vsel %vm357, %v302, 0
      %v593 = vsel %vm357, %v303, 0
      %v596 = vsel %vm357, %v304, 0
      %v599 = vsel %vm357, %v305, 0
      %v602 = vsel %vm357, %v306, 0
      %v605 = vsel %vm357, %v307, 0
      %v608 = vsel %vm357, %v308, 0
      %v611 = vsel %vm357, %v309, 0
      %v614 = vsel %vm357, %v310, 0
      %v617 = vsel %vm357, %v311, 0
      %v620 = vsel %vm357, %v312, 0
      %v623 = vsel %vm357, %v313, 0
      %v626 = vsel %vm357, %v314, 0
      %v629 = vsel %vm357, %v315, 0
      %v632 = vsel %vm357, %v316, 0
      %v635 = vsel %vm357, %v317, 0
      %v638 = vsel %vm357, %v318, 0
      %v641 = vsel %vm357, %v319, 0
      %v644 = vsel %vm357, %v320, 0
      %v647 = vsel %vm357, %v321, 0
      %v650 = vsel %vm357, %v322, 0
      %v653 = vsel %vm357, %v323, 0
      %v656 = vsel %vm357, %v324, 0
      %v659 = vsel %vm357, %v325, 0
      %v662 = vsel %vm357, %v326, 0
      %v665 = vsel %vm357, %v327, 0
      %v668 = vsel %vm357, %v328, 0
      %v671 = vsel %vm357, %v329, 0
      %v674 = vsel %vm357, %v330, 0
      %v677 = vsel %vm357, %v331, 0
      %v680 = vsel %vm357, %v332, 0
      %v683 = vsel %vm357, %v333, 0
      %v686 = vsel %vm357, %v334, 0
      %v689 = vsel %vm357, %v335, 0
      %v692 = vsel %vm357, %v336, 0
      %v695 = vsel %vm357, %v337, 0
      %v698 = vsel %vm357, %v338, 0
      %v701 = vsel %vm357, %v339, 0
      %v704 = vsel %vm357, %v340, 0
      %v707 = vsel %vm357, %v341, 0
      %v710 = vsel %vm357, %v342, 0
      %v713 = vsel %vm357, %v343, 0
      %v716 = vsel %vm357, %v344, 0
      %v719 = vsel %vm357, %v345, 0
      %v722 = vsel %vm357, %v346, 0
      %v725 = vsel %vm357, %v347, 0
      %v728 = vsel %vm357, %v348, 0
      %v731 = vsel %vm357, %v349, 0
      %v734 = vsel %vm357, %v350, 0
      %v737 = vsel %vm357, %v351, 0
      %v740 = vsel %vm357, %v352, 0
      %742 = vmatprep.subr.mxu0 0.0
      %743 = vmatpush1.msra.mxu0 %v353
      %744 = vmatprep.subr.mxu0 0.0
      %745 = vmatpush1.msra.mxu0 %v354
      %746 = vmatprep.subr.mxu0 0.0
      %747 = vmatpush1.msra.mxu0 %v355
      %748 = vmatprep.subr.mxu0 0.0
      %749 = vmatpush1.msra.mxu0 %v356
      %750 = vmatprep.subr.mxu0 0.0
      %751 = vmatpush1.msra.mxu0 0.0
      %752 = vmatprep.subr.mxu0 0.0
      %753 = vmatpush1.msra.mxu0 0.0
      %754 = vmatprep.subr.mxu0 0.0
      %755 = vmatpush1.msra.mxu0 0.0
      %756 = vmatprep.subr.mxu0 0.0
      %757 = vmatpush1.msra.mxu0 0.0
      %758 = vmatprep.subr.mxu0 0.0
      %759 = vmatpush1.msra.mxu0 0.0
      %760 = vmatprep.subr.mxu0 0.0
      %761 = vmatpush1.msra.mxu0 0.0
      %762 = vmatprep.subr.mxu0 0.0
      %763 = vmatpush1.msra.mxu0 0.0
      %764 = vmatprep.subr.mxu0 0.0
      %765 = vmatpush1.msra.mxu0 0.0
      %766 = vmatprep.subr.mxu0 0.0
      %767 = vmatpush1.msra.mxu0 0.0
      %768 = vmatprep.subr.mxu0 0.0
      %769 = vmatpush1.msra.mxu0 0.0
      %770 = vmatprep.subr.mxu0 0.0
      %771 = vmatpush1.msra.mxu0 0.0
      %772 = vmatprep.subr.mxu0 0.0
      %773 = vmatpush1.msra.mxu0 0.0
      %774 = vmatprep.subr.mxu0 0.0
      %775 = vmatpush1.msra.mxu0 0.0
      %776 = vmatprep.subr.mxu0 0.0
      %777 = vmatpush1.msra.mxu0 0.0
      %778 = vmatprep.subr.mxu0 0.0
      %779 = vmatpush1.msra.mxu0 0.0
      %780 = vmatprep.subr.mxu0 0.0
      %781 = vmatpush1.msra.mxu0 0.0
      %782 = vmatprep.subr.mxu0 0.0
      %783 = vmatpush1.msra.mxu0 0.0
      %784 = vmatprep.subr.mxu0 0.0
      %785 = vmatpush1.msra.mxu0 0.0
      %786 = vmatprep.subr.mxu0 0.0
      %787 = vmatpush1.msra.mxu0 0.0
      %788 = vmatprep.subr.mxu0 0.0
      %789 = vmatpush1.msra.mxu0 0.0
      %790 = vmatprep.subr.mxu0 0.0
      %791 = vmatpush1.msra.mxu0 0.0
      %792 = vmatprep.subr.mxu0 0.0
      %793 = vmatpush1.msra.mxu0 0.0
      %794 = vmatprep.subr.mxu0 0.0
      %795 = vmatpush1.msra.mxu0 0.0
      %796 = vmatprep.subr.mxu0 0.0
      %797 = vmatpush1.msra.mxu0 0.0
      %798 = vmatprep.subr.mxu0 0.0
      %799 = vmatpush1.msra.mxu0 0.0
      %800 = vmatprep.subr.mxu0 0.0
      %801 = vmatpush1.msra.mxu0 0.0
      %802 = vmatprep.subr.mxu0 0.0
      %803 = vmatpush1.msra.mxu0 0.0
      %804 = vmatprep.subr.mxu0 0.0
      %805 = vmatpush1.msra.mxu0 0.0
      %806 = vmatprep.mubr.f32.mxu0 0.0
      %807 = vmatmul.mubr.f32.gmra.mrb[0].mxu0 %v359
      %v808 = vpop.f32.mrb[0].mxu0
      %v809 = vadd.f32 0.0, %v808
      %v810 = vpop.f32.mrb[0].mxu0
      %811 = vmatprep.mubr.f32.mxu0 0.0
      %812 = vmatmul.mubr.f32.gmra.mrb[0].mxu0 %v362
      %v813 = vpop.f32.mrb[0].mxu0
      %v814 = vadd.f32 0.0, %v813
      %v815 = vpop.f32.mrb[0].mxu0
      %816 = vmatprep.mubr.f32.mxu0 0.0
      %817 = vmatmul.mubr.f32.gmra.mrb[0].mxu0 %v365
      %v818 = vpop.f32.mrb[0].mxu0
      %v819 = vadd.f32 0.0, %v818
      %v820 = vpop.f32.mrb[0].mxu0
      %821 = vmatprep.mubr.f32.mxu0 0.0
      %822 = vmatmul.mubr.f32.gmra.mrb[0].mxu0 %v368
      %v823 = vpop.f32.mrb[0].mxu0
      %v824 = vadd.f32 0.0, %v823
      %v825 = vpop.f32.mrb[0].mxu0
      %826 = vmatprep.mubr.f32.mxu0 0.0
      %827 = vmatmul.mubr.f32.gmra.mrb[0].mxu0 %v371
      %v828 = vpop.f32.mrb[0].mxu0
      %v829 = vadd.f32 0.0, %v828
      %v830 = vpop.f32.mrb[0].mxu0
      %831 = vmatprep.mubr.f32.mxu0 0.0
      %832 = vmatmul.mubr.f32.gmra.mrb[0].mxu0 %v374
      %v833 = vpop.f32.mrb[0].mxu0
      %v834 = vadd.f32 0.0, %v833
      %v835 = vpop.f32.mrb[0].mxu0
      %836 = vmatprep.mubr.f32.mxu0 0.0
      %837 = vmatmul.mubr.f32.gmra.mrb[0].mxu0 %v377
      %v838 = vpop.f32.mrb[0].mxu0
      %v839 = vadd.f32 0.0, %v838
      %v840 = vpop.f32.mrb[0].mxu0
      %841 = vmatprep.mubr.f32.mxu0 0.0
      %842 = vmatmul.mubr.f32.gmra.mrb[0].mxu0 %v380
      %v843 = vpop.f32.mrb[0].mxu0
      %v844 = vadd.f32 0.0, %v843
      %v845 = vpop.f32.mrb[0].mxu0
      %846 = vmatprep.mubr.f32.mxu0 0.0
      %847 = vmatmul.mubr.f32.gmra.mrb[0].mxu0 %v383
      %v848 = vpop.f32.mrb[0].mxu0
      %v849 = vadd.f32 0.0, %v848
      %v850 = vpop.f32.mrb[0].mxu0
      %851 = vmatprep.mubr.f32.mxu0 0.0
      %852 = vmatmul.mubr.f32.gmra.mrb[0].mxu0 %v386
      %v853 = vpop.f32.mrb[0].mxu0
      %v854 = vadd.f32 0.0, %v853
      %v855 = vpop.f32.mrb[0].mxu0
      %856 = vmatprep.mubr.f32.mxu0 0.0
      %857 = vmatmul.mubr.f32.gmra.mrb[0].mxu0 %v389
      %v858 = vpop.f32.mrb[0].mxu0
      %v859 = vadd.f32 0.0, %v858
      %v860 = vpop.f32.mrb[0].mxu0
      %861 = vmatprep.mubr.f32.mxu0 0.0
      %862 = vmatmul.mubr.f32.gmra.mrb[0].mxu0 %v392
      %v863 = vpop.f32.mrb[0].mxu0
      %v864 = vadd.f32 0.0, %v863
      %v865 = vpop.f32.mrb[0].mxu0
      %866 = vmatprep.mubr.f32.mxu0 0.0
      %867 = vmatmul.mubr.f32.gmra.mrb[0].mxu0 %v395
      %v868 = vpop.f32.mrb[0].mxu0
      %v869 = vadd.f32 0.0, %v868
      %v870 = vpop.f32.mrb[0].mxu0
      %871 = vmatprep.mubr.f32.mxu0 0.0
      %872 = vmatmul.mubr.f32.gmra.mrb[0].mxu0 %v398
      %v873 = vpop.f32.mrb[0].mxu0
      %v874 = vadd.f32 0.0, %v873
      %v875 = vpop.f32.mrb[0].mxu0
      %876 = vmatprep.mubr.f32.mxu0 0.0
      %877 = vmatmul.mubr.f32.gmra.mrb[0].mxu0 %v401
      %v878 = vpop.f32.mrb[0].mxu0
      %v879 = vadd.f32 0.0, %v878
      %v880 = vpop.f32.mrb[0].mxu0
      %881 = vmatprep.mubr.f32.mxu0 0.0
      %882 = vmatmul.mubr.f32.gmra.mrb[0].mxu0 %v404
      %v883 = vpop.f32.mrb[0].mxu0
      %v884 = vadd.f32 0.0, %v883
      %v885 = vpop.f32.mrb[0].mxu0
      %886 = vmatprep.mubr.f32.mxu0 0.0
      %887 = vmatmul.mubr.f32.gmra.mrb[0].mxu0 %v407
      %v888 = vpop.f32.mrb[0].mxu0
      %v889 = vadd.f32 0.0, %v888
      %v890 = vpop.f32.mrb[0].mxu0
      %891 = vmatprep.mubr.f32.mxu0 0.0
      %892 = vmatmul.mubr.f32.gmra.mrb[0].mxu0 %v410
      %v893 = vpop.f32.mrb[0].mxu0
      %v894 = vadd.f32 0.0, %v893
      %v895 = vpop.f32.mrb[0].mxu0
      %896 = vmatprep.mubr.f32.mxu0 0.0
      %897 = vmatmul.mubr.f32.gmra.mrb[0].mxu0 %v413
      %v898 = vpop.f32.mrb[0].mxu0
      %v899 = vadd.f32 0.0, %v898
      %v900 = vpop.f32.mrb[0].mxu0
      %901 = vmatprep.mubr.f32.mxu0 0.0
      %902 = vmatmul.mubr.f32.gmra.mrb[0].mxu0 %v416
      %v903 = vpop.f32.mrb[0].mxu0
      %v904 = vadd.f32 0.0, %v903
      %v905 = vpop.f32.mrb[0].mxu0
      %906 = vmatprep.mubr.f32.mxu0 0.0
      %907 = vmatmul.mubr.f32.gmra.mrb[0].mxu0 %v419
      %v908 = vpop.f32.mrb[0].mxu0
      %v909 = vadd.f32 0.0, %v908
      %v910 = vpop.f32.mrb[0].mxu0
      %911 = vmatprep.mubr.f32.mxu0 0.0
      %912 = vmatmul.mubr.f32.gmra.mrb[0].mxu0 %v422
      %v913 = vpop.f32.mrb[0].mxu0
      %v914 = vadd.f32 0.0, %v913
      %v915 = vpop.f32.mrb[0].mxu0
      %916 = vmatprep.mubr.f32.mxu0 0.0
      %917 = vmatmul.mubr.f32.gmra.mrb[0].mxu0 %v425
      %v918 = vpop.f32.mrb[0].mxu0
      %v919 = vadd.f32 0.0, %v918
      %v920 = vpop.f32.mrb[0].mxu0
      %921 = vmatprep.mubr.f32.mxu0 0.0
      %922 = vmatmul.mubr.f32.gmra.mrb[0].mxu0 %v428
      %v923 = vpop.f32.mrb[0].mxu0
      %v924 = vadd.f32 0.0, %v923
      %v925 = vpop.f32.mrb[0].mxu0
      %926 = vmatprep.mubr.f32.mxu0 0.0
      %927 = vmatmul.mubr.f32.gmra.mrb[0].mxu0 %v431
      %v928 = vpop.f32.mrb[0].mxu0
      %v929 = vadd.f32 0.0, %v928
      %v930 = vpop.f32.mrb[0].mxu0
      %931 = vmatprep.mubr.f32.mxu0 0.0
      %932 = vmatmul.mubr.f32.gmra.mrb[0].mxu0 %v434
      %v933 = vpop.f32.mrb[0].mxu0
      %v934 = vadd.f32 0.0, %v933
      %v935 = vpop.f32.mrb[0].mxu0
      %936 = vmatprep.mubr.f32.mxu0 0.0
      %937 = vmatmul.mubr.f32.gmra.mrb[0].mxu0 %v437
      %v938 = vpop.f32.mrb[0].mxu0
      %v939 = vadd.f32 0.0, %v938
      %v940 = vpop.f32.mrb[0].mxu0
      %941 = vmatprep.mubr.f32.mxu0 0.0
      %942 = vmatmul.mubr.f32.gmra.mrb[0].mxu0 %v440
      %v943 = vpop.f32.mrb[0].mxu0
      %v944 = vadd.f32 0.0, %v943
      %v945 = vpop.f32.mrb[0].mxu0
      %946 = vmatprep.mubr.f32.mxu0 0.0
      %947 = vmatmul.mubr.f32.gmra.mrb[0].mxu0 %v443
      %v948 = vpop.f32.mrb[0].mxu0
      %v949 = vadd.f32 0.0, %v948
      %v950 = vpop.f32.mrb[0].mxu0
      %951 = vmatprep.mubr.f32.mxu0 0.0
      %952 = vmatmul.mubr.f32.gmra.mrb[0].mxu0 %v446
      %v953 = vpop.f32.mrb[0].mxu0
      %v954 = vadd.f32 0.0, %v953
      %v955 = vpop.f32.mrb[0].mxu0
      %956 = vmatprep.mubr.f32.mxu0 0.0
      %957 = vmatmul.mubr.f32.gmra.mrb[0].mxu0 %v449
      %v958 = vpop.f32.mrb[0].mxu0
      %v959 = vadd.f32 0.0, %v958
      %v960 = vpop.f32.mrb[0].mxu0
      %961 = vmatprep.mubr.f32.mxu0 0.0
      %962 = vmatmul.mubr.f32.gmra.mrb[0].mxu0 %v452
      %v963 = vpop.f32.mrb[0].mxu0
      %v964 = vadd.f32 0.0, %v963
      %v965 = vpop.f32.mrb[0].mxu0
      %966 = vmatprep.mubr.f32.mxu0 0.0
      %967 = vmatmul.mubr.f32.gmra.mrb[0].mxu0 %v455
      %v968 = vpop.f32.mrb[0].mxu0
      %v969 = vadd.f32 0.0, %v968
      %v970 = vpop.f32.mrb[0].mxu0
      %971 = vmatprep.mubr.f32.mxu0 0.0
      %972 = vmatmul.mubr.f32.gmra.mrb[0].mxu0 %v458
      %v973 = vpop.f32.mrb[0].mxu0
      %v974 = vadd.f32 0.0, %v973
      %v975 = vpop.f32.mrb[0].mxu0
      %976 = vmatprep.mubr.f32.mxu0 0.0
      %977 = vmatmul.mubr.f32.gmra.mrb[0].mxu0 %v461
      %v978 = vpop.f32.mrb[0].mxu0
      %v979 = vadd.f32 0.0, %v978
      %v980 = vpop.f32.mrb[0].mxu0
      %981 = vmatprep.mubr.f32.mxu0 0.0
      %982 = vmatmul.mubr.f32.gmra.mrb[0].mxu0 %v464
      %v983 = vpop.f32.mrb[0].mxu0
      %v984 = vadd.f32 0.0, %v983
      %v985 = vpop.f32.mrb[0].mxu0
      %986 = vmatprep.mubr.f32.mxu0 0.0
      %987 = vmatmul.mubr.f32.gmra.mrb[0].mxu0 %v467
      %v988 = vpop.f32.mrb[0].mxu0
      %v989 = vadd.f32 0.0, %v988
      %v990 = vpop.f32.mrb[0].mxu0
      %991 = vmatprep.mubr.f32.mxu0 0.0
      %992 = vmatmul.mubr.f32.gmra.mrb[0].mxu0 %v470
      %v993 = vpop.f32.mrb[0].mxu0
      %v994 = vadd.f32 0.0, %v993
      %v995 = vpop.f32.mrb[0].mxu0
      %996 = vmatprep.mubr.f32.mxu0 0.0
      %997 = vmatmul.mubr.f32.gmra.mrb[0].mxu0 %v473
      %v998 = vpop.f32.mrb[0].mxu0
      %v999 = vadd.f32 0.0, %v998
      %v1000 = vpop.f32.mrb[0].mxu0
      %1001 = vmatprep.mubr.f32.mxu0 0.0
      %1002 = vmatmul.mubr.f32.gmra.mrb[0].mxu0 %v476
      %v1003 = vpop.f32.mrb[0].mxu0
      %v1004 = vadd.f32 0.0, %v1003
      %v1005 = vpop.f32.mrb[0].mxu0
      %1006 = vmatprep.mubr.f32.mxu0 0.0
      %1007 = vmatmul.mubr.f32.gmra.mrb[0].mxu0 %v479
      %v1008 = vpop.f32.mrb[0].mxu0
      %v1009 = vadd.f32 0.0, %v1008
      %v1010 = vpop.f32.mrb[0].mxu0
      %1011 = vmatprep.mubr.f32.mxu0 0.0
      %1012 = vmatmul.mubr.f32.gmra.mrb[0].mxu0 %v482
      %v1013 = vpop.f32.mrb[0].mxu0
      %v1014 = vadd.f32 0.0, %v1013
      %v1015 = vpop.f32.mrb[0].mxu0
      %1016 = vmatprep.mubr.f32.mxu0 0.0
      %1017 = vmatmul.mubr.f32.gmra.mrb[0].mxu0 %v485
      %v1018 = vpop.f32.mrb[0].mxu0
      %v1019 = vadd.f32 0.0, %v1018
      %v1020 = vpop.f32.mrb[0].mxu0
      %1021 = vmatprep.mubr.f32.mxu0 0.0
      %1022 = vmatmul.mubr.f32.gmra.mrb[0].mxu0 %v488
      %v1023 = vpop.f32.mrb[0].mxu0
      %v1024 = vadd.f32 0.0, %v1023
      %v1025 = vpop.f32.mrb[0].mxu0
      %1026 = vmatprep.mubr.f32.mxu0 0.0
      %1027 = vmatmul.mubr.f32.gmra.mrb[0].mxu0 %v491
      %v1028 = vpop.f32.mrb[0].mxu0
      %v1029 = vadd.f32 0.0, %v1028
      %v1030 = vpop.f32.mrb[0].mxu0
      %1031 = vmatprep.mubr.f32.mxu0 0.0
      %1032 = vmatmul.mubr.f32.gmra.mrb[0].mxu0 %v494
      %v1033 = vpop.f32.mrb[0].mxu0
      %v1034 = vadd.f32 0.0, %v1033
      %v1035 = vpop.f32.mrb[0].mxu0
      %1036 = vmatprep.mubr.f32.mxu0 0.0
      %1037 = vmatmul.mubr.f32.gmra.mrb[0].mxu0 %v497
      %v1038 = vpop.f32.mrb[0].mxu0
      %v1039 = vadd.f32 0.0, %v1038
      %v1040 = vpop.f32.mrb[0].mxu0
      %1041 = vmatprep.mubr.f32.mxu0 0.0
      %1042 = vmatmul.mubr.f32.gmra.mrb[0].mxu0 %v500
      %v1043 = vpop.f32.mrb[0].mxu0
      %v1044 = vadd.f32 0.0, %v1043
      %v1045 = vpop.f32.mrb[0].mxu0
      %1046 = vmatprep.mubr.f32.mxu0 0.0
      %1047 = vmatmul.mubr.f32.gmra.mrb[0].mxu0 %v503
      %v1048 = vpop.f32.mrb[0].mxu0
      %v1049 = vadd.f32 0.0, %v1048
      %v1050 = vpop.f32.mrb[0].mxu0
      %1051 = vmatprep.mubr.f32.mxu0 0.0
      %1052 = vmatmul.mubr.f32.gmra.mrb[0].mxu0 %v506
      %v1053 = vpop.f32.mrb[0].mxu0
      %v1054 = vadd.f32 0.0, %v1053
      %v1055 = vpop.f32.mrb[0].mxu0
      %1056 = vmatprep.mubr.f32.mxu0 0.0
      %1057 = vmatmul.mubr.f32.gmra.mrb[0].mxu0 %v509
      %v1058 = vpop.f32.mrb[0].mxu0
      %v1059 = vadd.f32 0.0, %v1058
      %v1060 = vpop.f32.mrb[0].mxu0
      %1061 = vmatprep.mubr.f32.mxu0 0.0
      %1062 = vmatmul.mubr.f32.gmra.mrb[0].mxu0 %v512
      %v1063 = vpop.f32.mrb[0].mxu0
      %v1064 = vadd.f32 0.0, %v1063
      %v1065 = vpop.f32.mrb[0].mxu0
      %1066 = vmatprep.mubr.f32.mxu0 0.0
      %1067 = vmatmul.mubr.f32.gmra.mrb[0].mxu0 %v515
      %v1068 = vpop.f32.mrb[0].mxu0
      %v1069 = vadd.f32 0.0, %v1068
      %v1070 = vpop.f32.mrb[0].mxu0
      %1071 = vmatprep.mubr.f32.mxu0 0.0
      %1072 = vmatmul.mubr.f32.gmra.mrb[0].mxu0 %v518
      %v1073 = vpop.f32.mrb[0].mxu0
      %v1074 = vadd.f32 0.0, %v1073
      %v1075 = vpop.f32.mrb[0].mxu0
      %1076 = vmatprep.mubr.f32.mxu0 0.0
      %1077 = vmatmul.mubr.f32.gmra.mrb[0].mxu0 %v521
      %v1078 = vpop.f32.mrb[0].mxu0
      %v1079 = vadd.f32 0.0, %v1078
      %v1080 = vpop.f32.mrb[0].mxu0
      %1081 = vmatprep.mubr.f32.mxu0 0.0
      %1082 = vmatmul.mubr.f32.gmra.mrb[0].mxu0 %v524
      %v1083 = vpop.f32.mrb[0].mxu0
      %v1084 = vadd.f32 0.0, %v1083
      %v1085 = vpop.f32.mrb[0].mxu0
      %1086 = vmatprep.mubr.f32.mxu0 0.0
      %1087 = vmatmul.mubr.f32.gmra.mrb[0].mxu0 %v527
      %v1088 = vpop.f32.mrb[0].mxu0
      %v1089 = vadd.f32 0.0, %v1088
      %v1090 = vpop.f32.mrb[0].mxu0
      %1091 = vmatprep.mubr.f32.mxu0 0.0
      %1092 = vmatmul.mubr.f32.gmra.mrb[0].mxu0 %v530
      %v1093 = vpop.f32.mrb[0].mxu0
      %v1094 = vadd.f32 0.0, %v1093
      %v1095 = vpop.f32.mrb[0].mxu0
      %1096 = vmatprep.mubr.f32.mxu0 0.0
      %1097 = vmatmul.mubr.f32.gmra.mrb[0].mxu0 %v533
      %v1098 = vpop.f32.mrb[0].mxu0
      %v1099 = vadd.f32 0.0, %v1098
      %v1100 = vpop.f32.mrb[0].mxu0
      %1101 = vmatprep.mubr.f32.mxu0 0.0
      %1102 = vmatmul.mubr.f32.gmra.mrb[0].mxu0 %v536
      %v1103 = vpop.f32.mrb[0].mxu0
      %v1104 = vadd.f32 0.0, %v1103
      %v1105 = vpop.f32.mrb[0].mxu0
      %1106 = vmatprep.mubr.f32.mxu0 0.0
      %1107 = vmatmul.mubr.f32.gmra.mrb[0].mxu0 %v539
      %v1108 = vpop.f32.mrb[0].mxu0
      %v1109 = vadd.f32 0.0, %v1108
      %v1110 = vpop.f32.mrb[0].mxu0
      %1111 = vmatprep.mubr.f32.mxu0 0.0
      %1112 = vmatmul.mubr.f32.gmra.mrb[0].mxu0 %v542
      %v1113 = vpop.f32.mrb[0].mxu0
      %v1114 = vadd.f32 0.0, %v1113
      %v1115 = vpop.f32.mrb[0].mxu0
      %1116 = vmatprep.mubr.f32.mxu0 0.0
      %1117 = vmatmul.mubr.f32.gmra.mrb[0].mxu0 %v545
      %v1118 = vpop.f32.mrb[0].mxu0
      %v1119 = vadd.f32 0.0, %v1118
      %v1120 = vpop.f32.mrb[0].mxu0
      %1121 = vmatprep.mubr.f32.mxu0 0.0
      %1122 = vmatmul.mubr.f32.gmra.mrb[0].mxu0 %v548
      %v1123 = vpop.f32.mrb[0].mxu0
      %v1124 = vadd.f32 0.0, %v1123
      %v1125 = vpop.f32.mrb[0].mxu0
      %1126 = vmatprep.mubr.f32.mxu0 0.0
      %1127 = vmatmul.mubr.f32.gmra.mrb[0].mxu0 %v551
      %v1128 = vpop.f32.mrb[0].mxu0
      %v1129 = vadd.f32 0.0, %v1128
      %v1130 = vpop.f32.mrb[0].mxu0
      %1131 = vmatprep.mubr.f32.mxu0 0.0
      %1132 = vmatmul.mubr.f32.gmra.mrb[0].mxu0 %v554
      %v1133 = vpop.f32.mrb[0].mxu0
      %v1134 = vadd.f32 0.0, %v1133
      %v1135 = vpop.f32.mrb[0].mxu0
      %1136 = vmatprep.mubr.f32.mxu0 0.0
      %1137 = vmatmul.mubr.f32.gmra.mrb[0].mxu0 %v557
      %v1138 = vpop.f32.mrb[0].mxu0
      %v1139 = vadd.f32 0.0, %v1138
      %v1140 = vpop.f32.mrb[0].mxu0
      %1141 = vmatprep.mubr.f32.mxu0 0.0
      %1142 = vmatmul.mubr.f32.gmra.mrb[0].mxu0 %v560
      %v1143 = vpop.f32.mrb[0].mxu0
      %v1144 = vadd.f32 0.0, %v1143
      %v1145 = vpop.f32.mrb[0].mxu0
      %1146 = vmatprep.mubr.f32.mxu0 0.0
      %1147 = vmatmul.mubr.f32.gmra.mrb[0].mxu0 %v563
      %v1148 = vpop.f32.mrb[0].mxu0
      %v1149 = vadd.f32 0.0, %v1148
      %v1150 = vpop.f32.mrb[0].mxu0
      %1151 = vmatprep.mubr.f32.mxu0 0.0
      %1152 = vmatmul.mubr.f32.gmra.mrb[0].mxu0 %v566
      %v1153 = vpop.f32.mrb[0].mxu0
      %v1154 = vadd.f32 0.0, %v1153
      %v1155 = vpop.f32.mrb[0].mxu0
      %1156 = vmatprep.mubr.f32.mxu0 0.0
      %1157 = vmatmul.mubr.f32.gmra.mrb[0].mxu0 %v569
      %v1158 = vpop.f32.mrb[0].mxu0
      %v1159 = vadd.f32 0.0, %v1158
      %v1160 = vpop.f32.mrb[0].mxu0
      %1161 = vmatprep.mubr.f32.mxu0 0.0
      %1162 = vmatmul.mubr.f32.gmra.mrb[0].mxu0 %v572
      %v1163 = vpop.f32.mrb[0].mxu0
      %v1164 = vadd.f32 0.0, %v1163
      %v1165 = vpop.f32.mrb[0].mxu0
      %1166 = vmatprep.mubr.f32.mxu0 0.0
      %1167 = vmatmul.mubr.f32.gmra.mrb[0].mxu0 %v575
      %v1168 = vpop.f32.mrb[0].mxu0
      %v1169 = vadd.f32 0.0, %v1168
      %v1170 = vpop.f32.mrb[0].mxu0
      %1171 = vmatprep.mubr.f32.mxu0 0.0
      %1172 = vmatmul.mubr.f32.gmra.mrb[0].mxu0 %v578
      %v1173 = vpop.f32.mrb[0].mxu0
      %v1174 = vadd.f32 0.0, %v1173
      %v1175 = vpop.f32.mrb[0].mxu0
      %1176 = vmatprep.mubr.f32.mxu0 0.0
      %1177 = vmatmul.mubr.f32.gmra.mrb[0].mxu0 %v581
      %v1178 = vpop.f32.mrb[0].mxu0
      %v1179 = vadd.f32 0.0, %v1178
      %v1180 = vpop.f32.mrb[0].mxu0
      %1181 = vmatprep.mubr.f32.mxu0 0.0
      %1182 = vmatmul.mubr.f32.gmra.mrb[0].mxu0 %v584
      %v1183 = vpop.f32.mrb[0].mxu0
      %v1184 = vadd.f32 0.0, %v1183
      %v1185 = vpop.f32.mrb[0].mxu0
      %1186 = vmatprep.mubr.f32.mxu0 0.0
      %1187 = vmatmul.mubr.f32.gmra.mrb[0].mxu0 %v587
      %v1188 = vpop.f32.mrb[0].mxu0
      %v1189 = vadd.f32 0.0, %v1188
      %v1190 = vpop.f32.mrb[0].mxu0
      %1191 = vmatprep.mubr.f32.mxu0 0.0
      %1192 = vmatmul.mubr.f32.gmra.mrb[0].mxu0 %v590
      %v1193 = vpop.f32.mrb[0].mxu0
      %v1194 = vadd.f32 0.0, %v1193
      %v1195 = vpop.f32.mrb[0].mxu0
      %1196 = vmatprep.mubr.f32.mxu0 0.0
      %1197 = vmatmul.mubr.f32.gmra.mrb[0].mxu0 %v593
      %v1198 = vpop.f32.mrb[0].mxu0
      %v1199 = vadd.f32 0.0, %v1198
      %v1200 = vpop.f32.mrb[0].mxu0
      %1201 = vmatprep.mubr.f32.mxu0 0.0
      %1202 = vmatmul.mubr.f32.gmra.mrb[0].mxu0 %v596
      %v1203 = vpop.f32.mrb[0].mxu0
      %v1204 = vadd.f32 0.0, %v1203
      %v1205 = vpop.f32.mrb[0].mxu0
      %1206 = vmatprep.mubr.f32.mxu0 0.0
      %1207 = vmatmul.mubr.f32.gmra.mrb[0].mxu0 %v599
      %v1208 = vpop.f32.mrb[0].mxu0
      %v1209 = vadd.f32 0.0, %v1208
      %v1210 = vpop.f32.mrb[0].mxu0
      %1211 = vmatprep.mubr.f32.mxu0 0.0
      %1212 = vmatmul.mubr.f32.gmra.mrb[0].mxu0 %v602
      %v1213 = vpop.f32.mrb[0].mxu0
      %v1214 = vadd.f32 0.0, %v1213
      %v1215 = vpop.f32.mrb[0].mxu0
      %1216 = vmatprep.mubr.f32.mxu0 0.0
      %1217 = vmatmul.mubr.f32.gmra.mrb[0].mxu0 %v605
      %v1218 = vpop.f32.mrb[0].mxu0
      %v1219 = vadd.f32 0.0, %v1218
      %v1220 = vpop.f32.mrb[0].mxu0
      %1221 = vmatprep.mubr.f32.mxu0 0.0
      %1222 = vmatmul.mubr.f32.gmra.mrb[0].mxu0 %v608
      %v1223 = vpop.f32.mrb[0].mxu0
      %v1224 = vadd.f32 0.0, %v1223
      %v1225 = vpop.f32.mrb[0].mxu0
      %1226 = vmatprep.mubr.f32.mxu0 0.0
      %1227 = vmatmul.mubr.f32.gmra.mrb[0].mxu0 %v611
      %v1228 = vpop.f32.mrb[0].mxu0
      %v1229 = vadd.f32 0.0, %v1228
      %v1230 = vpop.f32.mrb[0].mxu0
      %1231 = vmatprep.mubr.f32.mxu0 0.0
      %1232 = vmatmul.mubr.f32.gmra.mrb[0].mxu0 %v614
      %v1233 = vpop.f32.mrb[0].mxu0
      %v1234 = vadd.f32 0.0, %v1233
      %v1235 = vpop.f32.mrb[0].mxu0
      %1236 = vmatprep.mubr.f32.mxu0 0.0
      %1237 = vmatmul.mubr.f32.gmra.mrb[0].mxu0 %v617
      %v1238 = vpop.f32.mrb[0].mxu0
      %v1239 = vadd.f32 0.0, %v1238
      %v1240 = vpop.f32.mrb[0].mxu0
      %1241 = vmatprep.mubr.f32.mxu0 0.0
      %1242 = vmatmul.mubr.f32.gmra.mrb[0].mxu0 %v620
      %v1243 = vpop.f32.mrb[0].mxu0
      %v1244 = vadd.f32 0.0, %v1243
      %v1245 = vpop.f32.mrb[0].mxu0
      %1246 = vmatprep.mubr.f32.mxu0 0.0
      %1247 = vmatmul.mubr.f32.gmra.mrb[0].mxu0 %v623
      %v1248 = vpop.f32.mrb[0].mxu0
      %v1249 = vadd.f32 0.0, %v1248
      %v1250 = vpop.f32.mrb[0].mxu0
      %1251 = vmatprep.mubr.f32.mxu0 0.0
      %1252 = vmatmul.mubr.f32.gmra.mrb[0].mxu0 %v626
      %v1253 = vpop.f32.mrb[0].mxu0
      %v1254 = vadd.f32 0.0, %v1253
      %v1255 = vpop.f32.mrb[0].mxu0
      %1256 = vmatprep.mubr.f32.mxu0 0.0
      %1257 = vmatmul.mubr.f32.gmra.mrb[0].mxu0 %v629
      %v1258 = vpop.f32.mrb[0].mxu0
      %v1259 = vadd.f32 0.0, %v1258
      %v1260 = vpop.f32.mrb[0].mxu0
      %1261 = vmatprep.mubr.f32.mxu0 0.0
      %1262 = vmatmul.mubr.f32.gmra.mrb[0].mxu0 %v632
      %v1263 = vpop.f32.mrb[0].mxu0
      %v1264 = vadd.f32 0.0, %v1263
      %v1265 = vpop.f32.mrb[0].mxu0
      %1266 = vmatprep.mubr.f32.mxu0 0.0
      %1267 = vmatmul.mubr.f32.gmra.mrb[0].mxu0 %v635
      %v1268 = vpop.f32.mrb[0].mxu0
      %v1269 = vadd.f32 0.0, %v1268
      %v1270 = vpop.f32.mrb[0].mxu0
      %1271 = vmatprep.mubr.f32.mxu0 0.0
      %1272 = vmatmul.mubr.f32.gmra.mrb[0].mxu0 %v638
      %v1273 = vpop.f32.mrb[0].mxu0
      %v1274 = vadd.f32 0.0, %v1273
      %v1275 = vpop.f32.mrb[0].mxu0
      %1276 = vmatprep.mubr.f32.mxu0 0.0
      %1277 = vmatmul.mubr.f32.gmra.mrb[0].mxu0 %v641
      %v1278 = vpop.f32.mrb[0].mxu0
      %v1279 = vadd.f32 0.0, %v1278
      %v1280 = vpop.f32.mrb[0].mxu0
      %1281 = vmatprep.mubr.f32.mxu0 0.0
      %1282 = vmatmul.mubr.f32.gmra.mrb[0].mxu0 %v644
      %v1283 = vpop.f32.mrb[0].mxu0
      %v1284 = vadd.f32 0.0, %v1283
      %v1285 = vpop.f32.mrb[0].mxu0
      %1286 = vmatprep.mubr.f32.mxu0 0.0
      %1287 = vmatmul.mubr.f32.gmra.mrb[0].mxu0 %v647
      %v1288 = vpop.f32.mrb[0].mxu0
      %v1289 = vadd.f32 0.0, %v1288
      %v1290 = vpop.f32.mrb[0].mxu0
      %1291 = vmatprep.mubr.f32.mxu0 0.0
      %1292 = vmatmul.mubr.f32.gmra.mrb[0].mxu0 %v650
      %v1293 = vpop.f32.mrb[0].mxu0
      %v1294 = vadd.f32 0.0, %v1293
      %v1295 = vpop.f32.mrb[0].mxu0
      %1296 = vmatprep.mubr.f32.mxu0 0.0
      %1297 = vmatmul.mubr.f32.gmra.mrb[0].mxu0 %v653
      %v1298 = vpop.f32.mrb[0].mxu0
      %v1299 = vadd.f32 0.0, %v1298
      %v1300 = vpop.f32.mrb[0].mxu0
      %1301 = vmatprep.mubr.f32.mxu0 0.0
      %1302 = vmatmul.mubr.f32.gmra.mrb[0].mxu0 %v656
      %v1303 = vpop.f32.mrb[0].mxu0
      %v1304 = vadd.f32 0.0, %v1303
      %v1305 = vpop.f32.mrb[0].mxu0
      %1306 = vmatprep.mubr.f32.mxu0 0.0
      %1307 = vmatmul.mubr.f32.gmra.mrb[0].mxu0 %v659
      %v1308 = vpop.f32.mrb[0].mxu0
      %v1309 = vadd.f32 0.0, %v1308
      %v1310 = vpop.f32.mrb[0].mxu0
      %1311 = vmatprep.mubr.f32.mxu0 0.0
      %1312 = vmatmul.mubr.f32.gmra.mrb[0].mxu0 %v662
      %v1313 = vpop.f32.mrb[0].mxu0
      %v1314 = vadd.f32 0.0, %v1313
      %v1315 = vpop.f32.mrb[0].mxu0
      %1316 = vmatprep.mubr.f32.mxu0 0.0
      %1317 = vmatmul.mubr.f32.gmra.mrb[0].mxu0 %v665
      %v1318 = vpop.f32.mrb[0].mxu0
      %v1319 = vadd.f32 0.0, %v1318
      %v1320 = vpop.f32.mrb[0].mxu0
      %1321 = vmatprep.mubr.f32.mxu0 0.0
      %1322 = vmatmul.mubr.f32.gmra.mrb[0].mxu0 %v668
      %v1323 = vpop.f32.mrb[0].mxu0
      %v1324 = vadd.f32 0.0, %v1323
      %v1325 = vpop.f32.mrb[0].mxu0
      %1326 = vmatprep.mubr.f32.mxu0 0.0
      %1327 = vmatmul.mubr.f32.gmra.mrb[0].mxu0 %v671
      %v1328 = vpop.f32.mrb[0].mxu0
      %v1329 = vadd.f32 0.0, %v1328
      %v1330 = vpop.f32.mrb[0].mxu0
      %1331 = vmatprep.mubr.f32.mxu0 0.0
      %1332 = vmatmul.mubr.f32.gmra.mrb[0].mxu0 %v674
      %v1333 = vpop.f32.mrb[0].mxu0
      %v1334 = vadd.f32 0.0, %v1333
      %v1335 = vpop.f32.mrb[0].mxu0
      %1336 = vmatprep.mubr.f32.mxu0 0.0
      %1337 = vmatmul.mubr.f32.gmra.mrb[0].mxu0 %v677
      %v1338 = vpop.f32.mrb[0].mxu0
      %v1339 = vadd.f32 0.0, %v1338
      %v1340 = vpop.f32.mrb[0].mxu0
      %1341 = vmatprep.mubr.f32.mxu0 0.0
      %1342 = vmatmul.mubr.f32.gmra.mrb[0].mxu0 %v680
      %v1343 = vpop.f32.mrb[0].mxu0
      %v1344 = vadd.f32 0.0, %v1343
      %v1345 = vpop.f32.mrb[0].mxu0
      %1346 = vmatprep.mubr.f32.mxu0 0.0
      %1347 = vmatmul.mubr.f32.gmra.mrb[0].mxu0 %v683
      %v1348 = vpop.f32.mrb[0].mxu0
      %v1349 = vadd.f32 0.0, %v1348
      %v1350 = vpop.f32.mrb[0].mxu0
      %1351 = vmatprep.mubr.f32.mxu0 0.0
      %1352 = vmatmul.mubr.f32.gmra.mrb[0].mxu0 %v686
      %v1353 = vpop.f32.mrb[0].mxu0
      %v1354 = vadd.f32 0.0, %v1353
      %v1355 = vpop.f32.mrb[0].mxu0
      %1356 = vmatprep.mubr.f32.mxu0 0.0
      %1357 = vmatmul.mubr.f32.gmra.mrb[0].mxu0 %v689
      %v1358 = vpop.f32.mrb[0].mxu0
      %v1359 = vadd.f32 0.0, %v1358
      %v1360 = vpop.f32.mrb[0].mxu0
      %1361 = vmatprep.mubr.f32.mxu0 0.0
      %1362 = vmatmul.mubr.f32.gmra.mrb[0].mxu0 %v692
      %v1363 = vpop.f32.mrb[0].mxu0
      %v1364 = vadd.f32 0.0, %v1363
      %v1365 = vpop.f32.mrb[0].mxu0
      %1366 = vmatprep.mubr.f32.mxu0 0.0
      %1367 = vmatmul.mubr.f32.gmra.mrb[0].mxu0 %v695
      %v1368 = vpop.f32.mrb[0].mxu0
      %v1369 = vadd.f32 0.0, %v1368
      %v1370 = vpop.f32.mrb[0].mxu0
      %1371 = vmatprep.mubr.f32.mxu0 0.0
      %1372 = vmatmul.mubr.f32.gmra.mrb[0].mxu0 %v698
      %v1373 = vpop.f32.mrb[0].mxu0
      %v1374 = vadd.f32 0.0, %v1373
      %v1375 = vpop.f32.mrb[0].mxu0
      %1376 = vmatprep.mubr.f32.mxu0 0.0
      %1377 = vmatmul.mubr.f32.gmra.mrb[0].mxu0 %v701
      %v1378 = vpop.f32.mrb[0].mxu0
      %v1379 = vadd.f32 0.0, %v1378
      %v1380 = vpop.f32.mrb[0].mxu0
      %1381 = vmatprep.mubr.f32.mxu0 0.0
      %1382 = vmatmul.mubr.f32.gmra.mrb[0].mxu0 %v704
      %v1383 = vpop.f32.mrb[0].mxu0
      %v1384 = vadd.f32 0.0, %v1383
      %v1385 = vpop.f32.mrb[0].mxu0
      %1386 = vmatprep.mubr.f32.mxu0 0.0
      %1387 = vmatmul.mubr.f32.gmra.mrb[0].mxu0 %v707
      %v1388 = vpop.f32.mrb[0].mxu0
      %v1389 = vadd.f32 0.0, %v1388
      %v1390 = vpop.f32.mrb[0].mxu0
      %1391 = vmatprep.mubr.f32.mxu0 0.0
      %1392 = vmatmul.mubr.f32.gmra.mrb[0].mxu0 %v710
      %v1393 = vpop.f32.mrb[0].mxu0
      %v1394 = vadd.f32 0.0, %v1393
      %v1395 = vpop.f32.mrb[0].mxu0
      %1396 = vmatprep.mubr.f32.mxu0 0.0
      %1397 = vmatmul.mubr.f32.gmra.mrb[0].mxu0 %v713
      %v1398 = vpop.f32.mrb[0].mxu0
      %v1399 = vadd.f32 0.0, %v1398
      %v1400 = vpop.f32.mrb[0].mxu0
      %1401 = vmatprep.mubr.f32.mxu0 0.0
      %1402 = vmatmul.mubr.f32.gmra.mrb[0].mxu0 %v716
      %v1403 = vpop.f32.mrb[0].mxu0
      %v1404 = vadd.f32 0.0, %v1403
      %v1405 = vpop.f32.mrb[0].mxu0
      %1406 = vmatprep.mubr.f32.mxu0 0.0
      %1407 = vmatmul.mubr.f32.gmra.mrb[0].mxu0 %v719
      %v1408 = vpop.f32.mrb[0].mxu0
      %v1409 = vadd.f32 0.0, %v1408
      %v1410 = vpop.f32.mrb[0].mxu0
      %1411 = vmatprep.mubr.f32.mxu0 0.0
      %1412 = vmatmul.mubr.f32.gmra.mrb[0].mxu0 %v722
      %v1413 = vpop.f32.mrb[0].mxu0
      %v1414 = vadd.f32 0.0, %v1413
      %v1415 = vpop.f32.mrb[0].mxu0
      %1416 = vmatprep.mubr.f32.mxu0 0.0
      %1417 = vmatmul.mubr.f32.gmra.mrb[0].mxu0 %v725
      %v1418 = vpop.f32.mrb[0].mxu0
      %v1419 = vadd.f32 0.0, %v1418
      %v1420 = vpop.f32.mrb[0].mxu0
      %1421 = vmatprep.mubr.f32.mxu0 0.0
      %1422 = vmatmul.mubr.f32.gmra.mrb[0].mxu0 %v728
      %v1423 = vpop.f32.mrb[0].mxu0
      %v1424 = vadd.f32 0.0, %v1423
      %v1425 = vpop.f32.mrb[0].mxu0
      %1426 = vmatprep.mubr.f32.mxu0 0.0
      %1427 = vmatmul.mubr.f32.gmra.mrb[0].mxu0 %v731
      %v1428 = vpop.f32.mrb[0].mxu0
      %v1429 = vadd.f32 0.0, %v1428
      %v1430 = vpop.f32.mrb[0].mxu0
      %1431 = vmatprep.mubr.f32.mxu0 0.0
      %1432 = vmatmul.mubr.f32.gmra.mrb[0].mxu0 %v734
      %v1433 = vpop.f32.mrb[0].mxu0
      %v1434 = vadd.f32 0.0, %v1433
      %v1435 = vpop.f32.mrb[0].mxu0
      %1436 = vmatprep.mubr.f32.mxu0 0.0
      %1437 = vmatmul.mubr.f32.gmra.mrb[0].mxu0 %v737
      %v1438 = vpop.f32.mrb[0].mxu0
      %v1439 = vadd.f32 0.0, %v1438
      %v1440 = vpop.f32.mrb[0].mxu0
      %1441 = vmatprep.mubr.f32.mxu0 0.0
      %1442 = vmatmul.mubr.f32.gmra.mrb[0].mxu0 %v740
      %v1443 = vpop.f32.mrb[0].mxu0
      %v1444 = vadd.f32 0.0, %v1443
      %v1445 = vpop.f32.mrb[0].mxu0
      %1446 = vdwg.mxu0
      %v1447 = vsel %vm357, %v809, -inf
      %v1448 = vsel %vm357, %v969, -inf
      %v1449 = vmax.f32 %v1447, %v1448
      %v1450 = vsel %vm357, %v1129, -inf
      %v1451 = vmax.f32 %v1449, %v1450
      %v1452 = vsel %vm357, %v1289, -inf
      %v1453 = vmax.f32 %v1451, %v1452
      %v1454 = vsel %vm357, %v814, -inf
      %v1455 = vsel %vm357, %v974, -inf
      %v1456 = vmax.f32 %v1454, %v1455
      %v1457 = vsel %vm357, %v1134, -inf
      %v1458 = vmax.f32 %v1456, %v1457
      %v1459 = vsel %vm357, %v1294, -inf
      %v1460 = vmax.f32 %v1458, %v1459
      %v1461 = vsel %vm357, %v819, -inf
      %v1462 = vsel %vm357, %v979, -inf
      %v1463 = vmax.f32 %v1461, %v1462
      %v1464 = vsel %vm357, %v1139, -inf
      %v1465 = vmax.f32 %v1463, %v1464
      %v1466 = vsel %vm357, %v1299, -inf
      %v1467 = vmax.f32 %v1465, %v1466
      %v1468 = vsel %vm357, %v824, -inf
      %v1469 = vsel %vm357, %v984, -inf
      %v1470 = vmax.f32 %v1468, %v1469
      %v1471 = vsel %vm357, %v1144, -inf
      %v1472 = vmax.f32 %v1470, %v1471
      %v1473 = vsel %vm357, %v1304, -inf
      %v1474 = vmax.f32 %v1472, %v1473
      %v1475 = vsel %vm357, %v829, -inf
      %v1476 = vsel %vm357, %v989, -inf
      %v1477 = vmax.f32 %v1475, %v1476
      %v1478 = vsel %vm357, %v1149, -inf
      %v1479 = vmax.f32 %v1477, %v1478
      %v1480 = vsel %vm357, %v1309, -inf
      %v1481 = vmax.f32 %v1479, %v1480
      %v1482 = vsel %vm357, %v834, -inf
      %v1483 = vsel %vm357, %v994, -inf
      %v1484 = vmax.f32 %v1482, %v1483
      %v1485 = vsel %vm357, %v1154, -inf
      %v1486 = vmax.f32 %v1484, %v1485
      %v1487 = vsel %vm357, %v1314, -inf
      %v1488 = vmax.f32 %v1486, %v1487
      %v1489 = vsel %vm357, %v839, -inf
      %v1490 = vsel %vm357, %v999, -inf
      %v1491 = vmax.f32 %v1489, %v1490
      %v1492 = vsel %vm357, %v1159, -inf
      %v1493 = vmax.f32 %v1491, %v1492
      %v1494 = vsel %vm357, %v1319, -inf
      %v1495 = vmax.f32 %v1493, %v1494
      %v1496 = vsel %vm357, %v844, -inf
      %v1497 = vsel %vm357, %v1004, -inf
      %v1498 = vmax.f32 %v1496, %v1497
      %v1499 = vsel %vm357, %v1164, -inf
      %v1500 = vmax.f32 %v1498, %v1499
      %v1501 = vsel %vm357, %v1324, -inf
      %v1502 = vmax.f32 %v1500, %v1501
      %v1503 = vsel %vm357, %v849, -inf
      %v1504 = vsel %vm357, %v1009, -inf
      %v1505 = vmax.f32 %v1503, %v1504
      %v1506 = vsel %vm357, %v1169, -inf
      %v1507 = vmax.f32 %v1505, %v1506
      %v1508 = vsel %vm357, %v1329, -inf
      %v1509 = vmax.f32 %v1507, %v1508
      %v1510 = vsel %vm357, %v854, -inf
      %v1511 = vsel %vm357, %v1014, -inf
      %v1512 = vmax.f32 %v1510, %v1511
      %v1513 = vsel %vm357, %v1174, -inf
      %v1514 = vmax.f32 %v1512, %v1513
      %v1515 = vsel %vm357, %v1334, -inf
      %v1516 = vmax.f32 %v1514, %v1515
      %v1517 = vsel %vm357, %v859, -inf
      %v1518 = vsel %vm357, %v1019, -inf
      %v1519 = vmax.f32 %v1517, %v1518
      %v1520 = vsel %vm357, %v1179, -inf
      %v1521 = vmax.f32 %v1519, %v1520
      %v1522 = vsel %vm357, %v1339, -inf
      %v1523 = vmax.f32 %v1521, %v1522
      %v1524 = vsel %vm357, %v864, -inf
      %v1525 = vsel %vm357, %v1024, -inf
      %v1526 = vmax.f32 %v1524, %v1525
      %v1527 = vsel %vm357, %v1184, -inf
      %v1528 = vmax.f32 %v1526, %v1527
      %v1529 = vsel %vm357, %v1344, -inf
      %v1530 = vmax.f32 %v1528, %v1529
      %v1531 = vsel %vm357, %v869, -inf
      %v1532 = vsel %vm357, %v1029, -inf
      %v1533 = vmax.f32 %v1531, %v1532
      %v1534 = vsel %vm357, %v1189, -inf
      %v1535 = vmax.f32 %v1533, %v1534
      %v1536 = vsel %vm357, %v1349, -inf
      %v1537 = vmax.f32 %v1535, %v1536
      %v1538 = vsel %vm357, %v874, -inf
      %v1539 = vsel %vm357, %v1034, -inf
      %v1540 = vmax.f32 %v1538, %v1539
      %v1541 = vsel %vm357, %v1194, -inf
      %v1542 = vmax.f32 %v1540, %v1541
      %v1543 = vsel %vm357, %v1354, -inf
      %v1544 = vmax.f32 %v1542, %v1543
      %v1545 = vsel %vm357, %v879, -inf
      %v1546 = vsel %vm357, %v1039, -inf
      %v1547 = vmax.f32 %v1545, %v1546
      %v1548 = vsel %vm357, %v1199, -inf
      %v1549 = vmax.f32 %v1547, %v1548
      %v1550 = vsel %vm357, %v1359, -inf
      %v1551 = vmax.f32 %v1549, %v1550
      %v1552 = vsel %vm357, %v884, -inf
      %v1553 = vsel %vm357, %v1044, -inf
      %v1554 = vmax.f32 %v1552, %v1553
      %v1555 = vsel %vm357, %v1204, -inf
      %v1556 = vmax.f32 %v1554, %v1555
      %v1557 = vsel %vm357, %v1364, -inf
      %v1558 = vmax.f32 %v1556, %v1557
      %v1559 = vsel %vm357, %v889, -inf
      %v1560 = vsel %vm357, %v1049, -inf
      %v1561 = vmax.f32 %v1559, %v1560
      %v1562 = vsel %vm357, %v1209, -inf
      %v1563 = vmax.f32 %v1561, %v1562
      %v1564 = vsel %vm357, %v1369, -inf
      %v1565 = vmax.f32 %v1563, %v1564
      %v1566 = vsel %vm357, %v894, -inf
      %v1567 = vsel %vm357, %v1054, -inf
      %v1568 = vmax.f32 %v1566, %v1567
      %v1569 = vsel %vm357, %v1214, -inf
      %v1570 = vmax.f32 %v1568, %v1569
      %v1571 = vsel %vm357, %v1374, -inf
      %v1572 = vmax.f32 %v1570, %v1571
      %v1573 = vsel %vm357, %v899, -inf
      %v1574 = vsel %vm357, %v1059, -inf
      %v1575 = vmax.f32 %v1573, %v1574
      %v1576 = vsel %vm357, %v1219, -inf
      %v1577 = vmax.f32 %v1575, %v1576
      %v1578 = vsel %vm357, %v1379, -inf
      %v1579 = vmax.f32 %v1577, %v1578
      %v1580 = vsel %vm357, %v904, -inf
      %v1581 = vsel %vm357, %v1064, -inf
      %v1582 = vmax.f32 %v1580, %v1581
      %v1583 = vsel %vm357, %v1224, -inf
      %v1584 = vmax.f32 %v1582, %v1583
      %v1585 = vsel %vm357, %v1384, -inf
      %v1586 = vmax.f32 %v1584, %v1585
      %v1587 = vsel %vm357, %v909, -inf
      %v1588 = vsel %vm357, %v1069, -inf
      %v1589 = vmax.f32 %v1587, %v1588
      %v1590 = vsel %vm357, %v1229, -inf
      %v1591 = vmax.f32 %v1589, %v1590
      %v1592 = vsel %vm357, %v1389, -inf
      %v1593 = vmax.f32 %v1591, %v1592
      %v1594 = vsel %vm357, %v914, -inf
      %v1595 = vsel %vm357, %v1074, -inf
      %v1596 = vmax.f32 %v1594, %v1595
      %v1597 = vsel %vm357, %v1234, -inf
      %v1598 = vmax.f32 %v1596, %v1597
      %v1599 = vsel %vm357, %v1394, -inf
      %v1600 = vmax.f32 %v1598, %v1599
      %v1601 = vsel %vm357, %v919, -inf
      %v1602 = vsel %vm357, %v1079, -inf
      %v1603 = vmax.f32 %v1601, %v1602
      %v1604 = vsel %vm357, %v1239, -inf
      %v1605 = vmax.f32 %v1603, %v1604
      %v1606 = vsel %vm357, %v1399, -inf
      %v1607 = vmax.f32 %v1605, %v1606
      %v1608 = vsel %vm357, %v924, -inf
      %v1609 = vsel %vm357, %v1084, -inf
      %v1610 = vmax.f32 %v1608, %v1609
      %v1611 = vsel %vm357, %v1244, -inf
      %v1612 = vmax.f32 %v1610, %v1611
      %v1613 = vsel %vm357, %v1404, -inf
      %v1614 = vmax.f32 %v1612, %v1613
      %v1615 = vsel %vm357, %v929, -inf
      %v1616 = vsel %vm357, %v1089, -inf
      %v1617 = vmax.f32 %v1615, %v1616
      %v1618 = vsel %vm357, %v1249, -inf
      %v1619 = vmax.f32 %v1617, %v1618
      %v1620 = vsel %vm357, %v1409, -inf
      %v1621 = vmax.f32 %v1619, %v1620
      %v1622 = vsel %vm357, %v934, -inf
      %v1623 = vsel %vm357, %v1094, -inf
      %v1624 = vmax.f32 %v1622, %v1623
      %v1625 = vsel %vm357, %v1254, -inf
      %v1626 = vmax.f32 %v1624, %v1625
      %v1627 = vsel %vm357, %v1414, -inf
      %v1628 = vmax.f32 %v1626, %v1627
      %v1629 = vsel %vm357, %v939, -inf
      %v1630 = vsel %vm357, %v1099, -inf
      %v1631 = vmax.f32 %v1629, %v1630
      %v1632 = vsel %vm357, %v1259, -inf
      %v1633 = vmax.f32 %v1631, %v1632
      %v1634 = vsel %vm357, %v1419, -inf
      %v1635 = vmax.f32 %v1633, %v1634
      %v1636 = vsel %vm357, %v944, -inf
      %v1637 = vsel %vm357, %v1104, -inf
      %v1638 = vmax.f32 %v1636, %v1637
      %v1639 = vsel %vm357, %v1264, -inf
      %v1640 = vmax.f32 %v1638, %v1639
      %v1641 = vsel %vm357, %v1424, -inf
      %v1642 = vmax.f32 %v1640, %v1641
      %v1643 = vsel %vm357, %v949, -inf
      %v1644 = vsel %vm357, %v1109, -inf
      %v1645 = vmax.f32 %v1643, %v1644
      %v1646 = vsel %vm357, %v1269, -inf
      %v1647 = vmax.f32 %v1645, %v1646
      %v1648 = vsel %vm357, %v1429, -inf
      %v1649 = vmax.f32 %v1647, %v1648
      %v1650 = vsel %vm357, %v954, -inf
      %v1651 = vsel %vm357, %v1114, -inf
      %v1652 = vmax.f32 %v1650, %v1651
      %v1653 = vsel %vm357, %v1274, -inf
      %v1654 = vmax.f32 %v1652, %v1653
      %v1655 = vsel %vm357, %v1434, -inf
      %v1656 = vmax.f32 %v1654, %v1655
      %v1657 = vsel %vm357, %v959, -inf
      %v1658 = vsel %vm357, %v1119, -inf
      %v1659 = vmax.f32 %v1657, %v1658
      %v1660 = vsel %vm357, %v1279, -inf
      %v1661 = vmax.f32 %v1659, %v1660
      %v1662 = vsel %vm357, %v1439, -inf
      %v1663 = vmax.f32 %v1661, %v1662
      %v1664 = vsel %vm357, %v964, -inf
      %v1665 = vsel %vm357, %v1124, -inf
      %v1666 = vmax.f32 %v1664, %v1665
      %v1667 = vsel %vm357, %v1284, -inf
      %v1668 = vmax.f32 %v1666, %v1667
      %v1669 = vsel %vm357, %v1444, -inf
      %v1670 = vmax.f32 %v1668, %v1669
      %v1671 = vld [vmem:[%s2] sm:$0x1]
      %v1673 = vlaneseq
      %v1674 = vshrl.u32 %v1673, 7
      %v1675 = vsub.s32 0, %v1674
      %v1676 = vrot.slane %v1671, %v1675
      %v1678 = vadd.f32 %v1453, %v1676
      %v1679 = vadd.f32 %v1460, %v1676
      %v1680 = vadd.f32 %v1467, %v1676
      %v1681 = vadd.f32 %v1474, %v1676
      %v1682 = vadd.f32 %v1481, %v1676
      %v1683 = vadd.f32 %v1488, %v1676
      %v1684 = vadd.f32 %v1495, %v1676
      %v1685 = vadd.f32 %v1502, %v1676
      %v1686 = vadd.f32 %v1509, %v1676
      %v1687 = vadd.f32 %v1516, %v1676
      %v1688 = vadd.f32 %v1523, %v1676
      %v1689 = vadd.f32 %v1530, %v1676
      %v1690 = vadd.f32 %v1537, %v1676
      %v1691 = vadd.f32 %v1544, %v1676
      %v1692 = vadd.f32 %v1551, %v1676
      %v1693 = vadd.f32 %v1558, %v1676
      %v1694 = vadd.f32 %v1565, %v1676
      %v1695 = vadd.f32 %v1572, %v1676
      %v1696 = vadd.f32 %v1579, %v1676
      %v1697 = vadd.f32 %v1586, %v1676
      %v1698 = vadd.f32 %v1593, %v1676
      %v1699 = vadd.f32 %v1600, %v1676
      %v1700 = vadd.f32 %v1607, %v1676
      %v1701 = vadd.f32 %v1614, %v1676
      %v1702 = vadd.f32 %v1621, %v1676
      %v1703 = vadd.f32 %v1628, %v1676
      %v1704 = vadd.f32 %v1635, %v1676
      %v1705 = vadd.f32 %v1642, %v1676
      %v1706 = vadd.f32 %v1649, %v1676
      %v1707 = vadd.f32 %v1656, %v1676
      %v1708 = vadd.f32 %v1663, %v1676
      %v1709 = vadd.f32 %v1670, %v1676
      %v1710 = vmax.f32 %v1678, 0.0
      %v1711 = vmax.f32 %v1679, 0.0
      %v1712 = vmax.f32 %v1680, 0.0
      %v1713 = vmax.f32 %v1681, 0.0
      %v1714 = vmax.f32 %v1682, 0.0
      %v1715 = vmax.f32 %v1683, 0.0
      %v1716 = vmax.f32 %v1684, 0.0
      %v1717 = vmax.f32 %v1685, 0.0
      %v1718 = vmax.f32 %v1686, 0.0
      %v1719 = vmax.f32 %v1687, 0.0
      %v1720 = vmax.f32 %v1688, 0.0
      %v1721 = vmax.f32 %v1689, 0.0
      %v1722 = vmax.f32 %v1690, 0.0
      %v1723 = vmax.f32 %v1691, 0.0
      %v1724 = vmax.f32 %v1692, 0.0
      %v1725 = vmax.f32 %v1693, 0.0
      %v1726 = vmax.f32 %v1694, 0.0
      %v1727 = vmax.f32 %v1695, 0.0
      %v1728 = vmax.f32 %v1696, 0.0
      %v1729 = vmax.f32 %v1697, 0.0
      %v1730 = vmax.f32 %v1698, 0.0
      %v1731 = vmax.f32 %v1699, 0.0
      %v1732 = vmax.f32 %v1700, 0.0
      %v1733 = vmax.f32 %v1701, 0.0
      %v1734 = vmax.f32 %v1702, 0.0
      %v1735 = vmax.f32 %v1703, 0.0
      %v1736 = vmax.f32 %v1704, 0.0
      %v1737 = vmax.f32 %v1705, 0.0
      %v1738 = vmax.f32 %v1706, 0.0
      %v1739 = vmax.f32 %v1707, 0.0
      %v1740 = vmax.f32 %v1708, 0.0
      %v1741 = vmax.f32 %v1709, 0.0
      %1742 = vst.msk [vmem:[#allocation2] sm:$0xff] %vm357, 0.0
      %1743 = vst.msk [vmem:[#allocation2 + $0x8] sm:$0xff] %vm357, 0.0
      %1744 = vst.msk [vmem:[#allocation2 + $0x10] sm:$0xff] %vm357, 0.0
      %1745 = vst.msk [vmem:[#allocation2 + $0x18] sm:$0xff] %vm357, 0.0
      %1746 = vst.msk [vmem:[#allocation2 + $0x20] sm:$0xff] %vm357, 0.0
      %1747 = vst.msk [vmem:[#allocation2 + $0x28] sm:$0xff] %vm357, 0.0
      %1748 = vst.msk [vmem:[#allocation2 + $0x30] sm:$0xff] %vm357, 0.0
      %1749 = vst.msk [vmem:[#allocation2 + $0x38] sm:$0xff] %vm357, 0.0
      %1750 = vst.msk [vmem:[#allocation2 + $0x40] sm:$0xff] %vm357, 0.0
      %1751 = vst.msk [vmem:[#allocation2 + $0x48] sm:$0xff] %vm357, 0.0
      %1752 = vst.msk [vmem:[#allocation2 + $0x50] sm:$0xff] %vm357, 0.0
      %1753 = vst.msk [vmem:[#allocation2 + $0x58] sm:$0xff] %vm357, 0.0
      %1754 = vst.msk [vmem:[#allocation2 + $0x60] sm:$0xff] %vm357, 0.0
      %1755 = vst.msk [vmem:[#allocation2 + $0x68] sm:$0xff] %vm357, 0.0
      %1756 = vst.msk [vmem:[#allocation2 + $0x70] sm:$0xff] %vm357, 0.0
      %1757 = vst.msk [vmem:[#allocation2 + $0x78] sm:$0xff] %vm357, 0.0
      %1758 = vst.msk [vmem:[#allocation2 + $0x80] sm:$0xff] %vm357, 0.0
      %1759 = vst.msk [vmem:[#allocation2 + $0x88] sm:$0xff] %vm357, 0.0
      %1760 = vst.msk [vmem:[#allocation2 + $0x90] sm:$0xff] %vm357, 0.0
      %1761 = vst.msk [vmem:[#allocation2 + $0x98] sm:$0xff] %vm357, 0.0
      %1762 = vst.msk [vmem:[#allocation2 + $0xa0] sm:$0xff] %vm357, 0.0
      %1763 = vst.msk [vmem:[#allocation2 + $0xa8] sm:$0xff] %vm357, 0.0
      %1764 = vst.msk [vmem:[#allocation2 + $0xb0] sm:$0xff] %vm357, 0.0
      %1765 = vst.msk [vmem:[#allocation2 + $0xb8] sm:$0xff] %vm357, 0.0
      %1766 = vst.msk [vmem:[#allocation2 + $0xc0] sm:$0xff] %vm357, 0.0
      %1767 = vst.msk [vmem:[#allocation2 + $0xc8] sm:$0xff] %vm357, 0.0
      %1768 = vst.msk [vmem:[#allocation2 + $0xd0] sm:$0xff] %vm357, 0.0
      %1769 = vst.msk [vmem:[#allocation2 + $0xd8] sm:$0xff] %vm357, 0.0
      %1770 = vst.msk [vmem:[#allocation2 + $0xe0] sm:$0xff] %vm357, 0.0
      %1771 = vst.msk [vmem:[#allocation2 + $0xe8] sm:$0xff] %vm357, 0.0
      %1772 = vst.msk [vmem:[#allocation2 + $0xf0] sm:$0xff] %vm357, 0.0
      %1773 = vst.msk [vmem:[#allocation2 + $0xf8] sm:$0xff] %vm357, 0.0
      %1774 = vst.msk [vmem:[#allocation2 + $0x100] sm:$0xff] %vm357, 0.0
      %1775 = vst.msk [vmem:[#allocation2 + $0x108] sm:$0xff] %vm357, 0.0
      %1776 = vst.msk [vmem:[#allocation2 + $0x110] sm:$0xff] %vm357, 0.0
      %1777 = vst.msk [vmem:[#allocation2 + $0x118] sm:$0xff] %vm357, 0.0
      %1778 = vst.msk [vmem:[#allocation2 + $0x120] sm:$0xff] %vm357, 0.0
      %1779 = vst.msk [vmem:[#allocation2 + $0x128] sm:$0xff] %vm357, 0.0
      %1780 = vst.msk [vmem:[#allocation2 + $0x130] sm:$0xff] %vm357, 0.0
      %1781 = vst.msk [vmem:[#allocation2 + $0x138] sm:$0xff] %vm357, 0.0
      %1782 = vst.msk [vmem:[#allocation2 + $0x140] sm:$0xff] %vm357, 0.0
      %1783 = vst.msk [vmem:[#allocation2 + $0x13] sm:$0xff] %vm357, %v1710
      %1784 = vst.msk [vmem:[#allocation2 + $0x1b] sm:$0xff] %vm357, %v1711
      %1785 = vst.msk [vmem:[#allocation2 + $0x25] sm:$0xff] %vm357, %v1712
      %1786 = vst.msk [vmem:[#allocation2 + $0x2d] sm:$0xff] %vm357, %v1713
      %1787 = vst.msk [vmem:[#allocation2 + $0x37] sm:$0xff] %vm357, %v1714
      %1788 = vst.msk [vmem:[#allocation2 + $0x3f] sm:$0xff] %vm357, %v1715
      %1789 = vst.msk [vmem:[#allocation2 + $0x49] sm:$0xff] %vm357, %v1716
      %1790 = vst.msk [vmem:[#allocation2 + $0x51] sm:$0xff] %vm357, %v1717
      %1791 = vst.msk [vmem:[#allocation2 + $0x5b] sm:$0xff] %vm357, %v1718
      %1792 = vst.msk [vmem:[#allocation2 + $0x63] sm:$0xff] %vm357, %v1719
      %1793 = vst.msk [vmem:[#allocation2 + $0x6d] sm:$0xff] %vm357, %v1720
      %1794 = vst.msk [vmem:[#allocation2 + $0x75] sm:$0xff] %vm357, %v1721
      %1795 = vst.msk [vmem:[#allocation2 + $0x7f] sm:$0xff] %vm357, %v1722
      %1796 = vst.msk [vmem:[#allocation2 + $0x87] sm:$0xff] %vm357, %v1723
      %1797 = vst.msk [vmem:[#allocation2 + $0x91] sm:$0xff] %vm357, %v1724
      %1798 = vst.msk [vmem:[#allocation2 + $0x99] sm:$0xff] %vm357, %v1725
      %1799 = vst.msk [vmem:[#allocation2 + $0xa3] sm:$0xff] %vm357, %v1726
      %1800 = vst.msk [vmem:[#allocation2 + $0xab] sm:$0xff] %vm357, %v1727
      %1801 = vst.msk [vmem:[#allocation2 + $0xb5] sm:$0xff] %vm357, %v1728
      %1802 = vst.msk [vmem:[#allocation2 + $0xbd] sm:$0xff] %vm357, %v1729
      %1803 = vst.msk [vmem:[#allocation2 + $0xc7] sm:$0xff] %vm357, %v1730
      %1804 = vst.msk [vmem:[#allocation2 + $0xcf] sm:$0xff] %vm357, %v1731
      %1805 = vst.msk [vmem:[#allocation2 + $0xd9] sm:$0xff] %vm357, %v1732
      %1806 = vst.msk [vmem:[#allocation2 + $0xe1] sm:$0xff] %vm357, %v1733
      %1807 = vst.msk [vmem:[#allocation2 + $0xeb] sm:$0xff] %vm357, %v1734
      %1808 = vst.msk [vmem:[#allocation2 + $0xf3] sm:$0xff] %vm357, %v1735
      %1809 = vst.msk [vmem:[#allocation2 + $0xfd] sm:$0xff] %vm357, %v1736
      %1810 = vst.msk [vmem:[#allocation2 + $0x105] sm:$0xff] %vm357, %v1737
      %1811 = vst.msk [vmem:[#allocation2 + $0x10f] sm:$0xff] %vm357, %v1738
      %1812 = vst.msk [vmem:[#allocation2 + $0x117] sm:$0xff] %vm357, %v1739
      %1813 = vst.msk [vmem:[#allocation2 + $0x121] sm:$0xff] %vm357, %v1740
      %1814 = vst.msk [vmem:[#allocation2 + $0x129] sm:$0xff] %vm357, %v1741
      %v1815 = vld [vmem:[#allocation2] sm:$0xff]
      %v1816 = vld [vmem:[#allocation2 + $0x8] sm:$0xff]
      %v1817 = vld [vmem:[#allocation2 + $0x10] sm:$0xff]
      %v1818 = vld [vmem:[#allocation2 + $0x18] sm:$0xff]
      %v1819 = vld [vmem:[#allocation2 + $0x20] sm:$0xff]
      %v1820 = vld [vmem:[#allocation2 + $0x28] sm:$0xff]
      %v1821 = vld [vmem:[#allocation2 + $0x30] sm:$0xff]
      %v1822 = vld [vmem:[#allocation2 + $0x38] sm:$0xff]
      %v1823 = vld [vmem:[#allocation2 + $0x40] sm:$0xff]
      %v1824 = vld [vmem:[#allocation2 + $0x48] sm:$0xff]
      %v1825 = vld [vmem:[#allocation2 + $0x50] sm:$0xff]
      %v1826 = vld [vmem:[#allocation2 + $0x58] sm:$0xff]
      %v1827 = vld [vmem:[#allocation2 + $0x60] sm:$0xff]
      %v1828 = vld [vmem:[#allocation2 + $0x68] sm:$0xff]
      %v1829 = vld [vmem:[#allocation2 + $0x70] sm:$0xff]
      %v1830 = vld [vmem:[#allocation2 + $0x78] sm:$0xff]
      %v1831 = vld [vmem:[#allocation2 + $0x80] sm:$0xff]
      %v1832 = vld [vmem:[#allocation2 + $0x88] sm:$0xff]
      %v1833 = vld [vmem:[#allocation2 + $0x90] sm:$0xff]
      %v1834 = vld [vmem:[#allocation2 + $0x98] sm:$0xff]
      %v1835 = vld [vmem:[#allocation2 + $0xa0] sm:$0xff]
      %v1836 = vld [vmem:[#allocation2 + $0xa8] sm:$0xff]
      %v1837 = vld [vmem:[#allocation2 + $0xb0] sm:$0xff]
      %v1838 = vld [vmem:[#allocation2 + $0xb8] sm:$0xff]
      %v1839 = vld [vmem:[#allocation2 + $0xc0] sm:$0xff]
      %v1840 = vld [vmem:[#allocation2 + $0xc8] sm:$0xff]
      %v1841 = vld [vmem:[#allocation2 + $0xd0] sm:$0xff]
      %v1842 = vld [vmem:[#allocation2 + $0xd8] sm:$0xff]
      %v1843 = vld [vmem:[#allocation2 + $0xe0] sm:$0xff]
      %v1844 = vld [vmem:[#allocation2 + $0xe8] sm:$0xff]
      %v1845 = vld [vmem:[#allocation2 + $0xf0] sm:$0xff]
      %v1846 = vld [vmem:[#allocation2 + $0xf8] sm:$0xff]
      %v1847 = vld [vmem:[#allocation2 + $0x100] sm:$0xff]
      %v1848 = vld [vmem:[#allocation2 + $0x108] sm:$0xff]
      %v1849 = vld [vmem:[#allocation2 + $0x110] sm:$0xff]
      %v1850 = vld [vmem:[#allocation2 + $0x118] sm:$0xff]
      %v1851 = vld [vmem:[%s3] sm:$0xff]
      %v1852 = vld [vmem:[%s3 + $0x8] sm:$0xff]
      %v1853 = vld [vmem:[%s3 + $0x10] sm:$0xff]
      %v1854 = vld [vmem:[%s3 + $0x18] sm:$0xff]
      %v1855 = vld [vmem:[#allocation2 + $0x1] sm:$0xff]
      %v1856 = vld [vmem:[#allocation2 + $0x9] sm:$0xff]
      %v1857 = vld [vmem:[#allocation2 + $0x11] sm:$0xff]
      %v1858 = vld [vmem:[#allocation2 + $0x19] sm:$0xff]
      %v1859 = vld [vmem:[#allocation2 + $0x21] sm:$0xff]
      %v1860 = vld [vmem:[#allocation2 + $0x29] sm:$0xff]
      %v1861 = vld [vmem:[#allocation2 + $0x31] sm:$0xff]
      %v1862 = vld [vmem:[#allocation2 + $0x39] sm:$0xff]
      %v1863 = vld [vmem:[#allocation2 + $0x41] sm:$0xff]
      %v1864 = vld [vmem:[#allocation2 + $0x49] sm:$0xff]
      %v1865 = vld [vmem:[#allocation2 + $0x51] sm:$0xff]
      %v1866 = vld [vmem:[#allocation2 + $0x59] sm:$0xff]
      %v1867 = vld [vmem:[#allocation2 + $0x61] sm:$0xff]
      %v1868 = vld [vmem:[#allocation2 + $0x69] sm:$0xff]
      %v1869 = vld [vmem:[#allocation2 + $0x71] sm:$0xff]
      %v1870 = vld [vmem:[#allocation2 + $0x79] sm:$0xff]
      %v1871 = vld [vmem:[#allocation2 + $0x81] sm:$0xff]
      %v1872 = vld [vmem:[#allocation2 + $0x89] sm:$0xff]
      %v1873 = vld [vmem:[#allocation2 + $0x91] sm:$0xff]
      %v1874 = vld [vmem:[#allocation2 + $0x99] sm:$0xff]
      %v1875 = vld [vmem:[#allocation2 + $0xa1] sm:$0xff]
      %v1876 = vld [vmem:[#allocation2 + $0xa9] sm:$0xff]
      %v1877 = vld [vmem:[#allocation2 + $0xb1] sm:$0xff]
      %v1878 = vld [vmem:[#allocation2 + $0xb9] sm:$0xff]
      %v1879 = vld [vmem:[#allocation2 + $0xc1] sm:$0xff]
      %v1880 = vld [vmem:[#allocation2 + $0xc9] sm:$0xff]
      %v1881 = vld [vmem:[#allocation2 + $0xd1] sm:$0xff]
      %v1882 = vld [vmem:[#allocation2 + $0xd9] sm:$0xff]
      %v1883 = vld [vmem:[#allocation2 + $0xe1] sm:$0xff]
      %v1884 = vld [vmem:[#allocation2 + $0xe9] sm:$0xff]
      %v1885 = vld [vmem:[#allocation2 + $0xf1] sm:$0xff]
      %v1886 = vld [vmem:[#allocation2 + $0xf9] sm:$0xff]
      %v1887 = vld [vmem:[#allocation2 + $0x101] sm:$0xff]
      %v1888 = vld [vmem:[#allocation2 + $0x109] sm:$0xff]
      %v1889 = vld [vmem:[#allocation2 + $0x111] sm:$0xff]
      %v1890 = vld [vmem:[#allocation2 + $0x119] sm:$0xff]
      %s1891 = scalar_lea.vmem %s3, 32
      %v1892 = vld [vmem:[%s1891] sm:$0xff]
      %v1893 = vld [vmem:[%s1891 + $0x8] sm:$0xff]
      %v1894 = vld [vmem:[%s1891 + $0x10] sm:$0xff]
      %v1895 = vld [vmem:[%s1891 + $0x18] sm:$0xff]
      %v1897 = vsel %vm357, %v1855, 0
      %v1900 = vsel %vm357, %v1856, 0
      %v1903 = vsel %vm357, %v1857, 0
      %v1906 = vsel %vm357, %v1858, 0
      %v1909 = vsel %vm357, %v1859, 0
      %v1912 = vsel %vm357, %v1860, 0
      %v1915 = vsel %vm357, %v1861, 0
      %v1918 = vsel %vm357, %v1862, 0
      %v1921 = vsel %vm357, %v1863, 0
      %v1924 = vsel %vm357, %v1864, 0
      %v1927 = vsel %vm357, %v1865, 0
      %v1930 = vsel %vm357, %v1866, 0
      %v1933 = vsel %vm357, %v1867, 0
      %v1936 = vsel %vm357, %v1868, 0
      %v1939 = vsel %vm357, %v1869, 0
      %v1942 = vsel %vm357, %v1870, 0
      %v1945 = vsel %vm357, %v1871, 0
      %v1948 = vsel %vm357, %v1872, 0
      %v1951 = vsel %vm357, %v1873, 0
      %v1954 = vsel %vm357, %v1874, 0
      %v1957 = vsel %vm357, %v1875, 0
      %v1960 = vsel %vm357, %v1876, 0
      %v1963 = vsel %vm357, %v1877, 0
      %v1966 = vsel %vm357, %v1878, 0
      %v1969 = vsel %vm357, %v1879, 0
      %v1972 = vsel %vm357, %v1880, 0
      %v1975 = vsel %vm357, %v1881, 0
      %v1978 = vsel %vm357, %v1882, 0
      %v1981 = vsel %vm357, %v1883, 0
      %v1984 = vsel %vm357, %v1884, 0
      %v1987 = vsel %vm357, %v1885, 0
      %v1990 = vsel %vm357, %v1886, 0
      %v1993 = vsel %vm357, %v1887, 0
      %v1996 = vsel %vm357, %v1888, 0
      %v1999 = vsel %vm357, %v1889, 0
      %v2002 = vsel %vm357, %v1890, 0
      %2004 = vmatprep.subr.mxu0 0.0
      %2005 = vmatpush1.msra.mxu0 %v1892
      %2006 = vmatprep.subr.mxu0 0.0
      %2007 = vmatpush1.msra.mxu0 %v1893
      %2008 = vmatprep.subr.mxu0 0.0
      %2009 = vmatpush1.msra.mxu0 %v1894
      %2010 = vmatprep.subr.mxu0 0.0
      %2011 = vmatpush1.msra.mxu0 %v1895
      %2012 = vmatprep.subr.mxu0 0.0
      %2013 = vmatpush1.msra.mxu0 0.0
      %2014 = vmatprep.subr.mxu0 0.0
      %2015 = vmatpush1.msra.mxu0 0.0
      %2016 = vmatprep.subr.mxu0 0.0
      %2017 = vmatpush1.msra.mxu0 0.0
      %2018 = vmatprep.subr.mxu0 0.0
      %2019 = vmatpush1.msra.mxu0 0.0
      %2020 = vmatprep.subr.mxu0 0.0
      %2021 = vmatpush1.msra.mxu0 0.0
      %2022 = vmatprep.subr.mxu0 0.0
      %2023 = vmatpush1.msra.mxu0 0.0
      %2024 = vmatprep.subr.mxu0 0.0
      %2025 = vmatpush1.msra.mxu0 0.0
      %2026 = vmatprep.subr.mxu0 0.0
      %2027 = vmatpush1.msra.mxu0 0.0
      %2028 = vmatprep.subr.mxu0 0.0
      %2029 = vmatpush1.msra.mxu0 0.0
      %2030 = vmatprep.subr.mxu0 0.0
      %2031 = vmatpush1.msra.mxu0 0.0
      %2032 = vmatprep.subr.mxu0 0.0
      %2033 = vmatpush1.msra.mxu0 0.0
      %2034 = vmatprep.subr.mxu0 0.0
      %2035 = vmatpush1.msra.mxu0 0.0
      %2036 = vmatprep.subr.mxu0 0.0
      %2037 = vmatpush1.msra.mxu0 0.0
      %2038 = vmatprep.subr.mxu0 0.0
      %2039 = vmatpush1.msra.mxu0 0.0
      %2040 = vmatprep.subr.mxu0 0.0
      %2041 = vmatpush1.msra.mxu0 0.0
      %2042 = vmatprep.subr.mxu0 0.0
      %2043 = vmatpush1.msra.mxu0 0.0
      %2044 = vmatprep.subr.mxu0 0.0
      %2045 = vmatpush1.msra.mxu0 0.0
      %2046 = vmatprep.subr.mxu0 0.0
      %2047 = vmatpush1.msra.mxu0 0.0
      %2048 = vmatprep.subr.mxu0 0.0
      %2049 = vmatpush1.msra.mxu0 0.0
      %2050 = vmatprep.subr.mxu0 0.0
      %2051 = vmatpush1.msra.mxu0 0.0
      %2052 = vmatprep.subr.mxu0 0.0
      %2053 = vmatpush1.msra.mxu0 0.0
      %2054 = vmatprep.subr.mxu0 0.0
      %2055 = vmatpush1.msra.mxu0 0.0
      %2056 = vmatprep.subr.mxu0 0.0
      %2057 = vmatpush1.msra.mxu0 0.0
      %2058 = vmatprep.subr.mxu0 0.0
      %2059 = vmatpush1.msra.mxu0 0.0
      %2060 = vmatprep.subr.mxu0 0.0
      %2061 = vmatpush1.msra.mxu0 0.0
      %2062 = vmatprep.subr.mxu0 0.0
      %2063 = vmatpush1.msra.mxu0 0.0
      %2064 = vmatprep.subr.mxu0 0.0
      %2065 = vmatpush1.msra.mxu0 0.0
      %2066 = vmatprep.subr.mxu0 0.0
      %2067 = vmatpush1.msra.mxu0 0.0
      %2068 = vmatprep.mubr.f32.mxu0 0.0
      %2069 = vmatmul.mubr.f32.gmra.mrb[0].mxu0 %v1897
      %v2070 = vpop.f32.mrb[0].mxu0
      %v2071 = vadd.f32 0.0, %v2070
      %v2072 = vpop.f32.mrb[0].mxu0
      %2073 = vmatprep.mubr.f32.mxu0 0.0
      %2074 = vmatmul.mubr.f32.gmra.mrb[0].mxu0 %v1900
      %v2075 = vpop.f32.mrb[0].mxu0
      %v2076 = vadd.f32 0.0, %v2075
      %v2077 = vpop.f32.mrb[0].mxu0
      %2078 = vmatprep.mubr.f32.mxu0 0.0
      %2079 = vmatmul.mubr.f32.gmra.mrb[0].mxu0 %v1903
      %v2080 = vpop.f32.mrb[0].mxu0
      %v2081 = vadd.f32 0.0, %v2080
      %v2082 = vpop.f32.mrb[0].mxu0
      %2083 = vmatprep.mubr.f32.mxu0 0.0
      %2084 = vmatmul.mubr.f32.gmra.mrb[0].mxu0 %v1906
      %v2085 = vpop.f32.mrb[0].mxu0
      %v2086 = vadd.f32 0.0, %v2085
      %v2087 = vpop.f32.mrb[0].mxu0
      %2088 = vmatprep.mubr.f32.mxu0 0.0
      %2089 = vmatmul.mubr.f32.gmra.mrb[0].mxu0 %v1909
      %v2090 = vpop.f32.mrb[0].mxu0
      %v2091 = vadd.f32 0.0, %v2090
      %v2092 = vpop.f32.mrb[0].mxu0
      %2093 = vmatprep.mubr.f32.mxu0 0.0
      %2094 = vmatmul.mubr.f32.gmra.mrb[0].mxu0 %v1912
      %v2095 = vpop.f32.mrb[0].mxu0
      %v2096 = vadd.f32 0.0, %v2095
      %v2097 = vpop.f32.mrb[0].mxu0
      %2098 = vmatprep.mubr.f32.mxu0 0.0
      %2099 = vmatmul.mubr.f32.gmra.mrb[0].mxu0 %v1915
      %v2100 = vpop.f32.mrb[0].mxu0
      %v2101 = vadd.f32 0.0, %v2100
      %v2102 = vpop.f32.mrb[0].mxu0
      %2103 = vmatprep.mubr.f32.mxu0 0.0
      %2104 = vmatmul.mubr.f32.gmra.mrb[0].mxu0 %v1918
      %v2105 = vpop.f32.mrb[0].mxu0
      %v2106 = vadd.f32 0.0, %v2105
      %v2107 = vpop.f32.mrb[0].mxu0
      %2108 = vmatprep.mubr.f32.mxu0 0.0
      %2109 = vmatmul.mubr.f32.gmra.mrb[0].mxu0 %v1921
      %v2110 = vpop.f32.mrb[0].mxu0
      %v2111 = vadd.f32 0.0, %v2110
      %v2112 = vpop.f32.mrb[0].mxu0
      %2113 = vmatprep.mubr.f32.mxu0 0.0
      %2114 = vmatmul.mubr.f32.gmra.mrb[0].mxu0 %v1924
      %v2115 = vpop.f32.mrb[0].mxu0
      %v2116 = vadd.f32 0.0, %v2115
      %v2117 = vpop.f32.mrb[0].mxu0
      %2118 = vmatprep.mubr.f32.mxu0 0.0
      %2119 = vmatmul.mubr.f32.gmra.mrb[0].mxu0 %v1927
      %v2120 = vpop.f32.mrb[0].mxu0
      %v2121 = vadd.f32 0.0, %v2120
      %v2122 = vpop.f32.mrb[0].mxu0
      %2123 = vmatprep.mubr.f32.mxu0 0.0
      %2124 = vmatmul.mubr.f32.gmra.mrb[0].mxu0 %v1930
      %v2125 = vpop.f32.mrb[0].mxu0
      %v2126 = vadd.f32 0.0, %v2125
      %v2127 = vpop.f32.mrb[0].mxu0
      %2128 = vmatprep.mubr.f32.mxu0 0.0
      %2129 = vmatmul.mubr.f32.gmra.mrb[0].mxu0 %v1933
      %v2130 = vpop.f32.mrb[0].mxu0
      %v2131 = vadd.f32 0.0, %v2130
      %v2132 = vpop.f32.mrb[0].mxu0
      %2133 = vmatprep.mubr.f32.mxu0 0.0
      %2134 = vmatmul.mubr.f32.gmra.mrb[0].mxu0 %v1936
      %v2135 = vpop.f32.mrb[0].mxu0
      %v2136 = vadd.f32 0.0, %v2135
      %v2137 = vpop.f32.mrb[0].mxu0
      %2138 = vmatprep.mubr.f32.mxu0 0.0
      %2139 = vmatmul.mubr.f32.gmra.mrb[0].mxu0 %v1939
      %v2140 = vpop.f32.mrb[0].mxu0
      %v2141 = vadd.f32 0.0, %v2140
      %v2142 = vpop.f32.mrb[0].mxu0
      %2143 = vmatprep.mubr.f32.mxu0 0.0
      %2144 = vmatmul.mubr.f32.gmra.mrb[0].mxu0 %v1942
      %v2145 = vpop.f32.mrb[0].mxu0
      %v2146 = vadd.f32 0.0, %v2145
      %v2147 = vpop.f32.mrb[0].mxu0
      %2148 = vmatprep.mubr.f32.mxu0 0.0
      %2149 = vmatmul.mubr.f32.gmra.mrb[0].mxu0 %v1945
      %v2150 = vpop.f32.mrb[0].mxu0
      %v2151 = vadd.f32 0.0, %v2150
      %v2152 = vpop.f32.mrb[0].mxu0
      %2153 = vmatprep.mubr.f32.mxu0 0.0
      %2154 = vmatmul.mubr.f32.gmra.mrb[0].mxu0 %v1948
      %v2155 = vpop.f32.mrb[0].mxu0
      %v2156 = vadd.f32 0.0, %v2155
      %v2157 = vpop.f32.mrb[0].mxu0
      %2158 = vmatprep.mubr.f32.mxu0 0.0
      %2159 = vmatmul.mubr.f32.gmra.mrb[0].mxu0 %v1951
      %v2160 = vpop.f32.mrb[0].mxu0
      %v2161 = vadd.f32 0.0, %v2160
      %v2162 = vpop.f32.mrb[0].mxu0
      %2163 = vmatprep.mubr.f32.mxu0 0.0
      %2164 = vmatmul.mubr.f32.gmra.mrb[0].mxu0 %v1954
      %v2165 = vpop.f32.mrb[0].mxu0
      %v2166 = vadd.f32 0.0, %v2165
      %v2167 = vpop.f32.mrb[0].mxu0
      %2168 = vmatprep.mubr.f32.mxu0 0.0
      %2169 = vmatmul.mubr.f32.gmra.mrb[0].mxu0 %v1957
      %v2170 = vpop.f32.mrb[0].mxu0
      %v2171 = vadd.f32 0.0, %v2170
      %v2172 = vpop.f32.mrb[0].mxu0
      %2173 = vmatprep.mubr.f32.mxu0 0.0
      %2174 = vmatmul.mubr.f32.gmra.mrb[0].mxu0 %v1960
      %v2175 = vpop.f32.mrb[0].mxu0
      %v2176 = vadd.f32 0.0, %v2175
      %v2177 = vpop.f32.mrb[0].mxu0
      %2178 = vmatprep.mubr.f32.mxu0 0.0
      %2179 = vmatmul.mubr.f32.gmra.mrb[0].mxu0 %v1963
      %v2180 = vpop.f32.mrb[0].mxu0
      %v2181 = vadd.f32 0.0, %v2180
      %v2182 = vpop.f32.mrb[0].mxu0
      %2183 = vmatprep.mubr.f32.mxu0 0.0
      %2184 = vmatmul.mubr.f32.gmra.mrb[0].mxu0 %v1966
      %v2185 = vpop.f32.mrb[0].mxu0
      %v2186 = vadd.f32 0.0, %v2185
      %v2187 = vpop.f32.mrb[0].mxu0
      %2188 = vmatprep.mubr.f32.mxu0 0.0
      %2189 = vmatmul.mubr.f32.gmra.mrb[0].mxu0 %v1969
      %v2190 = vpop.f32.mrb[0].mxu0
      %v2191 = vadd.f32 0.0, %v2190
      %v2192 = vpop.f32.mrb[0].mxu0
      %2193 = vmatprep.mubr.f32.mxu0 0.0
      %2194 = vmatmul.mubr.f32.gmra.mrb[0].mxu0 %v1972
      %v2195 = vpop.f32.mrb[0].mxu0
      %v2196 = vadd.f32 0.0, %v2195
      %v2197 = vpop.f32.mrb[0].mxu0
      %2198 = vmatprep.mubr.f32.mxu0 0.0
      %2199 = vmatmul.mubr.f32.gmra.mrb[0].mxu0 %v1975
      %v2200 = vpop.f32.mrb[0].mxu0
      %v2201 = vadd.f32 0.0, %v2200
      %v2202 = vpop.f32.mrb[0].mxu0
      %2203 = vmatprep.mubr.f32.mxu0 0.0
      %2204 = vmatmul.mubr.f32.gmra.mrb[0].mxu0 %v1978
      %v2205 = vpop.f32.mrb[0].mxu0
      %v2206 = vadd.f32 0.0, %v2205
      %v2207 = vpop.f32.mrb[0].mxu0
      %2208 = vmatprep.mubr.f32.mxu0 0.0
      %2209 = vmatmul.mubr.f32.gmra.mrb[0].mxu0 %v1981
      %v2210 = vpop.f32.mrb[0].mxu0
      %v2211 = vadd.f32 0.0, %v2210
      %v2212 = vpop.f32.mrb[0].mxu0
      %2213 = vmatprep.mubr.f32.mxu0 0.0
      %2214 = vmatmul.mubr.f32.gmra.mrb[0].mxu0 %v1984
      %v2215 = vpop.f32.mrb[0].mxu0
      %v2216 = vadd.f32 0.0, %v2215
      %v2217 = vpop.f32.mrb[0].mxu0
      %2218 = vmatprep.mubr.f32.mxu0 0.0
      %2219 = vmatmul.mubr.f32.gmra.mrb[0].mxu0 %v1987
      %v2220 = vpop.f32.mrb[0].mxu0
      %v2221 = vadd.f32 0.0, %v2220
      %v2222 = vpop.f32.mrb[0].mxu0
      %2223 = vmatprep.mubr.f32.mxu0 0.0
      %2224 = vmatmul.mubr.f32.gmra.mrb[0].mxu0 %v1990
      %v2225 = vpop.f32.mrb[0].mxu0
      %v2226 = vadd.f32 0.0, %v2225
      %v2227 = vpop.f32.mrb[0].mxu0
      %2228 = vmatprep.mubr.f32.mxu0 0.0
      %2229 = vmatmul.mubr.f32.gmra.mrb[0].mxu0 %v1993
      %v2230 = vpop.f32.mrb[0].mxu0
      %v2231 = vadd.f32 0.0, %v2230
      %v2232 = vpop.f32.mrb[0].mxu0
      %2233 = vmatprep.mubr.f32.mxu0 0.0
      %2234 = vmatmul.mubr.f32.gmra.mrb[0].mxu0 %v1996
      %v2235 = vpop.f32.mrb[0].mxu0
      %v2236 = vadd.f32 0.0, %v2235
      %v2237 = vpop.f32.mrb[0].mxu0
      %2238 = vmatprep.mubr.f32.mxu0 0.0
      %2239 = vmatmul.mubr.f32.gmra.mrb[0].mxu0 %v1999
      %v2240 = vpop.f32.mrb[0].mxu0
      %v2241 = vadd.f32 0.0, %v2240
      %v2242 = vpop.f32.mrb[0].mxu0
      %2243 = vmatprep.mubr.f32.mxu0 0.0
      %2244 = vmatmul.mubr.f32.gmra.mrb[0].mxu0 %v2002
      %v2245 = vpop.f32.mrb[0].mxu0
      %v2246 = vadd.f32 0.0, %v2245
      %v2247 = vpop.f32.mrb[0].mxu0
      %2248 = vdwg.mxu0
      %v2250 = vsel %vm357, %v1815, 0
      %v2253 = vsel %vm357, %v1816, 0
      %v2256 = vsel %vm357, %v1817, 0
      %v2259 = vsel %vm357, %v1818, 0
      %v2262 = vsel %vm357, %v1819, 0
      %v2265 = vsel %vm357, %v1820, 0
      %v2268 = vsel %vm357, %v1821, 0
      %v2271 = vsel %vm357, %v1822, 0
      %v2274 = vsel %vm357, %v1823, 0
      %v2277 = vsel %vm357, %v1824, 0
      %v2280 = vsel %vm357, %v1825, 0
      %v2283 = vsel %vm357, %v1826, 0
      %v2286 = vsel %vm357, %v1827, 0
      %v2289 = vsel %vm357, %v1828, 0
      %v2292 = vsel %vm357, %v1829, 0
      %v2295 = vsel %vm357, %v1830, 0
      %v2298 = vsel %vm357, %v1831, 0
      %v2301 = vsel %vm357, %v1832, 0
      %v2304 = vsel %vm357, %v1833, 0
      %v2307 = vsel %vm357, %v1834, 0
      %v2310 = vsel %vm357, %v1835, 0
      %v2313 = vsel %vm357, %v1836, 0
      %v2316 = vsel %vm357, %v1837, 0
      %v2319 = vsel %vm357, %v1838, 0
      %v2322 = vsel %vm357, %v1839, 0
      %v2325 = vsel %vm357, %v1840, 0
      %v2328 = vsel %vm357, %v1841, 0
      %v2331 = vsel %vm357, %v1842, 0
      %v2334 = vsel %vm357, %v1843, 0
      %v2337 = vsel %vm357, %v1844, 0
      %v2340 = vsel %vm357, %v1845, 0
      %v2343 = vsel %vm357, %v1846, 0
      %v2346 = vsel %vm357, %v1847, 0
      %v2349 = vsel %vm357, %v1848, 0
      %v2352 = vsel %vm357, %v1849, 0
      %v2355 = vsel %vm357, %v1850, 0
      %2357 = vmatprep.subr.mxu0 0.0
      %2358 = vmatpush1.msra.mxu0 %v1851
      %2359 = vmatprep.subr.mxu0 0.0
      %2360 = vmatpush1.msra.mxu0 %v1852
      %2361 = vmatprep.subr.mxu0 0.0
      %2362 = vmatpush1.msra.mxu0 %v1853
      %2363 = vmatprep.subr.mxu0 0.0
      %2364 = vmatpush1.msra.mxu0 %v1854
      %2365 = vmatprep.subr.mxu0 0.0
      %2366 = vmatpush1.msra.mxu0 0.0
      %2367 = vmatprep.subr.mxu0 0.0
      %2368 = vmatpush1.msra.mxu0 0.0
      %2369 = vmatprep.subr.mxu0 0.0
      %2370 = vmatpush1.msra.mxu0 0.0
      %2371 = vmatprep.subr.mxu0 0.0
      %2372 = vmatpush1.msra.mxu0 0.0
      %2373 = vmatprep.subr.mxu0 0.0
      %2374 = vmatpush1.msra.mxu0 0.0
      %2375 = vmatprep.subr.mxu0 0.0
      %2376 = vmatpush1.msra.mxu0 0.0
      %2377 = vmatprep.subr.mxu0 0.0
      %2378 = vmatpush1.msra.mxu0 0.0
      %2379 = vmatprep.subr.mxu0 0.0
      %2380 = vmatpush1.msra.mxu0 0.0
      %2381 = vmatprep.subr.mxu0 0.0
      %2382 = vmatpush1.msra.mxu0 0.0
      %2383 = vmatprep.subr.mxu0 0.0
      %2384 = vmatpush1.msra.mxu0 0.0
      %2385 = vmatprep.subr.mxu0 0.0
      %2386 = vmatpush1.msra.mxu0 0.0
      %2387 = vmatprep.subr.mxu0 0.0
      %2388 = vmatpush1.msra.mxu0 0.0
      %2389 = vmatprep.subr.mxu0 0.0
      %2390 = vmatpush1.msra.mxu0 0.0
      %2391 = vmatprep.subr.mxu0 0.0
      %2392 = vmatpush1.msra.mxu0 0.0
      %2393 = vmatprep.subr.mxu0 0.0
      %2394 = vmatpush1.msra.mxu0 0.0
      %2395 = vmatprep.subr.mxu0 0.0
      %2396 = vmatpush1.msra.mxu0 0.0
      %2397 = vmatprep.subr.mxu0 0.0
      %2398 = vmatpush1.msra.mxu0 0.0
      %2399 = vmatprep.subr.mxu0 0.0
      %2400 = vmatpush1.msra.mxu0 0.0
      %2401 = vmatprep.subr.mxu0 0.0
      %2402 = vmatpush1.msra.mxu0 0.0
      %2403 = vmatprep.subr.mxu0 0.0
      %2404 = vmatpush1.msra.mxu0 0.0
      %2405 = vmatprep.subr.mxu0 0.0
      %2406 = vmatpush1.msra.mxu0 0.0
      %2407 = vmatprep.subr.mxu0 0.0
      %2408 = vmatpush1.msra.mxu0 0.0
      %2409 = vmatprep.subr.mxu0 0.0
      %2410 = vmatpush1.msra.mxu0 0.0
      %2411 = vmatprep.subr.mxu0 0.0
      %2412 = vmatpush1.msra.mxu0 0.0
      %2413 = vmatprep.subr.mxu0 0.0
      %2414 = vmatpush1.msra.mxu0 0.0
      %2415 = vmatprep.subr.mxu0 0.0
      %2416 = vmatpush1.msra.mxu0 0.0
      %2417 = vmatprep.subr.mxu0 0.0
      %2418 = vmatpush1.msra.mxu0 0.0
      %2419 = vmatprep.subr.mxu0 0.0
      %2420 = vmatpush1.msra.mxu0 0.0
      %2421 = vmatprep.mubr.f32.mxu0 0.0
      %2422 = vmatmul.mubr.f32.gmra.mrb[0].mxu0 %v2250
      %v2423 = vpop.f32.mrb[0].mxu0
      %v2424 = vadd.f32 %v2071, %v2423
      %v2425 = vpop.f32.mrb[0].mxu0
      %2426 = vmatprep.mubr.f32.mxu0 0.0
      %2427 = vmatmul.mubr.f32.gmra.mrb[0].mxu0 %v2253
      %v2428 = vpop.f32.mrb[0].mxu0
      %v2429 = vadd.f32 %v2076, %v2428
      %v2430 = vpop.f32.mrb[0].mxu0
      %2431 = vmatprep.mubr.f32.mxu0 0.0
      %2432 = vmatmul.mubr.f32.gmra.mrb[0].mxu0 %v2256
      %v2433 = vpop.f32.mrb[0].mxu0
      %v2434 = vadd.f32 %v2081, %v2433
      %v2435 = vpop.f32.mrb[0].mxu0
      %2436 = vmatprep.mubr.f32.mxu0 0.0
      %2437 = vmatmul.mubr.f32.gmra.mrb[0].mxu0 %v2259
      %v2438 = vpop.f32.mrb[0].mxu0
      %v2439 = vadd.f32 %v2086, %v2438
      %v2440 = vpop.f32.mrb[0].mxu0
      %2441 = vmatprep.mubr.f32.mxu0 0.0
      %2442 = vmatmul.mubr.f32.gmra.mrb[0].mxu0 %v2262
      %v2443 = vpop.f32.mrb[0].mxu0
      %v2444 = vadd.f32 %v2091, %v2443
      %v2445 = vpop.f32.mrb[0].mxu0
      %2446 = vmatprep.mubr.f32.mxu0 0.0
      %2447 = vmatmul.mubr.f32.gmra.mrb[0].mxu0 %v2265
      %v2448 = vpop.f32.mrb[0].mxu0
      %v2449 = vadd.f32 %v2096, %v2448
      %v2450 = vpop.f32.mrb[0].mxu0
      %2451 = vmatprep.mubr.f32.mxu0 0.0
      %2452 = vmatmul.mubr.f32.gmra.mrb[0].mxu0 %v2268
      %v2453 = vpop.f32.mrb[0].mxu0
      %v2454 = vadd.f32 %v2101, %v2453
      %v2455 = vpop.f32.mrb[0].mxu0
      %2456 = vmatprep.mubr.f32.mxu0 0.0
      %2457 = vmatmul.mubr.f32.gmra.mrb[0].mxu0 %v2271
      %v2458 = vpop.f32.mrb[0].mxu0
      %v2459 = vadd.f32 %v2106, %v2458
      %v2460 = vpop.f32.mrb[0].mxu0
      %2461 = vmatprep.mubr.f32.mxu0 0.0
      %2462 = vmatmul.mubr.f32.gmra.mrb[0].mxu0 %v2274
      %v2463 = vpop.f32.mrb[0].mxu0
      %v2464 = vadd.f32 %v2111, %v2463
      %v2465 = vpop.f32.mrb[0].mxu0
      %2466 = vmatprep.mubr.f32.mxu0 0.0
      %2467 = vmatmul.mubr.f32.gmra.mrb[0].mxu0 %v2277
      %v2468 = vpop.f32.mrb[0].mxu0
      %v2469 = vadd.f32 %v2116, %v2468
      %v2470 = vpop.f32.mrb[0].mxu0
      %2471 = vmatprep.mubr.f32.mxu0 0.0
      %2472 = vmatmul.mubr.f32.gmra.mrb[0].mxu0 %v2280
      %v2473 = vpop.f32.mrb[0].mxu0
      %v2474 = vadd.f32 %v2121, %v2473
      %v2475 = vpop.f32.mrb[0].mxu0
      %2476 = vmatprep.mubr.f32.mxu0 0.0
      %2477 = vmatmul.mubr.f32.gmra.mrb[0].mxu0 %v2283
      %v2478 = vpop.f32.mrb[0].mxu0
      %v2479 = vadd.f32 %v2126, %v2478
      %v2480 = vpop.f32.mrb[0].mxu0
      %2481 = vmatprep.mubr.f32.mxu0 0.0
      %2482 = vmatmul.mubr.f32.gmra.mrb[0].mxu0 %v2286
      %v2483 = vpop.f32.mrb[0].mxu0
      %v2484 = vadd.f32 %v2131, %v2483
      %v2485 = vpop.f32.mrb[0].mxu0
      %2486 = vmatprep.mubr.f32.mxu0 0.0
      %2487 = vmatmul.mubr.f32.gmra.mrb[0].mxu0 %v2289
      %v2488 = vpop.f32.mrb[0].mxu0
      %v2489 = vadd.f32 %v2136, %v2488
      %v2490 = vpop.f32.mrb[0].mxu0
      %2491 = vmatprep.mubr.f32.mxu0 0.0
      %2492 = vmatmul.mubr.f32.gmra.mrb[0].mxu0 %v2292
      %v2493 = vpop.f32.mrb[0].mxu0
      %v2494 = vadd.f32 %v2141, %v2493
      %v2495 = vpop.f32.mrb[0].mxu0
      %2496 = vmatprep.mubr.f32.mxu0 0.0
      %2497 = vmatmul.mubr.f32.gmra.mrb[0].mxu0 %v2295
      %v2498 = vpop.f32.mrb[0].mxu0
      %v2499 = vadd.f32 %v2146, %v2498
      %v2500 = vpop.f32.mrb[0].mxu0
      %2501 = vmatprep.mubr.f32.mxu0 0.0
      %2502 = vmatmul.mubr.f32.gmra.mrb[0].mxu0 %v2298
      %v2503 = vpop.f32.mrb[0].mxu0
      %v2504 = vadd.f32 %v2151, %v2503
      %v2505 = vpop.f32.mrb[0].mxu0
      %2506 = vmatprep.mubr.f32.mxu0 0.0
      %2507 = vmatmul.mubr.f32.gmra.mrb[0].mxu0 %v2301
      %v2508 = vpop.f32.mrb[0].mxu0
      %v2509 = vadd.f32 %v2156, %v2508
      %v2510 = vpop.f32.mrb[0].mxu0
      %2511 = vmatprep.mubr.f32.mxu0 0.0
      %2512 = vmatmul.mubr.f32.gmra.mrb[0].mxu0 %v2304
      %v2513 = vpop.f32.mrb[0].mxu0
      %v2514 = vadd.f32 %v2161, %v2513
      %v2515 = vpop.f32.mrb[0].mxu0
      %2516 = vmatprep.mubr.f32.mxu0 0.0
      %2517 = vmatmul.mubr.f32.gmra.mrb[0].mxu0 %v2307
      %v2518 = vpop.f32.mrb[0].mxu0
      %v2519 = vadd.f32 %v2166, %v2518
      %v2520 = vpop.f32.mrb[0].mxu0
      %2521 = vmatprep.mubr.f32.mxu0 0.0
      %2522 = vmatmul.mubr.f32.gmra.mrb[0].mxu0 %v2310
      %v2523 = vpop.f32.mrb[0].mxu0
      %v2524 = vadd.f32 %v2171, %v2523
      %v2525 = vpop.f32.mrb[0].mxu0
      %2526 = vmatprep.mubr.f32.mxu0 0.0
      %2527 = vmatmul.mubr.f32.gmra.mrb[0].mxu0 %v2313
      %v2528 = vpop.f32.mrb[0].mxu0
      %v2529 = vadd.f32 %v2176, %v2528
      %v2530 = vpop.f32.mrb[0].mxu0
      %2531 = vmatprep.mubr.f32.mxu0 0.0
      %2532 = vmatmul.mubr.f32.gmra.mrb[0].mxu0 %v2316
      %v2533 = vpop.f32.mrb[0].mxu0
      %v2534 = vadd.f32 %v2181, %v2533
      %v2535 = vpop.f32.mrb[0].mxu0
      %2536 = vmatprep.mubr.f32.mxu0 0.0
      %2537 = vmatmul.mubr.f32.gmra.mrb[0].mxu0 %v2319
      %v2538 = vpop.f32.mrb[0].mxu0
      %v2539 = vadd.f32 %v2186, %v2538
      %v2540 = vpop.f32.mrb[0].mxu0
      %2541 = vmatprep.mubr.f32.mxu0 0.0
      %2542 = vmatmul.mubr.f32.gmra.mrb[0].mxu0 %v2322
      %v2543 = vpop.f32.mrb[0].mxu0
      %v2544 = vadd.f32 %v2191, %v2543
      %v2545 = vpop.f32.mrb[0].mxu0
      %2546 = vmatprep.mubr.f32.mxu0 0.0
      %2547 = vmatmul.mubr.f32.gmra.mrb[0].mxu0 %v2325
      %v2548 = vpop.f32.mrb[0].mxu0
      %v2549 = vadd.f32 %v2196, %v2548
      %v2550 = vpop.f32.mrb[0].mxu0
      %2551 = vmatprep.mubr.f32.mxu0 0.0
      %2552 = vmatmul.mubr.f32.gmra.mrb[0].mxu0 %v2328
      %v2553 = vpop.f32.mrb[0].mxu0
      %v2554 = vadd.f32 %v2201, %v2553
      %v2555 = vpop.f32.mrb[0].mxu0
      %2556 = vmatprep.mubr.f32.mxu0 0.0
      %2557 = vmatmul.mubr.f32.gmra.mrb[0].mxu0 %v2331
      %v2558 = vpop.f32.mrb[0].mxu0
      %v2559 = vadd.f32 %v2206, %v2558
      %v2560 = vpop.f32.mrb[0].mxu0
      %2561 = vmatprep.mubr.f32.mxu0 0.0
      %2562 = vmatmul.mubr.f32.gmra.mrb[0].mxu0 %v2334
      %v2563 = vpop.f32.mrb[0].mxu0
      %v2564 = vadd.f32 %v2211, %v2563
      %v2565 = vpop.f32.mrb[0].mxu0
      %2566 = vmatprep.mubr.f32.mxu0 0.0
      %2567 = vmatmul.mubr.f32.gmra.mrb[0].mxu0 %v2337
      %v2568 = vpop.f32.mrb[0].mxu0
      %v2569 = vadd.f32 %v2216, %v2568
      %v2570 = vpop.f32.mrb[0].mxu0
      %2571 = vmatprep.mubr.f32.mxu0 0.0
      %2572 = vmatmul.mubr.f32.gmra.mrb[0].mxu0 %v2340
      %v2573 = vpop.f32.mrb[0].mxu0
      %v2574 = vadd.f32 %v2221, %v2573
      %v2575 = vpop.f32.mrb[0].mxu0
      %2576 = vmatprep.mubr.f32.mxu0 0.0
      %2577 = vmatmul.mubr.f32.gmra.mrb[0].mxu0 %v2343
      %v2578 = vpop.f32.mrb[0].mxu0
      %v2579 = vadd.f32 %v2226, %v2578
      %v2580 = vpop.f32.mrb[0].mxu0
      %2581 = vmatprep.mubr.f32.mxu0 0.0
      %2582 = vmatmul.mubr.f32.gmra.mrb[0].mxu0 %v2346
      %v2583 = vpop.f32.mrb[0].mxu0
      %v2584 = vadd.f32 %v2231, %v2583
      %v2585 = vpop.f32.mrb[0].mxu0
      %2586 = vmatprep.mubr.f32.mxu0 0.0
      %2587 = vmatmul.mubr.f32.gmra.mrb[0].mxu0 %v2349
      %v2588 = vpop.f32.mrb[0].mxu0
      %v2589 = vadd.f32 %v2236, %v2588
      %v2590 = vpop.f32.mrb[0].mxu0
      %2591 = vmatprep.mubr.f32.mxu0 0.0
      %2592 = vmatmul.mubr.f32.gmra.mrb[0].mxu0 %v2352
      %v2593 = vpop.f32.mrb[0].mxu0
      %v2594 = vadd.f32 %v2241, %v2593
      %v2595 = vpop.f32.mrb[0].mxu0
      %2596 = vmatprep.mubr.f32.mxu0 0.0
      %2597 = vmatmul.mubr.f32.gmra.mrb[0].mxu0 %v2355
      %v2598 = vpop.f32.mrb[0].mxu0
      %v2599 = vadd.f32 %v2246, %v2598
      %v2600 = vpop.f32.mrb[0].mxu0
      %2601 = vdwg.mxu0
      %v2602 = vld [vmem:[#allocation2 + $0x2] sm:$0xff]
      %v2603 = vld [vmem:[#allocation2 + $0xa] sm:$0xff]
      %v2604 = vld [vmem:[#allocation2 + $0x12] sm:$0xff]
      %v2605 = vld [vmem:[#allocation2 + $0x1a] sm:$0xff]
      %v2606 = vld [vmem:[#allocation2 + $0x22] sm:$0xff]
      %v2607 = vld [vmem:[#allocation2 + $0x2a] sm:$0xff]
      %v2608 = vld [vmem:[#allocation2 + $0x32] sm:$0xff]
      %v2609 = vld [vmem:[#allocation2 + $0x3a] sm:$0xff]
      %v2610 = vld [vmem:[#allocation2 + $0x42] sm:$0xff]
      %v2611 = vld [vmem:[#allocation2 + $0x4a] sm:$0xff]
      %v2612 = vld [vmem:[#allocation2 + $0x52] sm:$0xff]
      %v2613 = vld [vmem:[#allocation2 + $0x5a] sm:$0xff]
      %v2614 = vld [vmem:[#allocation2 + $0x62] sm:$0xff]
      %v2615 = vld [vmem:[#allocation2 + $0x6a] sm:$0xff]
      %v2616 = vld [vmem:[#allocation2 + $0x72] sm:$0xff]
      %v2617 = vld [vmem:[#allocation2 + $0x7a] sm:$0xff]
      %v2618 = vld [vmem:[#allocation2 + $0x82] sm:$0xff]
      %v2619 = vld [vmem:[#allocation2 + $0x8a] sm:$0xff]
      %v2620 = vld [vmem:[#allocation2 + $0x92] sm:$0xff]
      %v2621 = vld [vmem:[#allocation2 + $0x9a] sm:$0xff]
      %v2622 = vld [vmem:[#allocation2 + $0xa2] sm:$0xff]
      %v2623 = vld [vmem:[#allocation2 + $0xaa] sm:$0xff]
      %v2624 = vld [vmem:[#allocation2 + $0xb2] sm:$0xff]
      %v2625 = vld [vmem:[#allocation2 + $0xba] sm:$0xff]
      %v2626 = vld [vmem:[#allocation2 + $0xc2] sm:$0xff]
      %v2627 = vld [vmem:[#allocation2 + $0xca] sm:$0xff]
      %v2628 = vld [vmem:[#allocation2 + $0xd2] sm:$0xff]
      %v2629 = vld [vmem:[#allocation2 + $0xda] sm:$0xff]
      %v2630 = vld [vmem:[#allocation2 + $0xe2] sm:$0xff]
      %v2631 = vld [vmem:[#allocation2 + $0xea] sm:$0xff]
      %v2632 = vld [vmem:[#allocation2 + $0xf2] sm:$0xff]
      %v2633 = vld [vmem:[#allocation2 + $0xfa] sm:$0xff]
      %v2634 = vld [vmem:[#allocation2 + $0x102] sm:$0xff]
      %v2635 = vld [vmem:[#allocation2 + $0x10a] sm:$0xff]
      %v2636 = vld [vmem:[#allocation2 + $0x112] sm:$0xff]
      %v2637 = vld [vmem:[#allocation2 + $0x11a] sm:$0xff]
      %s2638 = scalar_lea.vmem %s3, 64
      %v2639 = vld [vmem:[%s2638] sm:$0xff]
      %v2640 = vld [vmem:[%s2638 + $0x8] sm:$0xff]
      %v2641 = vld [vmem:[%s2638 + $0x10] sm:$0xff]
      %v2642 = vld [vmem:[%s2638 + $0x18] sm:$0xff]
      %v2644 = vsel %vm357, %v2602, 0
      %v2647 = vsel %vm357, %v2603, 0
      %v2650 = vsel %vm357, %v2604, 0
      %v2653 = vsel %vm357, %v2605, 0
      %v2656 = vsel %vm357, %v2606, 0
      %v2659 = vsel %vm357, %v2607, 0
      %v2662 = vsel %vm357, %v2608, 0
      %v2665 = vsel %vm357, %v2609, 0
      %v2668 = vsel %vm357, %v2610, 0
      %v2671 = vsel %vm357, %v2611, 0
      %v2674 = vsel %vm357, %v2612, 0
      %v2677 = vsel %vm357, %v2613, 0
      %v2680 = vsel %vm357, %v2614, 0
      %v2683 = vsel %vm357, %v2615, 0
      %v2686 = vsel %vm357, %v2616, 0
      %v2689 = vsel %vm357, %v2617, 0
      %v2692 = vsel %vm357, %v2618, 0
      %v2695 = vsel %vm357, %v2619, 0
      %v2698 = vsel %vm357, %v2620, 0
      %v2701 = vsel %vm357, %v2621, 0
      %v2704 = vsel %vm357, %v2622, 0
      %v2707 = vsel %vm357, %v2623, 0
      %v2710 = vsel %vm357, %v2624, 0
      %v2713 = vsel %vm357, %v2625, 0
      %v2716 = vsel %vm357, %v2626, 0
      %v2719 = vsel %vm357, %v2627, 0
      %v2722 = vsel %vm357, %v2628, 0
      %v2725 = vsel %vm357, %v2629, 0
      %v2728 = vsel %vm357, %v2630, 0
      %v2731 = vsel %vm357, %v2631, 0
      %v2734 = vsel %vm357, %v2632, 0
      %v2737 = vsel %vm357, %v2633, 0
      %v2740 = vsel %vm357, %v2634, 0
      %v2743 = vsel %vm357, %v2635, 0
      %v2746 = vsel %vm357, %v2636, 0
      %v2749 = vsel %vm357, %v2637, 0
      %2751 = vmatprep.subr.mxu0 0.0
      %2752 = vmatpush1.msra.mxu0 %v2639
      %2753 = vmatprep.subr.mxu0 0.0
      %2754 = vmatpush1.msra.mxu0 %v2640
      %2755 = vmatprep.subr.mxu0 0.0
      %2756 = vmatpush1.msra.mxu0 %v2641
      %2757 = vmatprep.subr.mxu0 0.0
      %2758 = vmatpush1.msra.mxu0 %v2642
      %2759 = vmatprep.subr.mxu0 0.0
      %2760 = vmatpush1.msra.mxu0 0.0
      %2761 = vmatprep.subr.mxu0 0.0
      %2762 = vmatpush1.msra.mxu0 0.0
      %2763 = vmatprep.subr.mxu0 0.0
      %2764 = vmatpush1.msra.mxu0 0.0
      %2765 = vmatprep.subr.mxu0 0.0
      %2766 = vmatpush1.msra.mxu0 0.0
      %2767 = vmatprep.subr.mxu0 0.0
      %2768 = vmatpush1.msra.mxu0 0.0
      %2769 = vmatprep.subr.mxu0 0.0
      %2770 = vmatpush1.msra.mxu0 0.0
      %2771 = vmatprep.subr.mxu0 0.0
      %2772 = vmatpush1.msra.mxu0 0.0
      %2773 = vmatprep.subr.mxu0 0.0
      %2774 = vmatpush1.msra.mxu0 0.0
      %2775 = vmatprep.subr.mxu0 0.0
      %2776 = vmatpush1.msra.mxu0 0.0
      %2777 = vmatprep.subr.mxu0 0.0
      %2778 = vmatpush1.msra.mxu0 0.0
      %2779 = vmatprep.subr.mxu0 0.0
      %2780 = vmatpush1.msra.mxu0 0.0
      %2781 = vmatprep.subr.mxu0 0.0
      %2782 = vmatpush1.msra.mxu0 0.0
      %2783 = vmatprep.subr.mxu0 0.0
      %2784 = vmatpush1.msra.mxu0 0.0
      %2785 = vmatprep.subr.mxu0 0.0
      %2786 = vmatpush1.msra.mxu0 0.0
      %2787 = vmatprep.subr.mxu0 0.0
      %2788 = vmatpush1.msra.mxu0 0.0
      %2789 = vmatprep.subr.mxu0 0.0
      %2790 = vmatpush1.msra.mxu0 0.0
      %2791 = vmatprep.subr.mxu0 0.0
      %2792 = vmatpush1.msra.mxu0 0.0
      %2793 = vmatprep.subr.mxu0 0.0
      %2794 = vmatpush1.msra.mxu0 0.0
      %2795 = vmatprep.subr.mxu0 0.0
      %2796 = vmatpush1.msra.mxu0 0.0
      %2797 = vmatprep.subr.mxu0 0.0
      %2798 = vmatpush1.msra.mxu0 0.0
      %2799 = vmatprep.subr.mxu0 0.0
      %2800 = vmatpush1.msra.mxu0 0.0
      %2801 = vmatprep.subr.mxu0 0.0
      %2802 = vmatpush1.msra.mxu0 0.0
      %2803 = vmatprep.subr.mxu0 0.0
      %2804 = vmatpush1.msra.mxu0 0.0
      %2805 = vmatprep.subr.mxu0 0.0
      %2806 = vmatpush1.msra.mxu0 0.0
      %2807 = vmatprep.subr.mxu0 0.0
      %2808 = vmatpush1.msra.mxu0 0.0
      %2809 = vmatprep.subr.mxu0 0.0
      %2810 = vmatpush1.msra.mxu0 0.0
      %2811 = vmatprep.subr.mxu0 0.0
      %2812 = vmatpush1.msra.mxu0 0.0
      %2813 = vmatprep.subr.mxu0 0.0
      %2814 = vmatpush1.msra.mxu0 0.0
      %2815 = vmatprep.mubr.f32.mxu0 0.0
      %2816 = vmatmul.mubr.f32.gmra.mrb[0].mxu0 %v2644
      %v2817 = vpop.f32.mrb[0].mxu0
      %v2818 = vadd.f32 0.0, %v2817
      %v2819 = vpop.f32.mrb[0].mxu0
      %2820 = vmatprep.mubr.f32.mxu0 0.0
      %2821 = vmatmul.mubr.f32.gmra.mrb[0].mxu0 %v2647
      %v2822 = vpop.f32.mrb[0].mxu0
      %v2823 = vadd.f32 0.0, %v2822
      %v2824 = vpop.f32.mrb[0].mxu0
      %2825 = vmatprep.mubr.f32.mxu0 0.0
      %2826 = vmatmul.mubr.f32.gmra.mrb[0].mxu0 %v2650
      %v2827 = vpop.f32.mrb[0].mxu0
      %v2828 = vadd.f32 0.0, %v2827
      %v2829 = vpop.f32.mrb[0].mxu0
      %2830 = vmatprep.mubr.f32.mxu0 0.0
      %2831 = vmatmul.mubr.f32.gmra.mrb[0].mxu0 %v2653
      %v2832 = vpop.f32.mrb[0].mxu0
      %v2833 = vadd.f32 0.0, %v2832
      %v2834 = vpop.f32.mrb[0].mxu0
      %2835 = vmatprep.mubr.f32.mxu0 0.0
      %2836 = vmatmul.mubr.f32.gmra.mrb[0].mxu0 %v2656
      %v2837 = vpop.f32.mrb[0].mxu0
      %v2838 = vadd.f32 0.0, %v2837
      %v2839 = vpop.f32.mrb[0].mxu0
      %2840 = vmatprep.mubr.f32.mxu0 0.0
      %2841 = vmatmul.mubr.f32.gmra.mrb[0].mxu0 %v2659
      %v2842 = vpop.f32.mrb[0].mxu0
      %v2843 = vadd.f32 0.0, %v2842
      %v2844 = vpop.f32.mrb[0].mxu0
      %2845 = vmatprep.mubr.f32.mxu0 0.0
      %2846 = vmatmul.mubr.f32.gmra.mrb[0].mxu0 %v2662
      %v2847 = vpop.f32.mrb[0].mxu0
      %v2848 = vadd.f32 0.0, %v2847
      %v2849 = vpop.f32.mrb[0].mxu0
      %2850 = vmatprep.mubr.f32.mxu0 0.0
      %2851 = vmatmul.mubr.f32.gmra.mrb[0].mxu0 %v2665
      %v2852 = vpop.f32.mrb[0].mxu0
      %v2853 = vadd.f32 0.0, %v2852
      %v2854 = vpop.f32.mrb[0].mxu0
      %2855 = vmatprep.mubr.f32.mxu0 0.0
      %2856 = vmatmul.mubr.f32.gmra.mrb[0].mxu0 %v2668
      %v2857 = vpop.f32.mrb[0].mxu0
      %v2858 = vadd.f32 0.0, %v2857
      %v2859 = vpop.f32.mrb[0].mxu0
      %2860 = vmatprep.mubr.f32.mxu0 0.0
      %2861 = vmatmul.mubr.f32.gmra.mrb[0].mxu0 %v2671
      %v2862 = vpop.f32.mrb[0].mxu0
      %v2863 = vadd.f32 0.0, %v2862
      %v2864 = vpop.f32.mrb[0].mxu0
      %2865 = vmatprep.mubr.f32.mxu0 0.0
      %2866 = vmatmul.mubr.f32.gmra.mrb[0].mxu0 %v2674
      %v2867 = vpop.f32.mrb[0].mxu0
      %v2868 = vadd.f32 0.0, %v2867
      %v2869 = vpop.f32.mrb[0].mxu0
      %2870 = vmatprep.mubr.f32.mxu0 0.0
      %2871 = vmatmul.mubr.f32.gmra.mrb[0].mxu0 %v2677
      %v2872 = vpop.f32.mrb[0].mxu0
      %v2873 = vadd.f32 0.0, %v2872
      %v2874 = vpop.f32.mrb[0].mxu0
      %2875 = vmatprep.mubr.f32.mxu0 0.0
      %2876 = vmatmul.mubr.f32.gmra.mrb[0].mxu0 %v2680
      %v2877 = vpop.f32.mrb[0].mxu0
      %v2878 = vadd.f32 0.0, %v2877
      %v2879 = vpop.f32.mrb[0].mxu0
      %2880 = vmatprep.mubr.f32.mxu0 0.0
      %2881 = vmatmul.mubr.f32.gmra.mrb[0].mxu0 %v2683
      %v2882 = vpop.f32.mrb[0].mxu0
      %v2883 = vadd.f32 0.0, %v2882
      %v2884 = vpop.f32.mrb[0].mxu0
      %2885 = vmatprep.mubr.f32.mxu0 0.0
      %2886 = vmatmul.mubr.f32.gmra.mrb[0].mxu0 %v2686
      %v2887 = vpop.f32.mrb[0].mxu0
      %v2888 = vadd.f32 0.0, %v2887
      %v2889 = vpop.f32.mrb[0].mxu0
      %2890 = vmatprep.mubr.f32.mxu0 0.0
      %2891 = vmatmul.mubr.f32.gmra.mrb[0].mxu0 %v2689
      %v2892 = vpop.f32.mrb[0].mxu0
      %v2893 = vadd.f32 0.0, %v2892
      %v2894 = vpop.f32.mrb[0].mxu0
      %2895 = vmatprep.mubr.f32.mxu0 0.0
      %2896 = vmatmul.mubr.f32.gmra.mrb[0].mxu0 %v2692
      %v2897 = vpop.f32.mrb[0].mxu0
      %v2898 = vadd.f32 0.0, %v2897
      %v2899 = vpop.f32.mrb[0].mxu0
      %2900 = vmatprep.mubr.f32.mxu0 0.0
      %2901 = vmatmul.mubr.f32.gmra.mrb[0].mxu0 %v2695
      %v2902 = vpop.f32.mrb[0].mxu0
      %v2903 = vadd.f32 0.0, %v2902
      %v2904 = vpop.f32.mrb[0].mxu0
      %2905 = vmatprep.mubr.f32.mxu0 0.0
      %2906 = vmatmul.mubr.f32.gmra.mrb[0].mxu0 %v2698
      %v2907 = vpop.f32.mrb[0].mxu0
      %v2908 = vadd.f32 0.0, %v2907
      %v2909 = vpop.f32.mrb[0].mxu0
      %2910 = vmatprep.mubr.f32.mxu0 0.0
      %2911 = vmatmul.mubr.f32.gmra.mrb[0].mxu0 %v2701
      %v2912 = vpop.f32.mrb[0].mxu0
      %v2913 = vadd.f32 0.0, %v2912
      %v2914 = vpop.f32.mrb[0].mxu0
      %2915 = vmatprep.mubr.f32.mxu0 0.0
      %2916 = vmatmul.mubr.f32.gmra.mrb[0].mxu0 %v2704
      %v2917 = vpop.f32.mrb[0].mxu0
      %v2918 = vadd.f32 0.0, %v2917
      %v2919 = vpop.f32.mrb[0].mxu0
      %2920 = vmatprep.mubr.f32.mxu0 0.0
      %2921 = vmatmul.mubr.f32.gmra.mrb[0].mxu0 %v2707
      %v2922 = vpop.f32.mrb[0].mxu0
      %v2923 = vadd.f32 0.0, %v2922
      %v2924 = vpop.f32.mrb[0].mxu0
      %2925 = vmatprep.mubr.f32.mxu0 0.0
      %2926 = vmatmul.mubr.f32.gmra.mrb[0].mxu0 %v2710
      %v2927 = vpop.f32.mrb[0].mxu0
      %v2928 = vadd.f32 0.0, %v2927
      %v2929 = vpop.f32.mrb[0].mxu0
      %2930 = vmatprep.mubr.f32.mxu0 0.0
      %2931 = vmatmul.mubr.f32.gmra.mrb[0].mxu0 %v2713
      %v2932 = vpop.f32.mrb[0].mxu0
      %v2933 = vadd.f32 0.0, %v2932
      %v2934 = vpop.f32.mrb[0].mxu0
      %2935 = vmatprep.mubr.f32.mxu0 0.0
      %2936 = vmatmul.mubr.f32.gmra.mrb[0].mxu0 %v2716
      %v2937 = vpop.f32.mrb[0].mxu0
      %v2938 = vadd.f32 0.0, %v2937
      %v2939 = vpop.f32.mrb[0].mxu0
      %2940 = vmatprep.mubr.f32.mxu0 0.0
      %2941 = vmatmul.mubr.f32.gmra.mrb[0].mxu0 %v2719
      %v2942 = vpop.f32.mrb[0].mxu0
      %v2943 = vadd.f32 0.0, %v2942
      %v2944 = vpop.f32.mrb[0].mxu0
      %2945 = vmatprep.mubr.f32.mxu0 0.0
      %2946 = vmatmul.mubr.f32.gmra.mrb[0].mxu0 %v2722
      %v2947 = vpop.f32.mrb[0].mxu0
      %v2948 = vadd.f32 0.0, %v2947
      %v2949 = vpop.f32.mrb[0].mxu0
      %2950 = vmatprep.mubr.f32.mxu0 0.0
      %2951 = vmatmul.mubr.f32.gmra.mrb[0].mxu0 %v2725
      %v2952 = vpop.f32.mrb[0].mxu0
      %v2953 = vadd.f32 0.0, %v2952
      %v2954 = vpop.f32.mrb[0].mxu0
      %2955 = vmatprep.mubr.f32.mxu0 0.0
      %2956 = vmatmul.mubr.f32.gmra.mrb[0].mxu0 %v2728
      %v2957 = vpop.f32.mrb[0].mxu0
      %v2958 = vadd.f32 0.0, %v2957
      %v2959 = vpop.f32.mrb[0].mxu0
      %2960 = vmatprep.mubr.f32.mxu0 0.0
      %2961 = vmatmul.mubr.f32.gmra.mrb[0].mxu0 %v2731
      %v2962 = vpop.f32.mrb[0].mxu0
      %v2963 = vadd.f32 0.0, %v2962
      %v2964 = vpop.f32.mrb[0].mxu0
      %2965 = vmatprep.mubr.f32.mxu0 0.0
      %2966 = vmatmul.mubr.f32.gmra.mrb[0].mxu0 %v2734
      %v2967 = vpop.f32.mrb[0].mxu0
      %v2968 = vadd.f32 0.0, %v2967
      %v2969 = vpop.f32.mrb[0].mxu0
      %2970 = vmatprep.mubr.f32.mxu0 0.0
      %2971 = vmatmul.mubr.f32.gmra.mrb[0].mxu0 %v2737
      %v2972 = vpop.f32.mrb[0].mxu0
      %v2973 = vadd.f32 0.0, %v2972
      %v2974 = vpop.f32.mrb[0].mxu0
      %2975 = vmatprep.mubr.f32.mxu0 0.0
      %2976 = vmatmul.mubr.f32.gmra.mrb[0].mxu0 %v2740
      %v2977 = vpop.f32.mrb[0].mxu0
      %v2978 = vadd.f32 0.0, %v2977
      %v2979 = vpop.f32.mrb[0].mxu0
      %2980 = vmatprep.mubr.f32.mxu0 0.0
      %2981 = vmatmul.mubr.f32.gmra.mrb[0].mxu0 %v2743
      %v2982 = vpop.f32.mrb[0].mxu0
      %v2983 = vadd.f32 0.0, %v2982
      %v2984 = vpop.f32.mrb[0].mxu0
      %2985 = vmatprep.mubr.f32.mxu0 0.0
      %2986 = vmatmul.mubr.f32.gmra.mrb[0].mxu0 %v2746
      %v2987 = vpop.f32.mrb[0].mxu0
      %v2988 = vadd.f32 0.0, %v2987
      %v2989 = vpop.f32.mrb[0].mxu0
      %2990 = vmatprep.mubr.f32.mxu0 0.0
      %2991 = vmatmul.mubr.f32.gmra.mrb[0].mxu0 %v2749
      %v2992 = vpop.f32.mrb[0].mxu0
      %v2993 = vadd.f32 0.0, %v2992
      %v2994 = vpop.f32.mrb[0].mxu0
      %2995 = vdwg.mxu0
      %v2996 = vadd.f32 %v2424, %v2818
      %v2997 = vadd.f32 %v2429, %v2823
      %v2998 = vadd.f32 %v2434, %v2828
      %v2999 = vadd.f32 %v2439, %v2833
      %v3000 = vadd.f32 %v2444, %v2838
      %v3001 = vadd.f32 %v2449, %v2843
      %v3002 = vadd.f32 %v2454, %v2848
      %v3003 = vadd.f32 %v2459, %v2853
      %v3004 = vadd.f32 %v2464, %v2858
      %v3005 = vadd.f32 %v2469, %v2863
      %v3006 = vadd.f32 %v2474, %v2868
      %v3007 = vadd.f32 %v2479, %v2873
      %v3008 = vadd.f32 %v2484, %v2878
      %v3009 = vadd.f32 %v2489, %v2883
      %v3010 = vadd.f32 %v2494, %v2888
      %v3011 = vadd.f32 %v2499, %v2893
      %v3012 = vadd.f32 %v2504, %v2898
      %v3013 = vadd.f32 %v2509, %v2903
      %v3014 = vadd.f32 %v2514, %v2908
      %v3015 = vadd.f32 %v2519, %v2913
      %v3016 = vadd.f32 %v2524, %v2918
      %v3017 = vadd.f32 %v2529, %v2923
      %v3018 = vadd.f32 %v2534, %v2928
      %v3019 = vadd.f32 %v2539, %v2933
      %v3020 = vadd.f32 %v2544, %v2938
      %v3021 = vadd.f32 %v2549, %v2943
      %v3022 = vadd.f32 %v2554, %v2948
      %v3023 = vadd.f32 %v2559, %v2953
      %v3024 = vadd.f32 %v2564, %v2958
      %v3025 = vadd.f32 %v2569, %v2963
      %v3026 = vadd.f32 %v2574, %v2968
      %v3027 = vadd.f32 %v2579, %v2973
      %v3028 = vadd.f32 %v2584, %v2978
      %v3029 = vadd.f32 %v2589, %v2983
      %v3030 = vadd.f32 %v2594, %v2988
      %v3031 = vadd.f32 %v2599, %v2993
      %v3032 = vld [vmem:[#allocation2 + $0x12] sm:$0xff]
      %v3033 = vld [vmem:[#allocation2 + $0x1a] sm:$0xff]
      %v3034 = vld [vmem:[#allocation2 + $0x22] sm:$0xff]
      %v3035 = vld [vmem:[#allocation2 + $0x2a] sm:$0xff]
      %v3036 = vld [vmem:[#allocation2 + $0x32] sm:$0xff]
      %v3037 = vld [vmem:[#allocation2 + $0x3a] sm:$0xff]
      %v3038 = vld [vmem:[#allocation2 + $0x42] sm:$0xff]
      %v3039 = vld [vmem:[#allocation2 + $0x4a] sm:$0xff]
      %v3040 = vld [vmem:[#allocation2 + $0x52] sm:$0xff]
      %v3041 = vld [vmem:[#allocation2 + $0x5a] sm:$0xff]
      %v3042 = vld [vmem:[#allocation2 + $0x62] sm:$0xff]
      %v3043 = vld [vmem:[#allocation2 + $0x6a] sm:$0xff]
      %v3044 = vld [vmem:[#allocation2 + $0x72] sm:$0xff]
      %v3045 = vld [vmem:[#allocation2 + $0x7a] sm:$0xff]
      %v3046 = vld [vmem:[#allocation2 + $0x82] sm:$0xff]
      %v3047 = vld [vmem:[#allocation2 + $0x8a] sm:$0xff]
      %v3048 = vld [vmem:[#allocation2 + $0x92] sm:$0xff]
      %v3049 = vld [vmem:[#allocation2 + $0x9a] sm:$0xff]
      %v3050 = vld [vmem:[#allocation2 + $0xa2] sm:$0xff]
      %v3051 = vld [vmem:[#allocation2 + $0xaa] sm:$0xff]
      %v3052 = vld [vmem:[#allocation2 + $0xb2] sm:$0xff]
      %v3053 = vld [vmem:[#allocation2 + $0xba] sm:$0xff]
      %v3054 = vld [vmem:[#allocation2 + $0xc2] sm:$0xff]
      %v3055 = vld [vmem:[#allocation2 + $0xca] sm:$0xff]
      %v3056 = vld [vmem:[#allocation2 + $0xd2] sm:$0xff]
      %v3057 = vld [vmem:[#allocation2 + $0xda] sm:$0xff]
      %v3058 = vld [vmem:[#allocation2 + $0xe2] sm:$0xff]
      %v3059 = vld [vmem:[#allocation2 + $0xea] sm:$0xff]
      %v3060 = vld [vmem:[#allocation2 + $0xf2] sm:$0xff]
      %v3061 = vld [vmem:[#allocation2 + $0xfa] sm:$0xff]
      %v3062 = vld [vmem:[#allocation2 + $0x102] sm:$0xff]
      %v3063 = vld [vmem:[#allocation2 + $0x10a] sm:$0xff]
      %v3064 = vld [vmem:[#allocation2 + $0x112] sm:$0xff]
      %v3065 = vld [vmem:[#allocation2 + $0x11a] sm:$0xff]
      %v3066 = vld [vmem:[#allocation2 + $0x122] sm:$0xff]
      %v3067 = vld [vmem:[#allocation2 + $0x12a] sm:$0xff]
      %s3068 = scalar_lea.vmem %s3, 96
      %v3069 = vld [vmem:[%s3068] sm:$0xff]
      %v3070 = vld [vmem:[%s3068 + $0x8] sm:$0xff]
      %v3071 = vld [vmem:[%s3068 + $0x10] sm:$0xff]
      %v3072 = vld [vmem:[%s3068 + $0x18] sm:$0xff]
      %v3074 = vsel %vm357, %v3032, 0
      %v3077 = vsel %vm357, %v3033, 0
      %v3080 = vsel %vm357, %v3034, 0
      %v3083 = vsel %vm357, %v3035, 0
      %v3086 = vsel %vm357, %v3036, 0
      %v3089 = vsel %vm357, %v3037, 0
      %v3092 = vsel %vm357, %v3038, 0
      %v3095 = vsel %vm357, %v3039, 0
      %v3098 = vsel %vm357, %v3040, 0
      %v3101 = vsel %vm357, %v3041, 0
      %v3104 = vsel %vm357, %v3042, 0
      %v3107 = vsel %vm357, %v3043, 0
      %v3110 = vsel %vm357, %v3044, 0
      %v3113 = vsel %vm357, %v3045, 0
      %v3116 = vsel %vm357, %v3046, 0
      %v3119 = vsel %vm357, %v3047, 0
      %v3122 = vsel %vm357, %v3048, 0
      %v3125 = vsel %vm357, %v3049, 0
      %v3128 = vsel %vm357, %v3050, 0
      %v3131 = vsel %vm357, %v3051, 0
      %v3134 = vsel %vm357, %v3052, 0
      %v3137 = vsel %vm357, %v3053, 0
      %v3140 = vsel %vm357, %v3054, 0
      %v3143 = vsel %vm357, %v3055, 0
      %v3146 = vsel %vm357, %v3056, 0
      %v3149 = vsel %vm357, %v3057, 0
      %v3152 = vsel %vm357, %v3058, 0
      %v3155 = vsel %vm357, %v3059, 0
      %v3158 = vsel %vm357, %v3060, 0
      %v3161 = vsel %vm357, %v3061, 0
      %v3164 = vsel %vm357, %v3062, 0
      %v3167 = vsel %vm357, %v3063, 0
      %v3170 = vsel %vm357, %v3064, 0
      %v3173 = vsel %vm357, %v3065, 0
      %v3176 = vsel %vm357, %v3066, 0
      %v3179 = vsel %vm357, %v3067, 0
      %3181 = vmatprep.subr.mxu0 0.0
      %3182 = vmatpush1.msra.mxu0 %v3069
      %3183 = vmatprep.subr.mxu0 0.0
      %3184 = vmatpush1.msra.mxu0 %v3070
      %3185 = vmatprep.subr.mxu0 0.0
      %3186 = vmatpush1.msra.mxu0 %v3071
      %3187 = vmatprep.subr.mxu0 0.0
      %3188 = vmatpush1.msra.mxu0 %v3072
      %3189 = vmatprep.subr.mxu0 0.0
      %3190 = vmatpush1.msra.mxu0 0.0
      %3191 = vmatprep.subr.mxu0 0.0
      %3192 = vmatpush1.msra.mxu0 0.0
      %3193 = vmatprep.subr.mxu0 0.0
      %3194 = vmatpush1.msra.mxu0 0.0
      %3195 = vmatprep.subr.mxu0 0.0
      %3196 = vmatpush1.msra.mxu0 0.0
      %3197 = vmatprep.subr.mxu0 0.0
      %3198 = vmatpush1.msra.mxu0 0.0
      %3199 = vmatprep.subr.mxu0 0.0
      %3200 = vmatpush1.msra.mxu0 0.0
      %3201 = vmatprep.subr.mxu0 0.0
      %3202 = vmatpush1.msra.mxu0 0.0
      %3203 = vmatprep.subr.mxu0 0.0
      %3204 = vmatpush1.msra.mxu0 0.0
      %3205 = vmatprep.subr.mxu0 0.0
      %3206 = vmatpush1.msra.mxu0 0.0
      %3207 = vmatprep.subr.mxu0 0.0
      %3208 = vmatpush1.msra.mxu0 0.0
      %3209 = vmatprep.subr.mxu0 0.0
      %3210 = vmatpush1.msra.mxu0 0.0
      %3211 = vmatprep.subr.mxu0 0.0
      %3212 = vmatpush1.msra.mxu0 0.0
      %3213 = vmatprep.subr.mxu0 0.0
      %3214 = vmatpush1.msra.mxu0 0.0
      %3215 = vmatprep.subr.mxu0 0.0
      %3216 = vmatpush1.msra.mxu0 0.0
      %3217 = vmatprep.subr.mxu0 0.0
      %3218 = vmatpush1.msra.mxu0 0.0
      %3219 = vmatprep.subr.mxu0 0.0
      %3220 = vmatpush1.msra.mxu0 0.0
      %3221 = vmatprep.subr.mxu0 0.0
      %3222 = vmatpush1.msra.mxu0 0.0
      %3223 = vmatprep.subr.mxu0 0.0
      %3224 = vmatpush1.msra.mxu0 0.0
      %3225 = vmatprep.subr.mxu0 0.0
      %3226 = vmatpush1.msra.mxu0 0.0
      %3227 = vmatprep.subr.mxu0 0.0
      %3228 = vmatpush1.msra.mxu0 0.0
      %3229 = vmatprep.subr.mxu0 0.0
      %3230 = vmatpush1.msra.mxu0 0.0
      %3231 = vmatprep.subr.mxu0 0.0
      %3232 = vmatpush1.msra.mxu0 0.0
      %3233 = vmatprep.subr.mxu0 0.0
      %3234 = vmatpush1.msra.mxu0 0.0
      %3235 = vmatprep.subr.mxu0 0.0
      %3236 = vmatpush1.msra.mxu0 0.0
      %3237 = vmatprep.subr.mxu0 0.0
      %3238 = vmatpush1.msra.mxu0 0.0
      %3239 = vmatprep.subr.mxu0 0.0
      %3240 = vmatpush1.msra.mxu0 0.0
      %3241 = vmatprep.subr.mxu0 0.0
      %3242 = vmatpush1.msra.mxu0 0.0
      %3243 = vmatprep.subr.mxu0 0.0
      %3244 = vmatpush1.msra.mxu0 0.0
      %3245 = vmatprep.mubr.f32.mxu0 0.0
      %3246 = vmatmul.mubr.f32.gmra.mrb[0].mxu0 %v3074
      %v3247 = vpop.f32.mrb[0].mxu0
      %v3248 = vadd.f32 0.0, %v3247
      %v3249 = vpop.f32.mrb[0].mxu0
      %3250 = vmatprep.mubr.f32.mxu0 0.0
      %3251 = vmatmul.mubr.f32.gmra.mrb[0].mxu0 %v3077
      %v3252 = vpop.f32.mrb[0].mxu0
      %v3253 = vadd.f32 0.0, %v3252
      %v3254 = vpop.f32.mrb[0].mxu0
      %3255 = vmatprep.mubr.f32.mxu0 0.0
      %3256 = vmatmul.mubr.f32.gmra.mrb[0].mxu0 %v3080
      %v3257 = vpop.f32.mrb[0].mxu0
      %v3258 = vadd.f32 0.0, %v3257
      %v3259 = vpop.f32.mrb[0].mxu0
      %3260 = vmatprep.mubr.f32.mxu0 0.0
      %3261 = vmatmul.mubr.f32.gmra.mrb[0].mxu0 %v3083
      %v3262 = vpop.f32.mrb[0].mxu0
      %v3263 = vadd.f32 0.0, %v3262
      %v3264 = vpop.f32.mrb[0].mxu0
      %3265 = vmatprep.mubr.f32.mxu0 0.0
      %3266 = vmatmul.mubr.f32.gmra.mrb[0].mxu0 %v3086
      %v3267 = vpop.f32.mrb[0].mxu0
      %v3268 = vadd.f32 0.0, %v3267
      %v3269 = vpop.f32.mrb[0].mxu0
      %3270 = vmatprep.mubr.f32.mxu0 0.0
      %3271 = vmatmul.mubr.f32.gmra.mrb[0].mxu0 %v3089
      %v3272 = vpop.f32.mrb[0].mxu0
      %v3273 = vadd.f32 0.0, %v3272
      %v3274 = vpop.f32.mrb[0].mxu0
      %3275 = vmatprep.mubr.f32.mxu0 0.0
      %3276 = vmatmul.mubr.f32.gmra.mrb[0].mxu0 %v3092
      %v3277 = vpop.f32.mrb[0].mxu0
      %v3278 = vadd.f32 0.0, %v3277
      %v3279 = vpop.f32.mrb[0].mxu0
      %3280 = vmatprep.mubr.f32.mxu0 0.0
      %3281 = vmatmul.mubr.f32.gmra.mrb[0].mxu0 %v3095
      %v3282 = vpop.f32.mrb[0].mxu0
      %v3283 = vadd.f32 0.0, %v3282
      %v3284 = vpop.f32.mrb[0].mxu0
      %3285 = vmatprep.mubr.f32.mxu0 0.0
      %3286 = vmatmul.mubr.f32.gmra.mrb[0].mxu0 %v3098
      %v3287 = vpop.f32.mrb[0].mxu0
      %v3288 = vadd.f32 0.0, %v3287
      %v3289 = vpop.f32.mrb[0].mxu0
      %3290 = vmatprep.mubr.f32.mxu0 0.0
      %3291 = vmatmul.mubr.f32.gmra.mrb[0].mxu0 %v3101
      %v3292 = vpop.f32.mrb[0].mxu0
      %v3293 = vadd.f32 0.0, %v3292
      %v3294 = vpop.f32.mrb[0].mxu0
      %3295 = vmatprep.mubr.f32.mxu0 0.0
      %3296 = vmatmul.mubr.f32.gmra.mrb[0].mxu0 %v3104
      %v3297 = vpop.f32.mrb[0].mxu0
      %v3298 = vadd.f32 0.0, %v3297
      %v3299 = vpop.f32.mrb[0].mxu0
      %3300 = vmatprep.mubr.f32.mxu0 0.0
      %3301 = vmatmul.mubr.f32.gmra.mrb[0].mxu0 %v3107
      %v3302 = vpop.f32.mrb[0].mxu0
      %v3303 = vadd.f32 0.0, %v3302
      %v3304 = vpop.f32.mrb[0].mxu0
      %3305 = vmatprep.mubr.f32.mxu0 0.0
      %3306 = vmatmul.mubr.f32.gmra.mrb[0].mxu0 %v3110
      %v3307 = vpop.f32.mrb[0].mxu0
      %v3308 = vadd.f32 0.0, %v3307
      %v3309 = vpop.f32.mrb[0].mxu0
      %3310 = vmatprep.mubr.f32.mxu0 0.0
      %3311 = vmatmul.mubr.f32.gmra.mrb[0].mxu0 %v3113
      %v3312 = vpop.f32.mrb[0].mxu0
      %v3313 = vadd.f32 0.0, %v3312
      %v3314 = vpop.f32.mrb[0].mxu0
      %3315 = vmatprep.mubr.f32.mxu0 0.0
      %3316 = vmatmul.mubr.f32.gmra.mrb[0].mxu0 %v3116
      %v3317 = vpop.f32.mrb[0].mxu0
      %v3318 = vadd.f32 0.0, %v3317
      %v3319 = vpop.f32.mrb[0].mxu0
      %3320 = vmatprep.mubr.f32.mxu0 0.0
      %3321 = vmatmul.mubr.f32.gmra.mrb[0].mxu0 %v3119
      %v3322 = vpop.f32.mrb[0].mxu0
      %v3323 = vadd.f32 0.0, %v3322
      %v3324 = vpop.f32.mrb[0].mxu0
      %3325 = vmatprep.mubr.f32.mxu0 0.0
      %3326 = vmatmul.mubr.f32.gmra.mrb[0].mxu0 %v3122
      %v3327 = vpop.f32.mrb[0].mxu0
      %v3328 = vadd.f32 0.0, %v3327
      %v3329 = vpop.f32.mrb[0].mxu0
      %3330 = vmatprep.mubr.f32.mxu0 0.0
      %3331 = vmatmul.mubr.f32.gmra.mrb[0].mxu0 %v3125
      %v3332 = vpop.f32.mrb[0].mxu0
      %v3333 = vadd.f32 0.0, %v3332
      %v3334 = vpop.f32.mrb[0].mxu0
      %3335 = vmatprep.mubr.f32.mxu0 0.0
      %3336 = vmatmul.mubr.f32.gmra.mrb[0].mxu0 %v3128
      %v3337 = vpop.f32.mrb[0].mxu0
      %v3338 = vadd.f32 0.0, %v3337
      %v3339 = vpop.f32.mrb[0].mxu0
      %3340 = vmatprep.mubr.f32.mxu0 0.0
      %3341 = vmatmul.mubr.f32.gmra.mrb[0].mxu0 %v3131
      %v3342 = vpop.f32.mrb[0].mxu0
      %v3343 = vadd.f32 0.0, %v3342
      %v3344 = vpop.f32.mrb[0].mxu0
      %3345 = vmatprep.mubr.f32.mxu0 0.0
      %3346 = vmatmul.mubr.f32.gmra.mrb[0].mxu0 %v3134
      %v3347 = vpop.f32.mrb[0].mxu0
      %v3348 = vadd.f32 0.0, %v3347
      %v3349 = vpop.f32.mrb[0].mxu0
      %3350 = vmatprep.mubr.f32.mxu0 0.0
      %3351 = vmatmul.mubr.f32.gmra.mrb[0].mxu0 %v3137
      %v3352 = vpop.f32.mrb[0].mxu0
      %v3353 = vadd.f32 0.0, %v3352
      %v3354 = vpop.f32.mrb[0].mxu0
      %3355 = vmatprep.mubr.f32.mxu0 0.0
      %3356 = vmatmul.mubr.f32.gmra.mrb[0].mxu0 %v3140
      %v3357 = vpop.f32.mrb[0].mxu0
      %v3358 = vadd.f32 0.0, %v3357
      %v3359 = vpop.f32.mrb[0].mxu0
      %3360 = vmatprep.mubr.f32.mxu0 0.0
      %3361 = vmatmul.mubr.f32.gmra.mrb[0].mxu0 %v3143
      %v3362 = vpop.f32.mrb[0].mxu0
      %v3363 = vadd.f32 0.0, %v3362
      %v3364 = vpop.f32.mrb[0].mxu0
      %3365 = vmatprep.mubr.f32.mxu0 0.0
      %3366 = vmatmul.mubr.f32.gmra.mrb[0].mxu0 %v3146
      %v3367 = vpop.f32.mrb[0].mxu0
      %v3368 = vadd.f32 0.0, %v3367
      %v3369 = vpop.f32.mrb[0].mxu0
      %3370 = vmatprep.mubr.f32.mxu0 0.0
      %3371 = vmatmul.mubr.f32.gmra.mrb[0].mxu0 %v3149
      %v3372 = vpop.f32.mrb[0].mxu0
      %v3373 = vadd.f32 0.0, %v3372
      %v3374 = vpop.f32.mrb[0].mxu0
      %3375 = vmatprep.mubr.f32.mxu0 0.0
      %3376 = vmatmul.mubr.f32.gmra.mrb[0].mxu0 %v3152
      %v3377 = vpop.f32.mrb[0].mxu0
      %v3378 = vadd.f32 0.0, %v3377
      %v3379 = vpop.f32.mrb[0].mxu0
      %3380 = vmatprep.mubr.f32.mxu0 0.0
      %3381 = vmatmul.mubr.f32.gmra.mrb[0].mxu0 %v3155
      %v3382 = vpop.f32.mrb[0].mxu0
      %v3383 = vadd.f32 0.0, %v3382
      %v3384 = vpop.f32.mrb[0].mxu0
      %3385 = vmatprep.mubr.f32.mxu0 0.0
      %3386 = vmatmul.mubr.f32.gmra.mrb[0].mxu0 %v3158
      %v3387 = vpop.f32.mrb[0].mxu0
      %v3388 = vadd.f32 0.0, %v3387
      %v3389 = vpop.f32.mrb[0].mxu0
      %3390 = vmatprep.mubr.f32.mxu0 0.0
      %3391 = vmatmul.mubr.f32.gmra.mrb[0].mxu0 %v3161
      %v3392 = vpop.f32.mrb[0].mxu0
      %v3393 = vadd.f32 0.0, %v3392
      %v3394 = vpop.f32.mrb[0].mxu0
      %3395 = vmatprep.mubr.f32.mxu0 0.0
      %3396 = vmatmul.mubr.f32.gmra.mrb[0].mxu0 %v3164
      %v3397 = vpop.f32.mrb[0].mxu0
      %v3398 = vadd.f32 0.0, %v3397
      %v3399 = vpop.f32.mrb[0].mxu0
      %3400 = vmatprep.mubr.f32.mxu0 0.0
      %3401 = vmatmul.mubr.f32.gmra.mrb[0].mxu0 %v3167
      %v3402 = vpop.f32.mrb[0].mxu0
      %v3403 = vadd.f32 0.0, %v3402
      %v3404 = vpop.f32.mrb[0].mxu0
      %3405 = vmatprep.mubr.f32.mxu0 0.0
      %3406 = vmatmul.mubr.f32.gmra.mrb[0].mxu0 %v3170
      %v3407 = vpop.f32.mrb[0].mxu0
      %v3408 = vadd.f32 0.0, %v3407
      %v3409 = vpop.f32.mrb[0].mxu0
      %3410 = vmatprep.mubr.f32.mxu0 0.0
      %3411 = vmatmul.mubr.f32.gmra.mrb[0].mxu0 %v3173
      %v3412 = vpop.f32.mrb[0].mxu0
      %v3413 = vadd.f32 0.0, %v3412
      %v3414 = vpop.f32.mrb[0].mxu0
      %3415 = vmatprep.mubr.f32.mxu0 0.0
      %3416 = vmatmul.mubr.f32.gmra.mrb[0].mxu0 %v3176
      %v3417 = vpop.f32.mrb[0].mxu0
      %v3418 = vadd.f32 0.0, %v3417
      %v3419 = vpop.f32.mrb[0].mxu0
      %3420 = vmatprep.mubr.f32.mxu0 0.0
      %3421 = vmatmul.mubr.f32.gmra.mrb[0].mxu0 %v3179
      %v3422 = vpop.f32.mrb[0].mxu0
      %v3423 = vadd.f32 0.0, %v3422
      %v3424 = vpop.f32.mrb[0].mxu0
      %3425 = vdwg.mxu0
      %v3426 = vadd.f32 %v2996, %v3248
      %v3427 = vadd.f32 %v2997, %v3253
      %v3428 = vadd.f32 %v2998, %v3258
      %v3429 = vadd.f32 %v2999, %v3263
      %v3430 = vadd.f32 %v3000, %v3268
      %v3431 = vadd.f32 %v3001, %v3273
      %v3432 = vadd.f32 %v3002, %v3278
      %v3433 = vadd.f32 %v3003, %v3283
      %v3434 = vadd.f32 %v3004, %v3288
      %v3435 = vadd.f32 %v3005, %v3293
      %v3436 = vadd.f32 %v3006, %v3298
      %v3437 = vadd.f32 %v3007, %v3303
      %v3438 = vadd.f32 %v3008, %v3308
      %v3439 = vadd.f32 %v3009, %v3313
      %v3440 = vadd.f32 %v3010, %v3318
      %v3441 = vadd.f32 %v3011, %v3323
      %v3442 = vadd.f32 %v3012, %v3328
      %v3443 = vadd.f32 %v3013, %v3333
      %v3444 = vadd.f32 %v3014, %v3338
      %v3445 = vadd.f32 %v3015, %v3343
      %v3446 = vadd.f32 %v3016, %v3348
      %v3447 = vadd.f32 %v3017, %v3353
      %v3448 = vadd.f32 %v3018, %v3358
      %v3449 = vadd.f32 %v3019, %v3363
      %v3450 = vadd.f32 %v3020, %v3368
      %v3451 = vadd.f32 %v3021, %v3373
      %v3452 = vadd.f32 %v3022, %v3378
      %v3453 = vadd.f32 %v3023, %v3383
      %v3454 = vadd.f32 %v3024, %v3388
      %v3455 = vadd.f32 %v3025, %v3393
      %v3456 = vadd.f32 %v3026, %v3398
      %v3457 = vadd.f32 %v3027, %v3403
      %v3458 = vadd.f32 %v3028, %v3408
      %v3459 = vadd.f32 %v3029, %v3413
      %v3460 = vadd.f32 %v3030, %v3418
      %v3461 = vadd.f32 %v3031, %v3423
      %v3462 = vld [vmem:[#allocation2 + $0x13] sm:$0xff]
      %v3463 = vld [vmem:[#allocation2 + $0x1b] sm:$0xff]
      %v3464 = vld [vmem:[#allocation2 + $0x23] sm:$0xff]
      %v3465 = vld [vmem:[#allocation2 + $0x2b] sm:$0xff]
      %v3466 = vld [vmem:[#allocation2 + $0x33] sm:$0xff]
      %v3467 = vld [vmem:[#allocation2 + $0x3b] sm:$0xff]
      %v3468 = vld [vmem:[#allocation2 + $0x43] sm:$0xff]
      %v3469 = vld [vmem:[#allocation2 + $0x4b] sm:$0xff]
      %v3470 = vld [vmem:[#allocation2 + $0x53] sm:$0xff]
      %v3471 = vld [vmem:[#allocation2 + $0x5b] sm:$0xff]
      %v3472 = vld [vmem:[#allocation2 + $0x63] sm:$0xff]
      %v3473 = vld [vmem:[#allocation2 + $0x6b] sm:$0xff]
      %v3474 = vld [vmem:[#allocation2 + $0x73] sm:$0xff]
      %v3475 = vld [vmem:[#allocation2 + $0x7b] sm:$0xff]
      %v3476 = vld [vmem:[#allocation2 + $0x83] sm:$0xff]
      %v3477 = vld [vmem:[#allocation2 + $0x8b] sm:$0xff]
      %v3478 = vld [vmem:[#allocation2 + $0x93] sm:$0xff]
      %v3479 = vld [vmem:[#allocation2 + $0x9b] sm:$0xff]
      %v3480 = vld [vmem:[#allocation2 + $0xa3] sm:$0xff]
      %v3481 = vld [vmem:[#allocation2 + $0xab] sm:$0xff]
      %v3482 = vld [vmem:[#allocation2 + $0xb3] sm:$0xff]
      %v3483 = vld [vmem:[#allocation2 + $0xbb] sm:$0xff]
      %v3484 = vld [vmem:[#allocation2 + $0xc3] sm:$0xff]
      %v3485 = vld [vmem:[#allocation2 + $0xcb] sm:$0xff]
      %v3486 = vld [vmem:[#allocation2 + $0xd3] sm:$0xff]
      %v3487 = vld [vmem:[#allocation2 + $0xdb] sm:$0xff]
      %v3488 = vld [vmem:[#allocation2 + $0xe3] sm:$0xff]
      %v3489 = vld [vmem:[#allocation2 + $0xeb] sm:$0xff]
      %v3490 = vld [vmem:[#allocation2 + $0xf3] sm:$0xff]
      %v3491 = vld [vmem:[#allocation2 + $0xfb] sm:$0xff]
      %v3492 = vld [vmem:[#allocation2 + $0x103] sm:$0xff]
      %v3493 = vld [vmem:[#allocation2 + $0x10b] sm:$0xff]
      %v3494 = vld [vmem:[#allocation2 + $0x113] sm:$0xff]
      %v3495 = vld [vmem:[#allocation2 + $0x11b] sm:$0xff]
      %v3496 = vld [vmem:[#allocation2 + $0x123] sm:$0xff]
      %v3497 = vld [vmem:[#allocation2 + $0x12b] sm:$0xff]
      %s3498 = scalar_lea.vmem %s3, 128
      %v3499 = vld [vmem:[%s3498] sm:$0xff]
      %v3500 = vld [vmem:[%s3498 + $0x8] sm:$0xff]
      %v3501 = vld [vmem:[%s3498 + $0x10] sm:$0xff]
      %v3502 = vld [vmem:[%s3498 + $0x18] sm:$0xff]
      %v3504 = vsel %vm357, %v3462, 0
      %v3507 = vsel %vm357, %v3463, 0
      %v3510 = vsel %vm357, %v3464, 0
      %v3513 = vsel %vm357, %v3465, 0
      %v3516 = vsel %vm357, %v3466, 0
      %v3519 = vsel %vm357, %v3467, 0
      %v3522 = vsel %vm357, %v3468, 0
      %v3525 = vsel %vm357, %v3469, 0
      %v3528 = vsel %vm357, %v3470, 0
      %v3531 = vsel %vm357, %v3471, 0
      %v3534 = vsel %vm357, %v3472, 0
      %v3537 = vsel %vm357, %v3473, 0
      %v3540 = vsel %vm357, %v3474, 0
      %v3543 = vsel %vm357, %v3475, 0
      %v3546 = vsel %vm357, %v3476, 0
      %v3549 = vsel %vm357, %v3477, 0
      %v3552 = vsel %vm357, %v3478, 0
      %v3555 = vsel %vm357, %v3479, 0
      %v3558 = vsel %vm357, %v3480, 0
      %v3561 = vsel %vm357, %v3481, 0
      %v3564 = vsel %vm357, %v3482, 0
      %v3567 = vsel %vm357, %v3483, 0
      %v3570 = vsel %vm357, %v3484, 0
      %v3573 = vsel %vm357, %v3485, 0
      %v3576 = vsel %vm357, %v3486, 0
      %v3579 = vsel %vm357, %v3487, 0
      %v3582 = vsel %vm357, %v3488, 0
      %v3585 = vsel %vm357, %v3489, 0
      %v3588 = vsel %vm357, %v3490, 0
      %v3591 = vsel %vm357, %v3491, 0
      %v3594 = vsel %vm357, %v3492, 0
      %v3597 = vsel %vm357, %v3493, 0
      %v3600 = vsel %vm357, %v3494, 0
      %v3603 = vsel %vm357, %v3495, 0
      %v3606 = vsel %vm357, %v3496, 0
      %v3609 = vsel %vm357, %v3497, 0
      %3611 = vmatprep.subr.mxu0 0.0
      %3612 = vmatpush1.msra.mxu0 %v3499
      %3613 = vmatprep.subr.mxu0 0.0
      %3614 = vmatpush1.msra.mxu0 %v3500
      %3615 = vmatprep.subr.mxu0 0.0
      %3616 = vmatpush1.msra.mxu0 %v3501
      %3617 = vmatprep.subr.mxu0 0.0
      %3618 = vmatpush1.msra.mxu0 %v3502
      %3619 = vmatprep.subr.mxu0 0.0
      %3620 = vmatpush1.msra.mxu0 0.0
      %3621 = vmatprep.subr.mxu0 0.0
      %3622 = vmatpush1.msra.mxu0 0.0
      %3623 = vmatprep.subr.mxu0 0.0
      %3624 = vmatpush1.msra.mxu0 0.0
      %3625 = vmatprep.subr.mxu0 0.0
      %3626 = vmatpush1.msra.mxu0 0.0
      %3627 = vmatprep.subr.mxu0 0.0
      %3628 = vmatpush1.msra.mxu0 0.0
      %3629 = vmatprep.subr.mxu0 0.0
      %3630 = vmatpush1.msra.mxu0 0.0
      %3631 = vmatprep.subr.mxu0 0.0
      %3632 = vmatpush1.msra.mxu0 0.0
      %3633 = vmatprep.subr.mxu0 0.0
      %3634 = vmatpush1.msra.mxu0 0.0
      %3635 = vmatprep.subr.mxu0 0.0
      %3636 = vmatpush1.msra.mxu0 0.0
      %3637 = vmatprep.subr.mxu0 0.0
      %3638 = vmatpush1.msra.mxu0 0.0
      %3639 = vmatprep.subr.mxu0 0.0
      %3640 = vmatpush1.msra.mxu0 0.0
      %3641 = vmatprep.subr.mxu0 0.0
      %3642 = vmatpush1.msra.mxu0 0.0
      %3643 = vmatprep.subr.mxu0 0.0
      %3644 = vmatpush1.msra.mxu0 0.0
      %3645 = vmatprep.subr.mxu0 0.0
      %3646 = vmatpush1.msra.mxu0 0.0
      %3647 = vmatprep.subr.mxu0 0.0
      %3648 = vmatpush1.msra.mxu0 0.0
      %3649 = vmatprep.subr.mxu0 0.0
      %3650 = vmatpush1.msra.mxu0 0.0
      %3651 = vmatprep.subr.mxu0 0.0
      %3652 = vmatpush1.msra.mxu0 0.0
      %3653 = vmatprep.subr.mxu0 0.0
      %3654 = vmatpush1.msra.mxu0 0.0
      %3655 = vmatprep.subr.mxu0 0.0
      %3656 = vmatpush1.msra.mxu0 0.0
      %3657 = vmatprep.subr.mxu0 0.0
      %3658 = vmatpush1.msra.mxu0 0.0
      %3659 = vmatprep.subr.mxu0 0.0
      %3660 = vmatpush1.msra.mxu0 0.0
      %3661 = vmatprep.subr.mxu0 0.0
      %3662 = vmatpush1.msra.mxu0 0.0
      %3663 = vmatprep.subr.mxu0 0.0
      %3664 = vmatpush1.msra.mxu0 0.0
      %3665 = vmatprep.subr.mxu0 0.0
      %3666 = vmatpush1.msra.mxu0 0.0
      %3667 = vmatprep.subr.mxu0 0.0
      %3668 = vmatpush1.msra.mxu0 0.0
      %3669 = vmatprep.subr.mxu0 0.0
      %3670 = vmatpush1.msra.mxu0 0.0
      %3671 = vmatprep.subr.mxu0 0.0
      %3672 = vmatpush1.msra.mxu0 0.0
      %3673 = vmatprep.subr.mxu0 0.0
      %3674 = vmatpush1.msra.mxu0 0.0
      %3675 = vmatprep.mubr.f32.mxu0 0.0
      %3676 = vmatmul.mubr.f32.gmra.mrb[0].mxu0 %v3504
      %v3677 = vpop.f32.mrb[0].mxu0
      %v3678 = vadd.f32 0.0, %v3677
      %v3679 = vpop.f32.mrb[0].mxu0
      %3680 = vmatprep.mubr.f32.mxu0 0.0
      %3681 = vmatmul.mubr.f32.gmra.mrb[0].mxu0 %v3507
      %v3682 = vpop.f32.mrb[0].mxu0
      %v3683 = vadd.f32 0.0, %v3682
      %v3684 = vpop.f32.mrb[0].mxu0
      %3685 = vmatprep.mubr.f32.mxu0 0.0
      %3686 = vmatmul.mubr.f32.gmra.mrb[0].mxu0 %v3510
      %v3687 = vpop.f32.mrb[0].mxu0
      %v3688 = vadd.f32 0.0, %v3687
      %v3689 = vpop.f32.mrb[0].mxu0
      %3690 = vmatprep.mubr.f32.mxu0 0.0
      %3691 = vmatmul.mubr.f32.gmra.mrb[0].mxu0 %v3513
      %v3692 = vpop.f32.mrb[0].mxu0
      %v3693 = vadd.f32 0.0, %v3692
      %v3694 = vpop.f32.mrb[0].mxu0
      %3695 = vmatprep.mubr.f32.mxu0 0.0
      %3696 = vmatmul.mubr.f32.gmra.mrb[0].mxu0 %v3516
      %v3697 = vpop.f32.mrb[0].mxu0
      %v3698 = vadd.f32 0.0, %v3697
      %v3699 = vpop.f32.mrb[0].mxu0
      %3700 = vmatprep.mubr.f32.mxu0 0.0
      %3701 = vmatmul.mubr.f32.gmra.mrb[0].mxu0 %v3519
      %v3702 = vpop.f32.mrb[0].mxu0
      %v3703 = vadd.f32 0.0, %v3702
      %v3704 = vpop.f32.mrb[0].mxu0
      %3705 = vmatprep.mubr.f32.mxu0 0.0
      %3706 = vmatmul.mubr.f32.gmra.mrb[0].mxu0 %v3522
      %v3707 = vpop.f32.mrb[0].mxu0
      %v3708 = vadd.f32 0.0, %v3707
      %v3709 = vpop.f32.mrb[0].mxu0
      %3710 = vmatprep.mubr.f32.mxu0 0.0
      %3711 = vmatmul.mubr.f32.gmra.mrb[0].mxu0 %v3525
      %v3712 = vpop.f32.mrb[0].mxu0
      %v3713 = vadd.f32 0.0, %v3712
      %v3714 = vpop.f32.mrb[0].mxu0
      %3715 = vmatprep.mubr.f32.mxu0 0.0
      %3716 = vmatmul.mubr.f32.gmra.mrb[0].mxu0 %v3528
      %v3717 = vpop.f32.mrb[0].mxu0
      %v3718 = vadd.f32 0.0, %v3717
      %v3719 = vpop.f32.mrb[0].mxu0
      %3720 = vmatprep.mubr.f32.mxu0 0.0
      %3721 = vmatmul.mubr.f32.gmra.mrb[0].mxu0 %v3531
      %v3722 = vpop.f32.mrb[0].mxu0
      %v3723 = vadd.f32 0.0, %v3722
      %v3724 = vpop.f32.mrb[0].mxu0
      %3725 = vmatprep.mubr.f32.mxu0 0.0
      %3726 = vmatmul.mubr.f32.gmra.mrb[0].mxu0 %v3534
      %v3727 = vpop.f32.mrb[0].mxu0
      %v3728 = vadd.f32 0.0, %v3727
      %v3729 = vpop.f32.mrb[0].mxu0
      %3730 = vmatprep.mubr.f32.mxu0 0.0
      %3731 = vmatmul.mubr.f32.gmra.mrb[0].mxu0 %v3537
      %v3732 = vpop.f32.mrb[0].mxu0
      %v3733 = vadd.f32 0.0, %v3732
      %v3734 = vpop.f32.mrb[0].mxu0
      %3735 = vmatprep.mubr.f32.mxu0 0.0
      %3736 = vmatmul.mubr.f32.gmra.mrb[0].mxu0 %v3540
      %v3737 = vpop.f32.mrb[0].mxu0
      %v3738 = vadd.f32 0.0, %v3737
      %v3739 = vpop.f32.mrb[0].mxu0
      %3740 = vmatprep.mubr.f32.mxu0 0.0
      %3741 = vmatmul.mubr.f32.gmra.mrb[0].mxu0 %v3543
      %v3742 = vpop.f32.mrb[0].mxu0
      %v3743 = vadd.f32 0.0, %v3742
      %v3744 = vpop.f32.mrb[0].mxu0
      %3745 = vmatprep.mubr.f32.mxu0 0.0
      %3746 = vmatmul.mubr.f32.gmra.mrb[0].mxu0 %v3546
      %v3747 = vpop.f32.mrb[0].mxu0
      %v3748 = vadd.f32 0.0, %v3747
      %v3749 = vpop.f32.mrb[0].mxu0
      %3750 = vmatprep.mubr.f32.mxu0 0.0
      %3751 = vmatmul.mubr.f32.gmra.mrb[0].mxu0 %v3549
      %v3752 = vpop.f32.mrb[0].mxu0
      %v3753 = vadd.f32 0.0, %v3752
      %v3754 = vpop.f32.mrb[0].mxu0
      %3755 = vmatprep.mubr.f32.mxu0 0.0
      %3756 = vmatmul.mubr.f32.gmra.mrb[0].mxu0 %v3552
      %v3757 = vpop.f32.mrb[0].mxu0
      %v3758 = vadd.f32 0.0, %v3757
      %v3759 = vpop.f32.mrb[0].mxu0
      %3760 = vmatprep.mubr.f32.mxu0 0.0
      %3761 = vmatmul.mubr.f32.gmra.mrb[0].mxu0 %v3555
      %v3762 = vpop.f32.mrb[0].mxu0
      %v3763 = vadd.f32 0.0, %v3762
      %v3764 = vpop.f32.mrb[0].mxu0
      %3765 = vmatprep.mubr.f32.mxu0 0.0
      %3766 = vmatmul.mubr.f32.gmra.mrb[0].mxu0 %v3558
      %v3767 = vpop.f32.mrb[0].mxu0
      %v3768 = vadd.f32 0.0, %v3767
      %v3769 = vpop.f32.mrb[0].mxu0
      %3770 = vmatprep.mubr.f32.mxu0 0.0
      %3771 = vmatmul.mubr.f32.gmra.mrb[0].mxu0 %v3561
      %v3772 = vpop.f32.mrb[0].mxu0
      %v3773 = vadd.f32 0.0, %v3772
      %v3774 = vpop.f32.mrb[0].mxu0
      %3775 = vmatprep.mubr.f32.mxu0 0.0
      %3776 = vmatmul.mubr.f32.gmra.mrb[0].mxu0 %v3564
      %v3777 = vpop.f32.mrb[0].mxu0
      %v3778 = vadd.f32 0.0, %v3777
      %v3779 = vpop.f32.mrb[0].mxu0
      %3780 = vmatprep.mubr.f32.mxu0 0.0
      %3781 = vmatmul.mubr.f32.gmra.mrb[0].mxu0 %v3567
      %v3782 = vpop.f32.mrb[0].mxu0
      %v3783 = vadd.f32 0.0, %v3782
      %v3784 = vpop.f32.mrb[0].mxu0
      %3785 = vmatprep.mubr.f32.mxu0 0.0
      %3786 = vmatmul.mubr.f32.gmra.mrb[0].mxu0 %v3570
      %v3787 = vpop.f32.mrb[0].mxu0
      %v3788 = vadd.f32 0.0, %v3787
      %v3789 = vpop.f32.mrb[0].mxu0
      %3790 = vmatprep.mubr.f32.mxu0 0.0
      %3791 = vmatmul.mubr.f32.gmra.mrb[0].mxu0 %v3573
      %v3792 = vpop.f32.mrb[0].mxu0
      %v3793 = vadd.f32 0.0, %v3792
      %v3794 = vpop.f32.mrb[0].mxu0
      %3795 = vmatprep.mubr.f32.mxu0 0.0
      %3796 = vmatmul.mubr.f32.gmra.mrb[0].mxu0 %v3576
      %v3797 = vpop.f32.mrb[0].mxu0
      %v3798 = vadd.f32 0.0, %v3797
      %v3799 = vpop.f32.mrb[0].mxu0
      %3800 = vmatprep.mubr.f32.mxu0 0.0
      %3801 = vmatmul.mubr.f32.gmra.mrb[0].mxu0 %v3579
      %v3802 = vpop.f32.mrb[0].mxu0
      %v3803 = vadd.f32 0.0, %v3802
      %v3804 = vpop.f32.mrb[0].mxu0
      %3805 = vmatprep.mubr.f32.mxu0 0.0
      %3806 = vmatmul.mubr.f32.gmra.mrb[0].mxu0 %v3582
      %v3807 = vpop.f32.mrb[0].mxu0
      %v3808 = vadd.f32 0.0, %v3807
      %v3809 = vpop.f32.mrb[0].mxu0
      %3810 = vmatprep.mubr.f32.mxu0 0.0
      %3811 = vmatmul.mubr.f32.gmra.mrb[0].mxu0 %v3585
      %v3812 = vpop.f32.mrb[0].mxu0
      %v3813 = vadd.f32 0.0, %v3812
      %v3814 = vpop.f32.mrb[0].mxu0
      %3815 = vmatprep.mubr.f32.mxu0 0.0
      %3816 = vmatmul.mubr.f32.gmra.mrb[0].mxu0 %v3588
      %v3817 = vpop.f32.mrb[0].mxu0
      %v3818 = vadd.f32 0.0, %v3817
      %v3819 = vpop.f32.mrb[0].mxu0
      %3820 = vmatprep.mubr.f32.mxu0 0.0
      %3821 = vmatmul.mubr.f32.gmra.mrb[0].mxu0 %v3591
      %v3822 = vpop.f32.mrb[0].mxu0
      %v3823 = vadd.f32 0.0, %v3822
      %v3824 = vpop.f32.mrb[0].mxu0
      %3825 = vmatprep.mubr.f32.mxu0 0.0
      %3826 = vmatmul.mubr.f32.gmra.mrb[0].mxu0 %v3594
      %v3827 = vpop.f32.mrb[0].mxu0
      %v3828 = vadd.f32 0.0, %v3827
      %v3829 = vpop.f32.mrb[0].mxu0
      %3830 = vmatprep.mubr.f32.mxu0 0.0
      %3831 = vmatmul.mubr.f32.gmra.mrb[0].mxu0 %v3597
      %v3832 = vpop.f32.mrb[0].mxu0
      %v3833 = vadd.f32 0.0, %v3832
      %v3834 = vpop.f32.mrb[0].mxu0
      %3835 = vmatprep.mubr.f32.mxu0 0.0
      %3836 = vmatmul.mubr.f32.gmra.mrb[0].mxu0 %v3600
      %v3837 = vpop.f32.mrb[0].mxu0
      %v3838 = vadd.f32 0.0, %v3837
      %v3839 = vpop.f32.mrb[0].mxu0
      %3840 = vmatprep.mubr.f32.mxu0 0.0
      %3841 = vmatmul.mubr.f32.gmra.mrb[0].mxu0 %v3603
      %v3842 = vpop.f32.mrb[0].mxu0
      %v3843 = vadd.f32 0.0, %v3842
      %v3844 = vpop.f32.mrb[0].mxu0
      %3845 = vmatprep.mubr.f32.mxu0 0.0
      %3846 = vmatmul.mubr.f32.gmra.mrb[0].mxu0 %v3606
      %v3847 = vpop.f32.mrb[0].mxu0
      %v3848 = vadd.f32 0.0, %v3847
      %v3849 = vpop.f32.mrb[0].mxu0
      %3850 = vmatprep.mubr.f32.mxu0 0.0
      %3851 = vmatmul.mubr.f32.gmra.mrb[0].mxu0 %v3609
      %v3852 = vpop.f32.mrb[0].mxu0
      %v3853 = vadd.f32 0.0, %v3852
      %v3854 = vpop.f32.mrb[0].mxu0
      %3855 = vdwg.mxu0
      %v3856 = vadd.f32 %v3426, %v3678
      %v3857 = vadd.f32 %v3427, %v3683
      %v3858 = vadd.f32 %v3428, %v3688
      %v3859 = vadd.f32 %v3429, %v3693
      %v3860 = vadd.f32 %v3430, %v3698
      %v3861 = vadd.f32 %v3431, %v3703
      %v3862 = vadd.f32 %v3432, %v3708
      %v3863 = vadd.f32 %v3433, %v3713
      %v3864 = vadd.f32 %v3434, %v3718
      %v3865 = vadd.f32 %v3435, %v3723
      %v3866 = vadd.f32 %v3436, %v3728
      %v3867 = vadd.f32 %v3437, %v3733
      %v3868 = vadd.f32 %v3438, %v3738
      %v3869 = vadd.f32 %v3439, %v3743
      %v3870 = vadd.f32 %v3440, %v3748
      %v3871 = vadd.f32 %v3441, %v3753
      %v3872 = vadd.f32 %v3442, %v3758
      %v3873 = vadd.f32 %v3443, %v3763
      %v3874 = vadd.f32 %v3444, %v3768
      %v3875 = vadd.f32 %v3445, %v3773
      %v3876 = vadd.f32 %v3446, %v3778
      %v3877 = vadd.f32 %v3447, %v3783
      %v3878 = vadd.f32 %v3448, %v3788
      %v3879 = vadd.f32 %v3449, %v3793
      %v3880 = vadd.f32 %v3450, %v3798
      %v3881 = vadd.f32 %v3451, %v3803
      %v3882 = vadd.f32 %v3452, %v3808
      %v3883 = vadd.f32 %v3453, %v3813
      %v3884 = vadd.f32 %v3454, %v3818
      %v3885 = vadd.f32 %v3455, %v3823
      %v3886 = vadd.f32 %v3456, %v3828
      %v3887 = vadd.f32 %v3457, %v3833
      %v3888 = vadd.f32 %v3458, %v3838
      %v3889 = vadd.f32 %v3459, %v3843
      %v3890 = vadd.f32 %v3460, %v3848
      %v3891 = vadd.f32 %v3461, %v3853
      %v3892 = vld [vmem:[#allocation2 + $0x14] sm:$0xff]
      %v3893 = vld [vmem:[#allocation2 + $0x1c] sm:$0xff]
      %v3894 = vld [vmem:[#allocation2 + $0x24] sm:$0xff]
      %v3895 = vld [vmem:[#allocation2 + $0x2c] sm:$0xff]
      %v3896 = vld [vmem:[#allocation2 + $0x34] sm:$0xff]
      %v3897 = vld [vmem:[#allocation2 + $0x3c] sm:$0xff]
      %v3898 = vld [vmem:[#allocation2 + $0x44] sm:$0xff]
      %v3899 = vld [vmem:[#allocation2 + $0x4c] sm:$0xff]
      %v3900 = vld [vmem:[#allocation2 + $0x54] sm:$0xff]
      %v3901 = vld [vmem:[#allocation2 + $0x5c] sm:$0xff]
      %v3902 = vld [vmem:[#allocation2 + $0x64] sm:$0xff]
      %v3903 = vld [vmem:[#allocation2 + $0x6c] sm:$0xff]
      %v3904 = vld [vmem:[#allocation2 + $0x74] sm:$0xff]
      %v3905 = vld [vmem:[#allocation2 + $0x7c] sm:$0xff]
      %v3906 = vld [vmem:[#allocation2 + $0x84] sm:$0xff]
      %v3907 = vld [vmem:[#allocation2 + $0x8c] sm:$0xff]
      %v3908 = vld [vmem:[#allocation2 + $0x94] sm:$0xff]
      %v3909 = vld [vmem:[#allocation2 + $0x9c] sm:$0xff]
      %v3910 = vld [vmem:[#allocation2 + $0xa4] sm:$0xff]
      %v3911 = vld [vmem:[#allocation2 + $0xac] sm:$0xff]
      %v3912 = vld [vmem:[#allocation2 + $0xb4] sm:$0xff]
      %v3913 = vld [vmem:[#allocation2 + $0xbc] sm:$0xff]
      %v3914 = vld [vmem:[#allocation2 + $0xc4] sm:$0xff]
      %v3915 = vld [vmem:[#allocation2 + $0xcc] sm:$0xff]
      %v3916 = vld [vmem:[#allocation2 + $0xd4] sm:$0xff]
      %v3917 = vld [vmem:[#allocation2 + $0xdc] sm:$0xff]
      %v3918 = vld [vmem:[#allocation2 + $0xe4] sm:$0xff]
      %v3919 = vld [vmem:[#allocation2 + $0xec] sm:$0xff]
      %v3920 = vld [vmem:[#allocation2 + $0xf4] sm:$0xff]
      %v3921 = vld [vmem:[#allocation2 + $0xfc] sm:$0xff]
      %v3922 = vld [vmem:[#allocation2 + $0x104] sm:$0xff]
      %v3923 = vld [vmem:[#allocation2 + $0x10c] sm:$0xff]
      %v3924 = vld [vmem:[#allocation2 + $0x114] sm:$0xff]
      %v3925 = vld [vmem:[#allocation2 + $0x11c] sm:$0xff]
      %v3926 = vld [vmem:[#allocation2 + $0x124] sm:$0xff]
      %v3927 = vld [vmem:[#allocation2 + $0x12c] sm:$0xff]
      %s3928 = scalar_lea.vmem %s3, 160
      %v3929 = vld [vmem:[%s3928] sm:$0xff]
      %v3930 = vld [vmem:[%s3928 + $0x8] sm:$0xff]
      %v3931 = vld [vmem:[%s3928 + $0x10] sm:$0xff]
      %v3932 = vld [vmem:[%s3928 + $0x18] sm:$0xff]
      %v3934 = vsel %vm357, %v3892, 0
      %v3937 = vsel %vm357, %v3893, 0
      %v3940 = vsel %vm357, %v3894, 0
      %v3943 = vsel %vm357, %v3895, 0
      %v3946 = vsel %vm357, %v3896, 0
      %v3949 = vsel %vm357, %v3897, 0
      %v3952 = vsel %vm357, %v3898, 0
      %v3955 = vsel %vm357, %v3899, 0
      %v3958 = vsel %vm357, %v3900, 0
      %v3961 = vsel %vm357, %v3901, 0
      %v3964 = vsel %vm357, %v3902, 0
      %v3967 = vsel %vm357, %v3903, 0
      %v3970 = vsel %vm357, %v3904, 0
      %v3973 = vsel %vm357, %v3905, 0
      %v3976 = vsel %vm357, %v3906, 0
      %v3979 = vsel %vm357, %v3907, 0
      %v3982 = vsel %vm357, %v3908, 0
      %v3985 = vsel %vm357, %v3909, 0
      %v3988 = vsel %vm357, %v3910, 0
      %v3991 = vsel %vm357, %v3911, 0
      %v3994 = vsel %vm357, %v3912, 0
      %v3997 = vsel %vm357, %v3913, 0
      %v4000 = vsel %vm357, %v3914, 0
      %v4003 = vsel %vm357, %v3915, 0
      %v4006 = vsel %vm357, %v3916, 0
      %v4009 = vsel %vm357, %v3917, 0
      %v4012 = vsel %vm357, %v3918, 0
      %v4015 = vsel %vm357, %v3919, 0
      %v4018 = vsel %vm357, %v3920, 0
      %v4021 = vsel %vm357, %v3921, 0
      %v4024 = vsel %vm357, %v3922, 0
      %v4027 = vsel %vm357, %v3923, 0
      %v4030 = vsel %vm357, %v3924, 0
      %v4033 = vsel %vm357, %v3925, 0
      %v4036 = vsel %vm357, %v3926, 0
      %v4039 = vsel %vm357, %v3927, 0
      %4041 = vmatprep.subr.mxu0 0.0
      %4042 = vmatpush1.msra.mxu0 %v3929
      %4043 = vmatprep.subr.mxu0 0.0
      %4044 = vmatpush1.msra.mxu0 %v3930
      %4045 = vmatprep.subr.mxu0 0.0
      %4046 = vmatpush1.msra.mxu0 %v3931
      %4047 = vmatprep.subr.mxu0 0.0
      %4048 = vmatpush1.msra.mxu0 %v3932
      %4049 = vmatprep.subr.mxu0 0.0
      %4050 = vmatpush1.msra.mxu0 0.0
      %4051 = vmatprep.subr.mxu0 0.0
      %4052 = vmatpush1.msra.mxu0 0.0
      %4053 = vmatprep.subr.mxu0 0.0
      %4054 = vmatpush1.msra.mxu0 0.0
      %4055 = vmatprep.subr.mxu0 0.0
      %4056 = vmatpush1.msra.mxu0 0.0
      %4057 = vmatprep.subr.mxu0 0.0
      %4058 = vmatpush1.msra.mxu0 0.0
      %4059 = vmatprep.subr.mxu0 0.0
      %4060 = vmatpush1.msra.mxu0 0.0
      %4061 = vmatprep.subr.mxu0 0.0
      %4062 = vmatpush1.msra.mxu0 0.0
      %4063 = vmatprep.subr.mxu0 0.0
      %4064 = vmatpush1.msra.mxu0 0.0
      %4065 = vmatprep.subr.mxu0 0.0
      %4066 = vmatpush1.msra.mxu0 0.0
      %4067 = vmatprep.subr.mxu0 0.0
      %4068 = vmatpush1.msra.mxu0 0.0
      %4069 = vmatprep.subr.mxu0 0.0
      %4070 = vmatpush1.msra.mxu0 0.0
      %4071 = vmatprep.subr.mxu0 0.0
      %4072 = vmatpush1.msra.mxu0 0.0
      %4073 = vmatprep.subr.mxu0 0.0
      %4074 = vmatpush1.msra.mxu0 0.0
      %4075 = vmatprep.subr.mxu0 0.0
      %4076 = vmatpush1.msra.mxu0 0.0
      %4077 = vmatprep.subr.mxu0 0.0
      %4078 = vmatpush1.msra.mxu0 0.0
      %4079 = vmatprep.subr.mxu0 0.0
      %4080 = vmatpush1.msra.mxu0 0.0
      %4081 = vmatprep.subr.mxu0 0.0
      %4082 = vmatpush1.msra.mxu0 0.0
      %4083 = vmatprep.subr.mxu0 0.0
      %4084 = vmatpush1.msra.mxu0 0.0
      %4085 = vmatprep.subr.mxu0 0.0
      %4086 = vmatpush1.msra.mxu0 0.0
      %4087 = vmatprep.subr.mxu0 0.0
      %4088 = vmatpush1.msra.mxu0 0.0
      %4089 = vmatprep.subr.mxu0 0.0
      %4090 = vmatpush1.msra.mxu0 0.0
      %4091 = vmatprep.subr.mxu0 0.0
      %4092 = vmatpush1.msra.mxu0 0.0
      %4093 = vmatprep.subr.mxu0 0.0
      %4094 = vmatpush1.msra.mxu0 0.0
      %4095 = vmatprep.subr.mxu0 0.0
      %4096 = vmatpush1.msra.mxu0 0.0
      %4097 = vmatprep.subr.mxu0 0.0
      %4098 = vmatpush1.msra.mxu0 0.0
      %4099 = vmatprep.subr.mxu0 0.0
      %4100 = vmatpush1.msra.mxu0 0.0
      %4101 = vmatprep.subr.mxu0 0.0
      %4102 = vmatpush1.msra.mxu0 0.0
      %4103 = vmatprep.subr.mxu0 0.0
      %4104 = vmatpush1.msra.mxu0 0.0
      %4105 = vmatprep.mubr.f32.mxu0 0.0
      %4106 = vmatmul.mubr.f32.gmra.mrb[0].mxu0 %v3934
      %v4107 = vpop.f32.mrb[0].mxu0
      %v4108 = vadd.f32 0.0, %v4107
      %v4109 = vpop.f32.mrb[0].mxu0
      %4110 = vmatprep.mubr.f32.mxu0 0.0
      %4111 = vmatmul.mubr.f32.gmra.mrb[0].mxu0 %v3937
      %v4112 = vpop.f32.mrb[0].mxu0
      %v4113 = vadd.f32 0.0, %v4112
      %v4114 = vpop.f32.mrb[0].mxu0
      %4115 = vmatprep.mubr.f32.mxu0 0.0
      %4116 = vmatmul.mubr.f32.gmra.mrb[0].mxu0 %v3940
      %v4117 = vpop.f32.mrb[0].mxu0
      %v4118 = vadd.f32 0.0, %v4117
      %v4119 = vpop.f32.mrb[0].mxu0
      %4120 = vmatprep.mubr.f32.mxu0 0.0
      %4121 = vmatmul.mubr.f32.gmra.mrb[0].mxu0 %v3943
      %v4122 = vpop.f32.mrb[0].mxu0
      %v4123 = vadd.f32 0.0, %v4122
      %v4124 = vpop.f32.mrb[0].mxu0
      %4125 = vmatprep.mubr.f32.mxu0 0.0
      %4126 = vmatmul.mubr.f32.gmra.mrb[0].mxu0 %v3946
      %v4127 = vpop.f32.mrb[0].mxu0
      %v4128 = vadd.f32 0.0, %v4127
      %v4129 = vpop.f32.mrb[0].mxu0
      %4130 = vmatprep.mubr.f32.mxu0 0.0
      %4131 = vmatmul.mubr.f32.gmra.mrb[0].mxu0 %v3949
      %v4132 = vpop.f32.mrb[0].mxu0
      %v4133 = vadd.f32 0.0, %v4132
      %v4134 = vpop.f32.mrb[0].mxu0
      %4135 = vmatprep.mubr.f32.mxu0 0.0
      %4136 = vmatmul.mubr.f32.gmra.mrb[0].mxu0 %v3952
      %v4137 = vpop.f32.mrb[0].mxu0
      %v4138 = vadd.f32 0.0, %v4137
      %v4139 = vpop.f32.mrb[0].mxu0
      %4140 = vmatprep.mubr.f32.mxu0 0.0
      %4141 = vmatmul.mubr.f32.gmra.mrb[0].mxu0 %v3955
      %v4142 = vpop.f32.mrb[0].mxu0
      %v4143 = vadd.f32 0.0, %v4142
      %v4144 = vpop.f32.mrb[0].mxu0
      %4145 = vmatprep.mubr.f32.mxu0 0.0
      %4146 = vmatmul.mubr.f32.gmra.mrb[0].mxu0 %v3958
      %v4147 = vpop.f32.mrb[0].mxu0
      %v4148 = vadd.f32 0.0, %v4147
      %v4149 = vpop.f32.mrb[0].mxu0
      %4150 = vmatprep.mubr.f32.mxu0 0.0
      %4151 = vmatmul.mubr.f32.gmra.mrb[0].mxu0 %v3961
      %v4152 = vpop.f32.mrb[0].mxu0
      %v4153 = vadd.f32 0.0, %v4152
      %v4154 = vpop.f32.mrb[0].mxu0
      %4155 = vmatprep.mubr.f32.mxu0 0.0
      %4156 = vmatmul.mubr.f32.gmra.mrb[0].mxu0 %v3964
      %v4157 = vpop.f32.mrb[0].mxu0
      %v4158 = vadd.f32 0.0, %v4157
      %v4159 = vpop.f32.mrb[0].mxu0
      %4160 = vmatprep.mubr.f32.mxu0 0.0
      %4161 = vmatmul.mubr.f32.gmra.mrb[0].mxu0 %v3967
      %v4162 = vpop.f32.mrb[0].mxu0
      %v4163 = vadd.f32 0.0, %v4162
      %v4164 = vpop.f32.mrb[0].mxu0
      %4165 = vmatprep.mubr.f32.mxu0 0.0
      %4166 = vmatmul.mubr.f32.gmra.mrb[0].mxu0 %v3970
      %v4167 = vpop.f32.mrb[0].mxu0
      %v4168 = vadd.f32 0.0, %v4167
      %v4169 = vpop.f32.mrb[0].mxu0
      %4170 = vmatprep.mubr.f32.mxu0 0.0
      %4171 = vmatmul.mubr.f32.gmra.mrb[0].mxu0 %v3973
      %v4172 = vpop.f32.mrb[0].mxu0
      %v4173 = vadd.f32 0.0, %v4172
      %v4174 = vpop.f32.mrb[0].mxu0
      %4175 = vmatprep.mubr.f32.mxu0 0.0
      %4176 = vmatmul.mubr.f32.gmra.mrb[0].mxu0 %v3976
      %v4177 = vpop.f32.mrb[0].mxu0
      %v4178 = vadd.f32 0.0, %v4177
      %v4179 = vpop.f32.mrb[0].mxu0
      %4180 = vmatprep.mubr.f32.mxu0 0.0
      %4181 = vmatmul.mubr.f32.gmra.mrb[0].mxu0 %v3979
      %v4182 = vpop.f32.mrb[0].mxu0
      %v4183 = vadd.f32 0.0, %v4182
      %v4184 = vpop.f32.mrb[0].mxu0
      %4185 = vmatprep.mubr.f32.mxu0 0.0
      %4186 = vmatmul.mubr.f32.gmra.mrb[0].mxu0 %v3982
      %v4187 = vpop.f32.mrb[0].mxu0
      %v4188 = vadd.f32 0.0, %v4187
      %v4189 = vpop.f32.mrb[0].mxu0
      %4190 = vmatprep.mubr.f32.mxu0 0.0
      %4191 = vmatmul.mubr.f32.gmra.mrb[0].mxu0 %v3985
      %v4192 = vpop.f32.mrb[0].mxu0
      %v4193 = vadd.f32 0.0, %v4192
      %v4194 = vpop.f32.mrb[0].mxu0
      %4195 = vmatprep.mubr.f32.mxu0 0.0
      %4196 = vmatmul.mubr.f32.gmra.mrb[0].mxu0 %v3988
      %v4197 = vpop.f32.mrb[0].mxu0
      %v4198 = vadd.f32 0.0, %v4197
      %v4199 = vpop.f32.mrb[0].mxu0
      %4200 = vmatprep.mubr.f32.mxu0 0.0
      %4201 = vmatmul.mubr.f32.gmra.mrb[0].mxu0 %v3991
      %v4202 = vpop.f32.mrb[0].mxu0
      %v4203 = vadd.f32 0.0, %v4202
      %v4204 = vpop.f32.mrb[0].mxu0
      %4205 = vmatprep.mubr.f32.mxu0 0.0
      %4206 = vmatmul.mubr.f32.gmra.mrb[0].mxu0 %v3994
      %v4207 = vpop.f32.mrb[0].mxu0
      %v4208 = vadd.f32 0.0, %v4207
      %v4209 = vpop.f32.mrb[0].mxu0
      %4210 = vmatprep.mubr.f32.mxu0 0.0
      %4211 = vmatmul.mubr.f32.gmra.mrb[0].mxu0 %v3997
      %v4212 = vpop.f32.mrb[0].mxu0
      %v4213 = vadd.f32 0.0, %v4212
      %v4214 = vpop.f32.mrb[0].mxu0
      %4215 = vmatprep.mubr.f32.mxu0 0.0
      %4216 = vmatmul.mubr.f32.gmra.mrb[0].mxu0 %v4000
      %v4217 = vpop.f32.mrb[0].mxu0
      %v4218 = vadd.f32 0.0, %v4217
      %v4219 = vpop.f32.mrb[0].mxu0
      %4220 = vmatprep.mubr.f32.mxu0 0.0
      %4221 = vmatmul.mubr.f32.gmra.mrb[0].mxu0 %v4003
      %v4222 = vpop.f32.mrb[0].mxu0
      %v4223 = vadd.f32 0.0, %v4222
      %v4224 = vpop.f32.mrb[0].mxu0
      %4225 = vmatprep.mubr.f32.mxu0 0.0
      %4226 = vmatmul.mubr.f32.gmra.mrb[0].mxu0 %v4006
      %v4227 = vpop.f32.mrb[0].mxu0
      %v4228 = vadd.f32 0.0, %v4227
      %v4229 = vpop.f32.mrb[0].mxu0
      %4230 = vmatprep.mubr.f32.mxu0 0.0
      %4231 = vmatmul.mubr.f32.gmra.mrb[0].mxu0 %v4009
      %v4232 = vpop.f32.mrb[0].mxu0
      %v4233 = vadd.f32 0.0, %v4232
      %v4234 = vpop.f32.mrb[0].mxu0
      %4235 = vmatprep.mubr.f32.mxu0 0.0
      %4236 = vmatmul.mubr.f32.gmra.mrb[0].mxu0 %v4012
      %v4237 = vpop.f32.mrb[0].mxu0
      %v4238 = vadd.f32 0.0, %v4237
      %v4239 = vpop.f32.mrb[0].mxu0
      %4240 = vmatprep.mubr.f32.mxu0 0.0
      %4241 = vmatmul.mubr.f32.gmra.mrb[0].mxu0 %v4015
      %v4242 = vpop.f32.mrb[0].mxu0
      %v4243 = vadd.f32 0.0, %v4242
      %v4244 = vpop.f32.mrb[0].mxu0
      %4245 = vmatprep.mubr.f32.mxu0 0.0
      %4246 = vmatmul.mubr.f32.gmra.mrb[0].mxu0 %v4018
      %v4247 = vpop.f32.mrb[0].mxu0
      %v4248 = vadd.f32 0.0, %v4247
      %v4249 = vpop.f32.mrb[0].mxu0
      %4250 = vmatprep.mubr.f32.mxu0 0.0
      %4251 = vmatmul.mubr.f32.gmra.mrb[0].mxu0 %v4021
      %v4252 = vpop.f32.mrb[0].mxu0
      %v4253 = vadd.f32 0.0, %v4252
      %v4254 = vpop.f32.mrb[0].mxu0
      %4255 = vmatprep.mubr.f32.mxu0 0.0
      %4256 = vmatmul.mubr.f32.gmra.mrb[0].mxu0 %v4024
      %v4257 = vpop.f32.mrb[0].mxu0
      %v4258 = vadd.f32 0.0, %v4257
      %v4259 = vpop.f32.mrb[0].mxu0
      %4260 = vmatprep.mubr.f32.mxu0 0.0
      %4261 = vmatmul.mubr.f32.gmra.mrb[0].mxu0 %v4027
      %v4262 = vpop.f32.mrb[0].mxu0
      %v4263 = vadd.f32 0.0, %v4262
      %v4264 = vpop.f32.mrb[0].mxu0
      %4265 = vmatprep.mubr.f32.mxu0 0.0
      %4266 = vmatmul.mubr.f32.gmra.mrb[0].mxu0 %v4030
      %v4267 = vpop.f32.mrb[0].mxu0
      %v4268 = vadd.f32 0.0, %v4267
      %v4269 = vpop.f32.mrb[0].mxu0
      %4270 = vmatprep.mubr.f32.mxu0 0.0
      %4271 = vmatmul.mubr.f32.gmra.mrb[0].mxu0 %v4033
      %v4272 = vpop.f32.mrb[0].mxu0
      %v4273 = vadd.f32 0.0, %v4272
      %v4274 = vpop.f32.mrb[0].mxu0
      %4275 = vmatprep.mubr.f32.mxu0 0.0
      %4276 = vmatmul.mubr.f32.gmra.mrb[0].mxu0 %v4036
      %v4277 = vpop.f32.mrb[0].mxu0
      %v4278 = vadd.f32 0.0, %v4277
      %v4279 = vpop.f32.mrb[0].mxu0
      %4280 = vmatprep.mubr.f32.mxu0 0.0
      %4281 = vmatmul.mubr.f32.gmra.mrb[0].mxu0 %v4039
      %v4282 = vpop.f32.mrb[0].mxu0
      %v4283 = vadd.f32 0.0, %v4282
      %v4284 = vpop.f32.mrb[0].mxu0
      %4285 = vdwg.mxu0
      %v4286 = vadd.f32 %v3856, %v4108
      %v4287 = vadd.f32 %v3857, %v4113
      %v4288 = vadd.f32 %v3858, %v4118
      %v4289 = vadd.f32 %v3859, %v4123
      %v4290 = vadd.f32 %v3860, %v4128
      %v4291 = vadd.f32 %v3861, %v4133
      %v4292 = vadd.f32 %v3862, %v4138
      %v4293 = vadd.f32 %v3863, %v4143
      %v4294 = vadd.f32 %v3864, %v4148
      %v4295 = vadd.f32 %v3865, %v4153
      %v4296 = vadd.f32 %v3866, %v4158
      %v4297 = vadd.f32 %v3867, %v4163
      %v4298 = vadd.f32 %v3868, %v4168
      %v4299 = vadd.f32 %v3869, %v4173
      %v4300 = vadd.f32 %v3870, %v4178
      %v4301 = vadd.f32 %v3871, %v4183
      %v4302 = vadd.f32 %v3872, %v4188
      %v4303 = vadd.f32 %v3873, %v4193
      %v4304 = vadd.f32 %v3874, %v4198
      %v4305 = vadd.f32 %v3875, %v4203
      %v4306 = vadd.f32 %v3876, %v4208
      %v4307 = vadd.f32 %v3877, %v4213
      %v4308 = vadd.f32 %v3878, %v4218
      %v4309 = vadd.f32 %v3879, %v4223
      %v4310 = vadd.f32 %v3880, %v4228
      %v4311 = vadd.f32 %v3881, %v4233
      %v4312 = vadd.f32 %v3882, %v4238
      %v4313 = vadd.f32 %v3883, %v4243
      %v4314 = vadd.f32 %v3884, %v4248
      %v4315 = vadd.f32 %v3885, %v4253
      %v4316 = vadd.f32 %v3886, %v4258
      %v4317 = vadd.f32 %v3887, %v4263
      %v4318 = vadd.f32 %v3888, %v4268
      %v4319 = vadd.f32 %v3889, %v4273
      %v4320 = vadd.f32 %v3890, %v4278
      %v4321 = vadd.f32 %v3891, %v4283
      %v4322 = vld [vmem:[#allocation2 + $0x24] sm:$0xff]
      %v4323 = vld [vmem:[#allocation2 + $0x2c] sm:$0xff]
      %v4324 = vld [vmem:[#allocation2 + $0x34] sm:$0xff]
      %v4325 = vld [vmem:[#allocation2 + $0x3c] sm:$0xff]
      %v4326 = vld [vmem:[#allocation2 + $0x44] sm:$0xff]
      %v4327 = vld [vmem:[#allocation2 + $0x4c] sm:$0xff]
      %v4328 = vld [vmem:[#allocation2 + $0x54] sm:$0xff]
      %v4329 = vld [vmem:[#allocation2 + $0x5c] sm:$0xff]
      %v4330 = vld [vmem:[#allocation2 + $0x64] sm:$0xff]
      %v4331 = vld [vmem:[#allocation2 + $0x6c] sm:$0xff]
      %v4332 = vld [vmem:[#allocation2 + $0x74] sm:$0xff]
      %v4333 = vld [vmem:[#allocation2 + $0x7c] sm:$0xff]
      %v4334 = vld [vmem:[#allocation2 + $0x84] sm:$0xff]
      %v4335 = vld [vmem:[#allocation2 + $0x8c] sm:$0xff]
      %v4336 = vld [vmem:[#allocation2 + $0x94] sm:$0xff]
      %v4337 = vld [vmem:[#allocation2 + $0x9c] sm:$0xff]
      %v4338 = vld [vmem:[#allocation2 + $0xa4] sm:$0xff]
      %v4339 = vld [vmem:[#allocation2 + $0xac] sm:$0xff]
      %v4340 = vld [vmem:[#allocation2 + $0xb4] sm:$0xff]
      %v4341 = vld [vmem:[#allocation2 + $0xbc] sm:$0xff]
      %v4342 = vld [vmem:[#allocation2 + $0xc4] sm:$0xff]
      %v4343 = vld [vmem:[#allocation2 + $0xcc] sm:$0xff]
      %v4344 = vld [vmem:[#allocation2 + $0xd4] sm:$0xff]
      %v4345 = vld [vmem:[#allocation2 + $0xdc] sm:$0xff]
      %v4346 = vld [vmem:[#allocation2 + $0xe4] sm:$0xff]
      %v4347 = vld [vmem:[#allocation2 + $0xec] sm:$0xff]
      %v4348 = vld [vmem:[#allocation2 + $0xf4] sm:$0xff]
      %v4349 = vld [vmem:[#allocation2 + $0xfc] sm:$0xff]
      %v4350 = vld [vmem:[#allocation2 + $0x104] sm:$0xff]
      %v4351 = vld [vmem:[#allocation2 + $0x10c] sm:$0xff]
      %v4352 = vld [vmem:[#allocation2 + $0x114] sm:$0xff]
      %v4353 = vld [vmem:[#allocation2 + $0x11c] sm:$0xff]
      %v4354 = vld [vmem:[#allocation2 + $0x124] sm:$0xff]
      %v4355 = vld [vmem:[#allocation2 + $0x12c] sm:$0xff]
      %v4356 = vld [vmem:[#allocation2 + $0x134] sm:$0xff]
      %v4357 = vld [vmem:[#allocation2 + $0x13c] sm:$0xff]
      %s4358 = scalar_lea.vmem %s3, 192
      %v4359 = vld [vmem:[%s4358] sm:$0xff]
      %v4360 = vld [vmem:[%s4358 + $0x8] sm:$0xff]
      %v4361 = vld [vmem:[%s4358 + $0x10] sm:$0xff]
      %v4362 = vld [vmem:[%s4358 + $0x18] sm:$0xff]
      %v4364 = vsel %vm357, %v4322, 0
      %v4367 = vsel %vm357, %v4323, 0
      %v4370 = vsel %vm357, %v4324, 0
      %v4373 = vsel %vm357, %v4325, 0
      %v4376 = vsel %vm357, %v4326, 0
      %v4379 = vsel %vm357, %v4327, 0
      %v4382 = vsel %vm357, %v4328, 0
      %v4385 = vsel %vm357, %v4329, 0
      %v4388 = vsel %vm357, %v4330, 0
      %v4391 = vsel %vm357, %v4331, 0
      %v4394 = vsel %vm357, %v4332, 0
      %v4397 = vsel %vm357, %v4333, 0
      %v4400 = vsel %vm357, %v4334, 0
      %v4403 = vsel %vm357, %v4335, 0
      %v4406 = vsel %vm357, %v4336, 0
      %v4409 = vsel %vm357, %v4337, 0
      %v4412 = vsel %vm357, %v4338, 0
      %v4415 = vsel %vm357, %v4339, 0
      %v4418 = vsel %vm357, %v4340, 0
      %v4421 = vsel %vm357, %v4341, 0
      %v4424 = vsel %vm357, %v4342, 0
      %v4427 = vsel %vm357, %v4343, 0
      %v4430 = vsel %vm357, %v4344, 0
      %v4433 = vsel %vm357, %v4345, 0
      %v4436 = vsel %vm357, %v4346, 0
      %v4439 = vsel %vm357, %v4347, 0
      %v4442 = vsel %vm357, %v4348, 0
      %v4445 = vsel %vm357, %v4349, 0
      %v4448 = vsel %vm357, %v4350, 0
      %v4451 = vsel %vm357, %v4351, 0
      %v4454 = vsel %vm357, %v4352, 0
      %v4457 = vsel %vm357, %v4353, 0
      %v4460 = vsel %vm357, %v4354, 0
      %v4463 = vsel %vm357, %v4355, 0
      %v4466 = vsel %vm357, %v4356, 0
      %v4469 = vsel %vm357, %v4357, 0
      %4471 = vmatprep.subr.mxu0 0.0
      %4472 = vmatpush1.msra.mxu0 %v4359
      %4473 = vmatprep.subr.mxu0 0.0
      %4474 = vmatpush1.msra.mxu0 %v4360
      %4475 = vmatprep.subr.mxu0 0.0
      %4476 = vmatpush1.msra.mxu0 %v4361
      %4477 = vmatprep.subr.mxu0 0.0
      %4478 = vmatpush1.msra.mxu0 %v4362
      %4479 = vmatprep.subr.mxu0 0.0
      %4480 = vmatpush1.msra.mxu0 0.0
      %4481 = vmatprep.subr.mxu0 0.0
      %4482 = vmatpush1.msra.mxu0 0.0
      %4483 = vmatprep.subr.mxu0 0.0
      %4484 = vmatpush1.msra.mxu0 0.0
      %4485 = vmatprep.subr.mxu0 0.0
      %4486 = vmatpush1.msra.mxu0 0.0
      %4487 = vmatprep.subr.mxu0 0.0
      %4488 = vmatpush1.msra.mxu0 0.0
      %4489 = vmatprep.subr.mxu0 0.0
      %4490 = vmatpush1.msra.mxu0 0.0
      %4491 = vmatprep.subr.mxu0 0.0
      %4492 = vmatpush1.msra.mxu0 0.0
      %4493 = vmatprep.subr.mxu0 0.0
      %4494 = vmatpush1.msra.mxu0 0.0
      %4495 = vmatprep.subr.mxu0 0.0
      %4496 = vmatpush1.msra.mxu0 0.0
      %4497 = vmatprep.subr.mxu0 0.0
      %4498 = vmatpush1.msra.mxu0 0.0
      %4499 = vmatprep.subr.mxu0 0.0
      %4500 = vmatpush1.msra.mxu0 0.0
      %4501 = vmatprep.subr.mxu0 0.0
      %4502 = vmatpush1.msra.mxu0 0.0
      %4503 = vmatprep.subr.mxu0 0.0
      %4504 = vmatpush1.msra.mxu0 0.0
      %4505 = vmatprep.subr.mxu0 0.0
      %4506 = vmatpush1.msra.mxu0 0.0
      %4507 = vmatprep.subr.mxu0 0.0
      %4508 = vmatpush1.msra.mxu0 0.0
      %4509 = vmatprep.subr.mxu0 0.0
      %4510 = vmatpush1.msra.mxu0 0.0
      %4511 = vmatprep.subr.mxu0 0.0
      %4512 = vmatpush1.msra.mxu0 0.0
      %4513 = vmatprep.subr.mxu0 0.0
      %4514 = vmatpush1.msra.mxu0 0.0
      %4515 = vmatprep.subr.mxu0 0.0
      %4516 = vmatpush1.msra.mxu0 0.0
      %4517 = vmatprep.subr.mxu0 0.0
      %4518 = vmatpush1.msra.mxu0 0.0
      %4519 = vmatprep.subr.mxu0 0.0
      %4520 = vmatpush1.msra.mxu0 0.0
      %4521 = vmatprep.subr.mxu0 0.0
      %4522 = vmatpush1.msra.mxu0 0.0
      %4523 = vmatprep.subr.mxu0 0.0
      %4524 = vmatpush1.msra.mxu0 0.0
      %4525 = vmatprep.subr.mxu0 0.0
      %4526 = vmatpush1.msra.mxu0 0.0
      %4527 = vmatprep.subr.mxu0 0.0
      %4528 = vmatpush1.msra.mxu0 0.0
      %4529 = vmatprep.subr.mxu0 0.0
      %4530 = vmatpush1.msra.mxu0 0.0
      %4531 = vmatprep.subr.mxu0 0.0
      %4532 = vmatpush1.msra.mxu0 0.0
      %4533 = vmatprep.subr.mxu0 0.0
      %4534 = vmatpush1.msra.mxu0 0.0
      %4535 = vmatprep.mubr.f32.mxu0 0.0
      %4536 = vmatmul.mubr.f32.gmra.mrb[0].mxu0 %v4364
      %v4537 = vpop.f32.mrb[0].mxu0
      %v4538 = vadd.f32 0.0, %v4537
      %v4539 = vpop.f32.mrb[0].mxu0
      %4540 = vmatprep.mubr.f32.mxu0 0.0
      %4541 = vmatmul.mubr.f32.gmra.mrb[0].mxu0 %v4367
      %v4542 = vpop.f32.mrb[0].mxu0
      %v4543 = vadd.f32 0.0, %v4542
      %v4544 = vpop.f32.mrb[0].mxu0
      %4545 = vmatprep.mubr.f32.mxu0 0.0
      %4546 = vmatmul.mubr.f32.gmra.mrb[0].mxu0 %v4370
      %v4547 = vpop.f32.mrb[0].mxu0
      %v4548 = vadd.f32 0.0, %v4547
      %v4549 = vpop.f32.mrb[0].mxu0
      %4550 = vmatprep.mubr.f32.mxu0 0.0
      %4551 = vmatmul.mubr.f32.gmra.mrb[0].mxu0 %v4373
      %v4552 = vpop.f32.mrb[0].mxu0
      %v4553 = vadd.f32 0.0, %v4552
      %v4554 = vpop.f32.mrb[0].mxu0
      %4555 = vmatprep.mubr.f32.mxu0 0.0
      %4556 = vmatmul.mubr.f32.gmra.mrb[0].mxu0 %v4376
      %v4557 = vpop.f32.mrb[0].mxu0
      %v4558 = vadd.f32 0.0, %v4557
      %v4559 = vpop.f32.mrb[0].mxu0
      %4560 = vmatprep.mubr.f32.mxu0 0.0
      %4561 = vmatmul.mubr.f32.gmra.mrb[0].mxu0 %v4379
      %v4562 = vpop.f32.mrb[0].mxu0
      %v4563 = vadd.f32 0.0, %v4562
      %v4564 = vpop.f32.mrb[0].mxu0
      %4565 = vmatprep.mubr.f32.mxu0 0.0
      %4566 = vmatmul.mubr.f32.gmra.mrb[0].mxu0 %v4382
      %v4567 = vpop.f32.mrb[0].mxu0
      %v4568 = vadd.f32 0.0, %v4567
      %v4569 = vpop.f32.mrb[0].mxu0
      %4570 = vmatprep.mubr.f32.mxu0 0.0
      %4571 = vmatmul.mubr.f32.gmra.mrb[0].mxu0 %v4385
      %v4572 = vpop.f32.mrb[0].mxu0
      %v4573 = vadd.f32 0.0, %v4572
      %v4574 = vpop.f32.mrb[0].mxu0
      %4575 = vmatprep.mubr.f32.mxu0 0.0
      %4576 = vmatmul.mubr.f32.gmra.mrb[0].mxu0 %v4388
      %v4577 = vpop.f32.mrb[0].mxu0
      %v4578 = vadd.f32 0.0, %v4577
      %v4579 = vpop.f32.mrb[0].mxu0
      %4580 = vmatprep.mubr.f32.mxu0 0.0
      %4581 = vmatmul.mubr.f32.gmra.mrb[0].mxu0 %v4391
      %v4582 = vpop.f32.mrb[0].mxu0
      %v4583 = vadd.f32 0.0, %v4582
      %v4584 = vpop.f32.mrb[0].mxu0
      %4585 = vmatprep.mubr.f32.mxu0 0.0
      %4586 = vmatmul.mubr.f32.gmra.mrb[0].mxu0 %v4394
      %v4587 = vpop.f32.mrb[0].mxu0
      %v4588 = vadd.f32 0.0, %v4587
      %v4589 = vpop.f32.mrb[0].mxu0
      %4590 = vmatprep.mubr.f32.mxu0 0.0
      %4591 = vmatmul.mubr.f32.gmra.mrb[0].mxu0 %v4397
      %v4592 = vpop.f32.mrb[0].mxu0
      %v4593 = vadd.f32 0.0, %v4592
      %v4594 = vpop.f32.mrb[0].mxu0
      %4595 = vmatprep.mubr.f32.mxu0 0.0
      %4596 = vmatmul.mubr.f32.gmra.mrb[0].mxu0 %v4400
      %v4597 = vpop.f32.mrb[0].mxu0
      %v4598 = vadd.f32 0.0, %v4597
      %v4599 = vpop.f32.mrb[0].mxu0
      %4600 = vmatprep.mubr.f32.mxu0 0.0
      %4601 = vmatmul.mubr.f32.gmra.mrb[0].mxu0 %v4403
      %v4602 = vpop.f32.mrb[0].mxu0
      %v4603 = vadd.f32 0.0, %v4602
      %v4604 = vpop.f32.mrb[0].mxu0
      %4605 = vmatprep.mubr.f32.mxu0 0.0
      %4606 = vmatmul.mubr.f32.gmra.mrb[0].mxu0 %v4406
      %v4607 = vpop.f32.mrb[0].mxu0
      %v4608 = vadd.f32 0.0, %v4607
      %v4609 = vpop.f32.mrb[0].mxu0
      %4610 = vmatprep.mubr.f32.mxu0 0.0
      %4611 = vmatmul.mubr.f32.gmra.mrb[0].mxu0 %v4409
      %v4612 = vpop.f32.mrb[0].mxu0
      %v4613 = vadd.f32 0.0, %v4612
      %v4614 = vpop.f32.mrb[0].mxu0
      %4615 = vmatprep.mubr.f32.mxu0 0.0
      %4616 = vmatmul.mubr.f32.gmra.mrb[0].mxu0 %v4412
      %v4617 = vpop.f32.mrb[0].mxu0
      %v4618 = vadd.f32 0.0, %v4617
      %v4619 = vpop.f32.mrb[0].mxu0
      %4620 = vmatprep.mubr.f32.mxu0 0.0
      %4621 = vmatmul.mubr.f32.gmra.mrb[0].mxu0 %v4415
      %v4622 = vpop.f32.mrb[0].mxu0
      %v4623 = vadd.f32 0.0, %v4622
      %v4624 = vpop.f32.mrb[0].mxu0
      %4625 = vmatprep.mubr.f32.mxu0 0.0
      %4626 = vmatmul.mubr.f32.gmra.mrb[0].mxu0 %v4418
      %v4627 = vpop.f32.mrb[0].mxu0
      %v4628 = vadd.f32 0.0, %v4627
      %v4629 = vpop.f32.mrb[0].mxu0
      %4630 = vmatprep.mubr.f32.mxu0 0.0
      %4631 = vmatmul.mubr.f32.gmra.mrb[0].mxu0 %v4421
      %v4632 = vpop.f32.mrb[0].mxu0
      %v4633 = vadd.f32 0.0, %v4632
      %v4634 = vpop.f32.mrb[0].mxu0
      %4635 = vmatprep.mubr.f32.mxu0 0.0
      %4636 = vmatmul.mubr.f32.gmra.mrb[0].mxu0 %v4424
      %v4637 = vpop.f32.mrb[0].mxu0
      %v4638 = vadd.f32 0.0, %v4637
      %v4639 = vpop.f32.mrb[0].mxu0
      %4640 = vmatprep.mubr.f32.mxu0 0.0
      %4641 = vmatmul.mubr.f32.gmra.mrb[0].mxu0 %v4427
      %v4642 = vpop.f32.mrb[0].mxu0
      %v4643 = vadd.f32 0.0, %v4642
      %v4644 = vpop.f32.mrb[0].mxu0
      %4645 = vmatprep.mubr.f32.mxu0 0.0
      %4646 = vmatmul.mubr.f32.gmra.mrb[0].mxu0 %v4430
      %v4647 = vpop.f32.mrb[0].mxu0
      %v4648 = vadd.f32 0.0, %v4647
      %v4649 = vpop.f32.mrb[0].mxu0
      %4650 = vmatprep.mubr.f32.mxu0 0.0
      %4651 = vmatmul.mubr.f32.gmra.mrb[0].mxu0 %v4433
      %v4652 = vpop.f32.mrb[0].mxu0
      %v4653 = vadd.f32 0.0, %v4652
      %v4654 = vpop.f32.mrb[0].mxu0
      %4655 = vmatprep.mubr.f32.mxu0 0.0
      %4656 = vmatmul.mubr.f32.gmra.mrb[0].mxu0 %v4436
      %v4657 = vpop.f32.mrb[0].mxu0
      %v4658 = vadd.f32 0.0, %v4657
      %v4659 = vpop.f32.mrb[0].mxu0
      %4660 = vmatprep.mubr.f32.mxu0 0.0
      %4661 = vmatmul.mubr.f32.gmra.mrb[0].mxu0 %v4439
      %v4662 = vpop.f32.mrb[0].mxu0
      %v4663 = vadd.f32 0.0, %v4662
      %v4664 = vpop.f32.mrb[0].mxu0
      %4665 = vmatprep.mubr.f32.mxu0 0.0
      %4666 = vmatmul.mubr.f32.gmra.mrb[0].mxu0 %v4442
      %v4667 = vpop.f32.mrb[0].mxu0
      %v4668 = vadd.f32 0.0, %v4667
      %v4669 = vpop.f32.mrb[0].mxu0
      %4670 = vmatprep.mubr.f32.mxu0 0.0
      %4671 = vmatmul.mubr.f32.gmra.mrb[0].mxu0 %v4445
      %v4672 = vpop.f32.mrb[0].mxu0
      %v4673 = vadd.f32 0.0, %v4672
      %v4674 = vpop.f32.mrb[0].mxu0
      %4675 = vmatprep.mubr.f32.mxu0 0.0
      %4676 = vmatmul.mubr.f32.gmra.mrb[0].mxu0 %v4448
      %v4677 = vpop.f32.mrb[0].mxu0
      %v4678 = vadd.f32 0.0, %v4677
      %v4679 = vpop.f32.mrb[0].mxu0
      %4680 = vmatprep.mubr.f32.mxu0 0.0
      %4681 = vmatmul.mubr.f32.gmra.mrb[0].mxu0 %v4451
      %v4682 = vpop.f32.mrb[0].mxu0
      %v4683 = vadd.f32 0.0, %v4682
      %v4684 = vpop.f32.mrb[0].mxu0
      %4685 = vmatprep.mubr.f32.mxu0 0.0
      %4686 = vmatmul.mubr.f32.gmra.mrb[0].mxu0 %v4454
      %v4687 = vpop.f32.mrb[0].mxu0
      %v4688 = vadd.f32 0.0, %v4687
      %v4689 = vpop.f32.mrb[0].mxu0
      %4690 = vmatprep.mubr.f32.mxu0 0.0
      %4691 = vmatmul.mubr.f32.gmra.mrb[0].mxu0 %v4457
      %v4692 = vpop.f32.mrb[0].mxu0
      %v4693 = vadd.f32 0.0, %v4692
      %v4694 = vpop.f32.mrb[0].mxu0
      %4695 = vmatprep.mubr.f32.mxu0 0.0
      %4696 = vmatmul.mubr.f32.gmra.mrb[0].mxu0 %v4460
      %v4697 = vpop.f32.mrb[0].mxu0
      %v4698 = vadd.f32 0.0, %v4697
      %v4699 = vpop.f32.mrb[0].mxu0
      %4700 = vmatprep.mubr.f32.mxu0 0.0
      %4701 = vmatmul.mubr.f32.gmra.mrb[0].mxu0 %v4463
      %v4702 = vpop.f32.mrb[0].mxu0
      %v4703 = vadd.f32 0.0, %v4702
      %v4704 = vpop.f32.mrb[0].mxu0
      %4705 = vmatprep.mubr.f32.mxu0 0.0
      %4706 = vmatmul.mubr.f32.gmra.mrb[0].mxu0 %v4466
      %v4707 = vpop.f32.mrb[0].mxu0
      %v4708 = vadd.f32 0.0, %v4707
      %v4709 = vpop.f32.mrb[0].mxu0
      %4710 = vmatprep.mubr.f32.mxu0 0.0
      %4711 = vmatmul.mubr.f32.gmra.mrb[0].mxu0 %v4469
      %v4712 = vpop.f32.mrb[0].mxu0
      %v4713 = vadd.f32 0.0, %v4712
      %v4714 = vpop.f32.mrb[0].mxu0
      %4715 = vdwg.mxu0
      %v4716 = vadd.f32 %v4286, %v4538
      %v4717 = vadd.f32 %v4287, %v4543
      %v4718 = vadd.f32 %v4288, %v4548
      %v4719 = vadd.f32 %v4289, %v4553
      %v4720 = vadd.f32 %v4290, %v4558
      %v4721 = vadd.f32 %v4291, %v4563
      %v4722 = vadd.f32 %v4292, %v4568
      %v4723 = vadd.f32 %v4293, %v4573
      %v4724 = vadd.f32 %v4294, %v4578
      %v4725 = vadd.f32 %v4295, %v4583
      %v4726 = vadd.f32 %v4296, %v4588
      %v4727 = vadd.f32 %v4297, %v4593
      %v4728 = vadd.f32 %v4298, %v4598
      %v4729 = vadd.f32 %v4299, %v4603
      %v4730 = vadd.f32 %v4300, %v4608
      %v4731 = vadd.f32 %v4301, %v4613
      %v4732 = vadd.f32 %v4302, %v4618
      %v4733 = vadd.f32 %v4303, %v4623
      %v4734 = vadd.f32 %v4304, %v4628
      %v4735 = vadd.f32 %v4305, %v4633
      %v4736 = vadd.f32 %v4306, %v4638
      %v4737 = vadd.f32 %v4307, %v4643
      %v4738 = vadd.f32 %v4308, %v4648
      %v4739 = vadd.f32 %v4309, %v4653
      %v4740 = vadd.f32 %v4310, %v4658
      %v4741 = vadd.f32 %v4311, %v4663
      %v4742 = vadd.f32 %v4312, %v4668
      %v4743 = vadd.f32 %v4313, %v4673
      %v4744 = vadd.f32 %v4314, %v4678
      %v4745 = vadd.f32 %v4315, %v4683
      %v4746 = vadd.f32 %v4316, %v4688
      %v4747 = vadd.f32 %v4317, %v4693
      %v4748 = vadd.f32 %v4318, %v4698
      %v4749 = vadd.f32 %v4319, %v4703
      %v4750 = vadd.f32 %v4320, %v4708
      %v4751 = vadd.f32 %v4321, %v4713
      %v4752 = vld [vmem:[#allocation2 + $0x25] sm:$0xff]
      %v4753 = vld [vmem:[#allocation2 + $0x2d] sm:$0xff]
      %v4754 = vld [vmem:[#allocation2 + $0x35] sm:$0xff]
      %v4755 = vld [vmem:[#allocation2 + $0x3d] sm:$0xff]
      %v4756 = vld [vmem:[#allocation2 + $0x45] sm:$0xff]
      %v4757 = vld [vmem:[#allocation2 + $0x4d] sm:$0xff]
      %v4758 = vld [vmem:[#allocation2 + $0x55] sm:$0xff]
      %v4759 = vld [vmem:[#allocation2 + $0x5d] sm:$0xff]
      %v4760 = vld [vmem:[#allocation2 + $0x65] sm:$0xff]
      %v4761 = vld [vmem:[#allocation2 + $0x6d] sm:$0xff]
      %v4762 = vld [vmem:[#allocation2 + $0x75] sm:$0xff]
      %v4763 = vld [vmem:[#allocation2 + $0x7d] sm:$0xff]
      %v4764 = vld [vmem:[#allocation2 + $0x85] sm:$0xff]
      %v4765 = vld [vmem:[#allocation2 + $0x8d] sm:$0xff]
      %v4766 = vld [vmem:[#allocation2 + $0x95] sm:$0xff]
      %v4767 = vld [vmem:[#allocation2 + $0x9d] sm:$0xff]
      %v4768 = vld [vmem:[#allocation2 + $0xa5] sm:$0xff]
      %v4769 = vld [vmem:[#allocation2 + $0xad] sm:$0xff]
      %v4770 = vld [vmem:[#allocation2 + $0xb5] sm:$0xff]
      %v4771 = vld [vmem:[#allocation2 + $0xbd] sm:$0xff]
      %v4772 = vld [vmem:[#allocation2 + $0xc5] sm:$0xff]
      %v4773 = vld [vmem:[#allocation2 + $0xcd] sm:$0xff]
      %v4774 = vld [vmem:[#allocation2 + $0xd5] sm:$0xff]
      %v4775 = vld [vmem:[#allocation2 + $0xdd] sm:$0xff]
      %v4776 = vld [vmem:[#allocation2 + $0xe5] sm:$0xff]
      %v4777 = vld [vmem:[#allocation2 + $0xed] sm:$0xff]
      %v4778 = vld [vmem:[#allocation2 + $0xf5] sm:$0xff]
      %v4779 = vld [vmem:[#allocation2 + $0xfd] sm:$0xff]
      %v4780 = vld [vmem:[#allocation2 + $0x105] sm:$0xff]
      %v4781 = vld [vmem:[#allocation2 + $0x10d] sm:$0xff]
      %v4782 = vld [vmem:[#allocation2 + $0x115] sm:$0xff]
      %v4783 = vld [vmem:[#allocation2 + $0x11d] sm:$0xff]
      %v4784 = vld [vmem:[#allocation2 + $0x125] sm:$0xff]
      %v4785 = vld [vmem:[#allocation2 + $0x12d] sm:$0xff]
      %v4786 = vld [vmem:[#allocation2 + $0x135] sm:$0xff]
      %v4787 = vld [vmem:[#allocation2 + $0x13d] sm:$0xff]
      %s4788 = scalar_lea.vmem %s3, 224
      %v4789 = vld [vmem:[%s4788] sm:$0xff]
      %v4790 = vld [vmem:[%s4788 + $0x8] sm:$0xff]
      %v4791 = vld [vmem:[%s4788 + $0x10] sm:$0xff]
      %v4792 = vld [vmem:[%s4788 + $0x18] sm:$0xff]
      %v4794 = vsel %vm357, %v4752, 0
      %v4797 = vsel %vm357, %v4753, 0
      %v4800 = vsel %vm357, %v4754, 0
      %v4803 = vsel %vm357, %v4755, 0
      %v4806 = vsel %vm357, %v4756, 0
      %v4809 = vsel %vm357, %v4757, 0
      %v4812 = vsel %vm357, %v4758, 0
      %v4815 = vsel %vm357, %v4759, 0
      %v4818 = vsel %vm357, %v4760, 0
      %v4821 = vsel %vm357, %v4761, 0
      %v4824 = vsel %vm357, %v4762, 0
      %v4827 = vsel %vm357, %v4763, 0
      %v4830 = vsel %vm357, %v4764, 0
      %v4833 = vsel %vm357, %v4765, 0
      %v4836 = vsel %vm357, %v4766, 0
      %v4839 = vsel %vm357, %v4767, 0
      %v4842 = vsel %vm357, %v4768, 0
      %v4845 = vsel %vm357, %v4769, 0
      %v4848 = vsel %vm357, %v4770, 0
      %v4851 = vsel %vm357, %v4771, 0
      %v4854 = vsel %vm357, %v4772, 0
      %v4857 = vsel %vm357, %v4773, 0
      %v4860 = vsel %vm357, %v4774, 0
      %v4863 = vsel %vm357, %v4775, 0
      %v4866 = vsel %vm357, %v4776, 0
      %v4869 = vsel %vm357, %v4777, 0
      %v4872 = vsel %vm357, %v4778, 0
      %v4875 = vsel %vm357, %v4779, 0
      %v4878 = vsel %vm357, %v4780, 0
      %v4881 = vsel %vm357, %v4781, 0
      %v4884 = vsel %vm357, %v4782, 0
      %v4887 = vsel %vm357, %v4783, 0
      %v4890 = vsel %vm357, %v4784, 0
      %v4893 = vsel %vm357, %v4785, 0
      %v4896 = vsel %vm357, %v4786, 0
      %v4899 = vsel %vm357, %v4787, 0
      %4901 = vmatprep.subr.mxu0 0.0
      %4902 = vmatpush1.msra.mxu0 %v4789
      %4903 = vmatprep.subr.mxu0 0.0
      %4904 = vmatpush1.msra.mxu0 %v4790
      %4905 = vmatprep.subr.mxu0 0.0
      %4906 = vmatpush1.msra.mxu0 %v4791
      %4907 = vmatprep.subr.mxu0 0.0
      %4908 = vmatpush1.msra.mxu0 %v4792
      %4909 = vmatprep.subr.mxu0 0.0
      %4910 = vmatpush1.msra.mxu0 0.0
      %4911 = vmatprep.subr.mxu0 0.0
      %4912 = vmatpush1.msra.mxu0 0.0
      %4913 = vmatprep.subr.mxu0 0.0
      %4914 = vmatpush1.msra.mxu0 0.0
      %4915 = vmatprep.subr.mxu0 0.0
      %4916 = vmatpush1.msra.mxu0 0.0
      %4917 = vmatprep.subr.mxu0 0.0
      %4918 = vmatpush1.msra.mxu0 0.0
      %4919 = vmatprep.subr.mxu0 0.0
      %4920 = vmatpush1.msra.mxu0 0.0
      %4921 = vmatprep.subr.mxu0 0.0
      %4922 = vmatpush1.msra.mxu0 0.0
      %4923 = vmatprep.subr.mxu0 0.0
      %4924 = vmatpush1.msra.mxu0 0.0
      %4925 = vmatprep.subr.mxu0 0.0
      %4926 = vmatpush1.msra.mxu0 0.0
      %4927 = vmatprep.subr.mxu0 0.0
      %4928 = vmatpush1.msra.mxu0 0.0
      %4929 = vmatprep.subr.mxu0 0.0
      %4930 = vmatpush1.msra.mxu0 0.0
      %4931 = vmatprep.subr.mxu0 0.0
      %4932 = vmatpush1.msra.mxu0 0.0
      %4933 = vmatprep.subr.mxu0 0.0
      %4934 = vmatpush1.msra.mxu0 0.0
      %4935 = vmatprep.subr.mxu0 0.0
      %4936 = vmatpush1.msra.mxu0 0.0
      %4937 = vmatprep.subr.mxu0 0.0
      %4938 = vmatpush1.msra.mxu0 0.0
      %4939 = vmatprep.subr.mxu0 0.0
      %4940 = vmatpush1.msra.mxu0 0.0
      %4941 = vmatprep.subr.mxu0 0.0
      %4942 = vmatpush1.msra.mxu0 0.0
      %4943 = vmatprep.subr.mxu0 0.0
      %4944 = vmatpush1.msra.mxu0 0.0
      %4945 = vmatprep.subr.mxu0 0.0
      %4946 = vmatpush1.msra.mxu0 0.0
      %4947 = vmatprep.subr.mxu0 0.0
      %4948 = vmatpush1.msra.mxu0 0.0
      %4949 = vmatprep.subr.mxu0 0.0
      %4950 = vmatpush1.msra.mxu0 0.0
      %4951 = vmatprep.subr.mxu0 0.0
      %4952 = vmatpush1.msra.mxu0 0.0
      %4953 = vmatprep.subr.mxu0 0.0
      %4954 = vmatpush1.msra.mxu0 0.0
      %4955 = vmatprep.subr.mxu0 0.0
      %4956 = vmatpush1.msra.mxu0 0.0
      %4957 = vmatprep.subr.mxu0 0.0
      %4958 = vmatpush1.msra.mxu0 0.0
      %4959 = vmatprep.subr.mxu0 0.0
      %4960 = vmatpush1.msra.mxu0 0.0
      %4961 = vmatprep.subr.mxu0 0.0
      %4962 = vmatpush1.msra.mxu0 0.0
      %4963 = vmatprep.subr.mxu0 0.0
      %4964 = vmatpush1.msra.mxu0 0.0
      %4965 = vmatprep.mubr.f32.mxu0 0.0
      %4966 = vmatmul.mubr.f32.gmra.mrb[0].mxu0 %v4794
      %v4967 = vpop.f32.mrb[0].mxu0
      %v4968 = vadd.f32 0.0, %v4967
      %v4969 = vpop.f32.mrb[0].mxu0
      %4970 = vmatprep.mubr.f32.mxu0 0.0
      %4971 = vmatmul.mubr.f32.gmra.mrb[0].mxu0 %v4797
      %v4972 = vpop.f32.mrb[0].mxu0
      %v4973 = vadd.f32 0.0, %v4972
      %v4974 = vpop.f32.mrb[0].mxu0
      %4975 = vmatprep.mubr.f32.mxu0 0.0
      %4976 = vmatmul.mubr.f32.gmra.mrb[0].mxu0 %v4800
      %v4977 = vpop.f32.mrb[0].mxu0
      %v4978 = vadd.f32 0.0, %v4977
      %v4979 = vpop.f32.mrb[0].mxu0
      %4980 = vmatprep.mubr.f32.mxu0 0.0
      %4981 = vmatmul.mubr.f32.gmra.mrb[0].mxu0 %v4803
      %v4982 = vpop.f32.mrb[0].mxu0
      %v4983 = vadd.f32 0.0, %v4982
      %v4984 = vpop.f32.mrb[0].mxu0
      %4985 = vmatprep.mubr.f32.mxu0 0.0
      %4986 = vmatmul.mubr.f32.gmra.mrb[0].mxu0 %v4806
      %v4987 = vpop.f32.mrb[0].mxu0
      %v4988 = vadd.f32 0.0, %v4987
      %v4989 = vpop.f32.mrb[0].mxu0
      %4990 = vmatprep.mubr.f32.mxu0 0.0
      %4991 = vmatmul.mubr.f32.gmra.mrb[0].mxu0 %v4809
      %v4992 = vpop.f32.mrb[0].mxu0
      %v4993 = vadd.f32 0.0, %v4992
      %v4994 = vpop.f32.mrb[0].mxu0
      %4995 = vmatprep.mubr.f32.mxu0 0.0
      %4996 = vmatmul.mubr.f32.gmra.mrb[0].mxu0 %v4812
      %v4997 = vpop.f32.mrb[0].mxu0
      %v4998 = vadd.f32 0.0, %v4997
      %v4999 = vpop.f32.mrb[0].mxu0
      %5000 = vmatprep.mubr.f32.mxu0 0.0
      %5001 = vmatmul.mubr.f32.gmra.mrb[0].mxu0 %v4815
      %v5002 = vpop.f32.mrb[0].mxu0
      %v5003 = vadd.f32 0.0, %v5002
      %v5004 = vpop.f32.mrb[0].mxu0
      %5005 = vmatprep.mubr.f32.mxu0 0.0
      %5006 = vmatmul.mubr.f32.gmra.mrb[0].mxu0 %v4818
      %v5007 = vpop.f32.mrb[0].mxu0
      %v5008 = vadd.f32 0.0, %v5007
      %v5009 = vpop.f32.mrb[0].mxu0
      %5010 = vmatprep.mubr.f32.mxu0 0.0
      %5011 = vmatmul.mubr.f32.gmra.mrb[0].mxu0 %v4821
      %v5012 = vpop.f32.mrb[0].mxu0
      %v5013 = vadd.f32 0.0, %v5012
      %v5014 = vpop.f32.mrb[0].mxu0
      %5015 = vmatprep.mubr.f32.mxu0 0.0
      %5016 = vmatmul.mubr.f32.gmra.mrb[0].mxu0 %v4824
      %v5017 = vpop.f32.mrb[0].mxu0
      %v5018 = vadd.f32 0.0, %v5017
      %v5019 = vpop.f32.mrb[0].mxu0
      %5020 = vmatprep.mubr.f32.mxu0 0.0
      %5021 = vmatmul.mubr.f32.gmra.mrb[0].mxu0 %v4827
      %v5022 = vpop.f32.mrb[0].mxu0
      %v5023 = vadd.f32 0.0, %v5022
      %v5024 = vpop.f32.mrb[0].mxu0
      %5025 = vmatprep.mubr.f32.mxu0 0.0
      %5026 = vmatmul.mubr.f32.gmra.mrb[0].mxu0 %v4830
      %v5027 = vpop.f32.mrb[0].mxu0
      %v5028 = vadd.f32 0.0, %v5027
      %v5029 = vpop.f32.mrb[0].mxu0
      %5030 = vmatprep.mubr.f32.mxu0 0.0
      %5031 = vmatmul.mubr.f32.gmra.mrb[0].mxu0 %v4833
      %v5032 = vpop.f32.mrb[0].mxu0
      %v5033 = vadd.f32 0.0, %v5032
      %v5034 = vpop.f32.mrb[0].mxu0
      %5035 = vmatprep.mubr.f32.mxu0 0.0
      %5036 = vmatmul.mubr.f32.gmra.mrb[0].mxu0 %v4836
      %v5037 = vpop.f32.mrb[0].mxu0
      %v5038 = vadd.f32 0.0, %v5037
      %v5039 = vpop.f32.mrb[0].mxu0
      %5040 = vmatprep.mubr.f32.mxu0 0.0
      %5041 = vmatmul.mubr.f32.gmra.mrb[0].mxu0 %v4839
      %v5042 = vpop.f32.mrb[0].mxu0
      %v5043 = vadd.f32 0.0, %v5042
      %v5044 = vpop.f32.mrb[0].mxu0
      %5045 = vmatprep.mubr.f32.mxu0 0.0
      %5046 = vmatmul.mubr.f32.gmra.mrb[0].mxu0 %v4842
      %v5047 = vpop.f32.mrb[0].mxu0
      %v5048 = vadd.f32 0.0, %v5047
      %v5049 = vpop.f32.mrb[0].mxu0
      %5050 = vmatprep.mubr.f32.mxu0 0.0
      %5051 = vmatmul.mubr.f32.gmra.mrb[0].mxu0 %v4845
      %v5052 = vpop.f32.mrb[0].mxu0
      %v5053 = vadd.f32 0.0, %v5052
      %v5054 = vpop.f32.mrb[0].mxu0
      %5055 = vmatprep.mubr.f32.mxu0 0.0
      %5056 = vmatmul.mubr.f32.gmra.mrb[0].mxu0 %v4848
      %v5057 = vpop.f32.mrb[0].mxu0
      %v5058 = vadd.f32 0.0, %v5057
      %v5059 = vpop.f32.mrb[0].mxu0
      %5060 = vmatprep.mubr.f32.mxu0 0.0
      %5061 = vmatmul.mubr.f32.gmra.mrb[0].mxu0 %v4851
      %v5062 = vpop.f32.mrb[0].mxu0
      %v5063 = vadd.f32 0.0, %v5062
      %v5064 = vpop.f32.mrb[0].mxu0
      %5065 = vmatprep.mubr.f32.mxu0 0.0
      %5066 = vmatmul.mubr.f32.gmra.mrb[0].mxu0 %v4854
      %v5067 = vpop.f32.mrb[0].mxu0
      %v5068 = vadd.f32 0.0, %v5067
      %v5069 = vpop.f32.mrb[0].mxu0
      %5070 = vmatprep.mubr.f32.mxu0 0.0
      %5071 = vmatmul.mubr.f32.gmra.mrb[0].mxu0 %v4857
      %v5072 = vpop.f32.mrb[0].mxu0
      %v5073 = vadd.f32 0.0, %v5072
      %v5074 = vpop.f32.mrb[0].mxu0
      %5075 = vmatprep.mubr.f32.mxu0 0.0
      %5076 = vmatmul.mubr.f32.gmra.mrb[0].mxu0 %v4860
      %v5077 = vpop.f32.mrb[0].mxu0
      %v5078 = vadd.f32 0.0, %v5077
      %v5079 = vpop.f32.mrb[0].mxu0
      %5080 = vmatprep.mubr.f32.mxu0 0.0
      %5081 = vmatmul.mubr.f32.gmra.mrb[0].mxu0 %v4863
      %v5082 = vpop.f32.mrb[0].mxu0
      %v5083 = vadd.f32 0.0, %v5082
      %v5084 = vpop.f32.mrb[0].mxu0
      %5085 = vmatprep.mubr.f32.mxu0 0.0
      %5086 = vmatmul.mubr.f32.gmra.mrb[0].mxu0 %v4866
      %v5087 = vpop.f32.mrb[0].mxu0
      %v5088 = vadd.f32 0.0, %v5087
      %v5089 = vpop.f32.mrb[0].mxu0
      %5090 = vmatprep.mubr.f32.mxu0 0.0
      %5091 = vmatmul.mubr.f32.gmra.mrb[0].mxu0 %v4869
      %v5092 = vpop.f32.mrb[0].mxu0
      %v5093 = vadd.f32 0.0, %v5092
      %v5094 = vpop.f32.mrb[0].mxu0
      %5095 = vmatprep.mubr.f32.mxu0 0.0
      %5096 = vmatmul.mubr.f32.gmra.mrb[0].mxu0 %v4872
      %v5097 = vpop.f32.mrb[0].mxu0
      %v5098 = vadd.f32 0.0, %v5097
      %v5099 = vpop.f32.mrb[0].mxu0
      %5100 = vmatprep.mubr.f32.mxu0 0.0
      %5101 = vmatmul.mubr.f32.gmra.mrb[0].mxu0 %v4875
      %v5102 = vpop.f32.mrb[0].mxu0
      %v5103 = vadd.f32 0.0, %v5102
      %v5104 = vpop.f32.mrb[0].mxu0
      %5105 = vmatprep.mubr.f32.mxu0 0.0
      %5106 = vmatmul.mubr.f32.gmra.mrb[0].mxu0 %v4878
      %v5107 = vpop.f32.mrb[0].mxu0
      %v5108 = vadd.f32 0.0, %v5107
      %v5109 = vpop.f32.mrb[0].mxu0
      %5110 = vmatprep.mubr.f32.mxu0 0.0
      %5111 = vmatmul.mubr.f32.gmra.mrb[0].mxu0 %v4881
      %v5112 = vpop.f32.mrb[0].mxu0
      %v5113 = vadd.f32 0.0, %v5112
      %v5114 = vpop.f32.mrb[0].mxu0
      %5115 = vmatprep.mubr.f32.mxu0 0.0
      %5116 = vmatmul.mubr.f32.gmra.mrb[0].mxu0 %v4884
      %v5117 = vpop.f32.mrb[0].mxu0
      %v5118 = vadd.f32 0.0, %v5117
      %v5119 = vpop.f32.mrb[0].mxu0
      %5120 = vmatprep.mubr.f32.mxu0 0.0
      %5121 = vmatmul.mubr.f32.gmra.mrb[0].mxu0 %v4887
      %v5122 = vpop.f32.mrb[0].mxu0
      %v5123 = vadd.f32 0.0, %v5122
      %v5124 = vpop.f32.mrb[0].mxu0
      %5125 = vmatprep.mubr.f32.mxu0 0.0
      %5126 = vmatmul.mubr.f32.gmra.mrb[0].mxu0 %v4890
      %v5127 = vpop.f32.mrb[0].mxu0
      %v5128 = vadd.f32 0.0, %v5127
      %v5129 = vpop.f32.mrb[0].mxu0
      %5130 = vmatprep.mubr.f32.mxu0 0.0
      %5131 = vmatmul.mubr.f32.gmra.mrb[0].mxu0 %v4893
      %v5132 = vpop.f32.mrb[0].mxu0
      %v5133 = vadd.f32 0.0, %v5132
      %v5134 = vpop.f32.mrb[0].mxu0
      %5135 = vmatprep.mubr.f32.mxu0 0.0
      %5136 = vmatmul.mubr.f32.gmra.mrb[0].mxu0 %v4896
      %v5137 = vpop.f32.mrb[0].mxu0
      %v5138 = vadd.f32 0.0, %v5137
      %v5139 = vpop.f32.mrb[0].mxu0
      %5140 = vmatprep.mubr.f32.mxu0 0.0
      %5141 = vmatmul.mubr.f32.gmra.mrb[0].mxu0 %v4899
      %v5142 = vpop.f32.mrb[0].mxu0
      %v5143 = vadd.f32 0.0, %v5142
      %v5144 = vpop.f32.mrb[0].mxu0
      %5145 = vdwg.mxu0
      %v5146 = vadd.f32 %v4716, %v4968
      %v5147 = vadd.f32 %v4717, %v4973
      %v5148 = vadd.f32 %v4718, %v4978
      %v5149 = vadd.f32 %v4719, %v4983
      %v5150 = vadd.f32 %v4720, %v4988
      %v5151 = vadd.f32 %v4721, %v4993
      %v5152 = vadd.f32 %v4722, %v4998
      %v5153 = vadd.f32 %v4723, %v5003
      %v5154 = vadd.f32 %v4724, %v5008
      %v5155 = vadd.f32 %v4725, %v5013
      %v5156 = vadd.f32 %v4726, %v5018
      %v5157 = vadd.f32 %v4727, %v5023
      %v5158 = vadd.f32 %v4728, %v5028
      %v5159 = vadd.f32 %v4729, %v5033
      %v5160 = vadd.f32 %v4730, %v5038
      %v5161 = vadd.f32 %v4731, %v5043
      %v5162 = vadd.f32 %v4732, %v5048
      %v5163 = vadd.f32 %v4733, %v5053
      %v5164 = vadd.f32 %v4734, %v5058
      %v5165 = vadd.f32 %v4735, %v5063
      %v5166 = vadd.f32 %v4736, %v5068
      %v5167 = vadd.f32 %v4737, %v5073
      %v5168 = vadd.f32 %v4738, %v5078
      %v5169 = vadd.f32 %v4739, %v5083
      %v5170 = vadd.f32 %v4740, %v5088
      %v5171 = vadd.f32 %v4741, %v5093
      %v5172 = vadd.f32 %v4742, %v5098
      %v5173 = vadd.f32 %v4743, %v5103
      %v5174 = vadd.f32 %v4744, %v5108
      %v5175 = vadd.f32 %v4745, %v5113
      %v5176 = vadd.f32 %v4746, %v5118
      %v5177 = vadd.f32 %v4747, %v5123
      %v5178 = vadd.f32 %v4748, %v5128
      %v5179 = vadd.f32 %v4749, %v5133
      %v5180 = vadd.f32 %v4750, %v5138
      %v5181 = vadd.f32 %v4751, %v5143
      %v5182 = vld [vmem:[#allocation2 + $0x26] sm:$0xff]
      %v5183 = vld [vmem:[#allocation2 + $0x2e] sm:$0xff]
      %v5184 = vld [vmem:[#allocation2 + $0x36] sm:$0xff]
      %v5185 = vld [vmem:[#allocation2 + $0x3e] sm:$0xff]
      %v5186 = vld [vmem:[#allocation2 + $0x46] sm:$0xff]
      %v5187 = vld [vmem:[#allocation2 + $0x4e] sm:$0xff]
      %v5188 = vld [vmem:[#allocation2 + $0x56] sm:$0xff]
      %v5189 = vld [vmem:[#allocation2 + $0x5e] sm:$0xff]
      %v5190 = vld [vmem:[#allocation2 + $0x66] sm:$0xff]
      %v5191 = vld [vmem:[#allocation2 + $0x6e] sm:$0xff]
      %v5192 = vld [vmem:[#allocation2 + $0x76] sm:$0xff]
      %v5193 = vld [vmem:[#allocation2 + $0x7e] sm:$0xff]
      %v5194 = vld [vmem:[#allocation2 + $0x86] sm:$0xff]
      %v5195 = vld [vmem:[#allocation2 + $0x8e] sm:$0xff]
      %v5196 = vld [vmem:[#allocation2 + $0x96] sm:$0xff]
      %v5197 = vld [vmem:[#allocation2 + $0x9e] sm:$0xff]
      %v5198 = vld [vmem:[#allocation2 + $0xa6] sm:$0xff]
      %v5199 = vld [vmem:[#allocation2 + $0xae] sm:$0xff]
      %v5200 = vld [vmem:[#allocation2 + $0xb6] sm:$0xff]
      %v5201 = vld [vmem:[#allocation2 + $0xbe] sm:$0xff]
      %v5202 = vld [vmem:[#allocation2 + $0xc6] sm:$0xff]
      %v5203 = vld [vmem:[#allocation2 + $0xce] sm:$0xff]
      %v5204 = vld [vmem:[#allocation2 + $0xd6] sm:$0xff]
      %v5205 = vld [vmem:[#allocation2 + $0xde] sm:$0xff]
      %v5206 = vld [vmem:[#allocation2 + $0xe6] sm:$0xff]
      %v5207 = vld [vmem:[#allocation2 + $0xee] sm:$0xff]
      %v5208 = vld [vmem:[#allocation2 + $0xf6] sm:$0xff]
      %v5209 = vld [vmem:[#allocation2 + $0xfe] sm:$0xff]
      %v5210 = vld [vmem:[#allocation2 + $0x106] sm:$0xff]
      %v5211 = vld [vmem:[#allocation2 + $0x10e] sm:$0xff]
      %v5212 = vld [vmem:[#allocation2 + $0x116] sm:$0xff]
      %v5213 = vld [vmem:[#allocation2 + $0x11e] sm:$0xff]
      %v5214 = vld [vmem:[#allocation2 + $0x126] sm:$0xff]
      %v5215 = vld [vmem:[#allocation2 + $0x12e] sm:$0xff]
      %v5216 = vld [vmem:[#allocation2 + $0x136] sm:$0xff]
      %v5217 = vld [vmem:[#allocation2 + $0x13e] sm:$0xff]
      %s5218 = scalar_lea.vmem %s3, 256
      %v5219 = vld [vmem:[%s5218] sm:$0xff]
      %v5220 = vld [vmem:[%s5218 + $0x8] sm:$0xff]
      %v5221 = vld [vmem:[%s5218 + $0x10] sm:$0xff]
      %v5222 = vld [vmem:[%s5218 + $0x18] sm:$0xff]
      %v5224 = vsel %vm357, %v5182, 0
      %v5227 = vsel %vm357, %v5183, 0
      %v5230 = vsel %vm357, %v5184, 0
      %v5233 = vsel %vm357, %v5185, 0
      %v5236 = vsel %vm357, %v5186, 0
      %v5239 = vsel %vm357, %v5187, 0
      %v5242 = vsel %vm357, %v5188, 0
      %v5245 = vsel %vm357, %v5189, 0
      %v5248 = vsel %vm357, %v5190, 0
      %v5251 = vsel %vm357, %v5191, 0
      %v5254 = vsel %vm357, %v5192, 0
      %v5257 = vsel %vm357, %v5193, 0
      %v5260 = vsel %vm357, %v5194, 0
      %v5263 = vsel %vm357, %v5195, 0
      %v5266 = vsel %vm357, %v5196, 0
      %v5269 = vsel %vm357, %v5197, 0
      %v5272 = vsel %vm357, %v5198, 0
      %v5275 = vsel %vm357, %v5199, 0
      %v5278 = vsel %vm357, %v5200, 0
      %v5281 = vsel %vm357, %v5201, 0
      %v5284 = vsel %vm357, %v5202, 0
      %v5287 = vsel %vm357, %v5203, 0
      %v5290 = vsel %vm357, %v5204, 0
      %v5293 = vsel %vm357, %v5205, 0
      %v5296 = vsel %vm357, %v5206, 0
      %v5299 = vsel %vm357, %v5207, 0
      %v5302 = vsel %vm357, %v5208, 0
      %v5305 = vsel %vm357, %v5209, 0
      %v5308 = vsel %vm357, %v5210, 0
      %v5311 = vsel %vm357, %v5211, 0
      %v5314 = vsel %vm357, %v5212, 0
      %v5317 = vsel %vm357, %v5213, 0
      %v5320 = vsel %vm357, %v5214, 0
      %v5323 = vsel %vm357, %v5215, 0
      %v5326 = vsel %vm357, %v5216, 0
      %v5329 = vsel %vm357, %v5217, 0
      %5331 = vmatprep.subr.mxu0 0.0
      %5332 = vmatpush1.msra.mxu0 %v5219
      %5333 = vmatprep.subr.mxu0 0.0
      %5334 = vmatpush1.msra.mxu0 %v5220
      %5335 = vmatprep.subr.mxu0 0.0
      %5336 = vmatpush1.msra.mxu0 %v5221
      %5337 = vmatprep.subr.mxu0 0.0
      %5338 = vmatpush1.msra.mxu0 %v5222
      %5339 = vmatprep.subr.mxu0 0.0
      %5340 = vmatpush1.msra.mxu0 0.0
      %5341 = vmatprep.subr.mxu0 0.0
      %5342 = vmatpush1.msra.mxu0 0.0
      %5343 = vmatprep.subr.mxu0 0.0
      %5344 = vmatpush1.msra.mxu0 0.0
      %5345 = vmatprep.subr.mxu0 0.0
      %5346 = vmatpush1.msra.mxu0 0.0
      %5347 = vmatprep.subr.mxu0 0.0
      %5348 = vmatpush1.msra.mxu0 0.0
      %5349 = vmatprep.subr.mxu0 0.0
      %5350 = vmatpush1.msra.mxu0 0.0
      %5351 = vmatprep.subr.mxu0 0.0
      %5352 = vmatpush1.msra.mxu0 0.0
      %5353 = vmatprep.subr.mxu0 0.0
      %5354 = vmatpush1.msra.mxu0 0.0
      %5355 = vmatprep.subr.mxu0 0.0
      %5356 = vmatpush1.msra.mxu0 0.0
      %5357 = vmatprep.subr.mxu0 0.0
      %5358 = vmatpush1.msra.mxu0 0.0
      %5359 = vmatprep.subr.mxu0 0.0
      %5360 = vmatpush1.msra.mxu0 0.0
      %5361 = vmatprep.subr.mxu0 0.0
      %5362 = vmatpush1.msra.mxu0 0.0
      %5363 = vmatprep.subr.mxu0 0.0
      %5364 = vmatpush1.msra.mxu0 0.0
      %5365 = vmatprep.subr.mxu0 0.0
      %5366 = vmatpush1.msra.mxu0 0.0
      %5367 = vmatprep.subr.mxu0 0.0
      %5368 = vmatpush1.msra.mxu0 0.0
      %5369 = vmatprep.subr.mxu0 0.0
      %5370 = vmatpush1.msra.mxu0 0.0
      %5371 = vmatprep.subr.mxu0 0.0
      %5372 = vmatpush1.msra.mxu0 0.0
      %5373 = vmatprep.subr.mxu0 0.0
      %5374 = vmatpush1.msra.mxu0 0.0
      %5375 = vmatprep.subr.mxu0 0.0
      %5376 = vmatpush1.msra.mxu0 0.0
      %5377 = vmatprep.subr.mxu0 0.0
      %5378 = vmatpush1.msra.mxu0 0.0
      %5379 = vmatprep.subr.mxu0 0.0
      %5380 = vmatpush1.msra.mxu0 0.0
      %5381 = vmatprep.subr.mxu0 0.0
      %5382 = vmatpush1.msra.mxu0 0.0
      %5383 = vmatprep.subr.mxu0 0.0
      %5384 = vmatpush1.msra.mxu0 0.0
      %5385 = vmatprep.subr.mxu0 0.0
      %5386 = vmatpush1.msra.mxu0 0.0
      %5387 = vmatprep.subr.mxu0 0.0
      %5388 = vmatpush1.msra.mxu0 0.0
      %5389 = vmatprep.subr.mxu0 0.0
      %5390 = vmatpush1.msra.mxu0 0.0
      %5391 = vmatprep.subr.mxu0 0.0
      %5392 = vmatpush1.msra.mxu0 0.0
      %5393 = vmatprep.subr.mxu0 0.0
      %5394 = vmatpush1.msra.mxu0 0.0
      %5395 = vmatprep.mubr.f32.mxu0 0.0
      %5396 = vmatmul.mubr.f32.gmra.mrb[0].mxu0 %v5224
      %v5397 = vpop.f32.mrb[0].mxu0
      %v5398 = vadd.f32 0.0, %v5397
      %v5399 = vpop.f32.mrb[0].mxu0
      %5400 = vmatprep.mubr.f32.mxu0 0.0
      %5401 = vmatmul.mubr.f32.gmra.mrb[0].mxu0 %v5227
      %v5402 = vpop.f32.mrb[0].mxu0
      %v5403 = vadd.f32 0.0, %v5402
      %v5404 = vpop.f32.mrb[0].mxu0
      %5405 = vmatprep.mubr.f32.mxu0 0.0
      %5406 = vmatmul.mubr.f32.gmra.mrb[0].mxu0 %v5230
      %v5407 = vpop.f32.mrb[0].mxu0
      %v5408 = vadd.f32 0.0, %v5407
      %v5409 = vpop.f32.mrb[0].mxu0
      %5410 = vmatprep.mubr.f32.mxu0 0.0
      %5411 = vmatmul.mubr.f32.gmra.mrb[0].mxu0 %v5233
      %v5412 = vpop.f32.mrb[0].mxu0
      %v5413 = vadd.f32 0.0, %v5412
      %v5414 = vpop.f32.mrb[0].mxu0
      %5415 = vmatprep.mubr.f32.mxu0 0.0
      %5416 = vmatmul.mubr.f32.gmra.mrb[0].mxu0 %v5236
      %v5417 = vpop.f32.mrb[0].mxu0
      %v5418 = vadd.f32 0.0, %v5417
      %v5419 = vpop.f32.mrb[0].mxu0
      %5420 = vmatprep.mubr.f32.mxu0 0.0
      %5421 = vmatmul.mubr.f32.gmra.mrb[0].mxu0 %v5239
      %v5422 = vpop.f32.mrb[0].mxu0
      %v5423 = vadd.f32 0.0, %v5422
      %v5424 = vpop.f32.mrb[0].mxu0
      %5425 = vmatprep.mubr.f32.mxu0 0.0
      %5426 = vmatmul.mubr.f32.gmra.mrb[0].mxu0 %v5242
      %v5427 = vpop.f32.mrb[0].mxu0
      %v5428 = vadd.f32 0.0, %v5427
      %v5429 = vpop.f32.mrb[0].mxu0
      %5430 = vmatprep.mubr.f32.mxu0 0.0
      %5431 = vmatmul.mubr.f32.gmra.mrb[0].mxu0 %v5245
      %v5432 = vpop.f32.mrb[0].mxu0
      %v5433 = vadd.f32 0.0, %v5432
      %v5434 = vpop.f32.mrb[0].mxu0
      %5435 = vmatprep.mubr.f32.mxu0 0.0
      %5436 = vmatmul.mubr.f32.gmra.mrb[0].mxu0 %v5248
      %v5437 = vpop.f32.mrb[0].mxu0
      %v5438 = vadd.f32 0.0, %v5437
      %v5439 = vpop.f32.mrb[0].mxu0
      %5440 = vmatprep.mubr.f32.mxu0 0.0
      %5441 = vmatmul.mubr.f32.gmra.mrb[0].mxu0 %v5251
      %v5442 = vpop.f32.mrb[0].mxu0
      %v5443 = vadd.f32 0.0, %v5442
      %v5444 = vpop.f32.mrb[0].mxu0
      %5445 = vmatprep.mubr.f32.mxu0 0.0
      %5446 = vmatmul.mubr.f32.gmra.mrb[0].mxu0 %v5254
      %v5447 = vpop.f32.mrb[0].mxu0
      %v5448 = vadd.f32 0.0, %v5447
      %v5449 = vpop.f32.mrb[0].mxu0
      %5450 = vmatprep.mubr.f32.mxu0 0.0
      %5451 = vmatmul.mubr.f32.gmra.mrb[0].mxu0 %v5257
      %v5452 = vpop.f32.mrb[0].mxu0
      %v5453 = vadd.f32 0.0, %v5452
      %v5454 = vpop.f32.mrb[0].mxu0
      %5455 = vmatprep.mubr.f32.mxu0 0.0
      %5456 = vmatmul.mubr.f32.gmra.mrb[0].mxu0 %v5260
      %v5457 = vpop.f32.mrb[0].mxu0
      %v5458 = vadd.f32 0.0, %v5457
      %v5459 = vpop.f32.mrb[0].mxu0
      %5460 = vmatprep.mubr.f32.mxu0 0.0
      %5461 = vmatmul.mubr.f32.gmra.mrb[0].mxu0 %v5263
      %v5462 = vpop.f32.mrb[0].mxu0
      %v5463 = vadd.f32 0.0, %v5462
      %v5464 = vpop.f32.mrb[0].mxu0
      %5465 = vmatprep.mubr.f32.mxu0 0.0
      %5466 = vmatmul.mubr.f32.gmra.mrb[0].mxu0 %v5266
      %v5467 = vpop.f32.mrb[0].mxu0
      %v5468 = vadd.f32 0.0, %v5467
      %v5469 = vpop.f32.mrb[0].mxu0
      %5470 = vmatprep.mubr.f32.mxu0 0.0
      %5471 = vmatmul.mubr.f32.gmra.mrb[0].mxu0 %v5269
      %v5472 = vpop.f32.mrb[0].mxu0
      %v5473 = vadd.f32 0.0, %v5472
      %v5474 = vpop.f32.mrb[0].mxu0
      %5475 = vmatprep.mubr.f32.mxu0 0.0
      %5476 = vmatmul.mubr.f32.gmra.mrb[0].mxu0 %v5272
      %v5477 = vpop.f32.mrb[0].mxu0
      %v5478 = vadd.f32 0.0, %v5477
      %v5479 = vpop.f32.mrb[0].mxu0
      %5480 = vmatprep.mubr.f32.mxu0 0.0
      %5481 = vmatmul.mubr.f32.gmra.mrb[0].mxu0 %v5275
      %v5482 = vpop.f32.mrb[0].mxu0
      %v5483 = vadd.f32 0.0, %v5482
      %v5484 = vpop.f32.mrb[0].mxu0
      %5485 = vmatprep.mubr.f32.mxu0 0.0
      %5486 = vmatmul.mubr.f32.gmra.mrb[0].mxu0 %v5278
      %v5487 = vpop.f32.mrb[0].mxu0
      %v5488 = vadd.f32 0.0, %v5487
      %v5489 = vpop.f32.mrb[0].mxu0
      %5490 = vmatprep.mubr.f32.mxu0 0.0
      %5491 = vmatmul.mubr.f32.gmra.mrb[0].mxu0 %v5281
      %v5492 = vpop.f32.mrb[0].mxu0
      %v5493 = vadd.f32 0.0, %v5492
      %v5494 = vpop.f32.mrb[0].mxu0
      %5495 = vmatprep.mubr.f32.mxu0 0.0
      %5496 = vmatmul.mubr.f32.gmra.mrb[0].mxu0 %v5284
      %v5497 = vpop.f32.mrb[0].mxu0
      %v5498 = vadd.f32 0.0, %v5497
      %v5499 = vpop.f32.mrb[0].mxu0
      %5500 = vmatprep.mubr.f32.mxu0 0.0
      %5501 = vmatmul.mubr.f32.gmra.mrb[0].mxu0 %v5287
      %v5502 = vpop.f32.mrb[0].mxu0
      %v5503 = vadd.f32 0.0, %v5502
      %v5504 = vpop.f32.mrb[0].mxu0
      %5505 = vmatprep.mubr.f32.mxu0 0.0
      %5506 = vmatmul.mubr.f32.gmra.mrb[0].mxu0 %v5290
      %v5507 = vpop.f32.mrb[0].mxu0
      %v5508 = vadd.f32 0.0, %v5507
      %v5509 = vpop.f32.mrb[0].mxu0
      %5510 = vmatprep.mubr.f32.mxu0 0.0
      %5511 = vmatmul.mubr.f32.gmra.mrb[0].mxu0 %v5293
      %v5512 = vpop.f32.mrb[0].mxu0
      %v5513 = vadd.f32 0.0, %v5512
      %v5514 = vpop.f32.mrb[0].mxu0
      %5515 = vmatprep.mubr.f32.mxu0 0.0
      %5516 = vmatmul.mubr.f32.gmra.mrb[0].mxu0 %v5296
      %v5517 = vpop.f32.mrb[0].mxu0
      %v5518 = vadd.f32 0.0, %v5517
      %v5519 = vpop.f32.mrb[0].mxu0
      %5520 = vmatprep.mubr.f32.mxu0 0.0
      %5521 = vmatmul.mubr.f32.gmra.mrb[0].mxu0 %v5299
      %v5522 = vpop.f32.mrb[0].mxu0
      %v5523 = vadd.f32 0.0, %v5522
      %v5524 = vpop.f32.mrb[0].mxu0
      %5525 = vmatprep.mubr.f32.mxu0 0.0
      %5526 = vmatmul.mubr.f32.gmra.mrb[0].mxu0 %v5302
      %v5527 = vpop.f32.mrb[0].mxu0
      %v5528 = vadd.f32 0.0, %v5527
      %v5529 = vpop.f32.mrb[0].mxu0
      %5530 = vmatprep.mubr.f32.mxu0 0.0
      %5531 = vmatmul.mubr.f32.gmra.mrb[0].mxu0 %v5305
      %v5532 = vpop.f32.mrb[0].mxu0
      %v5533 = vadd.f32 0.0, %v5532
      %v5534 = vpop.f32.mrb[0].mxu0
      %5535 = vmatprep.mubr.f32.mxu0 0.0
      %5536 = vmatmul.mubr.f32.gmra.mrb[0].mxu0 %v5308
      %v5537 = vpop.f32.mrb[0].mxu0
      %v5538 = vadd.f32 0.0, %v5537
      %v5539 = vpop.f32.mrb[0].mxu0
      %5540 = vmatprep.mubr.f32.mxu0 0.0
      %5541 = vmatmul.mubr.f32.gmra.mrb[0].mxu0 %v5311
      %v5542 = vpop.f32.mrb[0].mxu0
      %v5543 = vadd.f32 0.0, %v5542
      %v5544 = vpop.f32.mrb[0].mxu0
      %5545 = vmatprep.mubr.f32.mxu0 0.0
      %5546 = vmatmul.mubr.f32.gmra.mrb[0].mxu0 %v5314
      %v5547 = vpop.f32.mrb[0].mxu0
      %v5548 = vadd.f32 0.0, %v5547
      %v5549 = vpop.f32.mrb[0].mxu0
      %5550 = vmatprep.mubr.f32.mxu0 0.0
      %5551 = vmatmul.mubr.f32.gmra.mrb[0].mxu0 %v5317
      %v5552 = vpop.f32.mrb[0].mxu0
      %v5553 = vadd.f32 0.0, %v5552
      %v5554 = vpop.f32.mrb[0].mxu0
      %5555 = vmatprep.mubr.f32.mxu0 0.0
      %5556 = vmatmul.mubr.f32.gmra.mrb[0].mxu0 %v5320
      %v5557 = vpop.f32.mrb[0].mxu0
      %v5558 = vadd.f32 0.0, %v5557
      %v5559 = vpop.f32.mrb[0].mxu0
      %5560 = vmatprep.mubr.f32.mxu0 0.0
      %5561 = vmatmul.mubr.f32.gmra.mrb[0].mxu0 %v5323
      %v5562 = vpop.f32.mrb[0].mxu0
      %v5563 = vadd.f32 0.0, %v5562
      %v5564 = vpop.f32.mrb[0].mxu0
      %5565 = vmatprep.mubr.f32.mxu0 0.0
      %5566 = vmatmul.mubr.f32.gmra.mrb[0].mxu0 %v5326
      %v5567 = vpop.f32.mrb[0].mxu0
      %v5568 = vadd.f32 0.0, %v5567
      %v5569 = vpop.f32.mrb[0].mxu0
      %5570 = vmatprep.mubr.f32.mxu0 0.0
      %5571 = vmatmul.mubr.f32.gmra.mrb[0].mxu0 %v5329
      %v5572 = vpop.f32.mrb[0].mxu0
      %v5573 = vadd.f32 0.0, %v5572
      %v5574 = vpop.f32.mrb[0].mxu0
      %5575 = vdwg.mxu0
      %v5576 = vadd.f32 %v5146, %v5398
      %v5577 = vadd.f32 %v5147, %v5403
      %v5578 = vadd.f32 %v5148, %v5408
      %v5579 = vadd.f32 %v5149, %v5413
      %v5580 = vadd.f32 %v5150, %v5418
      %v5581 = vadd.f32 %v5151, %v5423
      %v5582 = vadd.f32 %v5152, %v5428
      %v5583 = vadd.f32 %v5153, %v5433
      %v5584 = vadd.f32 %v5154, %v5438
      %v5585 = vadd.f32 %v5155, %v5443
      %v5586 = vadd.f32 %v5156, %v5448
      %v5587 = vadd.f32 %v5157, %v5453
      %v5588 = vadd.f32 %v5158, %v5458
      %v5589 = vadd.f32 %v5159, %v5463
      %v5590 = vadd.f32 %v5160, %v5468
      %v5591 = vadd.f32 %v5161, %v5473
      %v5592 = vadd.f32 %v5162, %v5478
      %v5593 = vadd.f32 %v5163, %v5483
      %v5594 = vadd.f32 %v5164, %v5488
      %v5595 = vadd.f32 %v5165, %v5493
      %v5596 = vadd.f32 %v5166, %v5498
      %v5597 = vadd.f32 %v5167, %v5503
      %v5598 = vadd.f32 %v5168, %v5508
      %v5599 = vadd.f32 %v5169, %v5513
      %v5600 = vadd.f32 %v5170, %v5518
      %v5601 = vadd.f32 %v5171, %v5523
      %v5602 = vadd.f32 %v5172, %v5528
      %v5603 = vadd.f32 %v5173, %v5533
      %v5604 = vadd.f32 %v5174, %v5538
      %v5605 = vadd.f32 %v5175, %v5543
      %v5606 = vadd.f32 %v5176, %v5548
      %v5607 = vadd.f32 %v5177, %v5553
      %v5608 = vadd.f32 %v5178, %v5558
      %v5609 = vadd.f32 %v5179, %v5563
      %v5610 = vadd.f32 %v5180, %v5568
      %v5611 = vadd.f32 %v5181, %v5573
      %vm5612 = vcmask 523264
      %5613 = vst.msk [vmem:[#allocation3] sm:$0xff] %vm5612, %v5576
      %5614 = vst.msk [vmem:[#allocation3 + $0x8] sm:$0xff] %vm5612, %v5577
      %5615 = vst.msk [vmem:[#allocation3 + $0x10] sm:$0xff] %vm5612, %v5578
      %5616 = vst.msk [vmem:[#allocation3 + $0x18] sm:$0xff] %vm5612, %v5579
      %5617 = vst.msk [vmem:[#allocation3 + $0x20] sm:$0xff] %vm5612, %v5580
      %5618 = vst.msk [vmem:[#allocation3 + $0x28] sm:$0xff] %vm5612, %v5581
      %5619 = vst.msk [vmem:[#allocation3 + $0x30] sm:$0xff] %vm5612, %v5582
      %5620 = vst.msk [vmem:[#allocation3 + $0x38] sm:$0xff] %vm5612, %v5583
      %5621 = vst.msk [vmem:[#allocation3 + $0x40] sm:$0xff] %vm5612, %v5584
      %5622 = vst.msk [vmem:[#allocation3 + $0x48] sm:$0xff] %vm5612, %v5585
      %5623 = vst.msk [vmem:[#allocation3 + $0x50] sm:$0xff] %vm5612, %v5586
      %5624 = vst.msk [vmem:[#allocation3 + $0x58] sm:$0xff] %vm5612, %v5587
      %5625 = vst.msk [vmem:[#allocation3 + $0x60] sm:$0xff] %vm5612, %v5588
      %5626 = vst.msk [vmem:[#allocation3 + $0x68] sm:$0xff] %vm5612, %v5589
      %5627 = vst.msk [vmem:[#allocation3 + $0x70] sm:$0xff] %vm5612, %v5590
      %5628 = vst.msk [vmem:[#allocation3 + $0x78] sm:$0xff] %vm5612, %v5591
      %5629 = vst.msk [vmem:[#allocation3 + $0x80] sm:$0xff] %vm5612, %v5592
      %5630 = vst.msk [vmem:[#allocation3 + $0x88] sm:$0xff] %vm5612, %v5593
      %5631 = vst.msk [vmem:[#allocation3 + $0x90] sm:$0xff] %vm5612, %v5594
      %5632 = vst.msk [vmem:[#allocation3 + $0x98] sm:$0xff] %vm5612, %v5595
      %5633 = vst.msk [vmem:[#allocation3 + $0xa0] sm:$0xff] %vm5612, %v5596
      %5634 = vst.msk [vmem:[#allocation3 + $0xa8] sm:$0xff] %vm5612, %v5597
      %5635 = vst.msk [vmem:[#allocation3 + $0xb0] sm:$0xff] %vm5612, %v5598
      %5636 = vst.msk [vmem:[#allocation3 + $0xb8] sm:$0xff] %vm5612, %v5599
      %5637 = vst.msk [vmem:[#allocation3 + $0xc0] sm:$0xff] %vm5612, %v5600
      %5638 = vst.msk [vmem:[#allocation3 + $0xc8] sm:$0xff] %vm5612, %v5601
      %5639 = vst.msk [vmem:[#allocation3 + $0xd0] sm:$0xff] %vm5612, %v5602
      %5640 = vst.msk [vmem:[#allocation3 + $0xd8] sm:$0xff] %vm5612, %v5603
      %5641 = vst.msk [vmem:[#allocation3 + $0xe0] sm:$0xff] %vm5612, %v5604
      %5642 = vst.msk [vmem:[#allocation3 + $0xe8] sm:$0xff] %vm5612, %v5605
      %5643 = vst.msk [vmem:[#allocation3 + $0xf0] sm:$0xff] %vm5612, %v5606
      %5644 = vst.msk [vmem:[#allocation3 + $0xf8] sm:$0xff] %vm5612, %v5607
      %5645 = vst.msk [vmem:[#allocation3 + $0x100] sm:$0xff] %vm5612, %v5608
      %5646 = vst.msk [vmem:[#allocation3 + $0x108] sm:$0xff] %vm5612, %v5609
      %5647 = vst.msk [vmem:[#allocation3 + $0x110] sm:$0xff] %vm5612, %v5610
      %5648 = vst.msk [vmem:[#allocation3 + $0x118] sm:$0xff] %vm5612, %v5611
      %v5649 = vld [vmem:[#allocation3] sm:$0xff]
      %v5650 = vld [vmem:[#allocation3 + $0x8] sm:$0xff]
      %v5651 = vld [vmem:[#allocation3 + $0x12] sm:$0xff]
      %v5652 = vld [vmem:[#allocation3 + $0x1a] sm:$0xff]
      %v5653 = vmax.f32 %v5649, %v5651
      %v5654 = vmax.f32 %v5650, %v5652
      %5655 = vst.msk [vmem:[#allocation4] sm:$0xff] %vm5612, %v5653
      %5656 = vst.msk [vmem:[#allocation4 + $0x8] sm:$0xff] %vm5612, %v5654
      %v5657 = vld [vmem:[#allocation3 + $0x24] sm:$0xff]
      %v5658 = vld [vmem:[#allocation3 + $0x2c] sm:$0xff]
      %v5659 = vld [vmem:[#allocation3 + $0x36] sm:$0xff]
      %v5660 = vld [vmem:[#allocation3 + $0x3e] sm:$0xff]
      %v5661 = vmax.f32 %v5657, %v5659
      %v5662 = vmax.f32 %v5658, %v5660
      %5663 = vst.msk [vmem:[#allocation4 + $0x10] sm:$0xff] %vm5612, %v5661
      %5664 = vst.msk [vmem:[#allocation4 + $0x18] sm:$0xff] %vm5612, %v5662
      %v5665 = vld [vmem:[#allocation3 + $0x48] sm:$0xff]
      %v5666 = vld [vmem:[#allocation3 + $0x50] sm:$0xff]
      %v5667 = vld [vmem:[#allocation3 + $0x5a] sm:$0xff]
      %v5668 = vld [vmem:[#allocation3 + $0x62] sm:$0xff]
      %v5669 = vmax.f32 %v5665, %v5667
      %v5670 = vmax.f32 %v5666, %v5668
      %5671 = vst.msk [vmem:[#allocation4 + $0x20] sm:$0xff] %vm5612, %v5669
      %5672 = vst.msk [vmem:[#allocation4 + $0x28] sm:$0xff] %vm5612, %v5670
      %v5673 = vld [vmem:[#allocation3 + $0x6c] sm:$0xff]
      %v5674 = vld [vmem:[#allocation3 + $0x74] sm:$0xff]
      %v5675 = vld [vmem:[#allocation3 + $0x7e] sm:$0xff]
      %v5676 = vld [vmem:[#allocation3 + $0x86] sm:$0xff]
      %v5677 = vmax.f32 %v5673, %v5675
      %v5678 = vmax.f32 %v5674, %v5676
      %5679 = vst.msk [vmem:[#allocation4 + $0x30] sm:$0xff] %vm5612, %v5677
      %5680 = vst.msk [vmem:[#allocation4 + $0x38] sm:$0xff] %vm5612, %v5678
      %v5681 = vld [vmem:[#allocation3 + $0x90] sm:$0xff]
      %v5682 = vld [vmem:[#allocation3 + $0x98] sm:$0xff]
      %v5683 = vld [vmem:[#allocation3 + $0xa2] sm:$0xff]
      %v5684 = vld [vmem:[#allocation3 + $0xaa] sm:$0xff]
      %v5685 = vmax.f32 %v5681, %v5683
      %v5686 = vmax.f32 %v5682, %v5684
      %5687 = vst.msk [vmem:[#allocation4 + $0x40] sm:$0xff] %vm5612, %v5685
      %5688 = vst.msk [vmem:[#allocation4 + $0x48] sm:$0xff] %vm5612, %v5686
      %v5689 = vld [vmem:[#allocation3 + $0xb4] sm:$0xff]
      %v5690 = vld [vmem:[#allocation3 + $0xbc] sm:$0xff]
      %v5691 = vld [vmem:[#allocation3 + $0xc6] sm:$0xff]
      %v5692 = vld [vmem:[#allocation3 + $0xce] sm:$0xff]
      %v5693 = vmax.f32 %v5689, %v5691
      %v5694 = vmax.f32 %v5690, %v5692
      %5695 = vst.msk [vmem:[#allocation4 + $0x50] sm:$0xff] %vm5612, %v5693
      %5696 = vst.msk [vmem:[#allocation4 + $0x58] sm:$0xff] %vm5612, %v5694
      %v5697 = vld [vmem:[#allocation3 + $0xd8] sm:$0xff]
      %v5698 = vld [vmem:[#allocation3 + $0xe0] sm:$0xff]
      %v5699 = vld [vmem:[#allocation3 + $0xea] sm:$0xff]
      %v5700 = vld [vmem:[#allocation3 + $0xf2] sm:$0xff]
      %v5701 = vmax.f32 %v5697, %v5699
      %v5702 = vmax.f32 %v5698, %v5700
      %5703 = vst.msk [vmem:[#allocation4 + $0x60] sm:$0xff] %vm5612, %v5701
      %5704 = vst.msk [vmem:[#allocation4 + $0x68] sm:$0xff] %vm5612, %v5702
      %v5705 = vld [vmem:[#allocation3 + $0xfc] sm:$0xff]
      %v5706 = vld [vmem:[#allocation3 + $0x104] sm:$0xff]
      %v5707 = vld [vmem:[#allocation3 + $0x10e] sm:$0xff]
      %v5708 = vld [vmem:[#allocation3 + $0x116] sm:$0xff]
      %v5709 = vmax.f32 %v5705, %v5707
      %v5710 = vmax.f32 %v5706, %v5708
      %5711 = vst.msk [vmem:[#allocation4 + $0x70] sm:$0xff] %vm5612, %v5709
      %5712 = vst.msk [vmem:[#allocation4 + $0x78] sm:$0xff] %vm5612, %v5710
      %v5713 = vld [vmem:[#allocation4] ss:$2 sm:$0xff]
      %s5714 = scalar_lea.vmem [#allocation4], 16
      %v5715 = vld [vmem:[%s5714] ss:$2 sm:$0xff]
      %s5716 = scalar_lea.vmem [#allocation4], 32
      %v5717 = vld [vmem:[%s5716] ss:$2 sm:$0xff]
      %s5718 = scalar_lea.vmem [#allocation4], 48
      %v5719 = vld [vmem:[%s5718] ss:$2 sm:$0xff]
      %s5720 = scalar_lea.vmem [#allocation4], 64
      %v5721 = vld [vmem:[%s5720] ss:$2 sm:$0xff]
      %s5722 = scalar_lea.vmem [#allocation4], 80
      %v5723 = vld [vmem:[%s5722] ss:$2 sm:$0xff]
      %s5724 = scalar_lea.vmem [#allocation4], 96
      %v5725 = vld [vmem:[%s5724] ss:$2 sm:$0xff]
      %s5726 = scalar_lea.vmem [#allocation4], 112
      %v5727 = vld [vmem:[%s5726] ss:$2 sm:$0xff]
      %s5728 = scalar_lea.vmem [#allocation4], 1
      %v5729 = vld [vmem:[%s5728] ss:$2 sm:$0xff]
      %s5730 = scalar_lea.vmem [#allocation4], 17
      %v5731 = vld [vmem:[%s5730] ss:$2 sm:$0xff]
      %s5732 = scalar_lea.vmem [#allocation4], 33
      %v5733 = vld [vmem:[%s5732] ss:$2 sm:$0xff]
      %s5734 = scalar_lea.vmem [#allocation4], 49
      %v5735 = vld [vmem:[%s5734] ss:$2 sm:$0xff]
      %s5736 = scalar_lea.vmem [#allocation4], 65
      %v5737 = vld [vmem:[%s5736] ss:$2 sm:$0xff]
      %s5738 = scalar_lea.vmem [#allocation4], 81
      %v5739 = vld [vmem:[%s5738] ss:$2 sm:$0xff]
      %s5740 = scalar_lea.vmem [#allocation4], 97
      %v5741 = vld [vmem:[%s5740] ss:$2 sm:$0xff]
      %s5742 = scalar_lea.vmem [#allocation4], 113
      %v5743 = vld [vmem:[%s5742] ss:$2 sm:$0xff]
      %v5744 = vmax.f32 %v5713, %v5729
      %v5745 = vmax.f32 %v5715, %v5731
      %v5746 = vmax.f32 %v5717, %v5733
      %v5747 = vmax.f32 %v5719, %v5735
      %v5748 = vmax.f32 %v5721, %v5737
      %v5749 = vmax.f32 %v5723, %v5739
      %v5750 = vmax.f32 %v5725, %v5741
      %v5751 = vmax.f32 %v5727, %v5743
      %v5752 = vld [vmem:[%s4] sm:$0x1]
      %v5754 = vlaneseq
      %v5755 = vshrl.u32 %v5754, 7
      %v5756 = vsub.s32 0, %v5755
      %v5757 = vrot.slane %v5752, %v5756
      %v5759 = vadd.f32 %v5744, %v5757
      %v5760 = vadd.f32 %v5745, %v5757
      %v5761 = vadd.f32 %v5746, %v5757
      %v5762 = vadd.f32 %v5747, %v5757
      %v5763 = vadd.f32 %v5748, %v5757
      %v5764 = vadd.f32 %v5749, %v5757
      %v5765 = vadd.f32 %v5750, %v5757
      %v5766 = vadd.f32 %v5751, %v5757
      %v5767 = vmax.f32 %v5759, 0.0
      %v5768 = vmax.f32 %v5760, 0.0
      %v5769 = vmax.f32 %v5761, 0.0
      %v5770 = vmax.f32 %v5762, 0.0
      %v5771 = vmax.f32 %v5763, 0.0
      %v5772 = vmax.f32 %v5764, 0.0
      %v5773 = vmax.f32 %v5765, 0.0
      %v5774 = vmax.f32 %v5766, 0.0
      %5775 = vst.msk [vmem:[%s224] sm:$0xff] %vm5612, %v5767
      %5776 = vst.msk [vmem:[%s224 + $0x8] sm:$0xff] %vm5612, %v5768
      %5777 = vst.msk [vmem:[%s224 + $0x10] sm:$0xff] %vm5612, %v5769
      %5778 = vst.msk [vmem:[%s224 + $0x18] sm:$0xff] %vm5612, %v5770
      %5779 = vst.msk [vmem:[%s224 + $0x20] sm:$0xff] %vm5612, %v5771
      %5780 = vst.msk [vmem:[%s224 + $0x28] sm:$0xff] %vm5612, %v5772
      %5781 = vst.msk [vmem:[%s224 + $0x30] sm:$0xff] %vm5612, %v5773
      %5782 = vst.msk [vmem:[%s224 + $0x38] sm:$0xff] %vm5612, %v5774
      %p5783 = scmp.lt.s32.totalorder %s16, 1
      %s5784 = scalar_select %p5783, %s16, 1
      %s5785 = smul.addr %s5784, 8
      %s5786 = smul.addr %s5785, 8
      %s5787 = scalar_lea.vmem %s5, %s5786
      // Predicated region
      $region41: #{cnn_forward.2} parent=39 // pred_check
        %p5788 = pneg %p144
      $region42: #{cnn_forward.2} parent=39 // pred_check_branch
        %5790 = sbr.rel (%p5788) target = $region44
      $region43: #{cnn_forward.2} parent=39 // pred_region
        _
      $region44: #{cnn_forward.2} parent=39 // pred_fallthru
        _
    $region40: #{cnn_forward.2} parent=5 // pred_fallthru
      _
    %p5791 = scmp.le.s32.totalorder 2, %s11
    // Predicated region
    $region45: #{cnn_forward.2} parent=5 // pred_check
      %p5792 = pneg %p5791
    $region46: #{cnn_forward.2} parent=5 // pred_check_branch
      %5794 = sbr.rel (%p5792) target = $region48
    $region47: #{cnn_forward.2} parent=5 // pred_region
      %s5795 = ssub.s32 %s11, 2
      // Predicated region
      $region49: #{cnn_forward.2} parent=47 // pred_check
        %p5796 = pneg %p150
      $region50: #{cnn_forward.2} parent=47 // pred_check_branch
        %5798 = sbr.rel (%p5796) target = $region52
      $region51: #{cnn_forward.2} parent=47 // pred_region
        %p5799 = scmp.lt.s32.totalorder %s17, 1
        %s5800 = scalar_select %p5799, %s17, 1
        %s5801 = smul.addr %s5800, 8
        %s5802 = smul.addr %s5801, 8
        %s5803 = scalar_lea.vmem %s5, %s5802
      $region52: #{cnn_forward.2} parent=47 // pred_fallthru
        _
    $region48: #{cnn_forward.2} parent=5 // pred_fallthru
      _
  $region6: #{cnn_forward.2} parent=0 // loop_footer
    %s15 = sadd.s32 1, %s11
  $region7: #{cnn_forward.2} parent=0 // loop_footer_branch
    %10 = sbr.rel target = $region3
  $region8: #{cnn_forward.2} parent=0 // loop_exit
    _

</llo_original>
